<compile_context>
chip_gen: v5e
topology: v5e:2x2
jax: 0.10.0
libtpu: 0.0.40
codegen_flags: <defaults>
</compile_context>

<pallas_src>
import jax
import jax.numpy as jnp
from jax import lax
from jax.experimental import pallas as pl
from jax.experimental.pallas import tpu as pltpu


# TTMLayer calls build_norm_layer(channels, 'LN'), whose default eps is 1e-06
# (not torch.nn.LayerNorm's 1e-05), so 1e-6 is the faithful value.
LN_EPS = 1e-6


def _layernorm_affine(x, gamma, beta):
    mu = jnp.mean(x, axis=-1, keepdims=True)
    var = jnp.mean((x - mu) * (x - mu), axis=-1, keepdims=True)
    return (x - mu) * lax.rsqrt(var + LN_EPS) * gamma + beta


def _layernorm_noaffine(x):
    mu = jnp.mean(x, axis=-1, keepdims=True)
    var = jnp.mean((x - mu) * (x - mu), axis=-1, keepdims=True)
    return (x - mu) * lax.rsqrt(var + LN_EPS)


def _gelu_exact(x):
    # PyTorch nn.GELU() default (exact erf) — used by the pure-JAX reference.
    return 0.5 * x * (1.0 + lax.erf(x * (1.0 / jnp.sqrt(2.0).astype(x.dtype))))


def ttm_layer_kernel(x_ref, g1_ref, be1_ref, w1_ref, b1_ref, w2_ref, b2_ref, o_ref):
    x = x_ref[...].astype(jnp.float32)

    # ---- branch 1: x + TreeSSM(LN1(x)) ------------------------------------
    ln1 = _layernorm_affine(x, g1_ref[...], be1_ref[...])
    # TODO(synk): Tree_SSM not provided in the source -> identity on ln1.
    x1 = x + ln1

    # ---- branch 2: x1 + MLP(LN2(x1)) ---------------------------------------
    # LN2's affine is folded into (w1, b1) on the host: only normalize here.
    h = _layernorm_noaffine(x1)
    h1 = jnp.dot(h.astype(jnp.bfloat16), w1_ref[...],
                 preferred_element_type=jnp.float32) + b1_ref[...]
    h1 = jax.nn.gelu(h1, approximate=True)          # tanh form -> EUP slot
    y = jnp.dot(h1.astype(jnp.bfloat16), w2_ref[...],
                preferred_element_type=jnp.float32) + b2_ref[...]

    o_ref[...] = (x1 + y).astype(o_ref.dtype)


def _vmem_limit_bytes(tile_m, C, Hd):
    tok = tile_m * C * 4                     # one f32 token tile
    weights = (C * Hd + Hd * C) * 2          # bf16 weight matrices (single copy)
    hidden = tile_m * Hd * 4                 # fc1 activation tile (f32)
    need = 4 * tok + 2 * weights + 2 * hidden + (2 << 20)
    # generous headroom, but never below the v6e/v7x scoped default nor above
    # v7x's 64 MiB physical VMEM
    return int(min(max(2 * need, 32 << 20), 64 << 20))


def ttm_layer_forward(x_nhwc, params, *, tile_m=512):
    """x_nhwc: (B, H, W, C) channels_last float32."""
    B, H, W, C = x_nhwc.shape
    N = B * H * W
    Hd = params["fc1_w"].shape[1]

    # ---- host-side prep: fold LN2 affine into fc1, cast weights to bf16 -----
    g2 = params["ln2_g"]                      # (1, C)
    b2v = params["ln2_b"]                     # (1, C)
    w1_fold = (g2.reshape(C, 1) * params["fc1_w"]).astype(jnp.bfloat16)   # (C, Hd)
    b1_fold = (params["fc1_b"] + b2v @ params["fc1_w"]).astype(jnp.float32)  # (1, Hd)
    w2_bf16 = params["fc2_w"].astype(jnp.bfloat16)                        # (Hd, C)
    b2_f32 = params["fc2_b"].astype(jnp.float32)                          # (1, C)

    # ---- pad token count to a tile multiple (no divisibility requirement) ---
    n_tiles = pl.cdiv(N, tile_m)
    N_pad = n_tiles * tile_m
    x_tok = x_nhwc.reshape(N, C)
    if N_pad != N:
        x_tok = jnp.pad(x_tok, ((0, N_pad - N), (0, 0)))

    full = lambda shape: pl.BlockSpec(shape, lambda i: (0, 0))

    cost = pl.CostEstimate(
        flops=int(4 * N_pad * C * Hd),                       # two matmuls
        transcendentals=int(N_pad * Hd + 2 * N_pad),         # gelu + 2 rsqrt
        bytes_accessed=int(2 * N_pad * C * 4                 # x in + out
                           + 2 * C * Hd * 2                  # bf16 weights
                           + (Hd + 3 * C) * 4),              # biases / LN params
    )

    out = pl.pallas_call(
        ttm_layer_kernel,
        out_shape=jax.ShapeDtypeStruct((N_pad, C), x_tok.dtype),
        grid_spec=pltpu.PrefetchScalarGridSpec(
            num_scalar_prefetch=0,
            grid=(n_tiles,),
            in_specs=[
                pl.BlockSpec((tile_m, C), lambda i: (i, 0)),   # x tokens
                full((1, C)),                                  # LN1 gamma
                full((1, C)),                                  # LN1 beta
                full((C, Hd)),                                 # fc1 weight (bf16, LN2-folded)
                full((1, Hd)),                                 # fc1 bias   (f32, LN2-folded)
                full((Hd, C)),                                 # fc2 weight (bf16)
                full((1, C)),                                  # fc2 bias   (f32)
            ],
            out_specs=pl.BlockSpec((tile_m, C), lambda i: (i, 0)),
        ),
        compiler_params=pltpu.CompilerParams(
            dimension_semantics=("parallel",),
            vmem_limit_bytes=_vmem_limit_bytes(tile_m, C, Hd)),
        cost_estimate=cost,
    )(x_tok,
      params["ln1_g"], params["ln1_b"],
      w1_fold, b1_fold, w2_bf16, b2_f32)

    return out[:N].reshape(B, H, W, C)


def init_params(key, channels, mlp_ratio=4.0):
    hidden = int(channels * mlp_ratio)
    k1, k2, k3, k4 = jax.random.split(key, 4)
    params = {
        # LayerNorm: torch default init weight=1, bias=0
        "ln1_g": jnp.ones((1, channels), jnp.float32),
        "ln1_b": jnp.zeros((1, channels), jnp.float32),
        "ln2_g": jnp.ones((1, channels), jnp.float32),
        "ln2_b": jnp.zeros((1, channels), jnp.float32),
        # Linear layers: deterministic small random init (stored as (in, out))
        "fc1_w": (jax.random.normal(k1, (channels, hidden), jnp.float32) * 0.02),
        "fc1_b": (jax.random.normal(k2, (1, hidden), jnp.float32) * 0.02),
        "fc2_w": (jax.random.normal(k3, (hidden, channels), jnp.float32) * 0.02),
        "fc2_b": (jax.random.normal(k4, (1, channels), jnp.float32) * 0.02),
    }
    return params


def ttm_layer_reference(x_nhwc, params):
    """Pure-JAX f32 reference of the PyTorch forward (Tree_SSM = identity)."""
    x = x_nhwc.astype(jnp.float32)
    ln1 = _layernorm_affine(x, params["ln1_g"][0], params["ln1_b"][0])
    x1 = x + ln1
    h = _layernorm_affine(x1, params["ln2_g"][0], params["ln2_b"][0])
    h1 = _gelu_exact(h @ params["fc1_w"] + params["fc1_b"][0])
    y = h1 @ params["fc2_w"] + params["fc2_b"][0]
    return x1 + y


if __name__ == "__main__":
    key = jax.random.PRNGKey(0)
    kx, kp = jax.random.split(key)

    # channels_last input; C=128 keeps the lane dim fully dense,
    # N = 2*20*16 = 640 tokens exercises padding (-> 1024) and 2 grid steps.
    B, H, W, C = 2, 20, 16, 128
    x = jax.random.normal(kx, (B, H, W, C), jnp.float32)
    params = init_params(kp, C, mlp_ratio=4.0)

    out = ttm_layer_forward(x, params, tile_m=512)
    out = jax.block_until_ready(out)

    ref = ttm_layer_reference(x, params)
    assert out.shape == (B, H, W, C)
    # bf16 matmuls + tanh-GELU vs. the exact f32/erf reference -> loosened tolerance.
    assert jnp.allclose(out, ref, atol=1e-2, rtol=1e-2), "mismatch vs JAX reference"

    print("KERNEL_OK")
</pallas_src>

<mosaic_0001>
module attributes {stable_mosaic.version = 11 : i64} {
  func.func @ttm_layer_kernel(%arg0: i32, %arg1: memref<512x128xf32, #tpu.memory_space<vmem>>, %arg2: memref<1x128xf32, #tpu.memory_space<vmem>>, %arg3: memref<1x128xf32, #tpu.memory_space<vmem>>, %arg4: memref<128x512xbf16, #tpu.memory_space<vmem>>, %arg5: memref<1x512xf32, #tpu.memory_space<vmem>>, %arg6: memref<512x128xbf16, #tpu.memory_space<vmem>>, %arg7: memref<1x128xf32, #tpu.memory_space<vmem>>, %arg8: memref<512x128xf32, #tpu.memory_space<vmem>>) attributes {dimension_semantics = [#tpu.dimension_semantics<parallel>], iteration_bounds = array<i64: 2>, scalar_prefetch = 0 : i64, scratch_operands = 0 : i64, tpu.core_type = #tpu.core_type<tc>, window_params = [{transform_indices = @transform_0, window_bounds = array<i64: 512, 128>}, {pipeline_mode = #tpu.pipeline_mode<synchronous>, transform_indices = @transform_1, window_bounds = array<i64: 1, 128>}, {pipeline_mode = #tpu.pipeline_mode<synchronous>, transform_indices = @transform_2, window_bounds = array<i64: 1, 128>}, {pipeline_mode = #tpu.pipeline_mode<synchronous>, transform_indices = @transform_3, window_bounds = array<i64: 128, 512>}, {pipeline_mode = #tpu.pipeline_mode<synchronous>, transform_indices = @transform_4, window_bounds = array<i64: 1, 512>}, {pipeline_mode = #tpu.pipeline_mode<synchronous>, transform_indices = @transform_5, window_bounds = array<i64: 512, 128>}, {pipeline_mode = #tpu.pipeline_mode<synchronous>, transform_indices = @transform_6, window_bounds = array<i64: 1, 128>}, {transform_indices = @transform_7, window_bounds = array<i64: 512, 128>}]} {
    %c0 = arith.constant 0 : index
    %c0_0 = arith.constant 0 : index
    %0 = vector.load %arg1[%c0, %c0_0] : memref<512x128xf32, #tpu.memory_space<vmem>>, vector<512x128xf32>
    %c0_1 = arith.constant 0 : index
    %c0_2 = arith.constant 0 : index
    %1 = vector.load %arg2[%c0_1, %c0_2] : memref<1x128xf32, #tpu.memory_space<vmem>>, vector<1x128xf32>
    %c0_3 = arith.constant 0 : index
    %c0_4 = arith.constant 0 : index
    %2 = vector.load %arg3[%c0_3, %c0_4] : memref<1x128xf32, #tpu.memory_space<vmem>>, vector<1x128xf32>
    %cst = arith.constant dense<0.000000e+00> : vector<512xf32>
    %3 = vector.multi_reduction <add>, %0, %cst [1] : vector<512x128xf32> to vector<512xf32>
    %4 = vector.shape_cast %3 : vector<512xf32> to vector<512x1xf32>
    %cst_5 = arith.constant 1.280000e+02 : f32
    %5 = vector.broadcast %cst_5 : f32 to vector<512x1xf32>
    %6 = arith.divf %4, %5 : vector<512x1xf32>
    %7 = vector.broadcast %6 : vector<512x1xf32> to vector<512x128xf32>
    %8 = arith.subf %0, %7 : vector<512x128xf32>
    %9 = vector.broadcast %6 : vector<512x1xf32> to vector<512x128xf32>
    %10 = arith.subf %0, %9 : vector<512x128xf32>
    %11 = arith.mulf %8, %10 : vector<512x128xf32>
    %cst_6 = arith.constant dense<0.000000e+00> : vector<512xf32>
    %12 = vector.multi_reduction <add>, %11, %cst_6 [1] : vector<512x128xf32> to vector<512xf32>
    %13 = vector.shape_cast %12 : vector<512xf32> to vector<512x1xf32>
    %cst_7 = arith.constant 1.280000e+02 : f32
    %14 = vector.broadcast %cst_7 : f32 to vector<512x1xf32>
    %15 = arith.divf %13, %14 : vector<512x1xf32>
    %16 = vector.broadcast %6 : vector<512x1xf32> to vector<512x128xf32>
    %17 = arith.subf %0, %16 : vector<512x128xf32>
    %cst_8 = arith.constant 9.99999997E-7 : f32
    %18 = vector.broadcast %cst_8 : f32 to vector<512x1xf32>
    %19 = arith.addf %15, %18 : vector<512x1xf32>
    %20 = math.rsqrt %19 : vector<512x1xf32>
    %21 = vector.broadcast %20 : vector<512x1xf32> to vector<512x128xf32>
    %22 = arith.mulf %17, %21 : vector<512x128xf32>
    %23 = vector.broadcast %1 : vector<1x128xf32> to vector<512x128xf32>
    %24 = arith.mulf %22, %23 : vector<512x128xf32>
    %25 = vector.broadcast %2 : vector<1x128xf32> to vector<512x128xf32>
    %26 = arith.addf %24, %25 : vector<512x128xf32>
    %27 = arith.addf %0, %26 : vector<512x128xf32>
    %cst_9 = arith.constant dense<0.000000e+00> : vector<512xf32>
    %28 = vector.multi_reduction <add>, %27, %cst_9 [1] : vector<512x128xf32> to vector<512xf32>
    %29 = vector.shape_cast %28 : vector<512xf32> to vector<512x1xf32>
    %cst_10 = arith.constant 1.280000e+02 : f32
    %30 = vector.broadcast %cst_10 : f32 to vector<512x1xf32>
    %31 = arith.divf %29, %30 : vector<512x1xf32>
    %32 = vector.broadcast %31 : vector<512x1xf32> to vector<512x128xf32>
    %33 = arith.subf %27, %32 : vector<512x128xf32>
    %34 = vector.broadcast %31 : vector<512x1xf32> to vector<512x128xf32>
    %35 = arith.subf %27, %34 : vector<512x128xf32>
    %36 = arith.mulf %33, %35 : vector<512x128xf32>
    %cst_11 = arith.constant dense<0.000000e+00> : vector<512xf32>
    %37 = vector.multi_reduction <add>, %36, %cst_11 [1] : vector<512x128xf32> to vector<512xf32>
    %38 = vector.shape_cast %37 : vector<512xf32> to vector<512x1xf32>
    %cst_12 = arith.constant 1.280000e+02 : f32
    %39 = vector.broadcast %cst_12 : f32 to vector<512x1xf32>
    %40 = arith.divf %38, %39 : vector<512x1xf32>
    %41 = vector.broadcast %31 : vector<512x1xf32> to vector<512x128xf32>
    %42 = arith.subf %27, %41 : vector<512x128xf32>
    %cst_13 = arith.constant 9.99999997E-7 : f32
    %43 = vector.broadcast %cst_13 : f32 to vector<512x1xf32>
    %44 = arith.addf %40, %43 : vector<512x1xf32>
    %45 = math.rsqrt %44 : vector<512x1xf32>
    %46 = vector.broadcast %45 : vector<512x1xf32> to vector<512x128xf32>
    %47 = arith.mulf %42, %46 : vector<512x128xf32>
    %48 = arith.truncf %47 : vector<512x128xf32> to vector<512x128xbf16>
    %c0_14 = arith.constant 0 : index
    %c0_15 = arith.constant 0 : index
    %49 = vector.load %arg4[%c0_14, %c0_15] : memref<128x512xbf16, #tpu.memory_space<vmem>>, vector<128x512xbf16>
    %cst_16 = arith.constant dense<0.000000e+00> : vector<512x512xf32>
    %50 = tpu.matmul %48, %49, %cst_16 {dimension_numbers = #tpu.dot_dimension_numbers<[1], [0], [0], [1], [0, 0, 1, 1], [], []>} : vector<512x128xbf16>, vector<128x512xbf16>, vector<512x512xf32> -> vector<512x512xf32>
    %c0_17 = arith.constant 0 : index
    %c0_18 = arith.constant 0 : index
    %51 = vector.load %arg5[%c0_17, %c0_18] : memref<1x512xf32, #tpu.memory_space<vmem>>, vector<1x512xf32>
    %52 = vector.broadcast %51 : vector<1x512xf32> to vector<512x512xf32>
    %53 = arith.addf %50, %52 : vector<512x512xf32>
    %54 = arith.mulf %53, %53 : vector<512x512xf32>
    %55 = arith.mulf %53, %54 : vector<512x512xf32>
    %cst_19 = arith.constant 4.471500e-02 : f32
    %56 = vector.broadcast %cst_19 : f32 to vector<512x512xf32>
    %57 = arith.mulf %56, %55 : vector<512x512xf32>
    %58 = arith.addf %53, %57 : vector<512x512xf32>
    %cst_20 = arith.constant 0.797884583 : f32
    %59 = vector.broadcast %cst_20 : f32 to vector<512x512xf32>
    %60 = arith.mulf %59, %58 : vector<512x512xf32>
    %61 = math.tanh %60 : vector<512x512xf32>
    %cst_21 = arith.constant 1.000000e+00 : f32
    %62 = vector.broadcast %cst_21 : f32 to vector<512x512xf32>
    %63 = arith.addf %62, %61 : vector<512x512xf32>
    %cst_22 = arith.constant 5.000000e-01 : f32
    %64 = vector.broadcast %cst_22 : f32 to vector<512x512xf32>
    %65 = arith.mulf %64, %63 : vector<512x512xf32>
    %66 = arith.mulf %53, %65 : vector<512x512xf32>
    %67 = arith.truncf %66 : vector<512x512xf32> to vector<512x512xbf16>
    %c0_23 = arith.constant 0 : index
    %c0_24 = arith.constant 0 : index
    %68 = vector.load %arg6[%c0_23, %c0_24] : memref<512x128xbf16, #tpu.memory_space<vmem>>, vector<512x128xbf16>
    %cst_25 = arith.constant dense<0.000000e+00> : vector<512x128xf32>
    %69 = tpu.matmul %67, %68, %cst_25 {dimension_numbers = #tpu.dot_dimension_numbers<[1], [0], [0], [1], [0, 0, 1, 1], [], []>} : vector<512x512xbf16>, vector<512x128xbf16>, vector<512x128xf32> -> vector<512x128xf32>
    %c0_26 = arith.constant 0 : index
    %c0_27 = arith.constant 0 : index
    %70 = vector.load %arg7[%c0_26, %c0_27] : memref<1x128xf32, #tpu.memory_space<vmem>>, vector<1x128xf32>
    %71 = vector.broadcast %70 : vector<1x128xf32> to vector<512x128xf32>
    %72 = arith.addf %69, %71 : vector<512x128xf32>
    %73 = arith.addf %27, %72 : vector<512x128xf32>
    %c0_28 = arith.constant 0 : index
    %c0_29 = arith.constant 0 : index
    %74 = vector.load %arg8[%c0_28, %c0_29] : memref<512x128xf32, #tpu.memory_space<vmem>>, vector<512x128xf32>
    tpu.vector_store %arg8[%c0_28, %c0_29], %73 {strides = array<i32>} : memref<512x128xf32, #tpu.memory_space<vmem>>, vector<512x128xf32>,
    return
  }
  func.func @transform_0(%arg0: i32) -> (i32, i32) {
    %c0_i32 = arith.constant 0 : i32
    %c0_i32_0 = arith.constant 0 : i32
    return %arg0, %c0_i32 : i32, i32
  }
  func.func @transform_1(%arg0: i32) -> (i32, i32) {
    %c0_i32 = arith.constant 0 : i32
    %c0_i32_0 = arith.constant 0 : i32
    %c0_i32_1 = arith.constant 0 : i32
    return %c0_i32, %c0_i32_0 : i32, i32
  }
  func.func @transform_2(%arg0: i32) -> (i32, i32) {
    %c0_i32 = arith.constant 0 : i32
    %c0_i32_0 = arith.constant 0 : i32
    %c0_i32_1 = arith.constant 0 : i32
    return %c0_i32, %c0_i32_0 : i32, i32
  }
  func.func @transform_3(%arg0: i32) -> (i32, i32) {
    %c0_i32 = arith.constant 0 : i32
    %c0_i32_0 = arith.constant 0 : i32
    %c0_i32_1 = arith.constant 0 : i32
    return %c0_i32, %c0_i32_0 : i32, i32
  }
  func.func @transform_4(%arg0: i32) -> (i32, i32) {
    %c0_i32 = arith.constant 0 : i32
    %c0_i32_0 = arith.constant 0 : i32
    %c0_i32_1 = arith.constant 0 : i32
    return %c0_i32, %c0_i32_0 : i32, i32
  }
  func.func @transform_5(%arg0: i32) -> (i32, i32) {
    %c0_i32 = arith.constant 0 : i32
    %c0_i32_0 = arith.constant 0 : i32
    %c0_i32_1 = arith.constant 0 : i32
    return %c0_i32, %c0_i32_0 : i32, i32
  }
  func.func @transform_6(%arg0: i32) -> (i32, i32) {
    %c0_i32 = arith.constant 0 : i32
    %c0_i32_0 = arith.constant 0 : i32
    %c0_i32_1 = arith.constant 0 : i32
    return %c0_i32, %c0_i32_0 : i32, i32
  }
  func.func @transform_7(%arg0: i32) -> (i32, i32) {
    %c0_i32 = arith.constant 0 : i32
    %c0_i32_0 = arith.constant 0 : i32
    return %arg0, %c0_i32 : i32, i32
  }
}

</mosaic_0001>

<llo_original>
// kernel: tpu_custom_call.1
$region0: #{tpu_custom_call.1}
  #allocation0 [shape = 'u32[]', space=smem, size = 0x4, offset = 0x4, fixed_abs, tag = 'smem constant byte address 0x4 - core index']
  #allocation1 [shape = 'u32[72,128]{1,0:T(1,128)}', space=vmem, size = 0x9000, scoped, tag = 'internal scratch']
  %s0 = inlined_call_operand.hbm [shape: f32[1024,128], index: 0, kind: input, shape index: {}]
  %s1 = inlined_call_operand.hbm [shape: f32[1,128], index: 1, kind: input, shape index: {}]
  %s2 = inlined_call_operand.vmem [shape: f32[1,128], index: 2, kind: input, shape index: {}]
  %s3 = inlined_call_operand.hbm [shape: bf16[128,512], index: 3, kind: input, shape index: {}]
  %s4 = inlined_call_operand.hbm [shape: f32[1,512], index: 4, kind: input, shape index: {}]
  %s5 = inlined_call_operand.hbm [shape: bf16[512,128], index: 5, kind: input, shape index: {}]
  %s6 = inlined_call_operand.vmem [shape: f32[1,128], index: 6, kind: input, shape index: {}]
  %s7 = inlined_call_operand.hbm [shape: f32[1024,128], index: 7, kind: output, shape index: {}]
  %s8 = sld [smem:[#allocation0]]
  $region81: #{tpu_custom_call.1} parent=0
    _
  %s10 = ssub.s32 1, %s8
  %s11 = scalar_select 0, %s10, %s8
  $region1: #{tpu_custom_call.1} parent=0
    #allocation2 [shape = 'u8[524288]{0}', space=vmem, size = 0x80000, scoped, tag = 'input window, operand 0']
    #allocation3 [shape = 's32[2]{0}', space=sflag, size = 0x8, scoped, tag = 'scoped memory for tpu_custom_call.1']
    #allocation4 [shape = 's32[2]{0}', space=sflag, size = 0x8, scoped, tag = 'scoped memory for tpu_custom_call.1']
    #allocation5 [shape = 'u8[512]{0}', space=vmem, size = 0x400, scoped, tag = 'input window, operand 1, single buffered']
    #allocation6 [shape = 's32[1]{0}', space=sflag, size = 0x4, scoped, tag = 'scoped memory for tpu_custom_call.1']
    #allocation7 [shape = 'u8[131072]{0}', space=vmem, size = 0x20000, scoped, tag = 'input window, operand 3, single buffered']
    #allocation8 [shape = 'u8[2048]{0}', space=vmem, size = 0x800, scoped, tag = 'input window, operand 4, single buffered']
    #allocation9 [shape = 's32[1]{0}', space=sflag, size = 0x4, scoped, tag = 'scoped memory for tpu_custom_call.1']
    #allocation10 [shape = 'u8[131072]{0}', space=vmem, size = 0x20000, scoped, tag = 'input window, operand 5, single buffered']
    #allocation11 [shape = 'u8[524288]{0}', space=vmem, size = 0x80000, scoped, tag = 'output window, operand 0']
    %12 = vsyncpa [#allocation3], 0
    %s13 = scalar_lea.sflag [#allocation3], 1
    %14 = vsyncpa %s13, 0
    %15 = vsyncpa [#allocation6], 0
    %16 = vsyncpa [#allocation9], 0
    %17 = vsyncpa [#allocation4], 0
    %s18 = scalar_lea.sflag [#allocation4], 1
    %19 = vsyncpa %s18, 0
    loop: start=0, step=1, limit=4
    $region2: #{tpu_custom_call.1} parent=1 // loop_pre_header
      _
    $region3: #{tpu_custom_call.1} parent=1 // loop_header
      %s21 = sphi 0, %s25
      %p22 = scmp.ge.s32.totalorder %s21, 4
      %s31 = sphi 0, %s33
      %s34 = sphi 0, %s31
      %s35 = sphi 0, %s34
      %s51 = sphi 0, %s35
      %s55 = sphi 0, %s55
      %s57 = sphi 0, %s55
      %s58 = sphi 0, %s57
      %s72 = sphi 0, %s58
      %s76 = sphi 0, %s76
      %s78 = sphi 0, %s76
      %s79 = sphi 0, %s78
      %s93 = sphi 0, %s79
      %s97 = sphi 0, %s97
      %s99 = sphi 0, %s97
      %s100 = sphi 0, %s99
      %s114 = sphi 0, %s100
      %s118 = sphi 0, %s118
      %s120 = sphi 0, %s118
      %s121 = sphi 0, %s120
      %s135 = sphi 0, %s121
      %s139 = sphi 0, %s139
      %s141 = sphi 0, %s139
      %s142 = sphi 0, %s141
      %s156 = sphi 0, %s142
      %s160 = sphi 0, %s160
      %s162 = sphi 0, %s160
      %s163 = sphi 0, %s162
      %s177 = sphi 0, %s163
      %s183 = sphi 0, %s185
      %s186 = sphi 0, %s183
      %s187 = sphi 0, %s186
      %s203 = sphi 0, %s187
    $region4: #{tpu_custom_call.1} parent=1 // loop_header_branch
      %24 = sbr.rel (%p22) target = $region8
    $region5: #{tpu_custom_call.1} parent=1 // loop_body
      %s26 = ssub.s32 %s21, 1
      %s27 = ssub.s32 %s21, 2
      %s28 = sadd.s32 %s21, 1
      %s29 = ssub.s32 %s21, %s28
      %p30 = scmp.eq.s32.totalorder %s29, 0
      %s32 = sadd.s32 %s31, 1
      %s33 = scalar_select %p30, %s31, %s32
      %p36 = pneg %p30
      %p37 = scmp.eq.s32.totalorder %s21, 1
      %p38 = por %p36, %p37
      %p39 = scmp.ne.s32.totalorder %s31, %s34
      %p40 = scmp.eq.s32.totalorder %s21, 0
      %p41 = por %p39, %p40
      %p42 = scmp.ne.s32.totalorder %s31, %s34
      %p43 = scmp.eq.s32.totalorder %s26, 1
      %p44 = por %p42, %p43
      %p45 = scmp.ne.s32.totalorder %s34, %s35
      %p46 = scmp.eq.s32.totalorder %s26, 0
      %p47 = por %p45, %p46
      %p48 = scmp.ne.s32.totalorder %s34, %s35
      %p49 = scmp.eq.s32.totalorder %s27, 1
      %p50 = por %p48, %p49
      %p52 = scmp.ne.s32.totalorder %s35, %s51
      %p53 = scmp.eq.s32.totalorder %s27, 0
      %p54 = por %p52, %p53
      %s56 = sadd.s32 %s55, 1
      %p59 = scmp.eq.s32.totalorder %s21, 1
      %p60 = scmp.ne.s32.totalorder %s55, %s57
      %p61 = scmp.eq.s32.totalorder %s21, 0
      %p62 = por %p60, %p61
      %p63 = scmp.ne.s32.totalorder %s55, %s57
      %p64 = scmp.eq.s32.totalorder %s26, 1
      %p65 = por %p63, %p64
      %p66 = scmp.ne.s32.totalorder %s57, %s58
      %p67 = scmp.eq.s32.totalorder %s26, 0
      %p68 = por %p66, %p67
      %p69 = scmp.ne.s32.totalorder %s57, %s58
      %p70 = scmp.eq.s32.totalorder %s27, 1
      %p71 = por %p69, %p70
      %p73 = scmp.ne.s32.totalorder %s58, %s72
      %p74 = scmp.eq.s32.totalorder %s27, 0
      %p75 = por %p73, %p74
      %s77 = sadd.s32 %s76, 1
      %p80 = scmp.eq.s32.totalorder %s21, 1
      %p81 = scmp.ne.s32.totalorder %s76, %s78
      %p82 = scmp.eq.s32.totalorder %s21, 0
      %p83 = por %p81, %p82
      %p84 = scmp.ne.s32.totalorder %s76, %s78
      %p85 = scmp.eq.s32.totalorder %s26, 1
      %p86 = por %p84, %p85
      %p87 = scmp.ne.s32.totalorder %s78, %s79
      %p88 = scmp.eq.s32.totalorder %s26, 0
      %p89 = por %p87, %p88
      %p90 = scmp.ne.s32.totalorder %s78, %s79
      %p91 = scmp.eq.s32.totalorder %s27, 1
      %p92 = por %p90, %p91
      %p94 = scmp.ne.s32.totalorder %s79, %s93
      %p95 = scmp.eq.s32.totalorder %s27, 0
      %p96 = por %p94, %p95
      %s98 = sadd.s32 %s97, 1
      %p101 = scmp.eq.s32.totalorder %s21, 1
      %p102 = scmp.ne.s32.totalorder %s97, %s99
      %p103 = scmp.eq.s32.totalorder %s21, 0
      %p104 = por %p102, %p103
      %p105 = scmp.ne.s32.totalorder %s97, %s99
      %p106 = scmp.eq.s32.totalorder %s26, 1
      %p107 = por %p105, %p106
      %p108 = scmp.ne.s32.totalorder %s99, %s100
      %p109 = scmp.eq.s32.totalorder %s26, 0
      %p110 = por %p108, %p109
      %p111 = scmp.ne.s32.totalorder %s99, %s100
      %p112 = scmp.eq.s32.totalorder %s27, 1
      %p113 = por %p111, %p112
      %p115 = scmp.ne.s32.totalorder %s100, %s114
      %p116 = scmp.eq.s32.totalorder %s27, 0
      %p117 = por %p115, %p116
      %s119 = sadd.s32 %s118, 1
      %p122 = scmp.eq.s32.totalorder %s21, 1
      %p123 = scmp.ne.s32.totalorder %s118, %s120
      %p124 = scmp.eq.s32.totalorder %s21, 0
      %p125 = por %p123, %p124
      %p126 = scmp.ne.s32.totalorder %s118, %s120
      %p127 = scmp.eq.s32.totalorder %s26, 1
      %p128 = por %p126, %p127
      %p129 = scmp.ne.s32.totalorder %s120, %s121
      %p130 = scmp.eq.s32.totalorder %s26, 0
      %p131 = por %p129, %p130
      %p132 = scmp.ne.s32.totalorder %s120, %s121
      %p133 = scmp.eq.s32.totalorder %s27, 1
      %p134 = por %p132, %p133
      %p136 = scmp.ne.s32.totalorder %s121, %s135
      %p137 = scmp.eq.s32.totalorder %s27, 0
      %p138 = por %p136, %p137
      %s140 = sadd.s32 %s139, 1
      %p143 = scmp.eq.s32.totalorder %s21, 1
      %p144 = scmp.ne.s32.totalorder %s139, %s141
      %p145 = scmp.eq.s32.totalorder %s21, 0
      %p146 = por %p144, %p145
      %p147 = scmp.ne.s32.totalorder %s139, %s141
      %p148 = scmp.eq.s32.totalorder %s26, 1
      %p149 = por %p147, %p148
      %p150 = scmp.ne.s32.totalorder %s141, %s142
      %p151 = scmp.eq.s32.totalorder %s26, 0
      %p152 = por %p150, %p151
      %p153 = scmp.ne.s32.totalorder %s141, %s142
      %p154 = scmp.eq.s32.totalorder %s27, 1
      %p155 = por %p153, %p154
      %p157 = scmp.ne.s32.totalorder %s142, %s156
      %p158 = scmp.eq.s32.totalorder %s27, 0
      %p159 = por %p157, %p158
      %s161 = sadd.s32 %s160, 1
      %p164 = scmp.eq.s32.totalorder %s21, 1
      %p165 = scmp.ne.s32.totalorder %s160, %s162
      %p166 = scmp.eq.s32.totalorder %s21, 0
      %p167 = por %p165, %p166
      %p168 = scmp.ne.s32.totalorder %s160, %s162
      %p169 = scmp.eq.s32.totalorder %s26, 1
      %p170 = por %p168, %p169
      %p171 = scmp.ne.s32.totalorder %s162, %s163
      %p172 = scmp.eq.s32.totalorder %s26, 0
      %p173 = por %p171, %p172
      %p174 = scmp.ne.s32.totalorder %s162, %s163
      %p175 = scmp.eq.s32.totalorder %s27, 1
      %p176 = por %p174, %p175
      %p178 = scmp.ne.s32.totalorder %s163, %s177
      %p179 = scmp.eq.s32.totalorder %s27, 0
      %p180 = por %p178, %p179
      %s181 = ssub.s32 %s21, %s28
      %p182 = scmp.eq.s32.totalorder %s181, 0
      %s184 = sadd.s32 %s183, 1
      %s185 = scalar_select %p182, %s183, %s184
      %p188 = pneg %p182
      %p189 = scmp.eq.s32.totalorder %s21, 1
      %p190 = por %p188, %p189
      %p191 = scmp.ne.s32.totalorder %s183, %s186
      %p192 = scmp.eq.s32.totalorder %s21, 0
      %p193 = por %p191, %p192
      %p194 = scmp.ne.s32.totalorder %s183, %s186
      %p195 = scmp.eq.s32.totalorder %s26, 1
      %p196 = por %p194, %p195
      %p197 = scmp.ne.s32.totalorder %s186, %s187
      %p198 = scmp.eq.s32.totalorder %s26, 0
      %p199 = por %p197, %p198
      %p200 = scmp.ne.s32.totalorder %s186, %s187
      %p201 = scmp.eq.s32.totalorder %s27, 1
      %p202 = por %p200, %p201
      %p204 = scmp.ne.s32.totalorder %s187, %s203
      %p205 = scmp.eq.s32.totalorder %s27, 0
      %p206 = por %p204, %p205
      %p207 = scmp.le.s32.totalorder 1, %s21
      %p208 = scmp.lt.s32.totalorder %s21, 3
      %p209 = pnand %p207, %p208
      %p210 = pneg %p209
      // Predicated region
      $region9: #{tpu_custom_call.1} parent=5 // pred_check
        _
      $region10: #{tpu_custom_call.1} parent=5 // pred_check_branch
        %212 = sbr.rel (%p209) target = $region12
      $region11: #{tpu_custom_call.1} parent=5 // pred_region
        %s213 = ssub.s32 %s21, 1
        // Predicated region
        $region13: #{tpu_custom_call.1} parent=11 // pred_check
          %p214 = pneg %p68
        $region14: #{tpu_custom_call.1} parent=11 // pred_check_branch
          %216 = sbr.rel (%p214) target = $region16
        $region15: #{tpu_custom_call.1} parent=11 // pred_region
          %218 = vsyncadd [#allocation6], 0
          %s220 = sshll.u32 %s1, 4
          %s221 = int_to_ptr.hbm [resolvable:$true] %s220
          %s222 = sshll.u32 [#allocation5], 4
          %s223 = int_to_ptr.vmem [resolvable:$true] %s222
          %225 = dma.hbm_to_vmem [thread:$0]  %s221, 16, %s223, [#allocation6]
        $region16: #{tpu_custom_call.1} parent=11 // pred_fallthru
          _
        // Predicated region
        $region17: #{tpu_custom_call.1} parent=11 // pred_check
          %p226 = pneg %p89
        $region18: #{tpu_custom_call.1} parent=11 // pred_check_branch
          %228 = sbr.rel (%p226) target = $region20
        $region19: #{tpu_custom_call.1} parent=11 // pred_region
          _
        $region20: #{tpu_custom_call.1} parent=11 // pred_fallthru
          _
        // Predicated region
        $region21: #{tpu_custom_call.1} parent=11 // pred_check
          %p229 = pneg %p110
        $region22: #{tpu_custom_call.1} parent=11 // pred_check_branch
          %231 = sbr.rel (%p229) target = $region24
        $region23: #{tpu_custom_call.1} parent=11 // pred_region
          %233 = vsyncadd [#allocation6], 0
          %s234 = sshll.u32 %s3, 4
          %s235 = int_to_ptr.hbm [resolvable:$true] %s234
          %s236 = sshll.u32 [#allocation7], 4
          %s237 = int_to_ptr.vmem [resolvable:$true] %s236
          %242 = dma.hbm_to_vmem [thread:$0]  %s235, 4096, %s237, [#allocation6], 256, 256, 16
        $region24: #{tpu_custom_call.1} parent=11 // pred_fallthru
          _
        // Predicated region
        $region25: #{tpu_custom_call.1} parent=11 // pred_check
          %p243 = pneg %p131
        $region26: #{tpu_custom_call.1} parent=11 // pred_check_branch
          %245 = sbr.rel (%p243) target = $region28
        $region27: #{tpu_custom_call.1} parent=11 // pred_region
          %247 = vsyncadd [#allocation9], 0
          %s249 = sshll.u32 %s4, 4
          %s250 = int_to_ptr.hbm [resolvable:$true] %s249
          %s251 = sshll.u32 [#allocation8], 4
          %s252 = int_to_ptr.vmem [resolvable:$true] %s251
          %254 = dma.hbm_to_vmem [thread:$0]  %s250, 64, %s252, [#allocation9]
        $region28: #{tpu_custom_call.1} parent=11 // pred_fallthru
          _
        // Predicated region
        $region29: #{tpu_custom_call.1} parent=11 // pred_check
          %p255 = pneg %p152
        $region30: #{tpu_custom_call.1} parent=11 // pred_check_branch
          %257 = sbr.rel (%p255) target = $region32
        $region31: #{tpu_custom_call.1} parent=11 // pred_region
          %259 = vsyncadd [#allocation9], 0
          %s260 = sshll.u32 %s5, 4
          %s261 = int_to_ptr.hbm [resolvable:$true] %s260
          %s262 = sshll.u32 [#allocation10], 4
          %s263 = int_to_ptr.vmem [resolvable:$true] %s262
          %268 = dma.hbm_to_vmem [thread:$0]  %s261, 4096, %s263, [#allocation9], 64, 64, 4
        $region32: #{tpu_custom_call.1} parent=11 // pred_fallthru
          _
        // Predicated region
        $region33: #{tpu_custom_call.1} parent=11 // pred_check
          %p269 = pneg %p173
        $region34: #{tpu_custom_call.1} parent=11 // pred_check_branch
          %271 = sbr.rel (%p269) target = $region36
        $region35: #{tpu_custom_call.1} parent=11 // pred_region
          _
        $region36: #{tpu_custom_call.1} parent=11 // pred_fallthru
          _
      $region12: #{tpu_custom_call.1} parent=5 // pred_fallthru
        _
      %p272 = scmp.lt.s32.totalorder %s21, 2
      // Predicated region
      $region37: #{tpu_custom_call.1} parent=5 // pred_check
        %p273 = pneg %p272
      $region38: #{tpu_custom_call.1} parent=5 // pred_check_branch
        %275 = sbr.rel (%p273) target = $region40
      $region39: #{tpu_custom_call.1} parent=5 // pred_region
        // Predicated region
        $region41: #{tpu_custom_call.1} parent=39 // pred_check
          %p276 = pneg %p41
        $region42: #{tpu_custom_call.1} parent=39 // pred_check_branch
          %278 = sbr.rel (%p276) target = $region44
        $region43: #{tpu_custom_call.1} parent=39 // pred_region
          %s279 = sand.u32 %s31, 1
          %s280 = scalar_lea.sflag [#allocation3], %s279
          %s281 = sand.u32 %s31, 1
          %s282 = smul.addr %s281, 512
          %s283 = scalar_lea.vmem [#allocation2], %s282
          %s284 = smul.u32 64, %s21
          %286 = vsyncadd %s280, 0
          %s287 = smul.addr %s284, 8
          %s288 = scalar_lea.hbm %s0, %s287
          %s289 = sshll.u32 %s288, 4
          %s290 = int_to_ptr.hbm [resolvable:$true] %s289
          %s291 = sshll.u32 %s283, 4
          %s292 = int_to_ptr.vmem [resolvable:$true] %s291
          %297 = dma.hbm_to_vmem [thread:$0]  %s290, 8192, %s292, %s280, 128, 128, 8
        $region44: #{tpu_custom_call.1} parent=39 // pred_fallthru
          _
      $region40: #{tpu_custom_call.1} parent=5 // pred_fallthru
        _
      %p298 = scmp.le.s32.totalorder 1, %s21
      %p299 = scmp.lt.s32.totalorder %s21, 3
      %p300 = pnand %p298, %p299
      %p301 = pneg %p300
      // Predicated region
      $region45: #{tpu_custom_call.1} parent=5 // pred_check
        _
      $region46: #{tpu_custom_call.1} parent=5 // pred_check_branch
        %303 = sbr.rel (%p300) target = $region48
      $region47: #{tpu_custom_call.1} parent=5 // pred_region
        %s304 = ssub.s32 %s21, 1
        %s305 = sand.u32 %s34, 1
        %s306 = scalar_lea.sflag [#allocation3], %s305
        %s307 = sand.u32 %s34, 1
        %s308 = smul.addr %s307, 512
        %s309 = scalar_lea.vmem [#allocation2], %s308
        // Predicated region
        $region49: #{tpu_custom_call.1} parent=47 // pred_check
          %p310 = pneg %p47
        $region50: #{tpu_custom_call.1} parent=47 // pred_check_branch
          %312 = sbr.rel (%p310) target = $region52
        $region51: #{tpu_custom_call.1} parent=47 // pred_region
          %314 = dma.done %s306, 8192
        $region52: #{tpu_custom_call.1} parent=47 // pred_fallthru
          _
        // Predicated region
        $region53: #{tpu_custom_call.1} parent=47 // pred_check
          %p315 = pneg %p68
        $region54: #{tpu_custom_call.1} parent=47 // pred_check_branch
          %317 = sbr.rel (%p315) target = $region56
        $region55: #{tpu_custom_call.1} parent=47 // pred_region
          %319 = dma.done [#allocation6], 16
        $region56: #{tpu_custom_call.1} parent=47 // pred_fallthru
          _
        // Predicated region
        $region57: #{tpu_custom_call.1} parent=47 // pred_check
          %p320 = pneg %p110
        $region58: #{tpu_custom_call.1} parent=47 // pred_check_branch
          %322 = sbr.rel (%p320) target = $region60
        $region59: #{tpu_custom_call.1} parent=47 // pred_region
          %324 = dma.done [#allocation6], 4096
        $region60: #{tpu_custom_call.1} parent=47 // pred_fallthru
          _
        // Predicated region
        $region61: #{tpu_custom_call.1} parent=47 // pred_check
          %p325 = pneg %p131
        $region62: #{tpu_custom_call.1} parent=47 // pred_check_branch
          %327 = sbr.rel (%p325) target = $region64
        $region63: #{tpu_custom_call.1} parent=47 // pred_region
          %329 = dma.done [#allocation9], 64
        $region64: #{tpu_custom_call.1} parent=47 // pred_fallthru
          _
        // Predicated region
        $region65: #{tpu_custom_call.1} parent=47 // pred_check
          %p330 = pneg %p152
        $region66: #{tpu_custom_call.1} parent=47 // pred_check_branch
          %332 = sbr.rel (%p330) target = $region68
        $region67: #{tpu_custom_call.1} parent=47 // pred_region
          %334 = dma.done [#allocation9], 4096
        $region68: #{tpu_custom_call.1} parent=47 // pred_fallthru
          _
        %s335 = sand.u32 %s34, 1
        %s336 = scalar_lea.sflag [#allocation3], %s335
        %s337 = sand.u32 %s34, 1
        %s338 = smul.addr %s337, 512
        %s339 = scalar_lea.vmem [#allocation2], %s338
        %p340 = pneg %p47
        %p341 = pneg %p44
        %p342 = pneg %p68
        %p343 = pneg %p65
        %p344 = pneg %p89
        %p345 = pneg %p86
        %p346 = pneg %p110
        %p347 = pneg %p107
        %p348 = pneg %p131
        %p349 = pneg %p128
        %p350 = pneg %p152
        %p351 = pneg %p149
        %p352 = pneg %p173
        %p353 = pneg %p170
        %p354 = pneg %p199
        %p355 = pneg %p196
        %s356 = sand.u32 %s186, 1
        %s357 = scalar_lea.sflag [#allocation4], %s356
        %s358 = sand.u32 %s186, 1
        %s359 = smul.addr %s358, 512
        %s360 = scalar_lea.vmem [#allocation11], %s359
        %s361 = smul.u32 64, %s26
        %s362 = smul.u32 64, %s26
        %v363 = vld [vmem:[%s309] sm:$0xff]
        %v364 = vld [vmem:[%s309 + $0x8] sm:$0xff]
        %v365 = vld [vmem:[%s309 + $0x10] sm:$0xff]
        %v366 = vld [vmem:[%s309 + $0x18] sm:$0xff]
        %v367 = vld [vmem:[%s309 + $0x20] sm:$0xff]
        %v368 = vld [vmem:[%s309 + $0x28] sm:$0xff]
        %v369 = vld [vmem:[%s309 + $0x30] sm:$0xff]
        %v370 = vld [vmem:[%s309 + $0x38] sm:$0xff]
        %v371 = vld [vmem:[%s309 + $0x40] sm:$0xff]
        %v372 = vld [vmem:[%s309 + $0x48] sm:$0xff]
        %v373 = vld [vmem:[%s309 + $0x50] sm:$0xff]
        %v374 = vld [vmem:[%s309 + $0x58] sm:$0xff]
        %v375 = vld [vmem:[%s309 + $0x60] sm:$0xff]
        %v376 = vld [vmem:[%s309 + $0x68] sm:$0xff]
        %v377 = vld [vmem:[%s309 + $0x70] sm:$0xff]
        %v378 = vld [vmem:[%s309 + $0x78] sm:$0xff]
        %v379 = vld [vmem:[%s309 + $0x80] sm:$0xff]
        %v380 = vld [vmem:[%s309 + $0x88] sm:$0xff]
        %v381 = vld [vmem:[%s309 + $0x90] sm:$0xff]
        %v382 = vld [vmem:[%s309 + $0x98] sm:$0xff]
        %v383 = vld [vmem:[%s309 + $0xa0] sm:$0xff]
        %v384 = vld [vmem:[%s309 + $0xa8] sm:$0xff]
        %v385 = vld [vmem:[%s309 + $0xb0] sm:$0xff]
        %v386 = vld [vmem:[%s309 + $0xb8] sm:$0xff]
        %v387 = vld [vmem:[%s309 + $0xc0] sm:$0xff]
        %v388 = vld [vmem:[%s309 + $0xc8] sm:$0xff]
        %v389 = vld [vmem:[%s309 + $0xd0] sm:$0xff]
        %v390 = vld [vmem:[%s309 + $0xd8] sm:$0xff]
        %v391 = vld [vmem:[%s309 + $0xe0] sm:$0xff]
        %v392 = vld [vmem:[%s309 + $0xe8] sm:$0xff]
        %v393 = vld [vmem:[%s309 + $0xf0] sm:$0xff]
        %v394 = vld [vmem:[%s309 + $0xf8] sm:$0xff]
        %v395 = vld [vmem:[%s309 + $0x100] sm:$0xff]
        %v396 = vld [vmem:[%s309 + $0x108] sm:$0xff]
        %v397 = vld [vmem:[%s309 + $0x110] sm:$0xff]
        %v398 = vld [vmem:[%s309 + $0x118] sm:$0xff]
        %v399 = vld [vmem:[%s309 + $0x120] sm:$0xff]
        %v400 = vld [vmem:[%s309 + $0x128] sm:$0xff]
        %v401 = vld [vmem:[%s309 + $0x130] sm:$0xff]
        %v402 = vld [vmem:[%s309 + $0x138] sm:$0xff]
        %v403 = vld [vmem:[%s309 + $0x140] sm:$0xff]
        %v404 = vld [vmem:[%s309 + $0x148] sm:$0xff]
        %v405 = vld [vmem:[%s309 + $0x150] sm:$0xff]
        %v406 = vld [vmem:[%s309 + $0x158] sm:$0xff]
        %v407 = vld [vmem:[%s309 + $0x160] sm:$0xff]
        %v408 = vld [vmem:[%s309 + $0x168] sm:$0xff]
        %v409 = vld [vmem:[%s309 + $0x170] sm:$0xff]
        %v410 = vld [vmem:[%s309 + $0x178] sm:$0xff]
        %v411 = vld [vmem:[%s309 + $0x180] sm:$0xff]
        %v412 = vld [vmem:[%s309 + $0x188] sm:$0xff]
        %v413 = vld [vmem:[%s309 + $0x190] sm:$0xff]
        %v414 = vld [vmem:[%s309 + $0x198] sm:$0xff]
        %v415 = vld [vmem:[%s309 + $0x1a0] sm:$0xff]
        %v416 = vld [vmem:[%s309 + $0x1a8] sm:$0xff]
        %v417 = vld [vmem:[%s309 + $0x1b0] sm:$0xff]
        %v418 = vld [vmem:[%s309 + $0x1b8] sm:$0xff]
        %v419 = vld [vmem:[%s309 + $0x1c0] sm:$0xff]
        %v420 = vld [vmem:[%s309 + $0x1c8] sm:$0xff]
        %v421 = vld [vmem:[%s309 + $0x1d0] sm:$0xff]
        %v422 = vld [vmem:[%s309 + $0x1d8] sm:$0xff]
        %v423 = vld [vmem:[%s309 + $0x1e0] sm:$0xff]
        %v424 = vld [vmem:[%s309 + $0x1e8] sm:$0xff]
        %v425 = vld [vmem:[%s309 + $0x1f0] sm:$0xff]
        %v426 = vld [vmem:[%s309 + $0x1f8] sm:$0xff]
        %v427 = vld [vmem:[#allocation5] sm:$0x1]
        %v428 = vld [vmem:[%s2] sm:$0x1]
        %429 = vadd.xlane.f32.xlu0 %v363
        %v430 = vpop.xlane.xlu0 %429
        %431 = vadd.xlane.f32.xlu0 %v364
        %v432 = vpop.xlane.xlu0 %431
        %433 = vadd.xlane.f32.xlu0 %v365
        %v434 = vpop.xlane.xlu0 %433
        %435 = vadd.xlane.f32.xlu0 %v366
        %v436 = vpop.xlane.xlu0 %435
        %437 = vadd.xlane.f32.xlu0 %v367
        %v438 = vpop.xlane.xlu0 %437
        %439 = vadd.xlane.f32.xlu0 %v368
        %v440 = vpop.xlane.xlu0 %439
        %441 = vadd.xlane.f32.xlu0 %v369
        %v442 = vpop.xlane.xlu0 %441
        %443 = vadd.xlane.f32.xlu0 %v370
        %v444 = vpop.xlane.xlu0 %443
        %445 = vadd.xlane.f32.xlu0 %v371
        %v446 = vpop.xlane.xlu0 %445
        %447 = vadd.xlane.f32.xlu0 %v372
        %v448 = vpop.xlane.xlu0 %447
        %449 = vadd.xlane.f32.xlu0 %v373
        %v450 = vpop.xlane.xlu0 %449
        %451 = vadd.xlane.f32.xlu0 %v374
        %v452 = vpop.xlane.xlu0 %451
        %453 = vadd.xlane.f32.xlu0 %v375
        %v454 = vpop.xlane.xlu0 %453
        %455 = vadd.xlane.f32.xlu0 %v376
        %v456 = vpop.xlane.xlu0 %455
        %457 = vadd.xlane.f32.xlu0 %v377
        %v458 = vpop.xlane.xlu0 %457
        %459 = vadd.xlane.f32.xlu0 %v378
        %v460 = vpop.xlane.xlu0 %459
        %461 = vadd.xlane.f32.xlu0 %v379
        %v462 = vpop.xlane.xlu0 %461
        %463 = vadd.xlane.f32.xlu0 %v380
        %v464 = vpop.xlane.xlu0 %463
        %465 = vadd.xlane.f32.xlu0 %v381
        %v466 = vpop.xlane.xlu0 %465
        %467 = vadd.xlane.f32.xlu0 %v382
        %v468 = vpop.xlane.xlu0 %467
        %469 = vadd.xlane.f32.xlu0 %v383
        %v470 = vpop.xlane.xlu0 %469
        %471 = vadd.xlane.f32.xlu0 %v384
        %v472 = vpop.xlane.xlu0 %471
        %473 = vadd.xlane.f32.xlu0 %v385
        %v474 = vpop.xlane.xlu0 %473
        %475 = vadd.xlane.f32.xlu0 %v386
        %v476 = vpop.xlane.xlu0 %475
        %477 = vadd.xlane.f32.xlu0 %v387
        %v478 = vpop.xlane.xlu0 %477
        %479 = vadd.xlane.f32.xlu0 %v388
        %v480 = vpop.xlane.xlu0 %479
        %481 = vadd.xlane.f32.xlu0 %v389
        %v482 = vpop.xlane.xlu0 %481
        %483 = vadd.xlane.f32.xlu0 %v390
        %v484 = vpop.xlane.xlu0 %483
        %485 = vadd.xlane.f32.xlu0 %v391
        %v486 = vpop.xlane.xlu0 %485
        %487 = vadd.xlane.f32.xlu0 %v392
        %v488 = vpop.xlane.xlu0 %487
        %489 = vadd.xlane.f32.xlu0 %v393
        %v490 = vpop.xlane.xlu0 %489
        %491 = vadd.xlane.f32.xlu0 %v394
        %v492 = vpop.xlane.xlu0 %491
        %493 = vadd.xlane.f32.xlu0 %v395
        %v494 = vpop.xlane.xlu0 %493
        %495 = vadd.xlane.f32.xlu0 %v396
        %v496 = vpop.xlane.xlu0 %495
        %497 = vadd.xlane.f32.xlu0 %v397
        %v498 = vpop.xlane.xlu0 %497
        %499 = vadd.xlane.f32.xlu0 %v398
        %v500 = vpop.xlane.xlu0 %499
        %501 = vadd.xlane.f32.xlu0 %v399
        %v502 = vpop.xlane.xlu0 %501
        %503 = vadd.xlane.f32.xlu0 %v400
        %v504 = vpop.xlane.xlu0 %503
        %505 = vadd.xlane.f32.xlu0 %v401
        %v506 = vpop.xlane.xlu0 %505
        %507 = vadd.xlane.f32.xlu0 %v402
        %v508 = vpop.xlane.xlu0 %507
        %509 = vadd.xlane.f32.xlu0 %v403
        %v510 = vpop.xlane.xlu0 %509
        %511 = vadd.xlane.f32.xlu0 %v404
        %v512 = vpop.xlane.xlu0 %511
        %513 = vadd.xlane.f32.xlu0 %v405
        %v514 = vpop.xlane.xlu0 %513
        %515 = vadd.xlane.f32.xlu0 %v406
        %v516 = vpop.xlane.xlu0 %515
        %517 = vadd.xlane.f32.xlu0 %v407
        %v518 = vpop.xlane.xlu0 %517
        %519 = vadd.xlane.f32.xlu0 %v408
        %v520 = vpop.xlane.xlu0 %519
        %521 = vadd.xlane.f32.xlu0 %v409
        %v522 = vpop.xlane.xlu0 %521
        %523 = vadd.xlane.f32.xlu0 %v410
        %v524 = vpop.xlane.xlu0 %523
        %525 = vadd.xlane.f32.xlu0 %v411
        %v526 = vpop.xlane.xlu0 %525
        %527 = vadd.xlane.f32.xlu0 %v412
        %v528 = vpop.xlane.xlu0 %527
        %529 = vadd.xlane.f32.xlu0 %v413
        %v530 = vpop.xlane.xlu0 %529
        %531 = vadd.xlane.f32.xlu0 %v414
        %v532 = vpop.xlane.xlu0 %531
        %533 = vadd.xlane.f32.xlu0 %v415
        %v534 = vpop.xlane.xlu0 %533
        %535 = vadd.xlane.f32.xlu0 %v416
        %v536 = vpop.xlane.xlu0 %535
        %537 = vadd.xlane.f32.xlu0 %v417
        %v538 = vpop.xlane.xlu0 %537
        %539 = vadd.xlane.f32.xlu0 %v418
        %v540 = vpop.xlane.xlu0 %539
        %541 = vadd.xlane.f32.xlu0 %v419
        %v542 = vpop.xlane.xlu0 %541
        %543 = vadd.xlane.f32.xlu0 %v420
        %v544 = vpop.xlane.xlu0 %543
        %545 = vadd.xlane.f32.xlu0 %v421
        %v546 = vpop.xlane.xlu0 %545
        %547 = vadd.xlane.f32.xlu0 %v422
        %v548 = vpop.xlane.xlu0 %547
        %549 = vadd.xlane.f32.xlu0 %v423
        %v550 = vpop.xlane.xlu0 %549
        %551 = vadd.xlane.f32.xlu0 %v424
        %v552 = vpop.xlane.xlu0 %551
        %553 = vadd.xlane.f32.xlu0 %v425
        %v554 = vpop.xlane.xlu0 %553
        %555 = vadd.xlane.f32.xlu0 %v426
        %v556 = vpop.xlane.xlu0 %555
        %v557 = vrcp.pop 128.0
        %v558 = vmul.f32 128.0, %v557
        %v559 = vsub.f32 1.0, %v558
        %v560 = vmul.f32 %v557, %v559
        %v561 = vadd.f32 %v557, %v560
        %vm562 = vweird.f32 %v557
        %v563 = vsel %vm562, %v557, %v561
        %v564 = vmul.f32 %v430, %v563
        %v565 = vmul.f32 %v432, %v563
        %v566 = vmul.f32 %v434, %v563
        %v567 = vmul.f32 %v436, %v563
        %v568 = vmul.f32 %v438, %v563
        %v569 = vmul.f32 %v440, %v563
        %v570 = vmul.f32 %v442, %v563
        %v571 = vmul.f32 %v444, %v563
        %v572 = vmul.f32 %v446, %v563
        %v573 = vmul.f32 %v448, %v563
        %v574 = vmul.f32 %v450, %v563
        %v575 = vmul.f32 %v452, %v563
        %v576 = vmul.f32 %v454, %v563
        %v577 = vmul.f32 %v456, %v563
        %v578 = vmul.f32 %v458, %v563
        %v579 = vmul.f32 %v460, %v563
        %v580 = vmul.f32 %v462, %v563
        %v581 = vmul.f32 %v464, %v563
        %v582 = vmul.f32 %v466, %v563
        %v583 = vmul.f32 %v468, %v563
        %v584 = vmul.f32 %v470, %v563
        %v585 = vmul.f32 %v472, %v563
        %v586 = vmul.f32 %v474, %v563
        %v587 = vmul.f32 %v476, %v563
        %v588 = vmul.f32 %v478, %v563
        %v589 = vmul.f32 %v480, %v563
        %v590 = vmul.f32 %v482, %v563
        %v591 = vmul.f32 %v484, %v563
        %v592 = vmul.f32 %v486, %v563
        %v593 = vmul.f32 %v488, %v563
        %v594 = vmul.f32 %v490, %v563
        %v595 = vmul.f32 %v492, %v563
        %v596 = vmul.f32 %v494, %v563
        %v597 = vmul.f32 %v496, %v563
        %v598 = vmul.f32 %v498, %v563
        %v599 = vmul.f32 %v500, %v563
        %v600 = vmul.f32 %v502, %v563
        %v601 = vmul.f32 %v504, %v563
        %v602 = vmul.f32 %v506, %v563
        %v603 = vmul.f32 %v508, %v563
        %v604 = vmul.f32 %v510, %v563
        %v605 = vmul.f32 %v512, %v563
        %v606 = vmul.f32 %v514, %v563
        %v607 = vmul.f32 %v516, %v563
        %v608 = vmul.f32 %v518, %v563
        %v609 = vmul.f32 %v520, %v563
        %v610 = vmul.f32 %v522, %v563
        %v611 = vmul.f32 %v524, %v563
        %v612 = vmul.f32 %v526, %v563
        %v613 = vmul.f32 %v528, %v563
        %v614 = vmul.f32 %v530, %v563
        %v615 = vmul.f32 %v532, %v563
        %v616 = vmul.f32 %v534, %v563
        %v617 = vmul.f32 %v536, %v563
        %v618 = vmul.f32 %v538, %v563
        %v619 = vmul.f32 %v540, %v563
        %v620 = vmul.f32 %v542, %v563
        %v621 = vmul.f32 %v544, %v563
        %v622 = vmul.f32 %v546, %v563
        %v623 = vmul.f32 %v548, %v563
        %v624 = vmul.f32 %v550, %v563
        %v625 = vmul.f32 %v552, %v563
        %v626 = vmul.f32 %v554, %v563
        %v627 = vmul.f32 %v556, %v563
        %v628 = vsub.f32 %v363, %v564
        %v629 = vsub.f32 %v364, %v565
        %v630 = vsub.f32 %v365, %v566
        %v631 = vsub.f32 %v366, %v567
        %v632 = vsub.f32 %v367, %v568
        %v633 = vsub.f32 %v368, %v569
        %v634 = vsub.f32 %v369, %v570
        %v635 = vsub.f32 %v370, %v571
        %v636 = vsub.f32 %v371, %v572
        %v637 = vsub.f32 %v372, %v573
        %v638 = vsub.f32 %v373, %v574
        %v639 = vsub.f32 %v374, %v575
        %v640 = vsub.f32 %v375, %v576
        %v641 = vsub.f32 %v376, %v577
        %v642 = vsub.f32 %v377, %v578
        %v643 = vsub.f32 %v378, %v579
        %v644 = vsub.f32 %v379, %v580
        %v645 = vsub.f32 %v380, %v581
        %v646 = vsub.f32 %v381, %v582
        %v647 = vsub.f32 %v382, %v583
        %v648 = vsub.f32 %v383, %v584
        %v649 = vsub.f32 %v384, %v585
        %v650 = vsub.f32 %v385, %v586
        %v651 = vsub.f32 %v386, %v587
        %v652 = vsub.f32 %v387, %v588
        %v653 = vsub.f32 %v388, %v589
        %v654 = vsub.f32 %v389, %v590
        %v655 = vsub.f32 %v390, %v591
        %v656 = vsub.f32 %v391, %v592
        %v657 = vsub.f32 %v392, %v593
        %v658 = vsub.f32 %v393, %v594
        %v659 = vsub.f32 %v394, %v595
        %v660 = vsub.f32 %v395, %v596
        %v661 = vsub.f32 %v396, %v597
        %v662 = vsub.f32 %v397, %v598
        %v663 = vsub.f32 %v398, %v599
        %v664 = vsub.f32 %v399, %v600
        %v665 = vsub.f32 %v400, %v601
        %v666 = vsub.f32 %v401, %v602
        %v667 = vsub.f32 %v402, %v603
        %v668 = vsub.f32 %v403, %v604
        %v669 = vsub.f32 %v404, %v605
        %v670 = vsub.f32 %v405, %v606
        %v671 = vsub.f32 %v406, %v607
        %v672 = vsub.f32 %v407, %v608
        %v673 = vsub.f32 %v408, %v609
        %v674 = vsub.f32 %v409, %v610
        %v675 = vsub.f32 %v410, %v611
        %v676 = vsub.f32 %v411, %v612
        %v677 = vsub.f32 %v412, %v613
        %v678 = vsub.f32 %v413, %v614
        %v679 = vsub.f32 %v414, %v615
        %v680 = vsub.f32 %v415, %v616
        %v681 = vsub.f32 %v416, %v617
        %v682 = vsub.f32 %v417, %v618
        %v683 = vsub.f32 %v418, %v619
        %v684 = vsub.f32 %v419, %v620
        %v685 = vsub.f32 %v420, %v621
        %v686 = vsub.f32 %v421, %v622
        %v687 = vsub.f32 %v422, %v623
        %v688 = vsub.f32 %v423, %v624
        %v689 = vsub.f32 %v424, %v625
        %v690 = vsub.f32 %v425, %v626
        %v691 = vsub.f32 %v426, %v627
        %v692 = vmul.f32 %v628, %v628
        %v693 = vmul.f32 %v629, %v629
        %v694 = vmul.f32 %v630, %v630
        %v695 = vmul.f32 %v631, %v631
        %v696 = vmul.f32 %v632, %v632
        %v697 = vmul.f32 %v633, %v633
        %v698 = vmul.f32 %v634, %v634
        %v699 = vmul.f32 %v635, %v635
        %v700 = vmul.f32 %v636, %v636
        %v701 = vmul.f32 %v637, %v637
        %v702 = vmul.f32 %v638, %v638
        %v703 = vmul.f32 %v639, %v639
        %v704 = vmul.f32 %v640, %v640
        %v705 = vmul.f32 %v641, %v641
        %v706 = vmul.f32 %v642, %v642
        %v707 = vmul.f32 %v643, %v643
        %v708 = vmul.f32 %v644, %v644
        %v709 = vmul.f32 %v645, %v645
        %v710 = vmul.f32 %v646, %v646
        %v711 = vmul.f32 %v647, %v647
        %v712 = vmul.f32 %v648, %v648
        %v713 = vmul.f32 %v649, %v649
        %v714 = vmul.f32 %v650, %v650
        %v715 = vmul.f32 %v651, %v651
        %v716 = vmul.f32 %v652, %v652
        %v717 = vmul.f32 %v653, %v653
        %v718 = vmul.f32 %v654, %v654
        %v719 = vmul.f32 %v655, %v655
        %v720 = vmul.f32 %v656, %v656
        %v721 = vmul.f32 %v657, %v657
        %v722 = vmul.f32 %v658, %v658
        %v723 = vmul.f32 %v659, %v659
        %v724 = vmul.f32 %v660, %v660
        %v725 = vmul.f32 %v661, %v661
        %v726 = vmul.f32 %v662, %v662
        %v727 = vmul.f32 %v663, %v663
        %v728 = vmul.f32 %v664, %v664
        %v729 = vmul.f32 %v665, %v665
        %v730 = vmul.f32 %v666, %v666
        %v731 = vmul.f32 %v667, %v667
        %v732 = vmul.f32 %v668, %v668
        %v733 = vmul.f32 %v669, %v669
        %v734 = vmul.f32 %v670, %v670
        %v735 = vmul.f32 %v671, %v671
        %v736 = vmul.f32 %v672, %v672
        %v737 = vmul.f32 %v673, %v673
        %v738 = vmul.f32 %v674, %v674
        %v739 = vmul.f32 %v675, %v675
        %v740 = vmul.f32 %v676, %v676
        %v741 = vmul.f32 %v677, %v677
        %v742 = vmul.f32 %v678, %v678
        %v743 = vmul.f32 %v679, %v679
        %v744 = vmul.f32 %v680, %v680
        %v745 = vmul.f32 %v681, %v681
        %v746 = vmul.f32 %v682, %v682
        %v747 = vmul.f32 %v683, %v683
        %v748 = vmul.f32 %v684, %v684
        %v749 = vmul.f32 %v685, %v685
        %v750 = vmul.f32 %v686, %v686
        %v751 = vmul.f32 %v687, %v687
        %v752 = vmul.f32 %v688, %v688
        %v753 = vmul.f32 %v689, %v689
        %v754 = vmul.f32 %v690, %v690
        %v755 = vmul.f32 %v691, %v691
        %756 = vadd.xlane.f32.xlu0 %v692
        %v757 = vpop.xlane.xlu0 %756
        %758 = vadd.xlane.f32.xlu0 %v693
        %v759 = vpop.xlane.xlu0 %758
        %760 = vadd.xlane.f32.xlu0 %v694
        %v761 = vpop.xlane.xlu0 %760
        %762 = vadd.xlane.f32.xlu0 %v695
        %v763 = vpop.xlane.xlu0 %762
        %764 = vadd.xlane.f32.xlu0 %v696
        %v765 = vpop.xlane.xlu0 %764
        %766 = vadd.xlane.f32.xlu0 %v697
        %v767 = vpop.xlane.xlu0 %766
        %768 = vadd.xlane.f32.xlu0 %v698
        %v769 = vpop.xlane.xlu0 %768
        %770 = vadd.xlane.f32.xlu0 %v699
        %v771 = vpop.xlane.xlu0 %770
        %772 = vadd.xlane.f32.xlu0 %v700
        %v773 = vpop.xlane.xlu0 %772
        %774 = vadd.xlane.f32.xlu0 %v701
        %v775 = vpop.xlane.xlu0 %774
        %776 = vadd.xlane.f32.xlu0 %v702
        %v777 = vpop.xlane.xlu0 %776
        %778 = vadd.xlane.f32.xlu0 %v703
        %v779 = vpop.xlane.xlu0 %778
        %780 = vadd.xlane.f32.xlu0 %v704
        %v781 = vpop.xlane.xlu0 %780
        %782 = vadd.xlane.f32.xlu0 %v705
        %v783 = vpop.xlane.xlu0 %782
        %784 = vadd.xlane.f32.xlu0 %v706
        %v785 = vpop.xlane.xlu0 %784
        %786 = vadd.xlane.f32.xlu0 %v707
        %v787 = vpop.xlane.xlu0 %786
        %788 = vadd.xlane.f32.xlu0 %v708
        %v789 = vpop.xlane.xlu0 %788
        %790 = vadd.xlane.f32.xlu0 %v709
        %v791 = vpop.xlane.xlu0 %790
        %792 = vadd.xlane.f32.xlu0 %v710
        %v793 = vpop.xlane.xlu0 %792
        %794 = vadd.xlane.f32.xlu0 %v711
        %v795 = vpop.xlane.xlu0 %794
        %796 = vadd.xlane.f32.xlu0 %v712
        %v797 = vpop.xlane.xlu0 %796
        %798 = vadd.xlane.f32.xlu0 %v713
        %v799 = vpop.xlane.xlu0 %798
        %800 = vadd.xlane.f32.xlu0 %v714
        %v801 = vpop.xlane.xlu0 %800
        %802 = vadd.xlane.f32.xlu0 %v715
        %v803 = vpop.xlane.xlu0 %802
        %804 = vadd.xlane.f32.xlu0 %v716
        %v805 = vpop.xlane.xlu0 %804
        %806 = vadd.xlane.f32.xlu0 %v717
        %v807 = vpop.xlane.xlu0 %806
        %808 = vadd.xlane.f32.xlu0 %v718
        %v809 = vpop.xlane.xlu0 %808
        %810 = vadd.xlane.f32.xlu0 %v719
        %v811 = vpop.xlane.xlu0 %810
        %812 = vadd.xlane.f32.xlu0 %v720
        %v813 = vpop.xlane.xlu0 %812
        %814 = vadd.xlane.f32.xlu0 %v721
        %v815 = vpop.xlane.xlu0 %814
        %816 = vadd.xlane.f32.xlu0 %v722
        %v817 = vpop.xlane.xlu0 %816
        %818 = vadd.xlane.f32.xlu0 %v723
        %v819 = vpop.xlane.xlu0 %818
        %820 = vadd.xlane.f32.xlu0 %v724
        %v821 = vpop.xlane.xlu0 %820
        %822 = vadd.xlane.f32.xlu0 %v725
        %v823 = vpop.xlane.xlu0 %822
        %824 = vadd.xlane.f32.xlu0 %v726
        %v825 = vpop.xlane.xlu0 %824
        %826 = vadd.xlane.f32.xlu0 %v727
        %v827 = vpop.xlane.xlu0 %826
        %828 = vadd.xlane.f32.xlu0 %v728
        %v829 = vpop.xlane.xlu0 %828
        %830 = vadd.xlane.f32.xlu0 %v729
        %v831 = vpop.xlane.xlu0 %830
        %832 = vadd.xlane.f32.xlu0 %v730
        %v833 = vpop.xlane.xlu0 %832
        %834 = vadd.xlane.f32.xlu0 %v731
        %v835 = vpop.xlane.xlu0 %834
        %836 = vadd.xlane.f32.xlu0 %v732
        %v837 = vpop.xlane.xlu0 %836
        %838 = vadd.xlane.f32.xlu0 %v733
        %v839 = vpop.xlane.xlu0 %838
        %840 = vadd.xlane.f32.xlu0 %v734
        %v841 = vpop.xlane.xlu0 %840
        %842 = vadd.xlane.f32.xlu0 %v735
        %v843 = vpop.xlane.xlu0 %842
        %844 = vadd.xlane.f32.xlu0 %v736
        %v845 = vpop.xlane.xlu0 %844
        %846 = vadd.xlane.f32.xlu0 %v737
        %v847 = vpop.xlane.xlu0 %846
        %848 = vadd.xlane.f32.xlu0 %v738
        %v849 = vpop.xlane.xlu0 %848
        %850 = vadd.xlane.f32.xlu0 %v739
        %v851 = vpop.xlane.xlu0 %850
        %852 = vadd.xlane.f32.xlu0 %v740
        %v853 = vpop.xlane.xlu0 %852
        %854 = vadd.xlane.f32.xlu0 %v741
        %v855 = vpop.xlane.xlu0 %854
        %856 = vadd.xlane.f32.xlu0 %v742
        %v857 = vpop.xlane.xlu0 %856
        %858 = vadd.xlane.f32.xlu0 %v743
        %v859 = vpop.xlane.xlu0 %858
        %860 = vadd.xlane.f32.xlu0 %v744
        %v861 = vpop.xlane.xlu0 %860
        %862 = vadd.xlane.f32.xlu0 %v745
        %v863 = vpop.xlane.xlu0 %862
        %864 = vadd.xlane.f32.xlu0 %v746
        %v865 = vpop.xlane.xlu0 %864
        %866 = vadd.xlane.f32.xlu0 %v747
        %v867 = vpop.xlane.xlu0 %866
        %868 = vadd.xlane.f32.xlu0 %v748
        %v869 = vpop.xlane.xlu0 %868
        %870 = vadd.xlane.f32.xlu0 %v749
        %v871 = vpop.xlane.xlu0 %870
        %872 = vadd.xlane.f32.xlu0 %v750
        %v873 = vpop.xlane.xlu0 %872
        %874 = vadd.xlane.f32.xlu0 %v751
        %v875 = vpop.xlane.xlu0 %874
        %876 = vadd.xlane.f32.xlu0 %v752
        %v877 = vpop.xlane.xlu0 %876
        %878 = vadd.xlane.f32.xlu0 %v753
        %v879 = vpop.xlane.xlu0 %878
        %880 = vadd.xlane.f32.xlu0 %v754
        %v881 = vpop.xlane.xlu0 %880
        %882 = vadd.xlane.f32.xlu0 %v755
        %v883 = vpop.xlane.xlu0 %882
        %v884 = vmul.f32 %v757, %v563
        %v885 = vmul.f32 %v759, %v563
        %v886 = vmul.f32 %v761, %v563
        %v887 = vmul.f32 %v763, %v563
        %v888 = vmul.f32 %v765, %v563
        %v889 = vmul.f32 %v767, %v563
        %v890 = vmul.f32 %v769, %v563
        %v891 = vmul.f32 %v771, %v563
        %v892 = vmul.f32 %v773, %v563
        %v893 = vmul.f32 %v775, %v563
        %v894 = vmul.f32 %v777, %v563
        %v895 = vmul.f32 %v779, %v563
        %v896 = vmul.f32 %v781, %v563
        %v897 = vmul.f32 %v783, %v563
        %v898 = vmul.f32 %v785, %v563
        %v899 = vmul.f32 %v787, %v563
        %v900 = vmul.f32 %v789, %v563
        %v901 = vmul.f32 %v791, %v563
        %v902 = vmul.f32 %v793, %v563
        %v903 = vmul.f32 %v795, %v563
        %v904 = vmul.f32 %v797, %v563
        %v905 = vmul.f32 %v799, %v563
        %v906 = vmul.f32 %v801, %v563
        %v907 = vmul.f32 %v803, %v563
        %v908 = vmul.f32 %v805, %v563
        %v909 = vmul.f32 %v807, %v563
        %v910 = vmul.f32 %v809, %v563
        %v911 = vmul.f32 %v811, %v563
        %v912 = vmul.f32 %v813, %v563
        %v913 = vmul.f32 %v815, %v563
        %v914 = vmul.f32 %v817, %v563
        %v915 = vmul.f32 %v819, %v563
        %v916 = vmul.f32 %v821, %v563
        %v917 = vmul.f32 %v823, %v563
        %v918 = vmul.f32 %v825, %v563
        %v919 = vmul.f32 %v827, %v563
        %v920 = vmul.f32 %v829, %v563
        %v921 = vmul.f32 %v831, %v563
        %v922 = vmul.f32 %v833, %v563
        %v923 = vmul.f32 %v835, %v563
        %v924 = vmul.f32 %v837, %v563
        %v925 = vmul.f32 %v839, %v563
        %v926 = vmul.f32 %v841, %v563
        %v927 = vmul.f32 %v843, %v563
        %v928 = vmul.f32 %v845, %v563
        %v929 = vmul.f32 %v847, %v563
        %v930 = vmul.f32 %v849, %v563
        %v931 = vmul.f32 %v851, %v563
        %v932 = vmul.f32 %v853, %v563
        %v933 = vmul.f32 %v855, %v563
        %v934 = vmul.f32 %v857, %v563
        %v935 = vmul.f32 %v859, %v563
        %v936 = vmul.f32 %v861, %v563
        %v937 = vmul.f32 %v863, %v563
        %v938 = vmul.f32 %v865, %v563
        %v939 = vmul.f32 %v867, %v563
        %v940 = vmul.f32 %v869, %v563
        %v941 = vmul.f32 %v871, %v563
        %v942 = vmul.f32 %v873, %v563
        %v943 = vmul.f32 %v875, %v563
        %v944 = vmul.f32 %v877, %v563
        %v945 = vmul.f32 %v879, %v563
        %v946 = vmul.f32 %v881, %v563
        %v947 = vmul.f32 %v883, %v563
        %v948 = vadd.f32 %v884, 1e-06
        %v949 = vadd.f32 %v885, 1e-06
        %v950 = vadd.f32 %v886, 1e-06
        %v951 = vadd.f32 %v887, 1e-06
        %v952 = vadd.f32 %v888, 1e-06
        %v953 = vadd.f32 %v889, 1e-06
        %v954 = vadd.f32 %v890, 1e-06
        %v955 = vadd.f32 %v891, 1e-06
        %v956 = vadd.f32 %v892, 1e-06
        %v957 = vadd.f32 %v893, 1e-06
        %v958 = vadd.f32 %v894, 1e-06
        %v959 = vadd.f32 %v895, 1e-06
        %v960 = vadd.f32 %v896, 1e-06
        %v961 = vadd.f32 %v897, 1e-06
        %v962 = vadd.f32 %v898, 1e-06
        %v963 = vadd.f32 %v899, 1e-06
        %v964 = vadd.f32 %v900, 1e-06
        %v965 = vadd.f32 %v901, 1e-06
        %v966 = vadd.f32 %v902, 1e-06
        %v967 = vadd.f32 %v903, 1e-06
        %v968 = vadd.f32 %v904, 1e-06
        %v969 = vadd.f32 %v905, 1e-06
        %v970 = vadd.f32 %v906, 1e-06
        %v971 = vadd.f32 %v907, 1e-06
        %v972 = vadd.f32 %v908, 1e-06
        %v973 = vadd.f32 %v909, 1e-06
        %v974 = vadd.f32 %v910, 1e-06
        %v975 = vadd.f32 %v911, 1e-06
        %v976 = vadd.f32 %v912, 1e-06
        %v977 = vadd.f32 %v913, 1e-06
        %v978 = vadd.f32 %v914, 1e-06
        %v979 = vadd.f32 %v915, 1e-06
        %v980 = vadd.f32 %v916, 1e-06
        %v981 = vadd.f32 %v917, 1e-06
        %v982 = vadd.f32 %v918, 1e-06
        %v983 = vadd.f32 %v919, 1e-06
        %v984 = vadd.f32 %v920, 1e-06
        %v985 = vadd.f32 %v921, 1e-06
        %v986 = vadd.f32 %v922, 1e-06
        %v987 = vadd.f32 %v923, 1e-06
        %v988 = vadd.f32 %v924, 1e-06
        %v989 = vadd.f32 %v925, 1e-06
        %v990 = vadd.f32 %v926, 1e-06
        %v991 = vadd.f32 %v927, 1e-06
        %v992 = vadd.f32 %v928, 1e-06
        %v993 = vadd.f32 %v929, 1e-06
        %v994 = vadd.f32 %v930, 1e-06
        %v995 = vadd.f32 %v931, 1e-06
        %v996 = vadd.f32 %v932, 1e-06
        %v997 = vadd.f32 %v933, 1e-06
        %v998 = vadd.f32 %v934, 1e-06
        %v999 = vadd.f32 %v935, 1e-06
        %v1000 = vadd.f32 %v936, 1e-06
        %v1001 = vadd.f32 %v937, 1e-06
        %v1002 = vadd.f32 %v938, 1e-06
        %v1003 = vadd.f32 %v939, 1e-06
        %v1004 = vadd.f32 %v940, 1e-06
        %v1005 = vadd.f32 %v941, 1e-06
        %v1006 = vadd.f32 %v942, 1e-06
        %v1007 = vadd.f32 %v943, 1e-06
        %v1008 = vadd.f32 %v944, 1e-06
        %v1009 = vadd.f32 %v945, 1e-06
        %v1010 = vadd.f32 %v946, 1e-06
        %v1011 = vadd.f32 %v947, 1e-06
        %v1012 = vrsqrt.pop %v948
        %v1013 = vmul.f32 %v1012, %v948
        %v1014 = vmul.f32 %v1013, %v1012
        %v1015 = vmul.f32 0.5, %v1014
        %v1016 = vsub.f32 1.5, %v1015
        %v1017 = vmul.f32 %v1012, %v1016
        %vm1018 = vweird.f32 %v948
        %vm1019 = vweird.f32 %v1012
        %vm1020 = vmor %vm1018, %vm1019
        %v1021 = vsel %vm1020, %v1012, %v1017
        %v1022 = vrsqrt.pop %v949
        %v1023 = vmul.f32 %v1022, %v949
        %v1024 = vmul.f32 %v1023, %v1022
        %v1025 = vmul.f32 0.5, %v1024
        %v1026 = vsub.f32 1.5, %v1025
        %v1027 = vmul.f32 %v1022, %v1026
        %vm1028 = vweird.f32 %v949
        %vm1029 = vweird.f32 %v1022
        %vm1030 = vmor %vm1028, %vm1029
        %v1031 = vsel %vm1030, %v1022, %v1027
        %v1032 = vrsqrt.pop %v950
        %v1033 = vmul.f32 %v1032, %v950
        %v1034 = vmul.f32 %v1033, %v1032
        %v1035 = vmul.f32 0.5, %v1034
        %v1036 = vsub.f32 1.5, %v1035
        %v1037 = vmul.f32 %v1032, %v1036
        %vm1038 = vweird.f32 %v950
        %vm1039 = vweird.f32 %v1032
        %vm1040 = vmor %vm1038, %vm1039
        %v1041 = vsel %vm1040, %v1032, %v1037
        %v1042 = vrsqrt.pop %v951
        %v1043 = vmul.f32 %v1042, %v951
        %v1044 = vmul.f32 %v1043, %v1042
        %v1045 = vmul.f32 0.5, %v1044
        %v1046 = vsub.f32 1.5, %v1045
        %v1047 = vmul.f32 %v1042, %v1046
        %vm1048 = vweird.f32 %v951
        %vm1049 = vweird.f32 %v1042
        %vm1050 = vmor %vm1048, %vm1049
        %v1051 = vsel %vm1050, %v1042, %v1047
        %v1052 = vrsqrt.pop %v952
        %v1053 = vmul.f32 %v1052, %v952
        %v1054 = vmul.f32 %v1053, %v1052
        %v1055 = vmul.f32 0.5, %v1054
        %v1056 = vsub.f32 1.5, %v1055
        %v1057 = vmul.f32 %v1052, %v1056
        %vm1058 = vweird.f32 %v952
        %vm1059 = vweird.f32 %v1052
        %vm1060 = vmor %vm1058, %vm1059
        %v1061 = vsel %vm1060, %v1052, %v1057
        %v1062 = vrsqrt.pop %v953
        %v1063 = vmul.f32 %v1062, %v953
        %v1064 = vmul.f32 %v1063, %v1062
        %v1065 = vmul.f32 0.5, %v1064
        %v1066 = vsub.f32 1.5, %v1065
        %v1067 = vmul.f32 %v1062, %v1066
        %vm1068 = vweird.f32 %v953
        %vm1069 = vweird.f32 %v1062
        %vm1070 = vmor %vm1068, %vm1069
        %v1071 = vsel %vm1070, %v1062, %v1067
        %v1072 = vrsqrt.pop %v954
        %v1073 = vmul.f32 %v1072, %v954
        %v1074 = vmul.f32 %v1073, %v1072
        %v1075 = vmul.f32 0.5, %v1074
        %v1076 = vsub.f32 1.5, %v1075
        %v1077 = vmul.f32 %v1072, %v1076
        %vm1078 = vweird.f32 %v954
        %vm1079 = vweird.f32 %v1072
        %vm1080 = vmor %vm1078, %vm1079
        %v1081 = vsel %vm1080, %v1072, %v1077
        %v1082 = vrsqrt.pop %v955
        %v1083 = vmul.f32 %v1082, %v955
        %v1084 = vmul.f32 %v1083, %v1082
        %v1085 = vmul.f32 0.5, %v1084
        %v1086 = vsub.f32 1.5, %v1085
        %v1087 = vmul.f32 %v1082, %v1086
        %vm1088 = vweird.f32 %v955
        %vm1089 = vweird.f32 %v1082
        %vm1090 = vmor %vm1088, %vm1089
        %v1091 = vsel %vm1090, %v1082, %v1087
        %v1092 = vrsqrt.pop %v956
        %v1093 = vmul.f32 %v1092, %v956
        %v1094 = vmul.f32 %v1093, %v1092
        %v1095 = vmul.f32 0.5, %v1094
        %v1096 = vsub.f32 1.5, %v1095
        %v1097 = vmul.f32 %v1092, %v1096
        %vm1098 = vweird.f32 %v956
        %vm1099 = vweird.f32 %v1092
        %vm1100 = vmor %vm1098, %vm1099
        %v1101 = vsel %vm1100, %v1092, %v1097
        %v1102 = vrsqrt.pop %v957
        %v1103 = vmul.f32 %v1102, %v957
        %v1104 = vmul.f32 %v1103, %v1102
        %v1105 = vmul.f32 0.5, %v1104
        %v1106 = vsub.f32 1.5, %v1105
        %v1107 = vmul.f32 %v1102, %v1106
        %vm1108 = vweird.f32 %v957
        %vm1109 = vweird.f32 %v1102
        %vm1110 = vmor %vm1108, %vm1109
        %v1111 = vsel %vm1110, %v1102, %v1107
        %v1112 = vrsqrt.pop %v958
        %v1113 = vmul.f32 %v1112, %v958
        %v1114 = vmul.f32 %v1113, %v1112
        %v1115 = vmul.f32 0.5, %v1114
        %v1116 = vsub.f32 1.5, %v1115
        %v1117 = vmul.f32 %v1112, %v1116
        %vm1118 = vweird.f32 %v958
        %vm1119 = vweird.f32 %v1112
        %vm1120 = vmor %vm1118, %vm1119
        %v1121 = vsel %vm1120, %v1112, %v1117
        %v1122 = vrsqrt.pop %v959
        %v1123 = vmul.f32 %v1122, %v959
        %v1124 = vmul.f32 %v1123, %v1122
        %v1125 = vmul.f32 0.5, %v1124
        %v1126 = vsub.f32 1.5, %v1125
        %v1127 = vmul.f32 %v1122, %v1126
        %vm1128 = vweird.f32 %v959
        %vm1129 = vweird.f32 %v1122
        %vm1130 = vmor %vm1128, %vm1129
        %v1131 = vsel %vm1130, %v1122, %v1127
        %v1132 = vrsqrt.pop %v960
        %v1133 = vmul.f32 %v1132, %v960
        %v1134 = vmul.f32 %v1133, %v1132
        %v1135 = vmul.f32 0.5, %v1134
        %v1136 = vsub.f32 1.5, %v1135
        %v1137 = vmul.f32 %v1132, %v1136
        %vm1138 = vweird.f32 %v960
        %vm1139 = vweird.f32 %v1132
        %vm1140 = vmor %vm1138, %vm1139
        %v1141 = vsel %vm1140, %v1132, %v1137
        %v1142 = vrsqrt.pop %v961
        %v1143 = vmul.f32 %v1142, %v961
        %v1144 = vmul.f32 %v1143, %v1142
        %v1145 = vmul.f32 0.5, %v1144
        %v1146 = vsub.f32 1.5, %v1145
        %v1147 = vmul.f32 %v1142, %v1146
        %vm1148 = vweird.f32 %v961
        %vm1149 = vweird.f32 %v1142
        %vm1150 = vmor %vm1148, %vm1149
        %v1151 = vsel %vm1150, %v1142, %v1147
        %v1152 = vrsqrt.pop %v962
        %v1153 = vmul.f32 %v1152, %v962
        %v1154 = vmul.f32 %v1153, %v1152
        %v1155 = vmul.f32 0.5, %v1154
        %v1156 = vsub.f32 1.5, %v1155
        %v1157 = vmul.f32 %v1152, %v1156
        %vm1158 = vweird.f32 %v962
        %vm1159 = vweird.f32 %v1152
        %vm1160 = vmor %vm1158, %vm1159
        %v1161 = vsel %vm1160, %v1152, %v1157
        %v1162 = vrsqrt.pop %v963
        %v1163 = vmul.f32 %v1162, %v963
        %v1164 = vmul.f32 %v1163, %v1162
        %v1165 = vmul.f32 0.5, %v1164
        %v1166 = vsub.f32 1.5, %v1165
        %v1167 = vmul.f32 %v1162, %v1166
        %vm1168 = vweird.f32 %v963
        %vm1169 = vweird.f32 %v1162
        %vm1170 = vmor %vm1168, %vm1169
        %v1171 = vsel %vm1170, %v1162, %v1167
        %v1172 = vrsqrt.pop %v964
        %v1173 = vmul.f32 %v1172, %v964
        %v1174 = vmul.f32 %v1173, %v1172
        %v1175 = vmul.f32 0.5, %v1174
        %v1176 = vsub.f32 1.5, %v1175
        %v1177 = vmul.f32 %v1172, %v1176
        %vm1178 = vweird.f32 %v964
        %vm1179 = vweird.f32 %v1172
        %vm1180 = vmor %vm1178, %vm1179
        %v1181 = vsel %vm1180, %v1172, %v1177
        %v1182 = vrsqrt.pop %v965
        %v1183 = vmul.f32 %v1182, %v965
        %v1184 = vmul.f32 %v1183, %v1182
        %v1185 = vmul.f32 0.5, %v1184
        %v1186 = vsub.f32 1.5, %v1185
        %v1187 = vmul.f32 %v1182, %v1186
        %vm1188 = vweird.f32 %v965
        %vm1189 = vweird.f32 %v1182
        %vm1190 = vmor %vm1188, %vm1189
        %v1191 = vsel %vm1190, %v1182, %v1187
        %v1192 = vrsqrt.pop %v966
        %v1193 = vmul.f32 %v1192, %v966
        %v1194 = vmul.f32 %v1193, %v1192
        %v1195 = vmul.f32 0.5, %v1194
        %v1196 = vsub.f32 1.5, %v1195
        %v1197 = vmul.f32 %v1192, %v1196
        %vm1198 = vweird.f32 %v966
        %vm1199 = vweird.f32 %v1192
        %vm1200 = vmor %vm1198, %vm1199
        %v1201 = vsel %vm1200, %v1192, %v1197
        %v1202 = vrsqrt.pop %v967
        %v1203 = vmul.f32 %v1202, %v967
        %v1204 = vmul.f32 %v1203, %v1202
        %v1205 = vmul.f32 0.5, %v1204
        %v1206 = vsub.f32 1.5, %v1205
        %v1207 = vmul.f32 %v1202, %v1206
        %vm1208 = vweird.f32 %v967
        %vm1209 = vweird.f32 %v1202
        %vm1210 = vmor %vm1208, %vm1209
        %v1211 = vsel %vm1210, %v1202, %v1207
        %v1212 = vrsqrt.pop %v968
        %v1213 = vmul.f32 %v1212, %v968
        %v1214 = vmul.f32 %v1213, %v1212
        %v1215 = vmul.f32 0.5, %v1214
        %v1216 = vsub.f32 1.5, %v1215
        %v1217 = vmul.f32 %v1212, %v1216
        %vm1218 = vweird.f32 %v968
        %vm1219 = vweird.f32 %v1212
        %vm1220 = vmor %vm1218, %vm1219
        %v1221 = vsel %vm1220, %v1212, %v1217
        %v1222 = vrsqrt.pop %v969
        %v1223 = vmul.f32 %v1222, %v969
        %v1224 = vmul.f32 %v1223, %v1222
        %v1225 = vmul.f32 0.5, %v1224
        %v1226 = vsub.f32 1.5, %v1225
        %v1227 = vmul.f32 %v1222, %v1226
        %vm1228 = vweird.f32 %v969
        %vm1229 = vweird.f32 %v1222
        %vm1230 = vmor %vm1228, %vm1229
        %v1231 = vsel %vm1230, %v1222, %v1227
        %v1232 = vrsqrt.pop %v970
        %v1233 = vmul.f32 %v1232, %v970
        %v1234 = vmul.f32 %v1233, %v1232
        %v1235 = vmul.f32 0.5, %v1234
        %v1236 = vsub.f32 1.5, %v1235
        %v1237 = vmul.f32 %v1232, %v1236
        %vm1238 = vweird.f32 %v970
        %vm1239 = vweird.f32 %v1232
        %vm1240 = vmor %vm1238, %vm1239
        %v1241 = vsel %vm1240, %v1232, %v1237
        %v1242 = vrsqrt.pop %v971
        %v1243 = vmul.f32 %v1242, %v971
        %v1244 = vmul.f32 %v1243, %v1242
        %v1245 = vmul.f32 0.5, %v1244
        %v1246 = vsub.f32 1.5, %v1245
        %v1247 = vmul.f32 %v1242, %v1246
        %vm1248 = vweird.f32 %v971
        %vm1249 = vweird.f32 %v1242
        %vm1250 = vmor %vm1248, %vm1249
        %v1251 = vsel %vm1250, %v1242, %v1247
        %v1252 = vrsqrt.pop %v972
        %v1253 = vmul.f32 %v1252, %v972
        %v1254 = vmul.f32 %v1253, %v1252
        %v1255 = vmul.f32 0.5, %v1254
        %v1256 = vsub.f32 1.5, %v1255
        %v1257 = vmul.f32 %v1252, %v1256
        %vm1258 = vweird.f32 %v972
        %vm1259 = vweird.f32 %v1252
        %vm1260 = vmor %vm1258, %vm1259
        %v1261 = vsel %vm1260, %v1252, %v1257
        %v1262 = vrsqrt.pop %v973
        %v1263 = vmul.f32 %v1262, %v973
        %v1264 = vmul.f32 %v1263, %v1262
        %v1265 = vmul.f32 0.5, %v1264
        %v1266 = vsub.f32 1.5, %v1265
        %v1267 = vmul.f32 %v1262, %v1266
        %vm1268 = vweird.f32 %v973
        %vm1269 = vweird.f32 %v1262
        %vm1270 = vmor %vm1268, %vm1269
        %v1271 = vsel %vm1270, %v1262, %v1267
        %v1272 = vrsqrt.pop %v974
        %v1273 = vmul.f32 %v1272, %v974
        %v1274 = vmul.f32 %v1273, %v1272
        %v1275 = vmul.f32 0.5, %v1274
        %v1276 = vsub.f32 1.5, %v1275
        %v1277 = vmul.f32 %v1272, %v1276
        %vm1278 = vweird.f32 %v974
        %vm1279 = vweird.f32 %v1272
        %vm1280 = vmor %vm1278, %vm1279
        %v1281 = vsel %vm1280, %v1272, %v1277
        %v1282 = vrsqrt.pop %v975
        %v1283 = vmul.f32 %v1282, %v975
        %v1284 = vmul.f32 %v1283, %v1282
        %v1285 = vmul.f32 0.5, %v1284
        %v1286 = vsub.f32 1.5, %v1285
        %v1287 = vmul.f32 %v1282, %v1286
        %vm1288 = vweird.f32 %v975
        %vm1289 = vweird.f32 %v1282
        %vm1290 = vmor %vm1288, %vm1289
        %v1291 = vsel %vm1290, %v1282, %v1287
        %v1292 = vrsqrt.pop %v976
        %v1293 = vmul.f32 %v1292, %v976
        %v1294 = vmul.f32 %v1293, %v1292
        %v1295 = vmul.f32 0.5, %v1294
        %v1296 = vsub.f32 1.5, %v1295
        %v1297 = vmul.f32 %v1292, %v1296
        %vm1298 = vweird.f32 %v976
        %vm1299 = vweird.f32 %v1292
        %vm1300 = vmor %vm1298, %vm1299
        %v1301 = vsel %vm1300, %v1292, %v1297
        %v1302 = vrsqrt.pop %v977
        %v1303 = vmul.f32 %v1302, %v977
        %v1304 = vmul.f32 %v1303, %v1302
        %v1305 = vmul.f32 0.5, %v1304
        %v1306 = vsub.f32 1.5, %v1305
        %v1307 = vmul.f32 %v1302, %v1306
        %vm1308 = vweird.f32 %v977
        %vm1309 = vweird.f32 %v1302
        %vm1310 = vmor %vm1308, %vm1309
        %v1311 = vsel %vm1310, %v1302, %v1307
        %v1312 = vrsqrt.pop %v978
        %v1313 = vmul.f32 %v1312, %v978
        %v1314 = vmul.f32 %v1313, %v1312
        %v1315 = vmul.f32 0.5, %v1314
        %v1316 = vsub.f32 1.5, %v1315
        %v1317 = vmul.f32 %v1312, %v1316
        %vm1318 = vweird.f32 %v978
        %vm1319 = vweird.f32 %v1312
        %vm1320 = vmor %vm1318, %vm1319
        %v1321 = vsel %vm1320, %v1312, %v1317
        %v1322 = vrsqrt.pop %v979
        %v1323 = vmul.f32 %v1322, %v979
        %v1324 = vmul.f32 %v1323, %v1322
        %v1325 = vmul.f32 0.5, %v1324
        %v1326 = vsub.f32 1.5, %v1325
        %v1327 = vmul.f32 %v1322, %v1326
        %vm1328 = vweird.f32 %v979
        %vm1329 = vweird.f32 %v1322
        %vm1330 = vmor %vm1328, %vm1329
        %v1331 = vsel %vm1330, %v1322, %v1327
        %v1332 = vrsqrt.pop %v980
        %v1333 = vmul.f32 %v1332, %v980
        %v1334 = vmul.f32 %v1333, %v1332
        %v1335 = vmul.f32 0.5, %v1334
        %v1336 = vsub.f32 1.5, %v1335
        %v1337 = vmul.f32 %v1332, %v1336
        %vm1338 = vweird.f32 %v980
        %vm1339 = vweird.f32 %v1332
        %vm1340 = vmor %vm1338, %vm1339
        %v1341 = vsel %vm1340, %v1332, %v1337
        %v1342 = vrsqrt.pop %v981
        %v1343 = vmul.f32 %v1342, %v981
        %v1344 = vmul.f32 %v1343, %v1342
        %v1345 = vmul.f32 0.5, %v1344
        %v1346 = vsub.f32 1.5, %v1345
        %v1347 = vmul.f32 %v1342, %v1346
        %vm1348 = vweird.f32 %v981
        %vm1349 = vweird.f32 %v1342
        %vm1350 = vmor %vm1348, %vm1349
        %v1351 = vsel %vm1350, %v1342, %v1347
        %v1352 = vrsqrt.pop %v982
        %v1353 = vmul.f32 %v1352, %v982
        %v1354 = vmul.f32 %v1353, %v1352
        %v1355 = vmul.f32 0.5, %v1354
        %v1356 = vsub.f32 1.5, %v1355
        %v1357 = vmul.f32 %v1352, %v1356
        %vm1358 = vweird.f32 %v982
        %vm1359 = vweird.f32 %v1352
        %vm1360 = vmor %vm1358, %vm1359
        %v1361 = vsel %vm1360, %v1352, %v1357
        %v1362 = vrsqrt.pop %v983
        %v1363 = vmul.f32 %v1362, %v983
        %v1364 = vmul.f32 %v1363, %v1362
        %v1365 = vmul.f32 0.5, %v1364
        %v1366 = vsub.f32 1.5, %v1365
        %v1367 = vmul.f32 %v1362, %v1366
        %vm1368 = vweird.f32 %v983
        %vm1369 = vweird.f32 %v1362
        %vm1370 = vmor %vm1368, %vm1369
        %v1371 = vsel %vm1370, %v1362, %v1367
        %v1372 = vrsqrt.pop %v984
        %v1373 = vmul.f32 %v1372, %v984
        %v1374 = vmul.f32 %v1373, %v1372
        %v1375 = vmul.f32 0.5, %v1374
        %v1376 = vsub.f32 1.5, %v1375
        %v1377 = vmul.f32 %v1372, %v1376
        %vm1378 = vweird.f32 %v984
        %vm1379 = vweird.f32 %v1372
        %vm1380 = vmor %vm1378, %vm1379
        %v1381 = vsel %vm1380, %v1372, %v1377
        %v1382 = vrsqrt.pop %v985
        %v1383 = vmul.f32 %v1382, %v985
        %v1384 = vmul.f32 %v1383, %v1382
        %v1385 = vmul.f32 0.5, %v1384
        %v1386 = vsub.f32 1.5, %v1385
        %v1387 = vmul.f32 %v1382, %v1386
        %vm1388 = vweird.f32 %v985
        %vm1389 = vweird.f32 %v1382
        %vm1390 = vmor %vm1388, %vm1389
        %v1391 = vsel %vm1390, %v1382, %v1387
        %v1392 = vrsqrt.pop %v986
        %v1393 = vmul.f32 %v1392, %v986
        %v1394 = vmul.f32 %v1393, %v1392
        %v1395 = vmul.f32 0.5, %v1394
        %v1396 = vsub.f32 1.5, %v1395
        %v1397 = vmul.f32 %v1392, %v1396
        %vm1398 = vweird.f32 %v986
        %vm1399 = vweird.f32 %v1392
        %vm1400 = vmor %vm1398, %vm1399
        %v1401 = vsel %vm1400, %v1392, %v1397
        %v1402 = vrsqrt.pop %v987
        %v1403 = vmul.f32 %v1402, %v987
        %v1404 = vmul.f32 %v1403, %v1402
        %v1405 = vmul.f32 0.5, %v1404
        %v1406 = vsub.f32 1.5, %v1405
        %v1407 = vmul.f32 %v1402, %v1406
        %vm1408 = vweird.f32 %v987
        %vm1409 = vweird.f32 %v1402
        %vm1410 = vmor %vm1408, %vm1409
        %v1411 = vsel %vm1410, %v1402, %v1407
        %v1412 = vrsqrt.pop %v988
        %v1413 = vmul.f32 %v1412, %v988
        %v1414 = vmul.f32 %v1413, %v1412
        %v1415 = vmul.f32 0.5, %v1414
        %v1416 = vsub.f32 1.5, %v1415
        %v1417 = vmul.f32 %v1412, %v1416
        %vm1418 = vweird.f32 %v988
        %vm1419 = vweird.f32 %v1412
        %vm1420 = vmor %vm1418, %vm1419
        %v1421 = vsel %vm1420, %v1412, %v1417
        %v1422 = vrsqrt.pop %v989
        %v1423 = vmul.f32 %v1422, %v989
        %v1424 = vmul.f32 %v1423, %v1422
        %v1425 = vmul.f32 0.5, %v1424
        %v1426 = vsub.f32 1.5, %v1425
        %v1427 = vmul.f32 %v1422, %v1426
        %vm1428 = vweird.f32 %v989
        %vm1429 = vweird.f32 %v1422
        %vm1430 = vmor %vm1428, %vm1429
        %v1431 = vsel %vm1430, %v1422, %v1427
        %v1432 = vrsqrt.pop %v990
        %v1433 = vmul.f32 %v1432, %v990
        %v1434 = vmul.f32 %v1433, %v1432
        %v1435 = vmul.f32 0.5, %v1434
        %v1436 = vsub.f32 1.5, %v1435
        %v1437 = vmul.f32 %v1432, %v1436
        %vm1438 = vweird.f32 %v990
        %vm1439 = vweird.f32 %v1432
        %vm1440 = vmor %vm1438, %vm1439
        %v1441 = vsel %vm1440, %v1432, %v1437
        %v1442 = vrsqrt.pop %v991
        %v1443 = vmul.f32 %v1442, %v991
        %v1444 = vmul.f32 %v1443, %v1442
        %v1445 = vmul.f32 0.5, %v1444
        %v1446 = vsub.f32 1.5, %v1445
        %v1447 = vmul.f32 %v1442, %v1446
        %vm1448 = vweird.f32 %v991
        %vm1449 = vweird.f32 %v1442
        %vm1450 = vmor %vm1448, %vm1449
        %v1451 = vsel %vm1450, %v1442, %v1447
        %v1452 = vrsqrt.pop %v992
        %v1453 = vmul.f32 %v1452, %v992
        %v1454 = vmul.f32 %v1453, %v1452
        %v1455 = vmul.f32 0.5, %v1454
        %v1456 = vsub.f32 1.5, %v1455
        %v1457 = vmul.f32 %v1452, %v1456
        %vm1458 = vweird.f32 %v992
        %vm1459 = vweird.f32 %v1452
        %vm1460 = vmor %vm1458, %vm1459
        %v1461 = vsel %vm1460, %v1452, %v1457
        %v1462 = vrsqrt.pop %v993
        %v1463 = vmul.f32 %v1462, %v993
        %v1464 = vmul.f32 %v1463, %v1462
        %v1465 = vmul.f32 0.5, %v1464
        %v1466 = vsub.f32 1.5, %v1465
        %v1467 = vmul.f32 %v1462, %v1466
        %vm1468 = vweird.f32 %v993
        %vm1469 = vweird.f32 %v1462
        %vm1470 = vmor %vm1468, %vm1469
        %v1471 = vsel %vm1470, %v1462, %v1467
        %v1472 = vrsqrt.pop %v994
        %v1473 = vmul.f32 %v1472, %v994
        %v1474 = vmul.f32 %v1473, %v1472
        %v1475 = vmul.f32 0.5, %v1474
        %v1476 = vsub.f32 1.5, %v1475
        %v1477 = vmul.f32 %v1472, %v1476
        %vm1478 = vweird.f32 %v994
        %vm1479 = vweird.f32 %v1472
        %vm1480 = vmor %vm1478, %vm1479
        %v1481 = vsel %vm1480, %v1472, %v1477
        %v1482 = vrsqrt.pop %v995
        %v1483 = vmul.f32 %v1482, %v995
        %v1484 = vmul.f32 %v1483, %v1482
        %v1485 = vmul.f32 0.5, %v1484
        %v1486 = vsub.f32 1.5, %v1485
        %v1487 = vmul.f32 %v1482, %v1486
        %vm1488 = vweird.f32 %v995
        %vm1489 = vweird.f32 %v1482
        %vm1490 = vmor %vm1488, %vm1489
        %v1491 = vsel %vm1490, %v1482, %v1487
        %v1492 = vrsqrt.pop %v996
        %v1493 = vmul.f32 %v1492, %v996
        %v1494 = vmul.f32 %v1493, %v1492
        %v1495 = vmul.f32 0.5, %v1494
        %v1496 = vsub.f32 1.5, %v1495
        %v1497 = vmul.f32 %v1492, %v1496
        %vm1498 = vweird.f32 %v996
        %vm1499 = vweird.f32 %v1492
        %vm1500 = vmor %vm1498, %vm1499
        %v1501 = vsel %vm1500, %v1492, %v1497
        %v1502 = vrsqrt.pop %v997
        %v1503 = vmul.f32 %v1502, %v997
        %v1504 = vmul.f32 %v1503, %v1502
        %v1505 = vmul.f32 0.5, %v1504
        %v1506 = vsub.f32 1.5, %v1505
        %v1507 = vmul.f32 %v1502, %v1506
        %vm1508 = vweird.f32 %v997
        %vm1509 = vweird.f32 %v1502
        %vm1510 = vmor %vm1508, %vm1509
        %v1511 = vsel %vm1510, %v1502, %v1507
        %v1512 = vrsqrt.pop %v998
        %v1513 = vmul.f32 %v1512, %v998
        %v1514 = vmul.f32 %v1513, %v1512
        %v1515 = vmul.f32 0.5, %v1514
        %v1516 = vsub.f32 1.5, %v1515
        %v1517 = vmul.f32 %v1512, %v1516
        %vm1518 = vweird.f32 %v998
        %vm1519 = vweird.f32 %v1512
        %vm1520 = vmor %vm1518, %vm1519
        %v1521 = vsel %vm1520, %v1512, %v1517
        %v1522 = vrsqrt.pop %v999
        %v1523 = vmul.f32 %v1522, %v999
        %v1524 = vmul.f32 %v1523, %v1522
        %v1525 = vmul.f32 0.5, %v1524
        %v1526 = vsub.f32 1.5, %v1525
        %v1527 = vmul.f32 %v1522, %v1526
        %vm1528 = vweird.f32 %v999
        %vm1529 = vweird.f32 %v1522
        %vm1530 = vmor %vm1528, %vm1529
        %v1531 = vsel %vm1530, %v1522, %v1527
        %v1532 = vrsqrt.pop %v1000
        %v1533 = vmul.f32 %v1532, %v1000
        %v1534 = vmul.f32 %v1533, %v1532
        %v1535 = vmul.f32 0.5, %v1534
        %v1536 = vsub.f32 1.5, %v1535
        %v1537 = vmul.f32 %v1532, %v1536
        %vm1538 = vweird.f32 %v1000
        %vm1539 = vweird.f32 %v1532
        %vm1540 = vmor %vm1538, %vm1539
        %v1541 = vsel %vm1540, %v1532, %v1537
        %v1542 = vrsqrt.pop %v1001
        %v1543 = vmul.f32 %v1542, %v1001
        %v1544 = vmul.f32 %v1543, %v1542
        %v1545 = vmul.f32 0.5, %v1544
        %v1546 = vsub.f32 1.5, %v1545
        %v1547 = vmul.f32 %v1542, %v1546
        %vm1548 = vweird.f32 %v1001
        %vm1549 = vweird.f32 %v1542
        %vm1550 = vmor %vm1548, %vm1549
        %v1551 = vsel %vm1550, %v1542, %v1547
        %v1552 = vrsqrt.pop %v1002
        %v1553 = vmul.f32 %v1552, %v1002
        %v1554 = vmul.f32 %v1553, %v1552
        %v1555 = vmul.f32 0.5, %v1554
        %v1556 = vsub.f32 1.5, %v1555
        %v1557 = vmul.f32 %v1552, %v1556
        %vm1558 = vweird.f32 %v1002
        %vm1559 = vweird.f32 %v1552
        %vm1560 = vmor %vm1558, %vm1559
        %v1561 = vsel %vm1560, %v1552, %v1557
        %v1562 = vrsqrt.pop %v1003
        %v1563 = vmul.f32 %v1562, %v1003
        %v1564 = vmul.f32 %v1563, %v1562
        %v1565 = vmul.f32 0.5, %v1564
        %v1566 = vsub.f32 1.5, %v1565
        %v1567 = vmul.f32 %v1562, %v1566
        %vm1568 = vweird.f32 %v1003
        %vm1569 = vweird.f32 %v1562
        %vm1570 = vmor %vm1568, %vm1569
        %v1571 = vsel %vm1570, %v1562, %v1567
        %v1572 = vrsqrt.pop %v1004
        %v1573 = vmul.f32 %v1572, %v1004
        %v1574 = vmul.f32 %v1573, %v1572
        %v1575 = vmul.f32 0.5, %v1574
        %v1576 = vsub.f32 1.5, %v1575
        %v1577 = vmul.f32 %v1572, %v1576
        %vm1578 = vweird.f32 %v1004
        %vm1579 = vweird.f32 %v1572
        %vm1580 = vmor %vm1578, %vm1579
        %v1581 = vsel %vm1580, %v1572, %v1577
        %v1582 = vrsqrt.pop %v1005
        %v1583 = vmul.f32 %v1582, %v1005
        %v1584 = vmul.f32 %v1583, %v1582
        %v1585 = vmul.f32 0.5, %v1584
        %v1586 = vsub.f32 1.5, %v1585
        %v1587 = vmul.f32 %v1582, %v1586
        %vm1588 = vweird.f32 %v1005
        %vm1589 = vweird.f32 %v1582
        %vm1590 = vmor %vm1588, %vm1589
        %v1591 = vsel %vm1590, %v1582, %v1587
        %v1592 = vrsqrt.pop %v1006
        %v1593 = vmul.f32 %v1592, %v1006
        %v1594 = vmul.f32 %v1593, %v1592
        %v1595 = vmul.f32 0.5, %v1594
        %v1596 = vsub.f32 1.5, %v1595
        %v1597 = vmul.f32 %v1592, %v1596
        %vm1598 = vweird.f32 %v1006
        %vm1599 = vweird.f32 %v1592
        %vm1600 = vmor %vm1598, %vm1599
        %v1601 = vsel %vm1600, %v1592, %v1597
        %v1602 = vrsqrt.pop %v1007
        %v1603 = vmul.f32 %v1602, %v1007
        %v1604 = vmul.f32 %v1603, %v1602
        %v1605 = vmul.f32 0.5, %v1604
        %v1606 = vsub.f32 1.5, %v1605
        %v1607 = vmul.f32 %v1602, %v1606
        %vm1608 = vweird.f32 %v1007
        %vm1609 = vweird.f32 %v1602
        %vm1610 = vmor %vm1608, %vm1609
        %v1611 = vsel %vm1610, %v1602, %v1607
        %v1612 = vrsqrt.pop %v1008
        %v1613 = vmul.f32 %v1612, %v1008
        %v1614 = vmul.f32 %v1613, %v1612
        %v1615 = vmul.f32 0.5, %v1614
        %v1616 = vsub.f32 1.5, %v1615
        %v1617 = vmul.f32 %v1612, %v1616
        %vm1618 = vweird.f32 %v1008
        %vm1619 = vweird.f32 %v1612
        %vm1620 = vmor %vm1618, %vm1619
        %v1621 = vsel %vm1620, %v1612, %v1617
        %v1622 = vrsqrt.pop %v1009
        %v1623 = vmul.f32 %v1622, %v1009
        %v1624 = vmul.f32 %v1623, %v1622
        %v1625 = vmul.f32 0.5, %v1624
        %v1626 = vsub.f32 1.5, %v1625
        %v1627 = vmul.f32 %v1622, %v1626
        %vm1628 = vweird.f32 %v1009
        %vm1629 = vweird.f32 %v1622
        %vm1630 = vmor %vm1628, %vm1629
        %v1631 = vsel %vm1630, %v1622, %v1627
        %v1632 = vrsqrt.pop %v1010
        %v1633 = vmul.f32 %v1632, %v1010
        %v1634 = vmul.f32 %v1633, %v1632
        %v1635 = vmul.f32 0.5, %v1634
        %v1636 = vsub.f32 1.5, %v1635
        %v1637 = vmul.f32 %v1632, %v1636
        %vm1638 = vweird.f32 %v1010
        %vm1639 = vweird.f32 %v1632
        %vm1640 = vmor %vm1638, %vm1639
        %v1641 = vsel %vm1640, %v1632, %v1637
        %v1642 = vrsqrt.pop %v1011
        %v1643 = vmul.f32 %v1642, %v1011
        %v1644 = vmul.f32 %v1643, %v1642
        %v1645 = vmul.f32 0.5, %v1644
        %v1646 = vsub.f32 1.5, %v1645
        %v1647 = vmul.f32 %v1642, %v1646
        %vm1648 = vweird.f32 %v1011
        %vm1649 = vweird.f32 %v1642
        %vm1650 = vmor %vm1648, %vm1649
        %v1651 = vsel %vm1650, %v1642, %v1647
        %v1652 = vmul.f32 %v628, %v1021
        %v1653 = vmul.f32 %v629, %v1031
        %v1654 = vmul.f32 %v630, %v1041
        %v1655 = vmul.f32 %v631, %v1051
        %v1656 = vmul.f32 %v632, %v1061
        %v1657 = vmul.f32 %v633, %v1071
        %v1658 = vmul.f32 %v634, %v1081
        %v1659 = vmul.f32 %v635, %v1091
        %v1660 = vmul.f32 %v636, %v1101
        %v1661 = vmul.f32 %v637, %v1111
        %v1662 = vmul.f32 %v638, %v1121
        %v1663 = vmul.f32 %v639, %v1131
        %v1664 = vmul.f32 %v640, %v1141
        %v1665 = vmul.f32 %v641, %v1151
        %v1666 = vmul.f32 %v642, %v1161
        %v1667 = vmul.f32 %v643, %v1171
        %v1668 = vmul.f32 %v644, %v1181
        %v1669 = vmul.f32 %v645, %v1191
        %v1670 = vmul.f32 %v646, %v1201
        %v1671 = vmul.f32 %v647, %v1211
        %v1672 = vmul.f32 %v648, %v1221
        %v1673 = vmul.f32 %v649, %v1231
        %v1674 = vmul.f32 %v650, %v1241
        %v1675 = vmul.f32 %v651, %v1251
        %v1676 = vmul.f32 %v652, %v1261
        %v1677 = vmul.f32 %v653, %v1271
        %v1678 = vmul.f32 %v654, %v1281
        %v1679 = vmul.f32 %v655, %v1291
        %v1680 = vmul.f32 %v656, %v1301
        %v1681 = vmul.f32 %v657, %v1311
        %v1682 = vmul.f32 %v658, %v1321
        %v1683 = vmul.f32 %v659, %v1331
        %v1684 = vmul.f32 %v660, %v1341
        %v1685 = vmul.f32 %v661, %v1351
        %v1686 = vmul.f32 %v662, %v1361
        %v1687 = vmul.f32 %v663, %v1371
        %v1688 = vmul.f32 %v664, %v1381
        %v1689 = vmul.f32 %v665, %v1391
        %v1690 = vmul.f32 %v666, %v1401
        %v1691 = vmul.f32 %v667, %v1411
        %v1692 = vmul.f32 %v668, %v1421
        %v1693 = vmul.f32 %v669, %v1431
        %v1694 = vmul.f32 %v670, %v1441
        %v1695 = vmul.f32 %v671, %v1451
        %v1696 = vmul.f32 %v672, %v1461
        %v1697 = vmul.f32 %v673, %v1471
        %v1698 = vmul.f32 %v674, %v1481
        %v1699 = vmul.f32 %v675, %v1491
        %v1700 = vmul.f32 %v676, %v1501
        %v1701 = vmul.f32 %v677, %v1511
        %v1702 = vmul.f32 %v678, %v1521
        %v1703 = vmul.f32 %v679, %v1531
        %v1704 = vmul.f32 %v680, %v1541
        %v1705 = vmul.f32 %v681, %v1551
        %v1706 = vmul.f32 %v682, %v1561
        %v1707 = vmul.f32 %v683, %v1571
        %v1708 = vmul.f32 %v684, %v1581
        %v1709 = vmul.f32 %v685, %v1591
        %v1710 = vmul.f32 %v686, %v1601
        %v1711 = vmul.f32 %v687, %v1611
        %v1712 = vmul.f32 %v688, %v1621
        %v1713 = vmul.f32 %v689, %v1631
        %v1714 = vmul.f32 %v690, %v1641
        %v1715 = vmul.f32 %v691, %v1651
        %v1717 = vperm.slane %v427, 0
        %v1719 = vmul.f32 %v1652, %v1717
        %v1720 = vmul.f32 %v1653, %v1717
        %v1721 = vmul.f32 %v1654, %v1717
        %v1722 = vmul.f32 %v1655, %v1717
        %v1723 = vmul.f32 %v1656, %v1717
        %v1724 = vmul.f32 %v1657, %v1717
        %v1725 = vmul.f32 %v1658, %v1717
        %v1726 = vmul.f32 %v1659, %v1717
        %v1727 = vmul.f32 %v1660, %v1717
        %v1728 = vmul.f32 %v1661, %v1717
        %v1729 = vmul.f32 %v1662, %v1717
        %v1730 = vmul.f32 %v1663, %v1717
        %v1731 = vmul.f32 %v1664, %v1717
        %v1732 = vmul.f32 %v1665, %v1717
        %v1733 = vmul.f32 %v1666, %v1717
        %v1734 = vmul.f32 %v1667, %v1717
        %v1735 = vmul.f32 %v1668, %v1717
        %v1736 = vmul.f32 %v1669, %v1717
        %v1737 = vmul.f32 %v1670, %v1717
        %v1738 = vmul.f32 %v1671, %v1717
        %v1739 = vmul.f32 %v1672, %v1717
        %v1740 = vmul.f32 %v1673, %v1717
        %v1741 = vmul.f32 %v1674, %v1717
        %v1742 = vmul.f32 %v1675, %v1717
        %v1743 = vmul.f32 %v1676, %v1717
        %v1744 = vmul.f32 %v1677, %v1717
        %v1745 = vmul.f32 %v1678, %v1717
        %v1746 = vmul.f32 %v1679, %v1717
        %v1747 = vmul.f32 %v1680, %v1717
        %v1748 = vmul.f32 %v1681, %v1717
        %v1749 = vmul.f32 %v1682, %v1717
        %v1750 = vmul.f32 %v1683, %v1717
        %v1751 = vmul.f32 %v1684, %v1717
        %v1752 = vmul.f32 %v1685, %v1717
        %v1753 = vmul.f32 %v1686, %v1717
        %v1754 = vmul.f32 %v1687, %v1717
        %v1755 = vmul.f32 %v1688, %v1717
        %v1756 = vmul.f32 %v1689, %v1717
        %v1757 = vmul.f32 %v1690, %v1717
        %v1758 = vmul.f32 %v1691, %v1717
        %v1759 = vmul.f32 %v1692, %v1717
        %v1760 = vmul.f32 %v1693, %v1717
        %v1761 = vmul.f32 %v1694, %v1717
        %v1762 = vmul.f32 %v1695, %v1717
        %v1763 = vmul.f32 %v1696, %v1717
        %v1764 = vmul.f32 %v1697, %v1717
        %v1765 = vmul.f32 %v1698, %v1717
        %v1766 = vmul.f32 %v1699, %v1717
        %v1767 = vmul.f32 %v1700, %v1717
        %v1768 = vmul.f32 %v1701, %v1717
        %v1769 = vmul.f32 %v1702, %v1717
        %v1770 = vmul.f32 %v1703, %v1717
        %v1771 = vmul.f32 %v1704, %v1717
        %v1772 = vmul.f32 %v1705, %v1717
        %v1773 = vmul.f32 %v1706, %v1717
        %v1774 = vmul.f32 %v1707, %v1717
        %v1775 = vmul.f32 %v1708, %v1717
        %v1776 = vmul.f32 %v1709, %v1717
        %v1777 = vmul.f32 %v1710, %v1717
        %v1778 = vmul.f32 %v1711, %v1717
        %v1779 = vmul.f32 %v1712, %v1717
        %v1780 = vmul.f32 %v1713, %v1717
        %v1781 = vmul.f32 %v1714, %v1717
        %v1782 = vmul.f32 %v1715, %v1717
        %v1784 = vperm.slane %v428, 0
        %v1786 = vadd.f32 %v1719, %v1784
        %v1787 = vadd.f32 %v1720, %v1784
        %v1788 = vadd.f32 %v1721, %v1784
        %v1789 = vadd.f32 %v1722, %v1784
        %v1790 = vadd.f32 %v1723, %v1784
        %v1791 = vadd.f32 %v1724, %v1784
        %v1792 = vadd.f32 %v1725, %v1784
        %v1793 = vadd.f32 %v1726, %v1784
        %v1794 = vadd.f32 %v1727, %v1784
        %v1795 = vadd.f32 %v1728, %v1784
        %v1796 = vadd.f32 %v1729, %v1784
        %v1797 = vadd.f32 %v1730, %v1784
        %v1798 = vadd.f32 %v1731, %v1784
        %v1799 = vadd.f32 %v1732, %v1784
        %v1800 = vadd.f32 %v1733, %v1784
        %v1801 = vadd.f32 %v1734, %v1784
        %v1802 = vadd.f32 %v1735, %v1784
        %v1803 = vadd.f32 %v1736, %v1784
        %v1804 = vadd.f32 %v1737, %v1784
        %v1805 = vadd.f32 %v1738, %v1784
        %v1806 = vadd.f32 %v1739, %v1784
        %v1807 = vadd.f32 %v1740, %v1784
        %v1808 = vadd.f32 %v1741, %v1784
        %v1809 = vadd.f32 %v1742, %v1784
        %v1810 = vadd.f32 %v1743, %v1784
        %v1811 = vadd.f32 %v1744, %v1784
        %v1812 = vadd.f32 %v1745, %v1784
        %v1813 = vadd.f32 %v1746, %v1784
        %v1814 = vadd.f32 %v1747, %v1784
        %v1815 = vadd.f32 %v1748, %v1784
        %v1816 = vadd.f32 %v1749, %v1784
        %v1817 = vadd.f32 %v1750, %v1784
        %v1818 = vadd.f32 %v1751, %v1784
        %v1819 = vadd.f32 %v1752, %v1784
        %v1820 = vadd.f32 %v1753, %v1784
        %v1821 = vadd.f32 %v1754, %v1784
        %v1822 = vadd.f32 %v1755, %v1784
        %v1823 = vadd.f32 %v1756, %v1784
        %v1824 = vadd.f32 %v1757, %v1784
        %v1825 = vadd.f32 %v1758, %v1784
        %v1826 = vadd.f32 %v1759, %v1784
        %v1827 = vadd.f32 %v1760, %v1784
        %v1828 = vadd.f32 %v1761, %v1784
        %v1829 = vadd.f32 %v1762, %v1784
        %v1830 = vadd.f32 %v1763, %v1784
        %v1831 = vadd.f32 %v1764, %v1784
        %v1832 = vadd.f32 %v1765, %v1784
        %v1833 = vadd.f32 %v1766, %v1784
        %v1834 = vadd.f32 %v1767, %v1784
        %v1835 = vadd.f32 %v1768, %v1784
        %v1836 = vadd.f32 %v1769, %v1784
        %v1837 = vadd.f32 %v1770, %v1784
        %v1838 = vadd.f32 %v1771, %v1784
        %v1839 = vadd.f32 %v1772, %v1784
        %v1840 = vadd.f32 %v1773, %v1784
        %v1841 = vadd.f32 %v1774, %v1784
        %v1842 = vadd.f32 %v1775, %v1784
        %v1843 = vadd.f32 %v1776, %v1784
        %v1844 = vadd.f32 %v1777, %v1784
        %v1845 = vadd.f32 %v1778, %v1784
        %v1846 = vadd.f32 %v1779, %v1784
        %v1847 = vadd.f32 %v1780, %v1784
        %v1848 = vadd.f32 %v1781, %v1784
        %v1849 = vadd.f32 %v1782, %v1784
        %v1850 = vadd.f32 %v363, %v1786
        %v1851 = vadd.f32 %v364, %v1787
        %v1852 = vadd.f32 %v365, %v1788
        %v1853 = vadd.f32 %v366, %v1789
        %v1854 = vadd.f32 %v367, %v1790
        %v1855 = vadd.f32 %v368, %v1791
        %v1856 = vadd.f32 %v369, %v1792
        %v1857 = vadd.f32 %v370, %v1793
        %v1858 = vadd.f32 %v371, %v1794
        %v1859 = vadd.f32 %v372, %v1795
        %v1860 = vadd.f32 %v373, %v1796
        %v1861 = vadd.f32 %v374, %v1797
        %v1862 = vadd.f32 %v375, %v1798
        %v1863 = vadd.f32 %v376, %v1799
        %v1864 = vadd.f32 %v377, %v1800
        %v1865 = vadd.f32 %v378, %v1801
        %v1866 = vadd.f32 %v379, %v1802
        %v1867 = vadd.f32 %v380, %v1803
        %v1868 = vadd.f32 %v381, %v1804
        %v1869 = vadd.f32 %v382, %v1805
        %v1870 = vadd.f32 %v383, %v1806
        %v1871 = vadd.f32 %v384, %v1807
        %v1872 = vadd.f32 %v385, %v1808
        %v1873 = vadd.f32 %v386, %v1809
        %v1874 = vadd.f32 %v387, %v1810
        %v1875 = vadd.f32 %v388, %v1811
        %v1876 = vadd.f32 %v389, %v1812
        %v1877 = vadd.f32 %v390, %v1813
        %v1878 = vadd.f32 %v391, %v1814
        %v1879 = vadd.f32 %v392, %v1815
        %v1880 = vadd.f32 %v393, %v1816
        %v1881 = vadd.f32 %v394, %v1817
        %v1882 = vadd.f32 %v395, %v1818
        %v1883 = vadd.f32 %v396, %v1819
        %v1884 = vadd.f32 %v397, %v1820
        %v1885 = vadd.f32 %v398, %v1821
        %v1886 = vadd.f32 %v399, %v1822
        %v1887 = vadd.f32 %v400, %v1823
        %v1888 = vadd.f32 %v401, %v1824
        %v1889 = vadd.f32 %v402, %v1825
        %v1890 = vadd.f32 %v403, %v1826
        %v1891 = vadd.f32 %v404, %v1827
        %v1892 = vadd.f32 %v405, %v1828
        %v1893 = vadd.f32 %v406, %v1829
        %v1894 = vadd.f32 %v407, %v1830
        %v1895 = vadd.f32 %v408, %v1831
        %v1896 = vadd.f32 %v409, %v1832
        %v1897 = vadd.f32 %v410, %v1833
        %v1898 = vadd.f32 %v411, %v1834
        %v1899 = vadd.f32 %v412, %v1835
        %v1900 = vadd.f32 %v413, %v1836
        %v1901 = vadd.f32 %v414, %v1837
        %v1902 = vadd.f32 %v415, %v1838
        %v1903 = vadd.f32 %v416, %v1839
        %v1904 = vadd.f32 %v417, %v1840
        %v1905 = vadd.f32 %v418, %v1841
        %v1906 = vadd.f32 %v419, %v1842
        %v1907 = vadd.f32 %v420, %v1843
        %v1908 = vadd.f32 %v421, %v1844
        %v1909 = vadd.f32 %v422, %v1845
        %v1910 = vadd.f32 %v423, %v1846
        %v1911 = vadd.f32 %v424, %v1847
        %v1912 = vadd.f32 %v425, %v1848
        %v1913 = vadd.f32 %v426, %v1849
        %1914 = vadd.xlane.f32.xlu0 %v1850
        %v1915 = vpop.xlane.xlu0 %1914
        %1916 = vadd.xlane.f32.xlu0 %v1851
        %v1917 = vpop.xlane.xlu0 %1916
        %1918 = vadd.xlane.f32.xlu0 %v1852
        %v1919 = vpop.xlane.xlu0 %1918
        %1920 = vadd.xlane.f32.xlu0 %v1853
        %v1921 = vpop.xlane.xlu0 %1920
        %1922 = vadd.xlane.f32.xlu0 %v1854
        %v1923 = vpop.xlane.xlu0 %1922
        %1924 = vadd.xlane.f32.xlu0 %v1855
        %v1925 = vpop.xlane.xlu0 %1924
        %1926 = vadd.xlane.f32.xlu0 %v1856
        %v1927 = vpop.xlane.xlu0 %1926
        %1928 = vadd.xlane.f32.xlu0 %v1857
        %v1929 = vpop.xlane.xlu0 %1928
        %1930 = vadd.xlane.f32.xlu0 %v1858
        %v1931 = vpop.xlane.xlu0 %1930
        %1932 = vadd.xlane.f32.xlu0 %v1859
        %v1933 = vpop.xlane.xlu0 %1932
        %1934 = vadd.xlane.f32.xlu0 %v1860
        %v1935 = vpop.xlane.xlu0 %1934
        %1936 = vadd.xlane.f32.xlu0 %v1861
        %v1937 = vpop.xlane.xlu0 %1936
        %1938 = vadd.xlane.f32.xlu0 %v1862
        %v1939 = vpop.xlane.xlu0 %1938
        %1940 = vadd.xlane.f32.xlu0 %v1863
        %v1941 = vpop.xlane.xlu0 %1940
        %1942 = vadd.xlane.f32.xlu0 %v1864
        %v1943 = vpop.xlane.xlu0 %1942
        %1944 = vadd.xlane.f32.xlu0 %v1865
        %v1945 = vpop.xlane.xlu0 %1944
        %1946 = vadd.xlane.f32.xlu0 %v1866
        %v1947 = vpop.xlane.xlu0 %1946
        %1948 = vadd.xlane.f32.xlu0 %v1867
        %v1949 = vpop.xlane.xlu0 %1948
        %1950 = vadd.xlane.f32.xlu0 %v1868
        %v1951 = vpop.xlane.xlu0 %1950
        %1952 = vadd.xlane.f32.xlu0 %v1869
        %v1953 = vpop.xlane.xlu0 %1952
        %1954 = vadd.xlane.f32.xlu0 %v1870
        %v1955 = vpop.xlane.xlu0 %1954
        %1956 = vadd.xlane.f32.xlu0 %v1871
        %v1957 = vpop.xlane.xlu0 %1956
        %1958 = vadd.xlane.f32.xlu0 %v1872
        %v1959 = vpop.xlane.xlu0 %1958
        %1960 = vadd.xlane.f32.xlu0 %v1873
        %v1961 = vpop.xlane.xlu0 %1960
        %1962 = vadd.xlane.f32.xlu0 %v1874
        %v1963 = vpop.xlane.xlu0 %1962
        %1964 = vadd.xlane.f32.xlu0 %v1875
        %v1965 = vpop.xlane.xlu0 %1964
        %1966 = vadd.xlane.f32.xlu0 %v1876
        %v1967 = vpop.xlane.xlu0 %1966
        %1968 = vadd.xlane.f32.xlu0 %v1877
        %v1969 = vpop.xlane.xlu0 %1968
        %1970 = vadd.xlane.f32.xlu0 %v1878
        %v1971 = vpop.xlane.xlu0 %1970
        %1972 = vadd.xlane.f32.xlu0 %v1879
        %v1973 = vpop.xlane.xlu0 %1972
        %1974 = vadd.xlane.f32.xlu0 %v1880
        %v1975 = vpop.xlane.xlu0 %1974
        %1976 = vadd.xlane.f32.xlu0 %v1881
        %v1977 = vpop.xlane.xlu0 %1976
        %1978 = vadd.xlane.f32.xlu0 %v1882
        %v1979 = vpop.xlane.xlu0 %1978
        %1980 = vadd.xlane.f32.xlu0 %v1883
        %v1981 = vpop.xlane.xlu0 %1980
        %1982 = vadd.xlane.f32.xlu0 %v1884
        %v1983 = vpop.xlane.xlu0 %1982
        %1984 = vadd.xlane.f32.xlu0 %v1885
        %v1985 = vpop.xlane.xlu0 %1984
        %1986 = vadd.xlane.f32.xlu0 %v1886
        %v1987 = vpop.xlane.xlu0 %1986
        %1988 = vadd.xlane.f32.xlu0 %v1887
        %v1989 = vpop.xlane.xlu0 %1988
        %1990 = vadd.xlane.f32.xlu0 %v1888
        %v1991 = vpop.xlane.xlu0 %1990
        %1992 = vadd.xlane.f32.xlu0 %v1889
        %v1993 = vpop.xlane.xlu0 %1992
        %1994 = vadd.xlane.f32.xlu0 %v1890
        %v1995 = vpop.xlane.xlu0 %1994
        %1996 = vadd.xlane.f32.xlu0 %v1891
        %v1997 = vpop.xlane.xlu0 %1996
        %1998 = vadd.xlane.f32.xlu0 %v1892
        %v1999 = vpop.xlane.xlu0 %1998
        %2000 = vadd.xlane.f32.xlu0 %v1893
        %v2001 = vpop.xlane.xlu0 %2000
        %2002 = vadd.xlane.f32.xlu0 %v1894
        %v2003 = vpop.xlane.xlu0 %2002
        %2004 = vadd.xlane.f32.xlu0 %v1895
        %v2005 = vpop.xlane.xlu0 %2004
        %2006 = vadd.xlane.f32.xlu0 %v1896
        %v2007 = vpop.xlane.xlu0 %2006
        %2008 = vadd.xlane.f32.xlu0 %v1897
        %v2009 = vpop.xlane.xlu0 %2008
        %2010 = vadd.xlane.f32.xlu0 %v1898
        %v2011 = vpop.xlane.xlu0 %2010
        %2012 = vadd.xlane.f32.xlu0 %v1899
        %v2013 = vpop.xlane.xlu0 %2012
        %2014 = vadd.xlane.f32.xlu0 %v1900
        %v2015 = vpop.xlane.xlu0 %2014
        %2016 = vadd.xlane.f32.xlu0 %v1901
        %v2017 = vpop.xlane.xlu0 %2016
        %2018 = vadd.xlane.f32.xlu0 %v1902
        %v2019 = vpop.xlane.xlu0 %2018
        %2020 = vadd.xlane.f32.xlu0 %v1903
        %v2021 = vpop.xlane.xlu0 %2020
        %2022 = vadd.xlane.f32.xlu0 %v1904
        %v2023 = vpop.xlane.xlu0 %2022
        %2024 = vadd.xlane.f32.xlu0 %v1905
        %v2025 = vpop.xlane.xlu0 %2024
        %2026 = vadd.xlane.f32.xlu0 %v1906
        %v2027 = vpop.xlane.xlu0 %2026
        %2028 = vadd.xlane.f32.xlu0 %v1907
        %v2029 = vpop.xlane.xlu0 %2028
        %2030 = vadd.xlane.f32.xlu0 %v1908
        %v2031 = vpop.xlane.xlu0 %2030
        %2032 = vadd.xlane.f32.xlu0 %v1909
        %v2033 = vpop.xlane.xlu0 %2032
        %2034 = vadd.xlane.f32.xlu0 %v1910
        %v2035 = vpop.xlane.xlu0 %2034
        %2036 = vadd.xlane.f32.xlu0 %v1911
        %v2037 = vpop.xlane.xlu0 %2036
        %2038 = vadd.xlane.f32.xlu0 %v1912
        %v2039 = vpop.xlane.xlu0 %2038
        %2040 = vadd.xlane.f32.xlu0 %v1913
        %v2041 = vpop.xlane.xlu0 %2040
        %v2042 = vmul.f32 %v1915, %v563
        %v2043 = vmul.f32 %v1917, %v563
        %v2044 = vmul.f32 %v1919, %v563
        %v2045 = vmul.f32 %v1921, %v563
        %v2046 = vmul.f32 %v1923, %v563
        %v2047 = vmul.f32 %v1925, %v563
        %v2048 = vmul.f32 %v1927, %v563
        %v2049 = vmul.f32 %v1929, %v563
        %v2050 = vmul.f32 %v1931, %v563
        %v2051 = vmul.f32 %v1933, %v563
        %v2052 = vmul.f32 %v1935, %v563
        %v2053 = vmul.f32 %v1937, %v563
        %v2054 = vmul.f32 %v1939, %v563
        %v2055 = vmul.f32 %v1941, %v563
        %v2056 = vmul.f32 %v1943, %v563
        %v2057 = vmul.f32 %v1945, %v563
        %v2058 = vmul.f32 %v1947, %v563
        %v2059 = vmul.f32 %v1949, %v563
        %v2060 = vmul.f32 %v1951, %v563
        %v2061 = vmul.f32 %v1953, %v563
        %v2062 = vmul.f32 %v1955, %v563
        %v2063 = vmul.f32 %v1957, %v563
        %v2064 = vmul.f32 %v1959, %v563
        %v2065 = vmul.f32 %v1961, %v563
        %v2066 = vmul.f32 %v1963, %v563
        %v2067 = vmul.f32 %v1965, %v563
        %v2068 = vmul.f32 %v1967, %v563
        %v2069 = vmul.f32 %v1969, %v563
        %v2070 = vmul.f32 %v1971, %v563
        %v2071 = vmul.f32 %v1973, %v563
        %v2072 = vmul.f32 %v1975, %v563
        %v2073 = vmul.f32 %v1977, %v563
        %v2074 = vmul.f32 %v1979, %v563
        %v2075 = vmul.f32 %v1981, %v563
        %v2076 = vmul.f32 %v1983, %v563
        %v2077 = vmul.f32 %v1985, %v563
        %v2078 = vmul.f32 %v1987, %v563
        %v2079 = vmul.f32 %v1989, %v563
        %v2080 = vmul.f32 %v1991, %v563
        %v2081 = vmul.f32 %v1993, %v563
        %v2082 = vmul.f32 %v1995, %v563
        %v2083 = vmul.f32 %v1997, %v563
        %v2084 = vmul.f32 %v1999, %v563
        %v2085 = vmul.f32 %v2001, %v563
        %v2086 = vmul.f32 %v2003, %v563
        %v2087 = vmul.f32 %v2005, %v563
        %v2088 = vmul.f32 %v2007, %v563
        %v2089 = vmul.f32 %v2009, %v563
        %v2090 = vmul.f32 %v2011, %v563
        %v2091 = vmul.f32 %v2013, %v563
        %v2092 = vmul.f32 %v2015, %v563
        %v2093 = vmul.f32 %v2017, %v563
        %v2094 = vmul.f32 %v2019, %v563
        %v2095 = vmul.f32 %v2021, %v563
        %v2096 = vmul.f32 %v2023, %v563
        %v2097 = vmul.f32 %v2025, %v563
        %v2098 = vmul.f32 %v2027, %v563
        %v2099 = vmul.f32 %v2029, %v563
        %v2100 = vmul.f32 %v2031, %v563
        %v2101 = vmul.f32 %v2033, %v563
        %v2102 = vmul.f32 %v2035, %v563
        %v2103 = vmul.f32 %v2037, %v563
        %v2104 = vmul.f32 %v2039, %v563
        %v2105 = vmul.f32 %v2041, %v563
        %v2106 = vsub.f32 %v1850, %v2042
        %v2107 = vsub.f32 %v1851, %v2043
        %v2108 = vsub.f32 %v1852, %v2044
        %v2109 = vsub.f32 %v1853, %v2045
        %v2110 = vsub.f32 %v1854, %v2046
        %v2111 = vsub.f32 %v1855, %v2047
        %v2112 = vsub.f32 %v1856, %v2048
        %v2113 = vsub.f32 %v1857, %v2049
        %v2114 = vsub.f32 %v1858, %v2050
        %v2115 = vsub.f32 %v1859, %v2051
        %v2116 = vsub.f32 %v1860, %v2052
        %v2117 = vsub.f32 %v1861, %v2053
        %v2118 = vsub.f32 %v1862, %v2054
        %v2119 = vsub.f32 %v1863, %v2055
        %v2120 = vsub.f32 %v1864, %v2056
        %v2121 = vsub.f32 %v1865, %v2057
        %v2122 = vsub.f32 %v1866, %v2058
        %v2123 = vsub.f32 %v1867, %v2059
        %v2124 = vsub.f32 %v1868, %v2060
        %v2125 = vsub.f32 %v1869, %v2061
        %v2126 = vsub.f32 %v1870, %v2062
        %v2127 = vsub.f32 %v1871, %v2063
        %v2128 = vsub.f32 %v1872, %v2064
        %v2129 = vsub.f32 %v1873, %v2065
        %v2130 = vsub.f32 %v1874, %v2066
        %v2131 = vsub.f32 %v1875, %v2067
        %v2132 = vsub.f32 %v1876, %v2068
        %v2133 = vsub.f32 %v1877, %v2069
        %v2134 = vsub.f32 %v1878, %v2070
        %v2135 = vsub.f32 %v1879, %v2071
        %v2136 = vsub.f32 %v1880, %v2072
        %v2137 = vsub.f32 %v1881, %v2073
        %v2138 = vsub.f32 %v1882, %v2074
        %v2139 = vsub.f32 %v1883, %v2075
        %v2140 = vsub.f32 %v1884, %v2076
        %v2141 = vsub.f32 %v1885, %v2077
        %v2142 = vsub.f32 %v1886, %v2078
        %v2143 = vsub.f32 %v1887, %v2079
        %v2144 = vsub.f32 %v1888, %v2080
        %v2145 = vsub.f32 %v1889, %v2081
        %v2146 = vsub.f32 %v1890, %v2082
        %v2147 = vsub.f32 %v1891, %v2083
        %v2148 = vsub.f32 %v1892, %v2084
        %v2149 = vsub.f32 %v1893, %v2085
        %v2150 = vsub.f32 %v1894, %v2086
        %v2151 = vsub.f32 %v1895, %v2087
        %v2152 = vsub.f32 %v1896, %v2088
        %v2153 = vsub.f32 %v1897, %v2089
        %v2154 = vsub.f32 %v1898, %v2090
        %v2155 = vsub.f32 %v1899, %v2091
        %v2156 = vsub.f32 %v1900, %v2092
        %v2157 = vsub.f32 %v1901, %v2093
        %v2158 = vsub.f32 %v1902, %v2094
        %v2159 = vsub.f32 %v1903, %v2095
        %v2160 = vsub.f32 %v1904, %v2096
        %v2161 = vsub.f32 %v1905, %v2097
        %v2162 = vsub.f32 %v1906, %v2098
        %v2163 = vsub.f32 %v1907, %v2099
        %v2164 = vsub.f32 %v1908, %v2100
        %v2165 = vsub.f32 %v1909, %v2101
        %v2166 = vsub.f32 %v1910, %v2102
        %v2167 = vsub.f32 %v1911, %v2103
        %v2168 = vsub.f32 %v1912, %v2104
        %v2169 = vsub.f32 %v1913, %v2105
        %v2170 = vmul.f32 %v2106, %v2106
        %v2171 = vmul.f32 %v2107, %v2107
        %v2172 = vmul.f32 %v2108, %v2108
        %v2173 = vmul.f32 %v2109, %v2109
        %v2174 = vmul.f32 %v2110, %v2110
        %v2175 = vmul.f32 %v2111, %v2111
        %v2176 = vmul.f32 %v2112, %v2112
        %v2177 = vmul.f32 %v2113, %v2113
        %v2178 = vmul.f32 %v2114, %v2114
        %v2179 = vmul.f32 %v2115, %v2115
        %v2180 = vmul.f32 %v2116, %v2116
        %v2181 = vmul.f32 %v2117, %v2117
        %v2182 = vmul.f32 %v2118, %v2118
        %v2183 = vmul.f32 %v2119, %v2119
        %v2184 = vmul.f32 %v2120, %v2120
        %v2185 = vmul.f32 %v2121, %v2121
        %v2186 = vmul.f32 %v2122, %v2122
        %v2187 = vmul.f32 %v2123, %v2123
        %v2188 = vmul.f32 %v2124, %v2124
        %v2189 = vmul.f32 %v2125, %v2125
        %v2190 = vmul.f32 %v2126, %v2126
        %v2191 = vmul.f32 %v2127, %v2127
        %v2192 = vmul.f32 %v2128, %v2128
        %v2193 = vmul.f32 %v2129, %v2129
        %v2194 = vmul.f32 %v2130, %v2130
        %v2195 = vmul.f32 %v2131, %v2131
        %v2196 = vmul.f32 %v2132, %v2132
        %v2197 = vmul.f32 %v2133, %v2133
        %v2198 = vmul.f32 %v2134, %v2134
        %v2199 = vmul.f32 %v2135, %v2135
        %v2200 = vmul.f32 %v2136, %v2136
        %v2201 = vmul.f32 %v2137, %v2137
        %v2202 = vmul.f32 %v2138, %v2138
        %v2203 = vmul.f32 %v2139, %v2139
        %v2204 = vmul.f32 %v2140, %v2140
        %v2205 = vmul.f32 %v2141, %v2141
        %v2206 = vmul.f32 %v2142, %v2142
        %v2207 = vmul.f32 %v2143, %v2143
        %v2208 = vmul.f32 %v2144, %v2144
        %v2209 = vmul.f32 %v2145, %v2145
        %v2210 = vmul.f32 %v2146, %v2146
        %v2211 = vmul.f32 %v2147, %v2147
        %v2212 = vmul.f32 %v2148, %v2148
        %v2213 = vmul.f32 %v2149, %v2149
        %v2214 = vmul.f32 %v2150, %v2150
        %v2215 = vmul.f32 %v2151, %v2151
        %v2216 = vmul.f32 %v2152, %v2152
        %v2217 = vmul.f32 %v2153, %v2153
        %v2218 = vmul.f32 %v2154, %v2154
        %v2219 = vmul.f32 %v2155, %v2155
        %v2220 = vmul.f32 %v2156, %v2156
        %v2221 = vmul.f32 %v2157, %v2157
        %v2222 = vmul.f32 %v2158, %v2158
        %v2223 = vmul.f32 %v2159, %v2159
        %v2224 = vmul.f32 %v2160, %v2160
        %v2225 = vmul.f32 %v2161, %v2161
        %v2226 = vmul.f32 %v2162, %v2162
        %v2227 = vmul.f32 %v2163, %v2163
        %v2228 = vmul.f32 %v2164, %v2164
        %v2229 = vmul.f32 %v2165, %v2165
        %v2230 = vmul.f32 %v2166, %v2166
        %v2231 = vmul.f32 %v2167, %v2167
        %v2232 = vmul.f32 %v2168, %v2168
        %v2233 = vmul.f32 %v2169, %v2169
        %2234 = vadd.xlane.f32.xlu0 %v2170
        %v2235 = vpop.xlane.xlu0 %2234
        %2236 = vadd.xlane.f32.xlu0 %v2171
        %v2237 = vpop.xlane.xlu0 %2236
        %2238 = vadd.xlane.f32.xlu0 %v2172
        %v2239 = vpop.xlane.xlu0 %2238
        %2240 = vadd.xlane.f32.xlu0 %v2173
        %v2241 = vpop.xlane.xlu0 %2240
        %2242 = vadd.xlane.f32.xlu0 %v2174
        %v2243 = vpop.xlane.xlu0 %2242
        %2244 = vadd.xlane.f32.xlu0 %v2175
        %v2245 = vpop.xlane.xlu0 %2244
        %2246 = vadd.xlane.f32.xlu0 %v2176
        %v2247 = vpop.xlane.xlu0 %2246
        %2248 = vadd.xlane.f32.xlu0 %v2177
        %v2249 = vpop.xlane.xlu0 %2248
        %2250 = vadd.xlane.f32.xlu0 %v2178
        %v2251 = vpop.xlane.xlu0 %2250
        %2252 = vadd.xlane.f32.xlu0 %v2179
        %v2253 = vpop.xlane.xlu0 %2252
        %2254 = vadd.xlane.f32.xlu0 %v2180
        %v2255 = vpop.xlane.xlu0 %2254
        %2256 = vadd.xlane.f32.xlu0 %v2181
        %v2257 = vpop.xlane.xlu0 %2256
        %2258 = vadd.xlane.f32.xlu0 %v2182
        %v2259 = vpop.xlane.xlu0 %2258
        %2260 = vadd.xlane.f32.xlu0 %v2183
        %v2261 = vpop.xlane.xlu0 %2260
        %2262 = vadd.xlane.f32.xlu0 %v2184
        %v2263 = vpop.xlane.xlu0 %2262
        %2264 = vadd.xlane.f32.xlu0 %v2185
        %v2265 = vpop.xlane.xlu0 %2264
        %2266 = vadd.xlane.f32.xlu0 %v2186
        %v2267 = vpop.xlane.xlu0 %2266
        %2268 = vadd.xlane.f32.xlu0 %v2187
        %v2269 = vpop.xlane.xlu0 %2268
        %2270 = vadd.xlane.f32.xlu0 %v2188
        %v2271 = vpop.xlane.xlu0 %2270
        %2272 = vadd.xlane.f32.xlu0 %v2189
        %v2273 = vpop.xlane.xlu0 %2272
        %2274 = vadd.xlane.f32.xlu0 %v2190
        %v2275 = vpop.xlane.xlu0 %2274
        %2276 = vadd.xlane.f32.xlu0 %v2191
        %v2277 = vpop.xlane.xlu0 %2276
        %2278 = vadd.xlane.f32.xlu0 %v2192
        %v2279 = vpop.xlane.xlu0 %2278
        %2280 = vadd.xlane.f32.xlu0 %v2193
        %v2281 = vpop.xlane.xlu0 %2280
        %2282 = vadd.xlane.f32.xlu0 %v2194
        %v2283 = vpop.xlane.xlu0 %2282
        %2284 = vadd.xlane.f32.xlu0 %v2195
        %v2285 = vpop.xlane.xlu0 %2284
        %2286 = vadd.xlane.f32.xlu0 %v2196
        %v2287 = vpop.xlane.xlu0 %2286
        %2288 = vadd.xlane.f32.xlu0 %v2197
        %v2289 = vpop.xlane.xlu0 %2288
        %2290 = vadd.xlane.f32.xlu0 %v2198
        %v2291 = vpop.xlane.xlu0 %2290
        %2292 = vadd.xlane.f32.xlu0 %v2199
        %v2293 = vpop.xlane.xlu0 %2292
        %2294 = vadd.xlane.f32.xlu0 %v2200
        %v2295 = vpop.xlane.xlu0 %2294
        %2296 = vadd.xlane.f32.xlu0 %v2201
        %v2297 = vpop.xlane.xlu0 %2296
        %2298 = vadd.xlane.f32.xlu0 %v2202
        %v2299 = vpop.xlane.xlu0 %2298
        %2300 = vadd.xlane.f32.xlu0 %v2203
        %v2301 = vpop.xlane.xlu0 %2300
        %2302 = vadd.xlane.f32.xlu0 %v2204
        %v2303 = vpop.xlane.xlu0 %2302
        %2304 = vadd.xlane.f32.xlu0 %v2205
        %v2305 = vpop.xlane.xlu0 %2304
        %2306 = vadd.xlane.f32.xlu0 %v2206
        %v2307 = vpop.xlane.xlu0 %2306
        %2308 = vadd.xlane.f32.xlu0 %v2207
        %v2309 = vpop.xlane.xlu0 %2308
        %2310 = vadd.xlane.f32.xlu0 %v2208
        %v2311 = vpop.xlane.xlu0 %2310
        %2312 = vadd.xlane.f32.xlu0 %v2209
        %v2313 = vpop.xlane.xlu0 %2312
        %2314 = vadd.xlane.f32.xlu0 %v2210
        %v2315 = vpop.xlane.xlu0 %2314
        %2316 = vadd.xlane.f32.xlu0 %v2211
        %v2317 = vpop.xlane.xlu0 %2316
        %2318 = vadd.xlane.f32.xlu0 %v2212
        %v2319 = vpop.xlane.xlu0 %2318
        %2320 = vadd.xlane.f32.xlu0 %v2213
        %v2321 = vpop.xlane.xlu0 %2320
        %2322 = vadd.xlane.f32.xlu0 %v2214
        %v2323 = vpop.xlane.xlu0 %2322
        %2324 = vadd.xlane.f32.xlu0 %v2215
        %v2325 = vpop.xlane.xlu0 %2324
        %2326 = vadd.xlane.f32.xlu0 %v2216
        %v2327 = vpop.xlane.xlu0 %2326
        %2328 = vadd.xlane.f32.xlu0 %v2217
        %v2329 = vpop.xlane.xlu0 %2328
        %2330 = vadd.xlane.f32.xlu0 %v2218
        %v2331 = vpop.xlane.xlu0 %2330
        %2332 = vadd.xlane.f32.xlu0 %v2219
        %v2333 = vpop.xlane.xlu0 %2332
        %2334 = vadd.xlane.f32.xlu0 %v2220
        %v2335 = vpop.xlane.xlu0 %2334
        %2336 = vadd.xlane.f32.xlu0 %v2221
        %v2337 = vpop.xlane.xlu0 %2336
        %2338 = vadd.xlane.f32.xlu0 %v2222
        %v2339 = vpop.xlane.xlu0 %2338
        %2340 = vadd.xlane.f32.xlu0 %v2223
        %v2341 = vpop.xlane.xlu0 %2340
        %2342 = vadd.xlane.f32.xlu0 %v2224
        %v2343 = vpop.xlane.xlu0 %2342
        %2344 = vadd.xlane.f32.xlu0 %v2225
        %v2345 = vpop.xlane.xlu0 %2344
        %2346 = vadd.xlane.f32.xlu0 %v2226
        %v2347 = vpop.xlane.xlu0 %2346
        %2348 = vadd.xlane.f32.xlu0 %v2227
        %v2349 = vpop.xlane.xlu0 %2348
        %2350 = vadd.xlane.f32.xlu0 %v2228
        %v2351 = vpop.xlane.xlu0 %2350
        %2352 = vadd.xlane.f32.xlu0 %v2229
        %v2353 = vpop.xlane.xlu0 %2352
        %2354 = vadd.xlane.f32.xlu0 %v2230
        %v2355 = vpop.xlane.xlu0 %2354
        %2356 = vadd.xlane.f32.xlu0 %v2231
        %v2357 = vpop.xlane.xlu0 %2356
        %2358 = vadd.xlane.f32.xlu0 %v2232
        %v2359 = vpop.xlane.xlu0 %2358
        %2360 = vadd.xlane.f32.xlu0 %v2233
        %v2361 = vpop.xlane.xlu0 %2360
        %v2362 = vmul.f32 %v2235, %v563
        %v2363 = vmul.f32 %v2237, %v563
        %v2364 = vmul.f32 %v2239, %v563
        %v2365 = vmul.f32 %v2241, %v563
        %v2366 = vmul.f32 %v2243, %v563
        %v2367 = vmul.f32 %v2245, %v563
        %v2368 = vmul.f32 %v2247, %v563
        %v2369 = vmul.f32 %v2249, %v563
        %v2370 = vmul.f32 %v2251, %v563
        %v2371 = vmul.f32 %v2253, %v563
        %v2372 = vmul.f32 %v2255, %v563
        %v2373 = vmul.f32 %v2257, %v563
        %v2374 = vmul.f32 %v2259, %v563
        %v2375 = vmul.f32 %v2261, %v563
        %v2376 = vmul.f32 %v2263, %v563
        %v2377 = vmul.f32 %v2265, %v563
        %v2378 = vmul.f32 %v2267, %v563
        %v2379 = vmul.f32 %v2269, %v563
        %v2380 = vmul.f32 %v2271, %v563
        %v2381 = vmul.f32 %v2273, %v563
        %v2382 = vmul.f32 %v2275, %v563
        %v2383 = vmul.f32 %v2277, %v563
        %v2384 = vmul.f32 %v2279, %v563
        %v2385 = vmul.f32 %v2281, %v563
        %v2386 = vmul.f32 %v2283, %v563
        %v2387 = vmul.f32 %v2285, %v563
        %v2388 = vmul.f32 %v2287, %v563
        %v2389 = vmul.f32 %v2289, %v563
        %v2390 = vmul.f32 %v2291, %v563
        %v2391 = vmul.f32 %v2293, %v563
        %v2392 = vmul.f32 %v2295, %v563
        %v2393 = vmul.f32 %v2297, %v563
        %v2394 = vmul.f32 %v2299, %v563
        %v2395 = vmul.f32 %v2301, %v563
        %v2396 = vmul.f32 %v2303, %v563
        %v2397 = vmul.f32 %v2305, %v563
        %v2398 = vmul.f32 %v2307, %v563
        %v2399 = vmul.f32 %v2309, %v563
        %v2400 = vmul.f32 %v2311, %v563
        %v2401 = vmul.f32 %v2313, %v563
        %v2402 = vmul.f32 %v2315, %v563
        %v2403 = vmul.f32 %v2317, %v563
        %v2404 = vmul.f32 %v2319, %v563
        %v2405 = vmul.f32 %v2321, %v563
        %v2406 = vmul.f32 %v2323, %v563
        %v2407 = vmul.f32 %v2325, %v563
        %v2408 = vmul.f32 %v2327, %v563
        %v2409 = vmul.f32 %v2329, %v563
        %v2410 = vmul.f32 %v2331, %v563
        %v2411 = vmul.f32 %v2333, %v563
        %v2412 = vmul.f32 %v2335, %v563
        %v2413 = vmul.f32 %v2337, %v563
        %v2414 = vmul.f32 %v2339, %v563
        %v2415 = vmul.f32 %v2341, %v563
        %v2416 = vmul.f32 %v2343, %v563
        %v2417 = vmul.f32 %v2345, %v563
        %v2418 = vmul.f32 %v2347, %v563
        %v2419 = vmul.f32 %v2349, %v563
        %v2420 = vmul.f32 %v2351, %v563
        %v2421 = vmul.f32 %v2353, %v563
        %v2422 = vmul.f32 %v2355, %v563
        %v2423 = vmul.f32 %v2357, %v563
        %v2424 = vmul.f32 %v2359, %v563
        %v2425 = vmul.f32 %v2361, %v563
        %v2426 = vadd.f32 %v2362, 1e-06
        %v2427 = vadd.f32 %v2363, 1e-06
        %v2428 = vadd.f32 %v2364, 1e-06
        %v2429 = vadd.f32 %v2365, 1e-06
        %v2430 = vadd.f32 %v2366, 1e-06
        %v2431 = vadd.f32 %v2367, 1e-06
        %v2432 = vadd.f32 %v2368, 1e-06
        %v2433 = vadd.f32 %v2369, 1e-06
        %v2434 = vadd.f32 %v2370, 1e-06
        %v2435 = vadd.f32 %v2371, 1e-06
        %v2436 = vadd.f32 %v2372, 1e-06
        %v2437 = vadd.f32 %v2373, 1e-06
        %v2438 = vadd.f32 %v2374, 1e-06
        %v2439 = vadd.f32 %v2375, 1e-06
        %v2440 = vadd.f32 %v2376, 1e-06
        %v2441 = vadd.f32 %v2377, 1e-06
        %v2442 = vadd.f32 %v2378, 1e-06
        %v2443 = vadd.f32 %v2379, 1e-06
        %v2444 = vadd.f32 %v2380, 1e-06
        %v2445 = vadd.f32 %v2381, 1e-06
        %v2446 = vadd.f32 %v2382, 1e-06
        %v2447 = vadd.f32 %v2383, 1e-06
        %v2448 = vadd.f32 %v2384, 1e-06
        %v2449 = vadd.f32 %v2385, 1e-06
        %v2450 = vadd.f32 %v2386, 1e-06
        %v2451 = vadd.f32 %v2387, 1e-06
        %v2452 = vadd.f32 %v2388, 1e-06
        %v2453 = vadd.f32 %v2389, 1e-06
        %v2454 = vadd.f32 %v2390, 1e-06
        %v2455 = vadd.f32 %v2391, 1e-06
        %v2456 = vadd.f32 %v2392, 1e-06
        %v2457 = vadd.f32 %v2393, 1e-06
        %v2458 = vadd.f32 %v2394, 1e-06
        %v2459 = vadd.f32 %v2395, 1e-06
        %v2460 = vadd.f32 %v2396, 1e-06
        %v2461 = vadd.f32 %v2397, 1e-06
        %v2462 = vadd.f32 %v2398, 1e-06
        %v2463 = vadd.f32 %v2399, 1e-06
        %v2464 = vadd.f32 %v2400, 1e-06
        %v2465 = vadd.f32 %v2401, 1e-06
        %v2466 = vadd.f32 %v2402, 1e-06
        %v2467 = vadd.f32 %v2403, 1e-06
        %v2468 = vadd.f32 %v2404, 1e-06
        %v2469 = vadd.f32 %v2405, 1e-06
        %v2470 = vadd.f32 %v2406, 1e-06
        %v2471 = vadd.f32 %v2407, 1e-06
        %v2472 = vadd.f32 %v2408, 1e-06
        %v2473 = vadd.f32 %v2409, 1e-06
        %v2474 = vadd.f32 %v2410, 1e-06
        %v2475 = vadd.f32 %v2411, 1e-06
        %v2476 = vadd.f32 %v2412, 1e-06
        %v2477 = vadd.f32 %v2413, 1e-06
        %v2478 = vadd.f32 %v2414, 1e-06
        %v2479 = vadd.f32 %v2415, 1e-06
        %v2480 = vadd.f32 %v2416, 1e-06
        %v2481 = vadd.f32 %v2417, 1e-06
        %v2482 = vadd.f32 %v2418, 1e-06
        %v2483 = vadd.f32 %v2419, 1e-06
        %v2484 = vadd.f32 %v2420, 1e-06
        %v2485 = vadd.f32 %v2421, 1e-06
        %v2486 = vadd.f32 %v2422, 1e-06
        %v2487 = vadd.f32 %v2423, 1e-06
        %v2488 = vadd.f32 %v2424, 1e-06
        %v2489 = vadd.f32 %v2425, 1e-06
        %v2490 = vrsqrt.pop %v2426
        %v2491 = vmul.f32 %v2490, %v2426
        %v2492 = vmul.f32 %v2491, %v2490
        %v2493 = vmul.f32 0.5, %v2492
        %v2494 = vsub.f32 1.5, %v2493
        %v2495 = vmul.f32 %v2490, %v2494
        %vm2496 = vweird.f32 %v2426
        %vm2497 = vweird.f32 %v2490
        %vm2498 = vmor %vm2496, %vm2497
        %v2499 = vsel %vm2498, %v2490, %v2495
        %v2500 = vrsqrt.pop %v2427
        %v2501 = vmul.f32 %v2500, %v2427
        %v2502 = vmul.f32 %v2501, %v2500
        %v2503 = vmul.f32 0.5, %v2502
        %v2504 = vsub.f32 1.5, %v2503
        %v2505 = vmul.f32 %v2500, %v2504
        %vm2506 = vweird.f32 %v2427
        %vm2507 = vweird.f32 %v2500
        %vm2508 = vmor %vm2506, %vm2507
        %v2509 = vsel %vm2508, %v2500, %v2505
        %v2510 = vrsqrt.pop %v2428
        %v2511 = vmul.f32 %v2510, %v2428
        %v2512 = vmul.f32 %v2511, %v2510
        %v2513 = vmul.f32 0.5, %v2512
        %v2514 = vsub.f32 1.5, %v2513
        %v2515 = vmul.f32 %v2510, %v2514
        %vm2516 = vweird.f32 %v2428
        %vm2517 = vweird.f32 %v2510
        %vm2518 = vmor %vm2516, %vm2517
        %v2519 = vsel %vm2518, %v2510, %v2515
        %v2520 = vrsqrt.pop %v2429
        %v2521 = vmul.f32 %v2520, %v2429
        %v2522 = vmul.f32 %v2521, %v2520
        %v2523 = vmul.f32 0.5, %v2522
        %v2524 = vsub.f32 1.5, %v2523
        %v2525 = vmul.f32 %v2520, %v2524
        %vm2526 = vweird.f32 %v2429
        %vm2527 = vweird.f32 %v2520
        %vm2528 = vmor %vm2526, %vm2527
        %v2529 = vsel %vm2528, %v2520, %v2525
        %v2530 = vrsqrt.pop %v2430
        %v2531 = vmul.f32 %v2530, %v2430
        %v2532 = vmul.f32 %v2531, %v2530
        %v2533 = vmul.f32 0.5, %v2532
        %v2534 = vsub.f32 1.5, %v2533
        %v2535 = vmul.f32 %v2530, %v2534
        %vm2536 = vweird.f32 %v2430
        %vm2537 = vweird.f32 %v2530
        %vm2538 = vmor %vm2536, %vm2537
        %v2539 = vsel %vm2538, %v2530, %v2535
        %v2540 = vrsqrt.pop %v2431
        %v2541 = vmul.f32 %v2540, %v2431
        %v2542 = vmul.f32 %v2541, %v2540
        %v2543 = vmul.f32 0.5, %v2542
        %v2544 = vsub.f32 1.5, %v2543
        %v2545 = vmul.f32 %v2540, %v2544
        %vm2546 = vweird.f32 %v2431
        %vm2547 = vweird.f32 %v2540
        %vm2548 = vmor %vm2546, %vm2547
        %v2549 = vsel %vm2548, %v2540, %v2545
        %v2550 = vrsqrt.pop %v2432
        %v2551 = vmul.f32 %v2550, %v2432
        %v2552 = vmul.f32 %v2551, %v2550
        %v2553 = vmul.f32 0.5, %v2552
        %v2554 = vsub.f32 1.5, %v2553
        %v2555 = vmul.f32 %v2550, %v2554
        %vm2556 = vweird.f32 %v2432
        %vm2557 = vweird.f32 %v2550
        %vm2558 = vmor %vm2556, %vm2557
        %v2559 = vsel %vm2558, %v2550, %v2555
        %v2560 = vrsqrt.pop %v2433
        %v2561 = vmul.f32 %v2560, %v2433
        %v2562 = vmul.f32 %v2561, %v2560
        %v2563 = vmul.f32 0.5, %v2562
        %v2564 = vsub.f32 1.5, %v2563
        %v2565 = vmul.f32 %v2560, %v2564
        %vm2566 = vweird.f32 %v2433
        %vm2567 = vweird.f32 %v2560
        %vm2568 = vmor %vm2566, %vm2567
        %v2569 = vsel %vm2568, %v2560, %v2565
        %v2570 = vrsqrt.pop %v2434
        %v2571 = vmul.f32 %v2570, %v2434
        %v2572 = vmul.f32 %v2571, %v2570
        %v2573 = vmul.f32 0.5, %v2572
        %v2574 = vsub.f32 1.5, %v2573
        %v2575 = vmul.f32 %v2570, %v2574
        %vm2576 = vweird.f32 %v2434
        %vm2577 = vweird.f32 %v2570
        %vm2578 = vmor %vm2576, %vm2577
        %v2579 = vsel %vm2578, %v2570, %v2575
        %v2580 = vrsqrt.pop %v2435
        %v2581 = vmul.f32 %v2580, %v2435
        %v2582 = vmul.f32 %v2581, %v2580
        %v2583 = vmul.f32 0.5, %v2582
        %v2584 = vsub.f32 1.5, %v2583
        %v2585 = vmul.f32 %v2580, %v2584
        %vm2586 = vweird.f32 %v2435
        %vm2587 = vweird.f32 %v2580
        %vm2588 = vmor %vm2586, %vm2587
        %v2589 = vsel %vm2588, %v2580, %v2585
        %v2590 = vrsqrt.pop %v2436
        %v2591 = vmul.f32 %v2590, %v2436
        %v2592 = vmul.f32 %v2591, %v2590
        %v2593 = vmul.f32 0.5, %v2592
        %v2594 = vsub.f32 1.5, %v2593
        %v2595 = vmul.f32 %v2590, %v2594
        %vm2596 = vweird.f32 %v2436
        %vm2597 = vweird.f32 %v2590
        %vm2598 = vmor %vm2596, %vm2597
        %v2599 = vsel %vm2598, %v2590, %v2595
        %v2600 = vrsqrt.pop %v2437
        %v2601 = vmul.f32 %v2600, %v2437
        %v2602 = vmul.f32 %v2601, %v2600
        %v2603 = vmul.f32 0.5, %v2602
        %v2604 = vsub.f32 1.5, %v2603
        %v2605 = vmul.f32 %v2600, %v2604
        %vm2606 = vweird.f32 %v2437
        %vm2607 = vweird.f32 %v2600
        %vm2608 = vmor %vm2606, %vm2607
        %v2609 = vsel %vm2608, %v2600, %v2605
        %v2610 = vrsqrt.pop %v2438
        %v2611 = vmul.f32 %v2610, %v2438
        %v2612 = vmul.f32 %v2611, %v2610
        %v2613 = vmul.f32 0.5, %v2612
        %v2614 = vsub.f32 1.5, %v2613
        %v2615 = vmul.f32 %v2610, %v2614
        %vm2616 = vweird.f32 %v2438
        %vm2617 = vweird.f32 %v2610
        %vm2618 = vmor %vm2616, %vm2617
        %v2619 = vsel %vm2618, %v2610, %v2615
        %v2620 = vrsqrt.pop %v2439
        %v2621 = vmul.f32 %v2620, %v2439
        %v2622 = vmul.f32 %v2621, %v2620
        %v2623 = vmul.f32 0.5, %v2622
        %v2624 = vsub.f32 1.5, %v2623
        %v2625 = vmul.f32 %v2620, %v2624
        %vm2626 = vweird.f32 %v2439
        %vm2627 = vweird.f32 %v2620
        %vm2628 = vmor %vm2626, %vm2627
        %v2629 = vsel %vm2628, %v2620, %v2625
        %v2630 = vrsqrt.pop %v2440
        %v2631 = vmul.f32 %v2630, %v2440
        %v2632 = vmul.f32 %v2631, %v2630
        %v2633 = vmul.f32 0.5, %v2632
        %v2634 = vsub.f32 1.5, %v2633
        %v2635 = vmul.f32 %v2630, %v2634
        %vm2636 = vweird.f32 %v2440
        %vm2637 = vweird.f32 %v2630
        %vm2638 = vmor %vm2636, %vm2637
        %v2639 = vsel %vm2638, %v2630, %v2635
        %v2640 = vrsqrt.pop %v2441
        %v2641 = vmul.f32 %v2640, %v2441
        %v2642 = vmul.f32 %v2641, %v2640
        %v2643 = vmul.f32 0.5, %v2642
        %v2644 = vsub.f32 1.5, %v2643
        %v2645 = vmul.f32 %v2640, %v2644
        %vm2646 = vweird.f32 %v2441
        %vm2647 = vweird.f32 %v2640
        %vm2648 = vmor %vm2646, %vm2647
        %v2649 = vsel %vm2648, %v2640, %v2645
        %v2650 = vrsqrt.pop %v2442
        %v2651 = vmul.f32 %v2650, %v2442
        %v2652 = vmul.f32 %v2651, %v2650
        %v2653 = vmul.f32 0.5, %v2652
        %v2654 = vsub.f32 1.5, %v2653
        %v2655 = vmul.f32 %v2650, %v2654
        %vm2656 = vweird.f32 %v2442
        %vm2657 = vweird.f32 %v2650
        %vm2658 = vmor %vm2656, %vm2657
        %v2659 = vsel %vm2658, %v2650, %v2655
        %v2660 = vrsqrt.pop %v2443
        %v2661 = vmul.f32 %v2660, %v2443
        %v2662 = vmul.f32 %v2661, %v2660
        %v2663 = vmul.f32 0.5, %v2662
        %v2664 = vsub.f32 1.5, %v2663
        %v2665 = vmul.f32 %v2660, %v2664
        %vm2666 = vweird.f32 %v2443
        %vm2667 = vweird.f32 %v2660
        %vm2668 = vmor %vm2666, %vm2667
        %v2669 = vsel %vm2668, %v2660, %v2665
        %v2670 = vrsqrt.pop %v2444
        %v2671 = vmul.f32 %v2670, %v2444
        %v2672 = vmul.f32 %v2671, %v2670
        %v2673 = vmul.f32 0.5, %v2672
        %v2674 = vsub.f32 1.5, %v2673
        %v2675 = vmul.f32 %v2670, %v2674
        %vm2676 = vweird.f32 %v2444
        %vm2677 = vweird.f32 %v2670
        %vm2678 = vmor %vm2676, %vm2677
        %v2679 = vsel %vm2678, %v2670, %v2675
        %v2680 = vrsqrt.pop %v2445
        %v2681 = vmul.f32 %v2680, %v2445
        %v2682 = vmul.f32 %v2681, %v2680
        %v2683 = vmul.f32 0.5, %v2682
        %v2684 = vsub.f32 1.5, %v2683
        %v2685 = vmul.f32 %v2680, %v2684
        %vm2686 = vweird.f32 %v2445
        %vm2687 = vweird.f32 %v2680
        %vm2688 = vmor %vm2686, %vm2687
        %v2689 = vsel %vm2688, %v2680, %v2685
        %v2690 = vrsqrt.pop %v2446
        %v2691 = vmul.f32 %v2690, %v2446
        %v2692 = vmul.f32 %v2691, %v2690
        %v2693 = vmul.f32 0.5, %v2692
        %v2694 = vsub.f32 1.5, %v2693
        %v2695 = vmul.f32 %v2690, %v2694
        %vm2696 = vweird.f32 %v2446
        %vm2697 = vweird.f32 %v2690
        %vm2698 = vmor %vm2696, %vm2697
        %v2699 = vsel %vm2698, %v2690, %v2695
        %v2700 = vrsqrt.pop %v2447
        %v2701 = vmul.f32 %v2700, %v2447
        %v2702 = vmul.f32 %v2701, %v2700
        %v2703 = vmul.f32 0.5, %v2702
        %v2704 = vsub.f32 1.5, %v2703
        %v2705 = vmul.f32 %v2700, %v2704
        %vm2706 = vweird.f32 %v2447
        %vm2707 = vweird.f32 %v2700
        %vm2708 = vmor %vm2706, %vm2707
        %v2709 = vsel %vm2708, %v2700, %v2705
        %v2710 = vrsqrt.pop %v2448
        %v2711 = vmul.f32 %v2710, %v2448
        %v2712 = vmul.f32 %v2711, %v2710
        %v2713 = vmul.f32 0.5, %v2712
        %v2714 = vsub.f32 1.5, %v2713
        %v2715 = vmul.f32 %v2710, %v2714
        %vm2716 = vweird.f32 %v2448
        %vm2717 = vweird.f32 %v2710
        %vm2718 = vmor %vm2716, %vm2717
        %v2719 = vsel %vm2718, %v2710, %v2715
        %v2720 = vrsqrt.pop %v2449
        %v2721 = vmul.f32 %v2720, %v2449
        %v2722 = vmul.f32 %v2721, %v2720
        %v2723 = vmul.f32 0.5, %v2722
        %v2724 = vsub.f32 1.5, %v2723
        %v2725 = vmul.f32 %v2720, %v2724
        %vm2726 = vweird.f32 %v2449
        %vm2727 = vweird.f32 %v2720
        %vm2728 = vmor %vm2726, %vm2727
        %v2729 = vsel %vm2728, %v2720, %v2725
        %v2730 = vrsqrt.pop %v2450
        %v2731 = vmul.f32 %v2730, %v2450
        %v2732 = vmul.f32 %v2731, %v2730
        %v2733 = vmul.f32 0.5, %v2732
        %v2734 = vsub.f32 1.5, %v2733
        %v2735 = vmul.f32 %v2730, %v2734
        %vm2736 = vweird.f32 %v2450
        %vm2737 = vweird.f32 %v2730
        %vm2738 = vmor %vm2736, %vm2737
        %v2739 = vsel %vm2738, %v2730, %v2735
        %v2740 = vrsqrt.pop %v2451
        %v2741 = vmul.f32 %v2740, %v2451
        %v2742 = vmul.f32 %v2741, %v2740
        %v2743 = vmul.f32 0.5, %v2742
        %v2744 = vsub.f32 1.5, %v2743
        %v2745 = vmul.f32 %v2740, %v2744
        %vm2746 = vweird.f32 %v2451
        %vm2747 = vweird.f32 %v2740
        %vm2748 = vmor %vm2746, %vm2747
        %v2749 = vsel %vm2748, %v2740, %v2745
        %v2750 = vrsqrt.pop %v2452
        %v2751 = vmul.f32 %v2750, %v2452
        %v2752 = vmul.f32 %v2751, %v2750
        %v2753 = vmul.f32 0.5, %v2752
        %v2754 = vsub.f32 1.5, %v2753
        %v2755 = vmul.f32 %v2750, %v2754
        %vm2756 = vweird.f32 %v2452
        %vm2757 = vweird.f32 %v2750
        %vm2758 = vmor %vm2756, %vm2757
        %v2759 = vsel %vm2758, %v2750, %v2755
        %v2760 = vrsqrt.pop %v2453
        %v2761 = vmul.f32 %v2760, %v2453
        %v2762 = vmul.f32 %v2761, %v2760
        %v2763 = vmul.f32 0.5, %v2762
        %v2764 = vsub.f32 1.5, %v2763
        %v2765 = vmul.f32 %v2760, %v2764
        %vm2766 = vweird.f32 %v2453
        %vm2767 = vweird.f32 %v2760
        %vm2768 = vmor %vm2766, %vm2767
        %v2769 = vsel %vm2768, %v2760, %v2765
        %v2770 = vrsqrt.pop %v2454
        %v2771 = vmul.f32 %v2770, %v2454
        %v2772 = vmul.f32 %v2771, %v2770
        %v2773 = vmul.f32 0.5, %v2772
        %v2774 = vsub.f32 1.5, %v2773
        %v2775 = vmul.f32 %v2770, %v2774
        %vm2776 = vweird.f32 %v2454
        %vm2777 = vweird.f32 %v2770
        %vm2778 = vmor %vm2776, %vm2777
        %v2779 = vsel %vm2778, %v2770, %v2775
        %v2780 = vrsqrt.pop %v2455
        %v2781 = vmul.f32 %v2780, %v2455
        %v2782 = vmul.f32 %v2781, %v2780
        %v2783 = vmul.f32 0.5, %v2782
        %v2784 = vsub.f32 1.5, %v2783
        %v2785 = vmul.f32 %v2780, %v2784
        %vm2786 = vweird.f32 %v2455
        %vm2787 = vweird.f32 %v2780
        %vm2788 = vmor %vm2786, %vm2787
        %v2789 = vsel %vm2788, %v2780, %v2785
        %v2790 = vrsqrt.pop %v2456
        %v2791 = vmul.f32 %v2790, %v2456
        %v2792 = vmul.f32 %v2791, %v2790
        %v2793 = vmul.f32 0.5, %v2792
        %v2794 = vsub.f32 1.5, %v2793
        %v2795 = vmul.f32 %v2790, %v2794
        %vm2796 = vweird.f32 %v2456
        %vm2797 = vweird.f32 %v2790
        %vm2798 = vmor %vm2796, %vm2797
        %v2799 = vsel %vm2798, %v2790, %v2795
        %v2800 = vrsqrt.pop %v2457
        %v2801 = vmul.f32 %v2800, %v2457
        %v2802 = vmul.f32 %v2801, %v2800
        %v2803 = vmul.f32 0.5, %v2802
        %v2804 = vsub.f32 1.5, %v2803
        %v2805 = vmul.f32 %v2800, %v2804
        %vm2806 = vweird.f32 %v2457
        %vm2807 = vweird.f32 %v2800
        %vm2808 = vmor %vm2806, %vm2807
        %v2809 = vsel %vm2808, %v2800, %v2805
        %v2810 = vrsqrt.pop %v2458
        %v2811 = vmul.f32 %v2810, %v2458
        %v2812 = vmul.f32 %v2811, %v2810
        %v2813 = vmul.f32 0.5, %v2812
        %v2814 = vsub.f32 1.5, %v2813
        %v2815 = vmul.f32 %v2810, %v2814
        %vm2816 = vweird.f32 %v2458
        %vm2817 = vweird.f32 %v2810
        %vm2818 = vmor %vm2816, %vm2817
        %v2819 = vsel %vm2818, %v2810, %v2815
        %v2820 = vrsqrt.pop %v2459
        %v2821 = vmul.f32 %v2820, %v2459
        %v2822 = vmul.f32 %v2821, %v2820
        %v2823 = vmul.f32 0.5, %v2822
        %v2824 = vsub.f32 1.5, %v2823
        %v2825 = vmul.f32 %v2820, %v2824
        %vm2826 = vweird.f32 %v2459
        %vm2827 = vweird.f32 %v2820
        %vm2828 = vmor %vm2826, %vm2827
        %v2829 = vsel %vm2828, %v2820, %v2825
        %v2830 = vrsqrt.pop %v2460
        %v2831 = vmul.f32 %v2830, %v2460
        %v2832 = vmul.f32 %v2831, %v2830
        %v2833 = vmul.f32 0.5, %v2832
        %v2834 = vsub.f32 1.5, %v2833
        %v2835 = vmul.f32 %v2830, %v2834
        %vm2836 = vweird.f32 %v2460
        %vm2837 = vweird.f32 %v2830
        %vm2838 = vmor %vm2836, %vm2837
        %v2839 = vsel %vm2838, %v2830, %v2835
        %v2840 = vrsqrt.pop %v2461
        %v2841 = vmul.f32 %v2840, %v2461
        %v2842 = vmul.f32 %v2841, %v2840
        %v2843 = vmul.f32 0.5, %v2842
        %v2844 = vsub.f32 1.5, %v2843
        %v2845 = vmul.f32 %v2840, %v2844
        %vm2846 = vweird.f32 %v2461
        %vm2847 = vweird.f32 %v2840
        %vm2848 = vmor %vm2846, %vm2847
        %v2849 = vsel %vm2848, %v2840, %v2845
        %v2850 = vrsqrt.pop %v2462
        %v2851 = vmul.f32 %v2850, %v2462
        %v2852 = vmul.f32 %v2851, %v2850
        %v2853 = vmul.f32 0.5, %v2852
        %v2854 = vsub.f32 1.5, %v2853
        %v2855 = vmul.f32 %v2850, %v2854
        %vm2856 = vweird.f32 %v2462
        %vm2857 = vweird.f32 %v2850
        %vm2858 = vmor %vm2856, %vm2857
        %v2859 = vsel %vm2858, %v2850, %v2855
        %v2860 = vrsqrt.pop %v2463
        %v2861 = vmul.f32 %v2860, %v2463
        %v2862 = vmul.f32 %v2861, %v2860
        %v2863 = vmul.f32 0.5, %v2862
        %v2864 = vsub.f32 1.5, %v2863
        %v2865 = vmul.f32 %v2860, %v2864
        %vm2866 = vweird.f32 %v2463
        %vm2867 = vweird.f32 %v2860
        %vm2868 = vmor %vm2866, %vm2867
        %v2869 = vsel %vm2868, %v2860, %v2865
        %v2870 = vrsqrt.pop %v2464
        %v2871 = vmul.f32 %v2870, %v2464
        %v2872 = vmul.f32 %v2871, %v2870
        %v2873 = vmul.f32 0.5, %v2872
        %v2874 = vsub.f32 1.5, %v2873
        %v2875 = vmul.f32 %v2870, %v2874
        %vm2876 = vweird.f32 %v2464
        %vm2877 = vweird.f32 %v2870
        %vm2878 = vmor %vm2876, %vm2877
        %v2879 = vsel %vm2878, %v2870, %v2875
        %v2880 = vrsqrt.pop %v2465
        %v2881 = vmul.f32 %v2880, %v2465
        %v2882 = vmul.f32 %v2881, %v2880
        %v2883 = vmul.f32 0.5, %v2882
        %v2884 = vsub.f32 1.5, %v2883
        %v2885 = vmul.f32 %v2880, %v2884
        %vm2886 = vweird.f32 %v2465
        %vm2887 = vweird.f32 %v2880
        %vm2888 = vmor %vm2886, %vm2887
        %v2889 = vsel %vm2888, %v2880, %v2885
        %v2890 = vrsqrt.pop %v2466
        %v2891 = vmul.f32 %v2890, %v2466
        %v2892 = vmul.f32 %v2891, %v2890
        %v2893 = vmul.f32 0.5, %v2892
        %v2894 = vsub.f32 1.5, %v2893
        %v2895 = vmul.f32 %v2890, %v2894
        %vm2896 = vweird.f32 %v2466
        %vm2897 = vweird.f32 %v2890
        %vm2898 = vmor %vm2896, %vm2897
        %v2899 = vsel %vm2898, %v2890, %v2895
        %v2900 = vrsqrt.pop %v2467
        %v2901 = vmul.f32 %v2900, %v2467
        %v2902 = vmul.f32 %v2901, %v2900
        %v2903 = vmul.f32 0.5, %v2902
        %v2904 = vsub.f32 1.5, %v2903
        %v2905 = vmul.f32 %v2900, %v2904
        %vm2906 = vweird.f32 %v2467
        %vm2907 = vweird.f32 %v2900
        %vm2908 = vmor %vm2906, %vm2907
        %v2909 = vsel %vm2908, %v2900, %v2905
        %v2910 = vrsqrt.pop %v2468
        %v2911 = vmul.f32 %v2910, %v2468
        %v2912 = vmul.f32 %v2911, %v2910
        %v2913 = vmul.f32 0.5, %v2912
        %v2914 = vsub.f32 1.5, %v2913
        %v2915 = vmul.f32 %v2910, %v2914
        %vm2916 = vweird.f32 %v2468
        %vm2917 = vweird.f32 %v2910
        %vm2918 = vmor %vm2916, %vm2917
        %v2919 = vsel %vm2918, %v2910, %v2915
        %v2920 = vrsqrt.pop %v2469
        %v2921 = vmul.f32 %v2920, %v2469
        %v2922 = vmul.f32 %v2921, %v2920
        %v2923 = vmul.f32 0.5, %v2922
        %v2924 = vsub.f32 1.5, %v2923
        %v2925 = vmul.f32 %v2920, %v2924
        %vm2926 = vweird.f32 %v2469
        %vm2927 = vweird.f32 %v2920
        %vm2928 = vmor %vm2926, %vm2927
        %v2929 = vsel %vm2928, %v2920, %v2925
        %v2930 = vrsqrt.pop %v2470
        %v2931 = vmul.f32 %v2930, %v2470
        %v2932 = vmul.f32 %v2931, %v2930
        %v2933 = vmul.f32 0.5, %v2932
        %v2934 = vsub.f32 1.5, %v2933
        %v2935 = vmul.f32 %v2930, %v2934
        %vm2936 = vweird.f32 %v2470
        %vm2937 = vweird.f32 %v2930
        %vm2938 = vmor %vm2936, %vm2937
        %v2939 = vsel %vm2938, %v2930, %v2935
        %v2940 = vrsqrt.pop %v2471
        %v2941 = vmul.f32 %v2940, %v2471
        %v2942 = vmul.f32 %v2941, %v2940
        %v2943 = vmul.f32 0.5, %v2942
        %v2944 = vsub.f32 1.5, %v2943
        %v2945 = vmul.f32 %v2940, %v2944
        %vm2946 = vweird.f32 %v2471
        %vm2947 = vweird.f32 %v2940
        %vm2948 = vmor %vm2946, %vm2947
        %v2949 = vsel %vm2948, %v2940, %v2945
        %v2950 = vrsqrt.pop %v2472
        %v2951 = vmul.f32 %v2950, %v2472
        %v2952 = vmul.f32 %v2951, %v2950
        %v2953 = vmul.f32 0.5, %v2952
        %v2954 = vsub.f32 1.5, %v2953
        %v2955 = vmul.f32 %v2950, %v2954
        %vm2956 = vweird.f32 %v2472
        %vm2957 = vweird.f32 %v2950
        %vm2958 = vmor %vm2956, %vm2957
        %v2959 = vsel %vm2958, %v2950, %v2955
        %v2960 = vrsqrt.pop %v2473
        %v2961 = vmul.f32 %v2960, %v2473
        %v2962 = vmul.f32 %v2961, %v2960
        %v2963 = vmul.f32 0.5, %v2962
        %v2964 = vsub.f32 1.5, %v2963
        %v2965 = vmul.f32 %v2960, %v2964
        %vm2966 = vweird.f32 %v2473
        %vm2967 = vweird.f32 %v2960
        %vm2968 = vmor %vm2966, %vm2967
        %v2969 = vsel %vm2968, %v2960, %v2965
        %v2970 = vrsqrt.pop %v2474
        %v2971 = vmul.f32 %v2970, %v2474
        %v2972 = vmul.f32 %v2971, %v2970
        %v2973 = vmul.f32 0.5, %v2972
        %v2974 = vsub.f32 1.5, %v2973
        %v2975 = vmul.f32 %v2970, %v2974
        %vm2976 = vweird.f32 %v2474
        %vm2977 = vweird.f32 %v2970
        %vm2978 = vmor %vm2976, %vm2977
        %v2979 = vsel %vm2978, %v2970, %v2975
        %v2980 = vrsqrt.pop %v2475
        %v2981 = vmul.f32 %v2980, %v2475
        %v2982 = vmul.f32 %v2981, %v2980
        %v2983 = vmul.f32 0.5, %v2982
        %v2984 = vsub.f32 1.5, %v2983
        %v2985 = vmul.f32 %v2980, %v2984
        %vm2986 = vweird.f32 %v2475
        %vm2987 = vweird.f32 %v2980
        %vm2988 = vmor %vm2986, %vm2987
        %v2989 = vsel %vm2988, %v2980, %v2985
        %v2990 = vrsqrt.pop %v2476
        %v2991 = vmul.f32 %v2990, %v2476
        %v2992 = vmul.f32 %v2991, %v2990
        %v2993 = vmul.f32 0.5, %v2992
        %v2994 = vsub.f32 1.5, %v2993
        %v2995 = vmul.f32 %v2990, %v2994
        %vm2996 = vweird.f32 %v2476
        %vm2997 = vweird.f32 %v2990
        %vm2998 = vmor %vm2996, %vm2997
        %v2999 = vsel %vm2998, %v2990, %v2995
        %v3000 = vrsqrt.pop %v2477
        %v3001 = vmul.f32 %v3000, %v2477
        %v3002 = vmul.f32 %v3001, %v3000
        %v3003 = vmul.f32 0.5, %v3002
        %v3004 = vsub.f32 1.5, %v3003
        %v3005 = vmul.f32 %v3000, %v3004
        %vm3006 = vweird.f32 %v2477
        %vm3007 = vweird.f32 %v3000
        %vm3008 = vmor %vm3006, %vm3007
        %v3009 = vsel %vm3008, %v3000, %v3005
        %v3010 = vrsqrt.pop %v2478
        %v3011 = vmul.f32 %v3010, %v2478
        %v3012 = vmul.f32 %v3011, %v3010
        %v3013 = vmul.f32 0.5, %v3012
        %v3014 = vsub.f32 1.5, %v3013
        %v3015 = vmul.f32 %v3010, %v3014
        %vm3016 = vweird.f32 %v2478
        %vm3017 = vweird.f32 %v3010
        %vm3018 = vmor %vm3016, %vm3017
        %v3019 = vsel %vm3018, %v3010, %v3015
        %v3020 = vrsqrt.pop %v2479
        %v3021 = vmul.f32 %v3020, %v2479
        %v3022 = vmul.f32 %v3021, %v3020
        %v3023 = vmul.f32 0.5, %v3022
        %v3024 = vsub.f32 1.5, %v3023
        %v3025 = vmul.f32 %v3020, %v3024
        %vm3026 = vweird.f32 %v2479
        %vm3027 = vweird.f32 %v3020
        %vm3028 = vmor %vm3026, %vm3027
        %v3029 = vsel %vm3028, %v3020, %v3025
        %v3030 = vrsqrt.pop %v2480
        %v3031 = vmul.f32 %v3030, %v2480
        %v3032 = vmul.f32 %v3031, %v3030
        %v3033 = vmul.f32 0.5, %v3032
        %v3034 = vsub.f32 1.5, %v3033
        %v3035 = vmul.f32 %v3030, %v3034
        %vm3036 = vweird.f32 %v2480
        %vm3037 = vweird.f32 %v3030
        %vm3038 = vmor %vm3036, %vm3037
        %v3039 = vsel %vm3038, %v3030, %v3035
        %v3040 = vrsqrt.pop %v2481
        %v3041 = vmul.f32 %v3040, %v2481
        %v3042 = vmul.f32 %v3041, %v3040
        %v3043 = vmul.f32 0.5, %v3042
        %v3044 = vsub.f32 1.5, %v3043
        %v3045 = vmul.f32 %v3040, %v3044
        %vm3046 = vweird.f32 %v2481
        %vm3047 = vweird.f32 %v3040
        %vm3048 = vmor %vm3046, %vm3047
        %v3049 = vsel %vm3048, %v3040, %v3045
        %v3050 = vrsqrt.pop %v2482
        %v3051 = vmul.f32 %v3050, %v2482
        %v3052 = vmul.f32 %v3051, %v3050
        %v3053 = vmul.f32 0.5, %v3052
        %v3054 = vsub.f32 1.5, %v3053
        %v3055 = vmul.f32 %v3050, %v3054
        %vm3056 = vweird.f32 %v2482
        %vm3057 = vweird.f32 %v3050
        %vm3058 = vmor %vm3056, %vm3057
        %v3059 = vsel %vm3058, %v3050, %v3055
        %v3060 = vrsqrt.pop %v2483
        %v3061 = vmul.f32 %v3060, %v2483
        %v3062 = vmul.f32 %v3061, %v3060
        %v3063 = vmul.f32 0.5, %v3062
        %v3064 = vsub.f32 1.5, %v3063
        %v3065 = vmul.f32 %v3060, %v3064
        %vm3066 = vweird.f32 %v2483
        %vm3067 = vweird.f32 %v3060
        %vm3068 = vmor %vm3066, %vm3067
        %v3069 = vsel %vm3068, %v3060, %v3065
        %v3070 = vrsqrt.pop %v2484
        %v3071 = vmul.f32 %v3070, %v2484
        %v3072 = vmul.f32 %v3071, %v3070
        %v3073 = vmul.f32 0.5, %v3072
        %v3074 = vsub.f32 1.5, %v3073
        %v3075 = vmul.f32 %v3070, %v3074
        %vm3076 = vweird.f32 %v2484
        %vm3077 = vweird.f32 %v3070
        %vm3078 = vmor %vm3076, %vm3077
        %v3079 = vsel %vm3078, %v3070, %v3075
        %v3080 = vrsqrt.pop %v2485
        %v3081 = vmul.f32 %v3080, %v2485
        %v3082 = vmul.f32 %v3081, %v3080
        %v3083 = vmul.f32 0.5, %v3082
        %v3084 = vsub.f32 1.5, %v3083
        %v3085 = vmul.f32 %v3080, %v3084
        %vm3086 = vweird.f32 %v2485
        %vm3087 = vweird.f32 %v3080
        %vm3088 = vmor %vm3086, %vm3087
        %v3089 = vsel %vm3088, %v3080, %v3085
        %v3090 = vrsqrt.pop %v2486
        %v3091 = vmul.f32 %v3090, %v2486
        %v3092 = vmul.f32 %v3091, %v3090
        %v3093 = vmul.f32 0.5, %v3092
        %v3094 = vsub.f32 1.5, %v3093
        %v3095 = vmul.f32 %v3090, %v3094
        %vm3096 = vweird.f32 %v2486
        %vm3097 = vweird.f32 %v3090
        %vm3098 = vmor %vm3096, %vm3097
        %v3099 = vsel %vm3098, %v3090, %v3095
        %v3100 = vrsqrt.pop %v2487
        %v3101 = vmul.f32 %v3100, %v2487
        %v3102 = vmul.f32 %v3101, %v3100
        %v3103 = vmul.f32 0.5, %v3102
        %v3104 = vsub.f32 1.5, %v3103
        %v3105 = vmul.f32 %v3100, %v3104
        %vm3106 = vweird.f32 %v2487
        %vm3107 = vweird.f32 %v3100
        %vm3108 = vmor %vm3106, %vm3107
        %v3109 = vsel %vm3108, %v3100, %v3105
        %v3110 = vrsqrt.pop %v2488
        %v3111 = vmul.f32 %v3110, %v2488
        %v3112 = vmul.f32 %v3111, %v3110
        %v3113 = vmul.f32 0.5, %v3112
        %v3114 = vsub.f32 1.5, %v3113
        %v3115 = vmul.f32 %v3110, %v3114
        %vm3116 = vweird.f32 %v2488
        %vm3117 = vweird.f32 %v3110
        %vm3118 = vmor %vm3116, %vm3117
        %v3119 = vsel %vm3118, %v3110, %v3115
        %v3120 = vrsqrt.pop %v2489
        %v3121 = vmul.f32 %v3120, %v2489
        %v3122 = vmul.f32 %v3121, %v3120
        %v3123 = vmul.f32 0.5, %v3122
        %v3124 = vsub.f32 1.5, %v3123
        %v3125 = vmul.f32 %v3120, %v3124
        %vm3126 = vweird.f32 %v2489
        %vm3127 = vweird.f32 %v3120
        %vm3128 = vmor %vm3126, %vm3127
        %v3129 = vsel %vm3128, %v3120, %v3125
        %v3130 = vmul.f32 %v2106, %v2499
        %v3131 = vmul.f32 %v2107, %v2509
        %v3132 = vmul.f32 %v2108, %v2519
        %v3133 = vmul.f32 %v2109, %v2529
        %v3134 = vmul.f32 %v2110, %v2539
        %v3135 = vmul.f32 %v2111, %v2549
        %v3136 = vmul.f32 %v2112, %v2559
        %v3137 = vmul.f32 %v2113, %v2569
        %v3138 = vmul.f32 %v2114, %v2579
        %v3139 = vmul.f32 %v2115, %v2589
        %v3140 = vmul.f32 %v2116, %v2599
        %v3141 = vmul.f32 %v2117, %v2609
        %v3142 = vmul.f32 %v2118, %v2619
        %v3143 = vmul.f32 %v2119, %v2629
        %v3144 = vmul.f32 %v2120, %v2639
        %v3145 = vmul.f32 %v2121, %v2649
        %v3146 = vmul.f32 %v2122, %v2659
        %v3147 = vmul.f32 %v2123, %v2669
        %v3148 = vmul.f32 %v2124, %v2679
        %v3149 = vmul.f32 %v2125, %v2689
        %v3150 = vmul.f32 %v2126, %v2699
        %v3151 = vmul.f32 %v2127, %v2709
        %v3152 = vmul.f32 %v2128, %v2719
        %v3153 = vmul.f32 %v2129, %v2729
        %v3154 = vmul.f32 %v2130, %v2739
        %v3155 = vmul.f32 %v2131, %v2749
        %v3156 = vmul.f32 %v2132, %v2759
        %v3157 = vmul.f32 %v2133, %v2769
        %v3158 = vmul.f32 %v2134, %v2779
        %v3159 = vmul.f32 %v2135, %v2789
        %v3160 = vmul.f32 %v2136, %v2799
        %v3161 = vmul.f32 %v2137, %v2809
        %v3162 = vmul.f32 %v2138, %v2819
        %v3163 = vmul.f32 %v2139, %v2829
        %v3164 = vmul.f32 %v2140, %v2839
        %v3165 = vmul.f32 %v2141, %v2849
        %v3166 = vmul.f32 %v2142, %v2859
        %v3167 = vmul.f32 %v2143, %v2869
        %v3168 = vmul.f32 %v2144, %v2879
        %v3169 = vmul.f32 %v2145, %v2889
        %v3170 = vmul.f32 %v2146, %v2899
        %v3171 = vmul.f32 %v2147, %v2909
        %v3172 = vmul.f32 %v2148, %v2919
        %v3173 = vmul.f32 %v2149, %v2929
        %v3174 = vmul.f32 %v2150, %v2939
        %v3175 = vmul.f32 %v2151, %v2949
        %v3176 = vmul.f32 %v2152, %v2959
        %v3177 = vmul.f32 %v2153, %v2969
        %v3178 = vmul.f32 %v2154, %v2979
        %v3179 = vmul.f32 %v2155, %v2989
        %v3180 = vmul.f32 %v2156, %v2999
        %v3181 = vmul.f32 %v2157, %v3009
        %v3182 = vmul.f32 %v2158, %v3019
        %v3183 = vmul.f32 %v2159, %v3029
        %v3184 = vmul.f32 %v2160, %v3039
        %v3185 = vmul.f32 %v2161, %v3049
        %v3186 = vmul.f32 %v2162, %v3059
        %v3187 = vmul.f32 %v2163, %v3069
        %v3188 = vmul.f32 %v2164, %v3079
        %v3189 = vmul.f32 %v2165, %v3089
        %v3190 = vmul.f32 %v2166, %v3099
        %v3191 = vmul.f32 %v2167, %v3109
        %v3192 = vmul.f32 %v2168, %v3119
        %v3193 = vmul.f32 %v2169, %v3129
        %v3194 = vpack.c.bf16 %v3131, %v3130
        %v3195 = vpack.c.bf16 %v3133, %v3132
        %v3196 = vpack.c.bf16 %v3135, %v3134
        %v3197 = vpack.c.bf16 %v3137, %v3136
        %v3198 = vpack.c.bf16 %v3139, %v3138
        %v3199 = vpack.c.bf16 %v3141, %v3140
        %v3200 = vpack.c.bf16 %v3143, %v3142
        %v3201 = vpack.c.bf16 %v3145, %v3144
        %v3202 = vpack.c.bf16 %v3147, %v3146
        %v3203 = vpack.c.bf16 %v3149, %v3148
        %v3204 = vpack.c.bf16 %v3151, %v3150
        %v3205 = vpack.c.bf16 %v3153, %v3152
        %v3206 = vpack.c.bf16 %v3155, %v3154
        %v3207 = vpack.c.bf16 %v3157, %v3156
        %v3208 = vpack.c.bf16 %v3159, %v3158
        %v3209 = vpack.c.bf16 %v3161, %v3160
        %v3210 = vpack.c.bf16 %v3163, %v3162
        %v3211 = vpack.c.bf16 %v3165, %v3164
        %v3212 = vpack.c.bf16 %v3167, %v3166
        %v3213 = vpack.c.bf16 %v3169, %v3168
        %v3214 = vpack.c.bf16 %v3171, %v3170
        %v3215 = vpack.c.bf16 %v3173, %v3172
        %v3216 = vpack.c.bf16 %v3175, %v3174
        %v3217 = vpack.c.bf16 %v3177, %v3176
        %v3218 = vpack.c.bf16 %v3179, %v3178
        %v3219 = vpack.c.bf16 %v3181, %v3180
        %v3220 = vpack.c.bf16 %v3183, %v3182
        %v3221 = vpack.c.bf16 %v3185, %v3184
        %v3222 = vpack.c.bf16 %v3187, %v3186
        %v3223 = vpack.c.bf16 %v3189, %v3188
        %v3224 = vpack.c.bf16 %v3191, %v3190
        %v3225 = vpack.c.bf16 %v3193, %v3192
        %v3226 = vld [vmem:[#allocation7] sm:$0xff]
        %v3227 = vld [vmem:[#allocation7 + $0x8] sm:$0xff]
        %v3228 = vld [vmem:[#allocation7 + $0x10] sm:$0xff]
        %v3229 = vld [vmem:[#allocation7 + $0x18] sm:$0xff]
        %v3230 = vld [vmem:[#allocation7 + $0x20] sm:$0xff]
        %v3231 = vld [vmem:[#allocation7 + $0x28] sm:$0xff]
        %v3232 = vld [vmem:[#allocation7 + $0x30] sm:$0xff]
        %v3233 = vld [vmem:[#allocation7 + $0x38] sm:$0xff]
        %v3234 = vld [vmem:[#allocation7 + $0x40] sm:$0xff]
        %v3235 = vld [vmem:[#allocation7 + $0x48] sm:$0xff]
        %v3236 = vld [vmem:[#allocation7 + $0x50] sm:$0xff]
        %v3237 = vld [vmem:[#allocation7 + $0x58] sm:$0xff]
        %v3238 = vld [vmem:[#allocation7 + $0x60] sm:$0xff]
        %v3239 = vld [vmem:[#allocation7 + $0x68] sm:$0xff]
        %v3240 = vld [vmem:[#allocation7 + $0x70] sm:$0xff]
        %v3241 = vld [vmem:[#allocation7 + $0x78] sm:$0xff]
        %v3242 = vld [vmem:[#allocation7 + $0x80] sm:$0xff]
        %v3243 = vld [vmem:[#allocation7 + $0x88] sm:$0xff]
        %v3244 = vld [vmem:[#allocation7 + $0x90] sm:$0xff]
        %v3245 = vld [vmem:[#allocation7 + $0x98] sm:$0xff]
        %v3246 = vld [vmem:[#allocation7 + $0xa0] sm:$0xff]
        %v3247 = vld [vmem:[#allocation7 + $0xa8] sm:$0xff]
        %v3248 = vld [vmem:[#allocation7 + $0xb0] sm:$0xff]
        %v3249 = vld [vmem:[#allocation7 + $0xb8] sm:$0xff]
        %v3250 = vld [vmem:[#allocation7 + $0xc0] sm:$0xff]
        %v3251 = vld [vmem:[#allocation7 + $0xc8] sm:$0xff]
        %v3252 = vld [vmem:[#allocation7 + $0xd0] sm:$0xff]
        %v3253 = vld [vmem:[#allocation7 + $0xd8] sm:$0xff]
        %v3254 = vld [vmem:[#allocation7 + $0xe0] sm:$0xff]
        %v3255 = vld [vmem:[#allocation7 + $0xe8] sm:$0xff]
        %v3256 = vld [vmem:[#allocation7 + $0xf0] sm:$0xff]
        %v3257 = vld [vmem:[#allocation7 + $0xf8] sm:$0xff]
        %v3258 = vld [vmem:[#allocation8] sm:$0xf]
        %v3260 = vperm.slane %v3258, 0
        %v3261 = vperm.slane %v3258, 1
        %v3262 = vperm.slane %v3258, 2
        %v3263 = vperm.slane %v3258, 3
        %v3300 = vunpack.c.l.b16 %v3226
        %v3301 = vunpack.c.h.b16 %v3226
        %v3302 = vunpack.c.l.b16 %v3227
        %v3303 = vunpack.c.h.b16 %v3227
        %v3304 = vunpack.c.l.b16 %v3228
        %v3305 = vunpack.c.h.b16 %v3228
        %v3306 = vunpack.c.l.b16 %v3229
        %v3307 = vunpack.c.h.b16 %v3229
        %v3308 = vunpack.c.l.b16 %v3230
        %v3309 = vunpack.c.h.b16 %v3230
        %v3310 = vunpack.c.l.b16 %v3231
        %v3311 = vunpack.c.h.b16 %v3231
        %v3312 = vunpack.c.l.b16 %v3232
        %v3313 = vunpack.c.h.b16 %v3232
        %v3314 = vunpack.c.l.b16 %v3233
        %v3315 = vunpack.c.h.b16 %v3233
        %v3316 = vunpack.c.l.b16 %v3234
        %v3317 = vunpack.c.h.b16 %v3234
        %v3318 = vunpack.c.l.b16 %v3235
        %v3319 = vunpack.c.h.b16 %v3235
        %v3320 = vunpack.c.l.b16 %v3236
        %v3321 = vunpack.c.h.b16 %v3236
        %v3322 = vunpack.c.l.b16 %v3237
        %v3323 = vunpack.c.h.b16 %v3237
        %v3324 = vunpack.c.l.b16 %v3238
        %v3325 = vunpack.c.h.b16 %v3238
        %v3326 = vunpack.c.l.b16 %v3239
        %v3327 = vunpack.c.h.b16 %v3239
        %v3328 = vunpack.c.l.b16 %v3240
        %v3329 = vunpack.c.h.b16 %v3240
        %v3330 = vunpack.c.l.b16 %v3241
        %v3331 = vunpack.c.h.b16 %v3241
        %v3332 = vunpack.c.l.b16 %v3242
        %v3333 = vunpack.c.h.b16 %v3242
        %v3334 = vunpack.c.l.b16 %v3243
        %v3335 = vunpack.c.h.b16 %v3243
        %v3336 = vunpack.c.l.b16 %v3244
        %v3337 = vunpack.c.h.b16 %v3244
        %v3338 = vunpack.c.l.b16 %v3245
        %v3339 = vunpack.c.h.b16 %v3245
        %v3340 = vunpack.c.l.b16 %v3246
        %v3341 = vunpack.c.h.b16 %v3246
        %v3342 = vunpack.c.l.b16 %v3247
        %v3343 = vunpack.c.h.b16 %v3247
        %v3344 = vunpack.c.l.b16 %v3248
        %v3345 = vunpack.c.h.b16 %v3248
        %v3346 = vunpack.c.l.b16 %v3249
        %v3347 = vunpack.c.h.b16 %v3249
        %v3348 = vunpack.c.l.b16 %v3250
        %v3349 = vunpack.c.h.b16 %v3250
        %v3350 = vunpack.c.l.b16 %v3251
        %v3351 = vunpack.c.h.b16 %v3251
        %v3352 = vunpack.c.l.b16 %v3252
        %v3353 = vunpack.c.h.b16 %v3252
        %v3354 = vunpack.c.l.b16 %v3253
        %v3355 = vunpack.c.h.b16 %v3253
        %v3356 = vunpack.c.l.b16 %v3254
        %v3357 = vunpack.c.h.b16 %v3254
        %v3358 = vunpack.c.l.b16 %v3255
        %v3359 = vunpack.c.h.b16 %v3255
        %v3360 = vunpack.c.l.b16 %v3256
        %v3361 = vunpack.c.h.b16 %v3256
        %v3362 = vunpack.c.l.b16 %v3257
        %v3363 = vunpack.c.h.b16 %v3257
        %v3364 = vpack.c.b16 %v3304, %v3300
        %v3365 = vpack.c.b16 %v3305, %v3301
        %v3366 = vpack.c.b16 %v3306, %v3302
        %v3367 = vpack.c.b16 %v3307, %v3303
        %v3368 = vpack.c.b16 %v3312, %v3308
        %v3369 = vpack.c.b16 %v3313, %v3309
        %v3370 = vpack.c.b16 %v3314, %v3310
        %v3371 = vpack.c.b16 %v3315, %v3311
        %v3372 = vpack.c.b16 %v3320, %v3316
        %v3373 = vpack.c.b16 %v3321, %v3317
        %v3374 = vpack.c.b16 %v3322, %v3318
        %v3375 = vpack.c.b16 %v3323, %v3319
        %v3376 = vpack.c.b16 %v3328, %v3324
        %v3377 = vpack.c.b16 %v3329, %v3325
        %v3378 = vpack.c.b16 %v3330, %v3326
        %v3379 = vpack.c.b16 %v3331, %v3327
        %v3380 = vpack.c.b16 %v3336, %v3332
        %v3381 = vpack.c.b16 %v3337, %v3333
        %v3382 = vpack.c.b16 %v3338, %v3334
        %v3383 = vpack.c.b16 %v3339, %v3335
        %v3384 = vpack.c.b16 %v3344, %v3340
        %v3385 = vpack.c.b16 %v3345, %v3341
        %v3386 = vpack.c.b16 %v3346, %v3342
        %v3387 = vpack.c.b16 %v3347, %v3343
        %v3388 = vpack.c.b16 %v3352, %v3348
        %v3389 = vpack.c.b16 %v3353, %v3349
        %v3390 = vpack.c.b16 %v3354, %v3350
        %v3391 = vpack.c.b16 %v3355, %v3351
        %v3392 = vpack.c.b16 %v3360, %v3356
        %v3393 = vpack.c.b16 %v3361, %v3357
        %v3394 = vpack.c.b16 %v3362, %v3358
        %v3395 = vpack.c.b16 %v3363, %v3359
        %3428 = vmatpush.bf16.msra.mxu0 %v3392
        %3429 = vmatpush.bf16.msra.mxu0 %v3388
        %3430 = vmatpush.bf16.msra.mxu0 %v3384
        %3431 = vmatpush.bf16.msra.mxu0 %v3380
        %3432 = vmatpush.bf16.msra.mxu0 %v3376
        %3433 = vmatpush.bf16.msra.mxu0 %v3372
        %3434 = vmatpush.bf16.msra.mxu0 %v3368
        %3435 = vmatpush.bf16.msra.mxu0 %v3364
        %3436 = vmatmul.bf16.gmra.mxu0 %v3194
        %v3437 = vpop.f32.mrf.mxu0
        %v3438 = vadd.f32 %v3260, %v3437
        %v3439 = vpop.f32.mrf.mxu0
        %v3440 = vadd.f32 %v3260, %v3439
        %3441 = vmatmul.bf16.gmra.mxu0 %v3195
        %v3442 = vpop.f32.mrf.mxu0
        %v3443 = vadd.f32 %v3260, %v3442
        %v3444 = vpop.f32.mrf.mxu0
        %v3445 = vadd.f32 %v3260, %v3444
        %3446 = vmatmul.bf16.gmra.mxu0 %v3196
        %v3447 = vpop.f32.mrf.mxu0
        %v3448 = vadd.f32 %v3260, %v3447
        %v3449 = vpop.f32.mrf.mxu0
        %v3450 = vadd.f32 %v3260, %v3449
        %3451 = vmatmul.bf16.gmra.mxu0 %v3197
        %v3452 = vpop.f32.mrf.mxu0
        %v3453 = vadd.f32 %v3260, %v3452
        %v3454 = vpop.f32.mrf.mxu0
        %v3455 = vadd.f32 %v3260, %v3454
        %3456 = vmatmul.bf16.gmra.mxu0 %v3198
        %v3457 = vpop.f32.mrf.mxu0
        %v3458 = vadd.f32 %v3260, %v3457
        %v3459 = vpop.f32.mrf.mxu0
        %v3460 = vadd.f32 %v3260, %v3459
        %3461 = vmatmul.bf16.gmra.mxu0 %v3199
        %v3462 = vpop.f32.mrf.mxu0
        %v3463 = vadd.f32 %v3260, %v3462
        %v3464 = vpop.f32.mrf.mxu0
        %v3465 = vadd.f32 %v3260, %v3464
        %3466 = vmatmul.bf16.gmra.mxu0 %v3200
        %v3467 = vpop.f32.mrf.mxu0
        %v3468 = vadd.f32 %v3260, %v3467
        %v3469 = vpop.f32.mrf.mxu0
        %v3470 = vadd.f32 %v3260, %v3469
        %3471 = vmatmul.bf16.gmra.mxu0 %v3201
        %v3472 = vpop.f32.mrf.mxu0
        %v3473 = vadd.f32 %v3260, %v3472
        %v3474 = vpop.f32.mrf.mxu0
        %v3475 = vadd.f32 %v3260, %v3474
        %3476 = vmatmul.bf16.gmra.mxu0 %v3202
        %v3477 = vpop.f32.mrf.mxu0
        %v3478 = vadd.f32 %v3260, %v3477
        %v3479 = vpop.f32.mrf.mxu0
        %v3480 = vadd.f32 %v3260, %v3479
        %3481 = vmatmul.bf16.gmra.mxu0 %v3203
        %v3482 = vpop.f32.mrf.mxu0
        %v3483 = vadd.f32 %v3260, %v3482
        %v3484 = vpop.f32.mrf.mxu0
        %v3485 = vadd.f32 %v3260, %v3484
        %3486 = vmatmul.bf16.gmra.mxu0 %v3204
        %v3487 = vpop.f32.mrf.mxu0
        %v3488 = vadd.f32 %v3260, %v3487
        %v3489 = vpop.f32.mrf.mxu0
        %v3490 = vadd.f32 %v3260, %v3489
        %3491 = vmatmul.bf16.gmra.mxu0 %v3205
        %v3492 = vpop.f32.mrf.mxu0
        %v3493 = vadd.f32 %v3260, %v3492
        %v3494 = vpop.f32.mrf.mxu0
        %v3495 = vadd.f32 %v3260, %v3494
        %3496 = vmatmul.bf16.gmra.mxu0 %v3206
        %v3497 = vpop.f32.mrf.mxu0
        %v3498 = vadd.f32 %v3260, %v3497
        %v3499 = vpop.f32.mrf.mxu0
        %v3500 = vadd.f32 %v3260, %v3499
        %3501 = vmatmul.bf16.gmra.mxu0 %v3207
        %v3502 = vpop.f32.mrf.mxu0
        %v3503 = vadd.f32 %v3260, %v3502
        %v3504 = vpop.f32.mrf.mxu0
        %v3505 = vadd.f32 %v3260, %v3504
        %3506 = vmatmul.bf16.gmra.mxu0 %v3208
        %v3507 = vpop.f32.mrf.mxu0
        %v3508 = vadd.f32 %v3260, %v3507
        %v3509 = vpop.f32.mrf.mxu0
        %v3510 = vadd.f32 %v3260, %v3509
        %3511 = vmatmul.bf16.gmra.mxu0 %v3209
        %v3512 = vpop.f32.mrf.mxu0
        %v3513 = vadd.f32 %v3260, %v3512
        %v3514 = vpop.f32.mrf.mxu0
        %v3515 = vadd.f32 %v3260, %v3514
        %3516 = vmatmul.bf16.gmra.mxu0 %v3210
        %v3517 = vpop.f32.mrf.mxu0
        %v3518 = vadd.f32 %v3260, %v3517
        %v3519 = vpop.f32.mrf.mxu0
        %v3520 = vadd.f32 %v3260, %v3519
        %3521 = vmatmul.bf16.gmra.mxu0 %v3211
        %v3522 = vpop.f32.mrf.mxu0
        %v3523 = vadd.f32 %v3260, %v3522
        %v3524 = vpop.f32.mrf.mxu0
        %v3525 = vadd.f32 %v3260, %v3524
        %3526 = vmatmul.bf16.gmra.mxu0 %v3212
        %v3527 = vpop.f32.mrf.mxu0
        %v3528 = vadd.f32 %v3260, %v3527
        %v3529 = vpop.f32.mrf.mxu0
        %v3530 = vadd.f32 %v3260, %v3529
        %3531 = vmatmul.bf16.gmra.mxu0 %v3213
        %v3532 = vpop.f32.mrf.mxu0
        %v3533 = vadd.f32 %v3260, %v3532
        %v3534 = vpop.f32.mrf.mxu0
        %v3535 = vadd.f32 %v3260, %v3534
        %3536 = vmatmul.bf16.gmra.mxu0 %v3214
        %v3537 = vpop.f32.mrf.mxu0
        %v3538 = vadd.f32 %v3260, %v3537
        %v3539 = vpop.f32.mrf.mxu0
        %v3540 = vadd.f32 %v3260, %v3539
        %3541 = vmatmul.bf16.gmra.mxu0 %v3215
        %v3542 = vpop.f32.mrf.mxu0
        %v3543 = vadd.f32 %v3260, %v3542
        %v3544 = vpop.f32.mrf.mxu0
        %v3545 = vadd.f32 %v3260, %v3544
        %3546 = vmatmul.bf16.gmra.mxu0 %v3216
        %v3547 = vpop.f32.mrf.mxu0
        %v3548 = vadd.f32 %v3260, %v3547
        %v3549 = vpop.f32.mrf.mxu0
        %v3550 = vadd.f32 %v3260, %v3549
        %3551 = vmatmul.bf16.gmra.mxu0 %v3217
        %v3552 = vpop.f32.mrf.mxu0
        %v3553 = vadd.f32 %v3260, %v3552
        %v3554 = vpop.f32.mrf.mxu0
        %v3555 = vadd.f32 %v3260, %v3554
        %3556 = vmatmul.bf16.gmra.mxu0 %v3218
        %v3557 = vpop.f32.mrf.mxu0
        %v3558 = vadd.f32 %v3260, %v3557
        %v3559 = vpop.f32.mrf.mxu0
        %v3560 = vadd.f32 %v3260, %v3559
        %3561 = vmatmul.bf16.gmra.mxu0 %v3219
        %v3562 = vpop.f32.mrf.mxu0
        %v3563 = vadd.f32 %v3260, %v3562
        %v3564 = vpop.f32.mrf.mxu0
        %v3565 = vadd.f32 %v3260, %v3564
        %3566 = vmatmul.bf16.gmra.mxu0 %v3220
        %v3567 = vpop.f32.mrf.mxu0
        %v3568 = vadd.f32 %v3260, %v3567
        %v3569 = vpop.f32.mrf.mxu0
        %v3570 = vadd.f32 %v3260, %v3569
        %3571 = vmatmul.bf16.gmra.mxu0 %v3221
        %v3572 = vpop.f32.mrf.mxu0
        %v3573 = vadd.f32 %v3260, %v3572
        %v3574 = vpop.f32.mrf.mxu0
        %v3575 = vadd.f32 %v3260, %v3574
        %3576 = vmatmul.bf16.gmra.mxu0 %v3222
        %v3577 = vpop.f32.mrf.mxu0
        %v3578 = vadd.f32 %v3260, %v3577
        %v3579 = vpop.f32.mrf.mxu0
        %v3580 = vadd.f32 %v3260, %v3579
        %3581 = vmatmul.bf16.gmra.mxu0 %v3223
        %v3582 = vpop.f32.mrf.mxu0
        %v3583 = vadd.f32 %v3260, %v3582
        %v3584 = vpop.f32.mrf.mxu0
        %v3585 = vadd.f32 %v3260, %v3584
        %3586 = vmatmul.bf16.gmra.mxu0 %v3224
        %v3587 = vpop.f32.mrf.mxu0
        %v3588 = vadd.f32 %v3260, %v3587
        %v3589 = vpop.f32.mrf.mxu0
        %v3590 = vadd.f32 %v3260, %v3589
        %3591 = vmatmul.bf16.gmra.mxu0 %v3225
        %v3592 = vpop.f32.mrf.mxu0
        %v3593 = vadd.f32 %v3260, %v3592
        %v3594 = vpop.f32.mrf.mxu0
        %v3595 = vadd.f32 %v3260, %v3594
        %3596 = vdwg.mxu0
        %3597 = vmatpush.bf16.msra.mxu0 %v3393
        %3598 = vmatpush.bf16.msra.mxu0 %v3389
        %3599 = vmatpush.bf16.msra.mxu0 %v3385
        %3600 = vmatpush.bf16.msra.mxu0 %v3381
        %3601 = vmatpush.bf16.msra.mxu0 %v3377
        %3602 = vmatpush.bf16.msra.mxu0 %v3373
        %3603 = vmatpush.bf16.msra.mxu0 %v3369
        %3604 = vmatpush.bf16.msra.mxu0 %v3365
        %3605 = vmatmul.bf16.gmra.mxu0 %v3194
        %v3606 = vpop.f32.mrf.mxu0
        %v3607 = vadd.f32 %v3261, %v3606
        %v3608 = vpop.f32.mrf.mxu0
        %v3609 = vadd.f32 %v3261, %v3608
        %3610 = vmatmul.bf16.gmra.mxu0 %v3195
        %v3611 = vpop.f32.mrf.mxu0
        %v3612 = vadd.f32 %v3261, %v3611
        %v3613 = vpop.f32.mrf.mxu0
        %v3614 = vadd.f32 %v3261, %v3613
        %3615 = vmatmul.bf16.gmra.mxu0 %v3196
        %v3616 = vpop.f32.mrf.mxu0
        %v3617 = vadd.f32 %v3261, %v3616
        %v3618 = vpop.f32.mrf.mxu0
        %v3619 = vadd.f32 %v3261, %v3618
        %3620 = vmatmul.bf16.gmra.mxu0 %v3197
        %v3621 = vpop.f32.mrf.mxu0
        %v3622 = vadd.f32 %v3261, %v3621
        %v3623 = vpop.f32.mrf.mxu0
        %v3624 = vadd.f32 %v3261, %v3623
        %3625 = vmatmul.bf16.gmra.mxu0 %v3198
        %v3626 = vpop.f32.mrf.mxu0
        %v3627 = vadd.f32 %v3261, %v3626
        %v3628 = vpop.f32.mrf.mxu0
        %v3629 = vadd.f32 %v3261, %v3628
        %3630 = vmatmul.bf16.gmra.mxu0 %v3199
        %v3631 = vpop.f32.mrf.mxu0
        %v3632 = vadd.f32 %v3261, %v3631
        %v3633 = vpop.f32.mrf.mxu0
        %v3634 = vadd.f32 %v3261, %v3633
        %3635 = vmatmul.bf16.gmra.mxu0 %v3200
        %v3636 = vpop.f32.mrf.mxu0
        %v3637 = vadd.f32 %v3261, %v3636
        %v3638 = vpop.f32.mrf.mxu0
        %v3639 = vadd.f32 %v3261, %v3638
        %3640 = vmatmul.bf16.gmra.mxu0 %v3201
        %v3641 = vpop.f32.mrf.mxu0
        %v3642 = vadd.f32 %v3261, %v3641
        %v3643 = vpop.f32.mrf.mxu0
        %v3644 = vadd.f32 %v3261, %v3643
        %3645 = vmatmul.bf16.gmra.mxu0 %v3202
        %v3646 = vpop.f32.mrf.mxu0
        %v3647 = vadd.f32 %v3261, %v3646
        %v3648 = vpop.f32.mrf.mxu0
        %v3649 = vadd.f32 %v3261, %v3648
        %3650 = vmatmul.bf16.gmra.mxu0 %v3203
        %v3651 = vpop.f32.mrf.mxu0
        %v3652 = vadd.f32 %v3261, %v3651
        %v3653 = vpop.f32.mrf.mxu0
        %v3654 = vadd.f32 %v3261, %v3653
        %3655 = vmatmul.bf16.gmra.mxu0 %v3204
        %v3656 = vpop.f32.mrf.mxu0
        %v3657 = vadd.f32 %v3261, %v3656
        %v3658 = vpop.f32.mrf.mxu0
        %v3659 = vadd.f32 %v3261, %v3658
        %3660 = vmatmul.bf16.gmra.mxu0 %v3205
        %v3661 = vpop.f32.mrf.mxu0
        %v3662 = vadd.f32 %v3261, %v3661
        %v3663 = vpop.f32.mrf.mxu0
        %v3664 = vadd.f32 %v3261, %v3663
        %3665 = vmatmul.bf16.gmra.mxu0 %v3206
        %v3666 = vpop.f32.mrf.mxu0
        %v3667 = vadd.f32 %v3261, %v3666
        %v3668 = vpop.f32.mrf.mxu0
        %v3669 = vadd.f32 %v3261, %v3668
        %3670 = vmatmul.bf16.gmra.mxu0 %v3207
        %v3671 = vpop.f32.mrf.mxu0
        %v3672 = vadd.f32 %v3261, %v3671
        %v3673 = vpop.f32.mrf.mxu0
        %v3674 = vadd.f32 %v3261, %v3673
        %3675 = vmatmul.bf16.gmra.mxu0 %v3208
        %v3676 = vpop.f32.mrf.mxu0
        %v3677 = vadd.f32 %v3261, %v3676
        %v3678 = vpop.f32.mrf.mxu0
        %v3679 = vadd.f32 %v3261, %v3678
        %3680 = vmatmul.bf16.gmra.mxu0 %v3209
        %v3681 = vpop.f32.mrf.mxu0
        %v3682 = vadd.f32 %v3261, %v3681
        %v3683 = vpop.f32.mrf.mxu0
        %v3684 = vadd.f32 %v3261, %v3683
        %3685 = vmatmul.bf16.gmra.mxu0 %v3210
        %v3686 = vpop.f32.mrf.mxu0
        %v3687 = vadd.f32 %v3261, %v3686
        %v3688 = vpop.f32.mrf.mxu0
        %v3689 = vadd.f32 %v3261, %v3688
        %3690 = vmatmul.bf16.gmra.mxu0 %v3211
        %v3691 = vpop.f32.mrf.mxu0
        %v3692 = vadd.f32 %v3261, %v3691
        %v3693 = vpop.f32.mrf.mxu0
        %v3694 = vadd.f32 %v3261, %v3693
        %3695 = vmatmul.bf16.gmra.mxu0 %v3212
        %v3696 = vpop.f32.mrf.mxu0
        %v3697 = vadd.f32 %v3261, %v3696
        %v3698 = vpop.f32.mrf.mxu0
        %v3699 = vadd.f32 %v3261, %v3698
        %3700 = vmatmul.bf16.gmra.mxu0 %v3213
        %v3701 = vpop.f32.mrf.mxu0
        %v3702 = vadd.f32 %v3261, %v3701
        %v3703 = vpop.f32.mrf.mxu0
        %v3704 = vadd.f32 %v3261, %v3703
        %3705 = vmatmul.bf16.gmra.mxu0 %v3214
        %v3706 = vpop.f32.mrf.mxu0
        %v3707 = vadd.f32 %v3261, %v3706
        %v3708 = vpop.f32.mrf.mxu0
        %v3709 = vadd.f32 %v3261, %v3708
        %3710 = vmatmul.bf16.gmra.mxu0 %v3215
        %v3711 = vpop.f32.mrf.mxu0
        %v3712 = vadd.f32 %v3261, %v3711
        %v3713 = vpop.f32.mrf.mxu0
        %v3714 = vadd.f32 %v3261, %v3713
        %3715 = vmatmul.bf16.gmra.mxu0 %v3216
        %v3716 = vpop.f32.mrf.mxu0
        %v3717 = vadd.f32 %v3261, %v3716
        %v3718 = vpop.f32.mrf.mxu0
        %v3719 = vadd.f32 %v3261, %v3718
        %3720 = vmatmul.bf16.gmra.mxu0 %v3217
        %v3721 = vpop.f32.mrf.mxu0
        %v3722 = vadd.f32 %v3261, %v3721
        %v3723 = vpop.f32.mrf.mxu0
        %v3724 = vadd.f32 %v3261, %v3723
        %3725 = vmatmul.bf16.gmra.mxu0 %v3218
        %v3726 = vpop.f32.mrf.mxu0
        %v3727 = vadd.f32 %v3261, %v3726
        %v3728 = vpop.f32.mrf.mxu0
        %v3729 = vadd.f32 %v3261, %v3728
        %3730 = vmatmul.bf16.gmra.mxu0 %v3219
        %v3731 = vpop.f32.mrf.mxu0
        %v3732 = vadd.f32 %v3261, %v3731
        %v3733 = vpop.f32.mrf.mxu0
        %v3734 = vadd.f32 %v3261, %v3733
        %3735 = vmatmul.bf16.gmra.mxu0 %v3220
        %v3736 = vpop.f32.mrf.mxu0
        %v3737 = vadd.f32 %v3261, %v3736
        %v3738 = vpop.f32.mrf.mxu0
        %v3739 = vadd.f32 %v3261, %v3738
        %3740 = vmatmul.bf16.gmra.mxu0 %v3221
        %v3741 = vpop.f32.mrf.mxu0
        %v3742 = vadd.f32 %v3261, %v3741
        %v3743 = vpop.f32.mrf.mxu0
        %v3744 = vadd.f32 %v3261, %v3743
        %3745 = vmatmul.bf16.gmra.mxu0 %v3222
        %v3746 = vpop.f32.mrf.mxu0
        %v3747 = vadd.f32 %v3261, %v3746
        %v3748 = vpop.f32.mrf.mxu0
        %v3749 = vadd.f32 %v3261, %v3748
        %3750 = vmatmul.bf16.gmra.mxu0 %v3223
        %v3751 = vpop.f32.mrf.mxu0
        %v3752 = vadd.f32 %v3261, %v3751
        %v3753 = vpop.f32.mrf.mxu0
        %v3754 = vadd.f32 %v3261, %v3753
        %3755 = vmatmul.bf16.gmra.mxu0 %v3224
        %v3756 = vpop.f32.mrf.mxu0
        %v3757 = vadd.f32 %v3261, %v3756
        %v3758 = vpop.f32.mrf.mxu0
        %v3759 = vadd.f32 %v3261, %v3758
        %3760 = vmatmul.bf16.gmra.mxu0 %v3225
        %v3761 = vpop.f32.mrf.mxu0
        %v3762 = vadd.f32 %v3261, %v3761
        %v3763 = vpop.f32.mrf.mxu0
        %v3764 = vadd.f32 %v3261, %v3763
        %3765 = vdwg.mxu0
        %3766 = vmatpush.bf16.msra.mxu0 %v3394
        %3767 = vmatpush.bf16.msra.mxu0 %v3390
        %3768 = vmatpush.bf16.msra.mxu0 %v3386
        %3769 = vmatpush.bf16.msra.mxu0 %v3382
        %3770 = vmatpush.bf16.msra.mxu0 %v3378
        %3771 = vmatpush.bf16.msra.mxu0 %v3374
        %3772 = vmatpush.bf16.msra.mxu0 %v3370
        %3773 = vmatpush.bf16.msra.mxu0 %v3366
        %3774 = vmatmul.bf16.gmra.mxu0 %v3194
        %v3775 = vpop.f32.mrf.mxu0
        %v3776 = vadd.f32 %v3262, %v3775
        %v3777 = vpop.f32.mrf.mxu0
        %v3778 = vadd.f32 %v3262, %v3777
        %3779 = vmatmul.bf16.gmra.mxu0 %v3195
        %v3780 = vpop.f32.mrf.mxu0
        %v3781 = vadd.f32 %v3262, %v3780
        %v3782 = vpop.f32.mrf.mxu0
        %v3783 = vadd.f32 %v3262, %v3782
        %3784 = vmatmul.bf16.gmra.mxu0 %v3196
        %v3785 = vpop.f32.mrf.mxu0
        %v3786 = vadd.f32 %v3262, %v3785
        %v3787 = vpop.f32.mrf.mxu0
        %v3788 = vadd.f32 %v3262, %v3787
        %3789 = vmatmul.bf16.gmra.mxu0 %v3197
        %v3790 = vpop.f32.mrf.mxu0
        %v3791 = vadd.f32 %v3262, %v3790
        %v3792 = vpop.f32.mrf.mxu0
        %v3793 = vadd.f32 %v3262, %v3792
        %3794 = vmatmul.bf16.gmra.mxu0 %v3198
        %v3795 = vpop.f32.mrf.mxu0
        %v3796 = vadd.f32 %v3262, %v3795
        %v3797 = vpop.f32.mrf.mxu0
        %v3798 = vadd.f32 %v3262, %v3797
        %3799 = vmatmul.bf16.gmra.mxu0 %v3199
        %v3800 = vpop.f32.mrf.mxu0
        %v3801 = vadd.f32 %v3262, %v3800
        %v3802 = vpop.f32.mrf.mxu0
        %v3803 = vadd.f32 %v3262, %v3802
        %3804 = vmatmul.bf16.gmra.mxu0 %v3200
        %v3805 = vpop.f32.mrf.mxu0
        %v3806 = vadd.f32 %v3262, %v3805
        %v3807 = vpop.f32.mrf.mxu0
        %v3808 = vadd.f32 %v3262, %v3807
        %3809 = vmatmul.bf16.gmra.mxu0 %v3201
        %v3810 = vpop.f32.mrf.mxu0
        %v3811 = vadd.f32 %v3262, %v3810
        %v3812 = vpop.f32.mrf.mxu0
        %v3813 = vadd.f32 %v3262, %v3812
        %3814 = vmatmul.bf16.gmra.mxu0 %v3202
        %v3815 = vpop.f32.mrf.mxu0
        %v3816 = vadd.f32 %v3262, %v3815
        %v3817 = vpop.f32.mrf.mxu0
        %v3818 = vadd.f32 %v3262, %v3817
        %3819 = vmatmul.bf16.gmra.mxu0 %v3203
        %v3820 = vpop.f32.mrf.mxu0
        %v3821 = vadd.f32 %v3262, %v3820
        %v3822 = vpop.f32.mrf.mxu0
        %v3823 = vadd.f32 %v3262, %v3822
        %3824 = vmatmul.bf16.gmra.mxu0 %v3204
        %v3825 = vpop.f32.mrf.mxu0
        %v3826 = vadd.f32 %v3262, %v3825
        %v3827 = vpop.f32.mrf.mxu0
        %v3828 = vadd.f32 %v3262, %v3827
        %3829 = vmatmul.bf16.gmra.mxu0 %v3205
        %v3830 = vpop.f32.mrf.mxu0
        %v3831 = vadd.f32 %v3262, %v3830
        %v3832 = vpop.f32.mrf.mxu0
        %v3833 = vadd.f32 %v3262, %v3832
        %3834 = vmatmul.bf16.gmra.mxu0 %v3206
        %v3835 = vpop.f32.mrf.mxu0
        %v3836 = vadd.f32 %v3262, %v3835
        %v3837 = vpop.f32.mrf.mxu0
        %v3838 = vadd.f32 %v3262, %v3837
        %3839 = vmatmul.bf16.gmra.mxu0 %v3207
        %v3840 = vpop.f32.mrf.mxu0
        %v3841 = vadd.f32 %v3262, %v3840
        %v3842 = vpop.f32.mrf.mxu0
        %v3843 = vadd.f32 %v3262, %v3842
        %3844 = vmatmul.bf16.gmra.mxu0 %v3208
        %v3845 = vpop.f32.mrf.mxu0
        %v3846 = vadd.f32 %v3262, %v3845
        %v3847 = vpop.f32.mrf.mxu0
        %v3848 = vadd.f32 %v3262, %v3847
        %3849 = vmatmul.bf16.gmra.mxu0 %v3209
        %v3850 = vpop.f32.mrf.mxu0
        %v3851 = vadd.f32 %v3262, %v3850
        %v3852 = vpop.f32.mrf.mxu0
        %v3853 = vadd.f32 %v3262, %v3852
        %3854 = vmatmul.bf16.gmra.mxu0 %v3210
        %v3855 = vpop.f32.mrf.mxu0
        %v3856 = vadd.f32 %v3262, %v3855
        %v3857 = vpop.f32.mrf.mxu0
        %v3858 = vadd.f32 %v3262, %v3857
        %3859 = vmatmul.bf16.gmra.mxu0 %v3211
        %v3860 = vpop.f32.mrf.mxu0
        %v3861 = vadd.f32 %v3262, %v3860
        %v3862 = vpop.f32.mrf.mxu0
        %v3863 = vadd.f32 %v3262, %v3862
        %3864 = vmatmul.bf16.gmra.mxu0 %v3212
        %v3865 = vpop.f32.mrf.mxu0
        %v3866 = vadd.f32 %v3262, %v3865
        %v3867 = vpop.f32.mrf.mxu0
        %v3868 = vadd.f32 %v3262, %v3867
        %3869 = vmatmul.bf16.gmra.mxu0 %v3213
        %v3870 = vpop.f32.mrf.mxu0
        %v3871 = vadd.f32 %v3262, %v3870
        %v3872 = vpop.f32.mrf.mxu0
        %v3873 = vadd.f32 %v3262, %v3872
        %3874 = vmatmul.bf16.gmra.mxu0 %v3214
        %v3875 = vpop.f32.mrf.mxu0
        %v3876 = vadd.f32 %v3262, %v3875
        %v3877 = vpop.f32.mrf.mxu0
        %v3878 = vadd.f32 %v3262, %v3877
        %3879 = vmatmul.bf16.gmra.mxu0 %v3215
        %v3880 = vpop.f32.mrf.mxu0
        %v3881 = vadd.f32 %v3262, %v3880
        %v3882 = vpop.f32.mrf.mxu0
        %v3883 = vadd.f32 %v3262, %v3882
        %3884 = vmatmul.bf16.gmra.mxu0 %v3216
        %v3885 = vpop.f32.mrf.mxu0
        %v3886 = vadd.f32 %v3262, %v3885
        %v3887 = vpop.f32.mrf.mxu0
        %v3888 = vadd.f32 %v3262, %v3887
        %3889 = vmatmul.bf16.gmra.mxu0 %v3217
        %v3890 = vpop.f32.mrf.mxu0
        %v3891 = vadd.f32 %v3262, %v3890
        %v3892 = vpop.f32.mrf.mxu0
        %v3893 = vadd.f32 %v3262, %v3892
        %3894 = vmatmul.bf16.gmra.mxu0 %v3218
        %v3895 = vpop.f32.mrf.mxu0
        %v3896 = vadd.f32 %v3262, %v3895
        %v3897 = vpop.f32.mrf.mxu0
        %v3898 = vadd.f32 %v3262, %v3897
        %3899 = vmatmul.bf16.gmra.mxu0 %v3219
        %v3900 = vpop.f32.mrf.mxu0
        %v3901 = vadd.f32 %v3262, %v3900
        %v3902 = vpop.f32.mrf.mxu0
        %v3903 = vadd.f32 %v3262, %v3902
        %3904 = vmatmul.bf16.gmra.mxu0 %v3220
        %v3905 = vpop.f32.mrf.mxu0
        %v3906 = vadd.f32 %v3262, %v3905
        %v3907 = vpop.f32.mrf.mxu0
        %v3908 = vadd.f32 %v3262, %v3907
        %3909 = vmatmul.bf16.gmra.mxu0 %v3221
        %v3910 = vpop.f32.mrf.mxu0
        %v3911 = vadd.f32 %v3262, %v3910
        %v3912 = vpop.f32.mrf.mxu0
        %v3913 = vadd.f32 %v3262, %v3912
        %3914 = vmatmul.bf16.gmra.mxu0 %v3222
        %v3915 = vpop.f32.mrf.mxu0
        %v3916 = vadd.f32 %v3262, %v3915
        %v3917 = vpop.f32.mrf.mxu0
        %v3918 = vadd.f32 %v3262, %v3917
        %3919 = vmatmul.bf16.gmra.mxu0 %v3223
        %v3920 = vpop.f32.mrf.mxu0
        %v3921 = vadd.f32 %v3262, %v3920
        %v3922 = vpop.f32.mrf.mxu0
        %v3923 = vadd.f32 %v3262, %v3922
        %3924 = vmatmul.bf16.gmra.mxu0 %v3224
        %v3925 = vpop.f32.mrf.mxu0
        %v3926 = vadd.f32 %v3262, %v3925
        %v3927 = vpop.f32.mrf.mxu0
        %v3928 = vadd.f32 %v3262, %v3927
        %3929 = vmatmul.bf16.gmra.mxu0 %v3225
        %v3930 = vpop.f32.mrf.mxu0
        %v3931 = vadd.f32 %v3262, %v3930
        %v3932 = vpop.f32.mrf.mxu0
        %v3933 = vadd.f32 %v3262, %v3932
        %3934 = vdwg.mxu0
        %3935 = vmatpush.bf16.msra.mxu0 %v3395
        %3936 = vmatpush.bf16.msra.mxu0 %v3391
        %3937 = vmatpush.bf16.msra.mxu0 %v3387
        %3938 = vmatpush.bf16.msra.mxu0 %v3383
        %3939 = vmatpush.bf16.msra.mxu0 %v3379
        %3940 = vmatpush.bf16.msra.mxu0 %v3375
        %3941 = vmatpush.bf16.msra.mxu0 %v3371
        %3942 = vmatpush.bf16.msra.mxu0 %v3367
        %3943 = vmatmul.bf16.gmra.mxu0 %v3194
        %v3944 = vpop.f32.mrf.mxu0
        %v3945 = vadd.f32 %v3263, %v3944
        %v3946 = vpop.f32.mrf.mxu0
        %v3947 = vadd.f32 %v3263, %v3946
        %3948 = vmatmul.bf16.gmra.mxu0 %v3195
        %v3949 = vpop.f32.mrf.mxu0
        %v3950 = vadd.f32 %v3263, %v3949
        %v3951 = vpop.f32.mrf.mxu0
        %v3952 = vadd.f32 %v3263, %v3951
        %3953 = vmatmul.bf16.gmra.mxu0 %v3196
        %v3954 = vpop.f32.mrf.mxu0
        %v3955 = vadd.f32 %v3263, %v3954
        %v3956 = vpop.f32.mrf.mxu0
        %v3957 = vadd.f32 %v3263, %v3956
        %3958 = vmatmul.bf16.gmra.mxu0 %v3197
        %v3959 = vpop.f32.mrf.mxu0
        %v3960 = vadd.f32 %v3263, %v3959
        %v3961 = vpop.f32.mrf.mxu0
        %v3962 = vadd.f32 %v3263, %v3961
        %3963 = vmatmul.bf16.gmra.mxu0 %v3198
        %v3964 = vpop.f32.mrf.mxu0
        %v3965 = vadd.f32 %v3263, %v3964
        %v3966 = vpop.f32.mrf.mxu0
        %v3967 = vadd.f32 %v3263, %v3966
        %3968 = vmatmul.bf16.gmra.mxu0 %v3199
        %v3969 = vpop.f32.mrf.mxu0
        %v3970 = vadd.f32 %v3263, %v3969
        %v3971 = vpop.f32.mrf.mxu0
        %v3972 = vadd.f32 %v3263, %v3971
        %3973 = vmatmul.bf16.gmra.mxu0 %v3200
        %v3974 = vpop.f32.mrf.mxu0
        %v3975 = vadd.f32 %v3263, %v3974
        %v3976 = vpop.f32.mrf.mxu0
        %v3977 = vadd.f32 %v3263, %v3976
        %3978 = vmatmul.bf16.gmra.mxu0 %v3201
        %v3979 = vpop.f32.mrf.mxu0
        %v3980 = vadd.f32 %v3263, %v3979
        %v3981 = vpop.f32.mrf.mxu0
        %v3982 = vadd.f32 %v3263, %v3981
        %3983 = vmatmul.bf16.gmra.mxu0 %v3202
        %v3984 = vpop.f32.mrf.mxu0
        %v3985 = vadd.f32 %v3263, %v3984
        %v3986 = vpop.f32.mrf.mxu0
        %v3987 = vadd.f32 %v3263, %v3986
        %3988 = vmatmul.bf16.gmra.mxu0 %v3203
        %v3989 = vpop.f32.mrf.mxu0
        %v3990 = vadd.f32 %v3263, %v3989
        %v3991 = vpop.f32.mrf.mxu0
        %v3992 = vadd.f32 %v3263, %v3991
        %3993 = vmatmul.bf16.gmra.mxu0 %v3204
        %v3994 = vpop.f32.mrf.mxu0
        %v3995 = vadd.f32 %v3263, %v3994
        %v3996 = vpop.f32.mrf.mxu0
        %v3997 = vadd.f32 %v3263, %v3996
        %3998 = vmatmul.bf16.gmra.mxu0 %v3205
        %v3999 = vpop.f32.mrf.mxu0
        %v4000 = vadd.f32 %v3263, %v3999
        %v4001 = vpop.f32.mrf.mxu0
        %v4002 = vadd.f32 %v3263, %v4001
        %4003 = vmatmul.bf16.gmra.mxu0 %v3206
        %v4004 = vpop.f32.mrf.mxu0
        %v4005 = vadd.f32 %v3263, %v4004
        %v4006 = vpop.f32.mrf.mxu0
        %v4007 = vadd.f32 %v3263, %v4006
        %4008 = vmatmul.bf16.gmra.mxu0 %v3207
        %v4009 = vpop.f32.mrf.mxu0
        %v4010 = vadd.f32 %v3263, %v4009
        %v4011 = vpop.f32.mrf.mxu0
        %v4012 = vadd.f32 %v3263, %v4011
        %4013 = vmatmul.bf16.gmra.mxu0 %v3208
        %v4014 = vpop.f32.mrf.mxu0
        %v4015 = vadd.f32 %v3263, %v4014
        %v4016 = vpop.f32.mrf.mxu0
        %v4017 = vadd.f32 %v3263, %v4016
        %4018 = vmatmul.bf16.gmra.mxu0 %v3209
        %v4019 = vpop.f32.mrf.mxu0
        %v4020 = vadd.f32 %v3263, %v4019
        %v4021 = vpop.f32.mrf.mxu0
        %v4022 = vadd.f32 %v3263, %v4021
        %4023 = vmatmul.bf16.gmra.mxu0 %v3210
        %v4024 = vpop.f32.mrf.mxu0
        %v4025 = vadd.f32 %v3263, %v4024
        %v4026 = vpop.f32.mrf.mxu0
        %v4027 = vadd.f32 %v3263, %v4026
        %4028 = vmatmul.bf16.gmra.mxu0 %v3211
        %v4029 = vpop.f32.mrf.mxu0
        %v4030 = vadd.f32 %v3263, %v4029
        %v4031 = vpop.f32.mrf.mxu0
        %v4032 = vadd.f32 %v3263, %v4031
        %4033 = vmatmul.bf16.gmra.mxu0 %v3212
        %v4034 = vpop.f32.mrf.mxu0
        %v4035 = vadd.f32 %v3263, %v4034
        %v4036 = vpop.f32.mrf.mxu0
        %v4037 = vadd.f32 %v3263, %v4036
        %4038 = vmatmul.bf16.gmra.mxu0 %v3213
        %v4039 = vpop.f32.mrf.mxu0
        %v4040 = vadd.f32 %v3263, %v4039
        %v4041 = vpop.f32.mrf.mxu0
        %v4042 = vadd.f32 %v3263, %v4041
        %4043 = vmatmul.bf16.gmra.mxu0 %v3214
        %v4044 = vpop.f32.mrf.mxu0
        %v4045 = vadd.f32 %v3263, %v4044
        %v4046 = vpop.f32.mrf.mxu0
        %v4047 = vadd.f32 %v3263, %v4046
        %4048 = vmatmul.bf16.gmra.mxu0 %v3215
        %v4049 = vpop.f32.mrf.mxu0
        %v4050 = vadd.f32 %v3263, %v4049
        %v4051 = vpop.f32.mrf.mxu0
        %v4052 = vadd.f32 %v3263, %v4051
        %4053 = vmatmul.bf16.gmra.mxu0 %v3216
        %v4054 = vpop.f32.mrf.mxu0
        %v4055 = vadd.f32 %v3263, %v4054
        %v4056 = vpop.f32.mrf.mxu0
        %v4057 = vadd.f32 %v3263, %v4056
        %4058 = vmatmul.bf16.gmra.mxu0 %v3217
        %v4059 = vpop.f32.mrf.mxu0
        %v4060 = vadd.f32 %v3263, %v4059
        %v4061 = vpop.f32.mrf.mxu0
        %v4062 = vadd.f32 %v3263, %v4061
        %4063 = vmatmul.bf16.gmra.mxu0 %v3218
        %v4064 = vpop.f32.mrf.mxu0
        %v4065 = vadd.f32 %v3263, %v4064
        %v4066 = vpop.f32.mrf.mxu0
        %v4067 = vadd.f32 %v3263, %v4066
        %4068 = vmatmul.bf16.gmra.mxu0 %v3219
        %v4069 = vpop.f32.mrf.mxu0
        %v4070 = vadd.f32 %v3263, %v4069
        %v4071 = vpop.f32.mrf.mxu0
        %v4072 = vadd.f32 %v3263, %v4071
        %4073 = vmatmul.bf16.gmra.mxu0 %v3220
        %v4074 = vpop.f32.mrf.mxu0
        %v4075 = vadd.f32 %v3263, %v4074
        %v4076 = vpop.f32.mrf.mxu0
        %v4077 = vadd.f32 %v3263, %v4076
        %4078 = vmatmul.bf16.gmra.mxu0 %v3221
        %v4079 = vpop.f32.mrf.mxu0
        %v4080 = vadd.f32 %v3263, %v4079
        %v4081 = vpop.f32.mrf.mxu0
        %v4082 = vadd.f32 %v3263, %v4081
        %4083 = vmatmul.bf16.gmra.mxu0 %v3222
        %v4084 = vpop.f32.mrf.mxu0
        %v4085 = vadd.f32 %v3263, %v4084
        %v4086 = vpop.f32.mrf.mxu0
        %v4087 = vadd.f32 %v3263, %v4086
        %4088 = vmatmul.bf16.gmra.mxu0 %v3223
        %v4089 = vpop.f32.mrf.mxu0
        %v4090 = vadd.f32 %v3263, %v4089
        %v4091 = vpop.f32.mrf.mxu0
        %v4092 = vadd.f32 %v3263, %v4091
        %4093 = vmatmul.bf16.gmra.mxu0 %v3224
        %v4094 = vpop.f32.mrf.mxu0
        %v4095 = vadd.f32 %v3263, %v4094
        %v4096 = vpop.f32.mrf.mxu0
        %v4097 = vadd.f32 %v3263, %v4096
        %4098 = vmatmul.bf16.gmra.mxu0 %v3225
        %v4099 = vpop.f32.mrf.mxu0
        %v4100 = vadd.f32 %v3263, %v4099
        %v4101 = vpop.f32.mrf.mxu0
        %v4102 = vadd.f32 %v3263, %v4101
        %4103 = vdwg.mxu0
        %v4104 = vmul.f32 %v3438, %v3438
        %v4105 = vmul.f32 %v3607, %v3607
        %v4106 = vmul.f32 %v3776, %v3776
        %v4107 = vmul.f32 %v3945, %v3945
        %v4108 = vmul.f32 %v3440, %v3440
        %v4109 = vmul.f32 %v3609, %v3609
        %v4110 = vmul.f32 %v3778, %v3778
        %v4111 = vmul.f32 %v3947, %v3947
        %v4112 = vmul.f32 %v3443, %v3443
        %v4113 = vmul.f32 %v3612, %v3612
        %v4114 = vmul.f32 %v3781, %v3781
        %v4115 = vmul.f32 %v3950, %v3950
        %v4116 = vmul.f32 %v3445, %v3445
        %v4117 = vmul.f32 %v3614, %v3614
        %v4118 = vmul.f32 %v3783, %v3783
        %v4119 = vmul.f32 %v3952, %v3952
        %v4120 = vmul.f32 %v3448, %v3448
        %v4121 = vmul.f32 %v3617, %v3617
        %v4122 = vmul.f32 %v3786, %v3786
        %v4123 = vmul.f32 %v3955, %v3955
        %v4124 = vmul.f32 %v3450, %v3450
        %v4125 = vmul.f32 %v3619, %v3619
        %v4126 = vmul.f32 %v3788, %v3788
        %v4127 = vmul.f32 %v3957, %v3957
        %v4128 = vmul.f32 %v3453, %v3453
        %v4129 = vmul.f32 %v3622, %v3622
        %v4130 = vmul.f32 %v3791, %v3791
        %v4131 = vmul.f32 %v3960, %v3960
        %v4132 = vmul.f32 %v3455, %v3455
        %v4133 = vmul.f32 %v3624, %v3624
        %v4134 = vmul.f32 %v3793, %v3793
        %v4135 = vmul.f32 %v3962, %v3962
        %v4136 = vmul.f32 %v3458, %v3458
        %v4137 = vmul.f32 %v3627, %v3627
        %v4138 = vmul.f32 %v3796, %v3796
        %v4139 = vmul.f32 %v3965, %v3965
        %v4140 = vmul.f32 %v3460, %v3460
        %v4141 = vmul.f32 %v3629, %v3629
        %v4142 = vmul.f32 %v3798, %v3798
        %v4143 = vmul.f32 %v3967, %v3967
        %v4144 = vmul.f32 %v3463, %v3463
        %v4145 = vmul.f32 %v3632, %v3632
        %v4146 = vmul.f32 %v3801, %v3801
        %v4147 = vmul.f32 %v3970, %v3970
        %v4148 = vmul.f32 %v3465, %v3465
        %v4149 = vmul.f32 %v3634, %v3634
        %v4150 = vmul.f32 %v3803, %v3803
        %v4151 = vmul.f32 %v3972, %v3972
        %v4152 = vmul.f32 %v3468, %v3468
        %v4153 = vmul.f32 %v3637, %v3637
        %v4154 = vmul.f32 %v3806, %v3806
        %v4155 = vmul.f32 %v3975, %v3975
        %v4156 = vmul.f32 %v3470, %v3470
        %v4157 = vmul.f32 %v3639, %v3639
        %v4158 = vmul.f32 %v3808, %v3808
        %v4159 = vmul.f32 %v3977, %v3977
        %v4160 = vmul.f32 %v3473, %v3473
        %v4161 = vmul.f32 %v3642, %v3642
        %v4162 = vmul.f32 %v3811, %v3811
        %v4163 = vmul.f32 %v3980, %v3980
        %v4164 = vmul.f32 %v3475, %v3475
        %v4165 = vmul.f32 %v3644, %v3644
        %v4166 = vmul.f32 %v3813, %v3813
        %v4167 = vmul.f32 %v3982, %v3982
        %v4168 = vmul.f32 %v3478, %v3478
        %v4169 = vmul.f32 %v3647, %v3647
        %v4170 = vmul.f32 %v3816, %v3816
        %v4171 = vmul.f32 %v3985, %v3985
        %v4172 = vmul.f32 %v3480, %v3480
        %v4173 = vmul.f32 %v3649, %v3649
        %v4174 = vmul.f32 %v3818, %v3818
        %v4175 = vmul.f32 %v3987, %v3987
        %v4176 = vmul.f32 %v3483, %v3483
        %v4177 = vmul.f32 %v3652, %v3652
        %v4178 = vmul.f32 %v3821, %v3821
        %v4179 = vmul.f32 %v3990, %v3990
        %v4180 = vmul.f32 %v3485, %v3485
        %v4181 = vmul.f32 %v3654, %v3654
        %v4182 = vmul.f32 %v3823, %v3823
        %v4183 = vmul.f32 %v3992, %v3992
        %v4184 = vmul.f32 %v3488, %v3488
        %v4185 = vmul.f32 %v3657, %v3657
        %v4186 = vmul.f32 %v3826, %v3826
        %v4187 = vmul.f32 %v3995, %v3995
        %v4188 = vmul.f32 %v3490, %v3490
        %v4189 = vmul.f32 %v3659, %v3659
        %v4190 = vmul.f32 %v3828, %v3828
        %v4191 = vmul.f32 %v3997, %v3997
        %v4192 = vmul.f32 %v3493, %v3493
        %v4193 = vmul.f32 %v3662, %v3662
        %v4194 = vmul.f32 %v3831, %v3831
        %v4195 = vmul.f32 %v4000, %v4000
        %v4196 = vmul.f32 %v3495, %v3495
        %v4197 = vmul.f32 %v3664, %v3664
        %v4198 = vmul.f32 %v3833, %v3833
        %v4199 = vmul.f32 %v4002, %v4002
        %v4200 = vmul.f32 %v3498, %v3498
        %v4201 = vmul.f32 %v3667, %v3667
        %v4202 = vmul.f32 %v3836, %v3836
        %v4203 = vmul.f32 %v4005, %v4005
        %v4204 = vmul.f32 %v3500, %v3500
        %v4205 = vmul.f32 %v3669, %v3669
        %v4206 = vmul.f32 %v3838, %v3838
        %v4207 = vmul.f32 %v4007, %v4007
        %v4208 = vmul.f32 %v3503, %v3503
        %v4209 = vmul.f32 %v3672, %v3672
        %v4210 = vmul.f32 %v3841, %v3841
        %v4211 = vmul.f32 %v4010, %v4010
        %v4212 = vmul.f32 %v3505, %v3505
        %v4213 = vmul.f32 %v3674, %v3674
        %v4214 = vmul.f32 %v3843, %v3843
        %v4215 = vmul.f32 %v4012, %v4012
        %v4216 = vmul.f32 %v3508, %v3508
        %v4217 = vmul.f32 %v3677, %v3677
        %v4218 = vmul.f32 %v3846, %v3846
        %v4219 = vmul.f32 %v4015, %v4015
        %v4220 = vmul.f32 %v3510, %v3510
        %v4221 = vmul.f32 %v3679, %v3679
        %v4222 = vmul.f32 %v3848, %v3848
        %v4223 = vmul.f32 %v4017, %v4017
        %v4224 = vmul.f32 %v3513, %v3513
        %v4225 = vmul.f32 %v3682, %v3682
        %v4226 = vmul.f32 %v3851, %v3851
        %v4227 = vmul.f32 %v4020, %v4020
        %v4228 = vmul.f32 %v3515, %v3515
        %v4229 = vmul.f32 %v3684, %v3684
        %v4230 = vmul.f32 %v3853, %v3853
        %v4231 = vmul.f32 %v4022, %v4022
        %v4232 = vmul.f32 %v3518, %v3518
        %v4233 = vmul.f32 %v3687, %v3687
        %v4234 = vmul.f32 %v3856, %v3856
        %v4235 = vmul.f32 %v4025, %v4025
        %v4236 = vmul.f32 %v3520, %v3520
        %v4237 = vmul.f32 %v3689, %v3689
        %v4238 = vmul.f32 %v3858, %v3858
        %v4239 = vmul.f32 %v4027, %v4027
        %v4240 = vmul.f32 %v3523, %v3523
        %v4241 = vmul.f32 %v3692, %v3692
        %v4242 = vmul.f32 %v3861, %v3861
        %v4243 = vmul.f32 %v4030, %v4030
        %v4244 = vmul.f32 %v3525, %v3525
        %v4245 = vmul.f32 %v3694, %v3694
        %v4246 = vmul.f32 %v3863, %v3863
        %v4247 = vmul.f32 %v4032, %v4032
        %v4248 = vmul.f32 %v3528, %v3528
        %v4249 = vmul.f32 %v3697, %v3697
        %v4250 = vmul.f32 %v3866, %v3866
        %v4251 = vmul.f32 %v4035, %v4035
        %v4252 = vmul.f32 %v3530, %v3530
        %v4253 = vmul.f32 %v3699, %v3699
        %v4254 = vmul.f32 %v3868, %v3868
        %v4255 = vmul.f32 %v4037, %v4037
        %v4256 = vmul.f32 %v3533, %v3533
        %v4257 = vmul.f32 %v3702, %v3702
        %v4258 = vmul.f32 %v3871, %v3871
        %v4259 = vmul.f32 %v4040, %v4040
        %v4260 = vmul.f32 %v3535, %v3535
        %v4261 = vmul.f32 %v3704, %v3704
        %v4262 = vmul.f32 %v3873, %v3873
        %v4263 = vmul.f32 %v4042, %v4042
        %v4264 = vmul.f32 %v3538, %v3538
        %v4265 = vmul.f32 %v3707, %v3707
        %v4266 = vmul.f32 %v3876, %v3876
        %v4267 = vmul.f32 %v4045, %v4045
        %v4268 = vmul.f32 %v3540, %v3540
        %v4269 = vmul.f32 %v3709, %v3709
        %v4270 = vmul.f32 %v3878, %v3878
        %v4271 = vmul.f32 %v4047, %v4047
        %v4272 = vmul.f32 %v3543, %v3543
        %v4273 = vmul.f32 %v3712, %v3712
        %v4274 = vmul.f32 %v3881, %v3881
        %v4275 = vmul.f32 %v4050, %v4050
        %v4276 = vmul.f32 %v3545, %v3545
        %v4277 = vmul.f32 %v3714, %v3714
        %v4278 = vmul.f32 %v3883, %v3883
        %v4279 = vmul.f32 %v4052, %v4052
        %v4280 = vmul.f32 %v3548, %v3548
        %v4281 = vmul.f32 %v3717, %v3717
        %v4282 = vmul.f32 %v3886, %v3886
        %v4283 = vmul.f32 %v4055, %v4055
        %v4284 = vmul.f32 %v3550, %v3550
        %v4285 = vmul.f32 %v3719, %v3719
        %v4286 = vmul.f32 %v3888, %v3888
        %v4287 = vmul.f32 %v4057, %v4057
        %v4288 = vmul.f32 %v3553, %v3553
        %v4289 = vmul.f32 %v3722, %v3722
        %v4290 = vmul.f32 %v3891, %v3891
        %v4291 = vmul.f32 %v4060, %v4060
        %v4292 = vmul.f32 %v3555, %v3555
        %v4293 = vmul.f32 %v3724, %v3724
        %v4294 = vmul.f32 %v3893, %v3893
        %v4295 = vmul.f32 %v4062, %v4062
        %v4296 = vmul.f32 %v3558, %v3558
        %v4297 = vmul.f32 %v3727, %v3727
        %v4298 = vmul.f32 %v3896, %v3896
        %v4299 = vmul.f32 %v4065, %v4065
        %v4300 = vmul.f32 %v3560, %v3560
        %v4301 = vmul.f32 %v3729, %v3729
        %v4302 = vmul.f32 %v3898, %v3898
        %v4303 = vmul.f32 %v4067, %v4067
        %v4304 = vmul.f32 %v3563, %v3563
        %v4305 = vmul.f32 %v3732, %v3732
        %v4306 = vmul.f32 %v3901, %v3901
        %v4307 = vmul.f32 %v4070, %v4070
        %v4308 = vmul.f32 %v3565, %v3565
        %v4309 = vmul.f32 %v3734, %v3734
        %v4310 = vmul.f32 %v3903, %v3903
        %v4311 = vmul.f32 %v4072, %v4072
        %v4312 = vmul.f32 %v3568, %v3568
        %v4313 = vmul.f32 %v3737, %v3737
        %v4314 = vmul.f32 %v3906, %v3906
        %v4315 = vmul.f32 %v4075, %v4075
        %v4316 = vmul.f32 %v3570, %v3570
        %v4317 = vmul.f32 %v3739, %v3739
        %v4318 = vmul.f32 %v3908, %v3908
        %v4319 = vmul.f32 %v4077, %v4077
        %v4320 = vmul.f32 %v3573, %v3573
        %v4321 = vmul.f32 %v3742, %v3742
        %v4322 = vmul.f32 %v3911, %v3911
        %v4323 = vmul.f32 %v4080, %v4080
        %v4324 = vmul.f32 %v3575, %v3575
        %v4325 = vmul.f32 %v3744, %v3744
        %v4326 = vmul.f32 %v3913, %v3913
        %v4327 = vmul.f32 %v4082, %v4082
        %v4328 = vmul.f32 %v3578, %v3578
        %v4329 = vmul.f32 %v3747, %v3747
        %v4330 = vmul.f32 %v3916, %v3916
        %v4331 = vmul.f32 %v4085, %v4085
        %v4332 = vmul.f32 %v3580, %v3580
        %v4333 = vmul.f32 %v3749, %v3749
        %v4334 = vmul.f32 %v3918, %v3918
        %v4335 = vmul.f32 %v4087, %v4087
        %v4336 = vmul.f32 %v3583, %v3583
        %v4337 = vmul.f32 %v3752, %v3752
        %v4338 = vmul.f32 %v3921, %v3921
        %v4339 = vmul.f32 %v4090, %v4090
        %v4340 = vmul.f32 %v3585, %v3585
        %v4341 = vmul.f32 %v3754, %v3754
        %v4342 = vmul.f32 %v3923, %v3923
        %v4343 = vmul.f32 %v4092, %v4092
        %v4344 = vmul.f32 %v3588, %v3588
        %v4345 = vmul.f32 %v3757, %v3757
        %v4346 = vmul.f32 %v3926, %v3926
        %v4347 = vmul.f32 %v4095, %v4095
        %v4348 = vmul.f32 %v3590, %v3590
        %v4349 = vmul.f32 %v3759, %v3759
        %v4350 = vmul.f32 %v3928, %v3928
        %v4351 = vmul.f32 %v4097, %v4097
        %v4352 = vmul.f32 %v3593, %v3593
        %v4353 = vmul.f32 %v3762, %v3762
        %v4354 = vmul.f32 %v3931, %v3931
        %v4355 = vmul.f32 %v4100, %v4100
        %v4356 = vmul.f32 %v3595, %v3595
        %v4357 = vmul.f32 %v3764, %v3764
        %v4358 = vmul.f32 %v3933, %v3933
        %v4359 = vmul.f32 %v4102, %v4102
        %v4360 = vmul.f32 %v3438, %v4104
        %v4361 = vmul.f32 %v3607, %v4105
        %v4362 = vmul.f32 %v3776, %v4106
        %v4363 = vmul.f32 %v3945, %v4107
        %v4364 = vmul.f32 %v3440, %v4108
        %v4365 = vmul.f32 %v3609, %v4109
        %v4366 = vmul.f32 %v3778, %v4110
        %v4367 = vmul.f32 %v3947, %v4111
        %v4368 = vmul.f32 %v3443, %v4112
        %v4369 = vmul.f32 %v3612, %v4113
        %v4370 = vmul.f32 %v3781, %v4114
        %v4371 = vmul.f32 %v3950, %v4115
        %v4372 = vmul.f32 %v3445, %v4116
        %v4373 = vmul.f32 %v3614, %v4117
        %v4374 = vmul.f32 %v3783, %v4118
        %v4375 = vmul.f32 %v3952, %v4119
        %v4376 = vmul.f32 %v3448, %v4120
        %v4377 = vmul.f32 %v3617, %v4121
        %v4378 = vmul.f32 %v3786, %v4122
        %v4379 = vmul.f32 %v3955, %v4123
        %v4380 = vmul.f32 %v3450, %v4124
        %v4381 = vmul.f32 %v3619, %v4125
        %v4382 = vmul.f32 %v3788, %v4126
        %v4383 = vmul.f32 %v3957, %v4127
        %v4384 = vmul.f32 %v3453, %v4128
        %v4385 = vmul.f32 %v3622, %v4129
        %v4386 = vmul.f32 %v3791, %v4130
        %v4387 = vmul.f32 %v3960, %v4131
        %v4388 = vmul.f32 %v3455, %v4132
        %v4389 = vmul.f32 %v3624, %v4133
        %v4390 = vmul.f32 %v3793, %v4134
        %v4391 = vmul.f32 %v3962, %v4135
        %v4392 = vmul.f32 %v3458, %v4136
        %v4393 = vmul.f32 %v3627, %v4137
        %v4394 = vmul.f32 %v3796, %v4138
        %v4395 = vmul.f32 %v3965, %v4139
        %v4396 = vmul.f32 %v3460, %v4140
        %v4397 = vmul.f32 %v3629, %v4141
        %v4398 = vmul.f32 %v3798, %v4142
        %v4399 = vmul.f32 %v3967, %v4143
        %v4400 = vmul.f32 %v3463, %v4144
        %v4401 = vmul.f32 %v3632, %v4145
        %v4402 = vmul.f32 %v3801, %v4146
        %v4403 = vmul.f32 %v3970, %v4147
        %v4404 = vmul.f32 %v3465, %v4148
        %v4405 = vmul.f32 %v3634, %v4149
        %v4406 = vmul.f32 %v3803, %v4150
        %v4407 = vmul.f32 %v3972, %v4151
        %v4408 = vmul.f32 %v3468, %v4152
        %v4409 = vmul.f32 %v3637, %v4153
        %v4410 = vmul.f32 %v3806, %v4154
        %v4411 = vmul.f32 %v3975, %v4155
        %v4412 = vmul.f32 %v3470, %v4156
        %v4413 = vmul.f32 %v3639, %v4157
        %v4414 = vmul.f32 %v3808, %v4158
        %v4415 = vmul.f32 %v3977, %v4159
        %v4416 = vmul.f32 %v3473, %v4160
        %v4417 = vmul.f32 %v3642, %v4161
        %v4418 = vmul.f32 %v3811, %v4162
        %v4419 = vmul.f32 %v3980, %v4163
        %v4420 = vmul.f32 %v3475, %v4164
        %v4421 = vmul.f32 %v3644, %v4165
        %v4422 = vmul.f32 %v3813, %v4166
        %v4423 = vmul.f32 %v3982, %v4167
        %v4424 = vmul.f32 %v3478, %v4168
        %v4425 = vmul.f32 %v3647, %v4169
        %v4426 = vmul.f32 %v3816, %v4170
        %v4427 = vmul.f32 %v3985, %v4171
        %v4428 = vmul.f32 %v3480, %v4172
        %v4429 = vmul.f32 %v3649, %v4173
        %v4430 = vmul.f32 %v3818, %v4174
        %v4431 = vmul.f32 %v3987, %v4175
        %v4432 = vmul.f32 %v3483, %v4176
        %v4433 = vmul.f32 %v3652, %v4177
        %v4434 = vmul.f32 %v3821, %v4178
        %v4435 = vmul.f32 %v3990, %v4179
        %v4436 = vmul.f32 %v3485, %v4180
        %v4437 = vmul.f32 %v3654, %v4181
        %v4438 = vmul.f32 %v3823, %v4182
        %v4439 = vmul.f32 %v3992, %v4183
        %v4440 = vmul.f32 %v3488, %v4184
        %v4441 = vmul.f32 %v3657, %v4185
        %v4442 = vmul.f32 %v3826, %v4186
        %v4443 = vmul.f32 %v3995, %v4187
        %v4444 = vmul.f32 %v3490, %v4188
        %v4445 = vmul.f32 %v3659, %v4189
        %v4446 = vmul.f32 %v3828, %v4190
        %v4447 = vmul.f32 %v3997, %v4191
        %v4448 = vmul.f32 %v3493, %v4192
        %v4449 = vmul.f32 %v3662, %v4193
        %v4450 = vmul.f32 %v3831, %v4194
        %v4451 = vmul.f32 %v4000, %v4195
        %v4452 = vmul.f32 %v3495, %v4196
        %v4453 = vmul.f32 %v3664, %v4197
        %v4454 = vmul.f32 %v3833, %v4198
        %v4455 = vmul.f32 %v4002, %v4199
        %v4456 = vmul.f32 %v3498, %v4200
        %v4457 = vmul.f32 %v3667, %v4201
        %v4458 = vmul.f32 %v3836, %v4202
        %v4459 = vmul.f32 %v4005, %v4203
        %v4460 = vmul.f32 %v3500, %v4204
        %v4461 = vmul.f32 %v3669, %v4205
        %v4462 = vmul.f32 %v3838, %v4206
        %v4463 = vmul.f32 %v4007, %v4207
        %v4464 = vmul.f32 %v3503, %v4208
        %v4465 = vmul.f32 %v3672, %v4209
        %v4466 = vmul.f32 %v3841, %v4210
        %v4467 = vmul.f32 %v4010, %v4211
        %v4468 = vmul.f32 %v3505, %v4212
        %v4469 = vmul.f32 %v3674, %v4213
        %v4470 = vmul.f32 %v3843, %v4214
        %v4471 = vmul.f32 %v4012, %v4215
        %v4472 = vmul.f32 %v3508, %v4216
        %v4473 = vmul.f32 %v3677, %v4217
        %v4474 = vmul.f32 %v3846, %v4218
        %v4475 = vmul.f32 %v4015, %v4219
        %v4476 = vmul.f32 %v3510, %v4220
        %v4477 = vmul.f32 %v3679, %v4221
        %v4478 = vmul.f32 %v3848, %v4222
        %v4479 = vmul.f32 %v4017, %v4223
        %v4480 = vmul.f32 %v3513, %v4224
        %v4481 = vmul.f32 %v3682, %v4225
        %v4482 = vmul.f32 %v3851, %v4226
        %v4483 = vmul.f32 %v4020, %v4227
        %v4484 = vmul.f32 %v3515, %v4228
        %v4485 = vmul.f32 %v3684, %v4229
        %v4486 = vmul.f32 %v3853, %v4230
        %v4487 = vmul.f32 %v4022, %v4231
        %v4488 = vmul.f32 %v3518, %v4232
        %v4489 = vmul.f32 %v3687, %v4233
        %v4490 = vmul.f32 %v3856, %v4234
        %v4491 = vmul.f32 %v4025, %v4235
        %v4492 = vmul.f32 %v3520, %v4236
        %v4493 = vmul.f32 %v3689, %v4237
        %v4494 = vmul.f32 %v3858, %v4238
        %v4495 = vmul.f32 %v4027, %v4239
        %v4496 = vmul.f32 %v3523, %v4240
        %v4497 = vmul.f32 %v3692, %v4241
        %v4498 = vmul.f32 %v3861, %v4242
        %v4499 = vmul.f32 %v4030, %v4243
        %v4500 = vmul.f32 %v3525, %v4244
        %v4501 = vmul.f32 %v3694, %v4245
        %v4502 = vmul.f32 %v3863, %v4246
        %v4503 = vmul.f32 %v4032, %v4247
        %v4504 = vmul.f32 %v3528, %v4248
        %v4505 = vmul.f32 %v3697, %v4249
        %v4506 = vmul.f32 %v3866, %v4250
        %v4507 = vmul.f32 %v4035, %v4251
        %v4508 = vmul.f32 %v3530, %v4252
        %v4509 = vmul.f32 %v3699, %v4253
        %v4510 = vmul.f32 %v3868, %v4254
        %v4511 = vmul.f32 %v4037, %v4255
        %v4512 = vmul.f32 %v3533, %v4256
        %v4513 = vmul.f32 %v3702, %v4257
        %v4514 = vmul.f32 %v3871, %v4258
        %v4515 = vmul.f32 %v4040, %v4259
        %v4516 = vmul.f32 %v3535, %v4260
        %v4517 = vmul.f32 %v3704, %v4261
        %v4518 = vmul.f32 %v3873, %v4262
        %v4519 = vmul.f32 %v4042, %v4263
        %v4520 = vmul.f32 %v3538, %v4264
        %v4521 = vmul.f32 %v3707, %v4265
        %v4522 = vmul.f32 %v3876, %v4266
        %v4523 = vmul.f32 %v4045, %v4267
        %v4524 = vmul.f32 %v3540, %v4268
        %v4525 = vmul.f32 %v3709, %v4269
        %v4526 = vmul.f32 %v3878, %v4270
        %v4527 = vmul.f32 %v4047, %v4271
        %v4528 = vmul.f32 %v3543, %v4272
        %v4529 = vmul.f32 %v3712, %v4273
        %v4530 = vmul.f32 %v3881, %v4274
        %v4531 = vmul.f32 %v4050, %v4275
        %v4532 = vmul.f32 %v3545, %v4276
        %v4533 = vmul.f32 %v3714, %v4277
        %v4534 = vmul.f32 %v3883, %v4278
        %v4535 = vmul.f32 %v4052, %v4279
        %v4536 = vmul.f32 %v3548, %v4280
        %v4537 = vmul.f32 %v3717, %v4281
        %v4538 = vmul.f32 %v3886, %v4282
        %v4539 = vmul.f32 %v4055, %v4283
        %v4540 = vmul.f32 %v3550, %v4284
        %v4541 = vmul.f32 %v3719, %v4285
        %v4542 = vmul.f32 %v3888, %v4286
        %v4543 = vmul.f32 %v4057, %v4287
        %v4544 = vmul.f32 %v3553, %v4288
        %v4545 = vmul.f32 %v3722, %v4289
        %v4546 = vmul.f32 %v3891, %v4290
        %v4547 = vmul.f32 %v4060, %v4291
        %v4548 = vmul.f32 %v3555, %v4292
        %v4549 = vmul.f32 %v3724, %v4293
        %v4550 = vmul.f32 %v3893, %v4294
        %v4551 = vmul.f32 %v4062, %v4295
        %v4552 = vmul.f32 %v3558, %v4296
        %v4553 = vmul.f32 %v3727, %v4297
        %v4554 = vmul.f32 %v3896, %v4298
        %v4555 = vmul.f32 %v4065, %v4299
        %v4556 = vmul.f32 %v3560, %v4300
        %v4557 = vmul.f32 %v3729, %v4301
        %v4558 = vmul.f32 %v3898, %v4302
        %v4559 = vmul.f32 %v4067, %v4303
        %v4560 = vmul.f32 %v3563, %v4304
        %v4561 = vmul.f32 %v3732, %v4305
        %v4562 = vmul.f32 %v3901, %v4306
        %v4563 = vmul.f32 %v4070, %v4307
        %v4564 = vmul.f32 %v3565, %v4308
        %v4565 = vmul.f32 %v3734, %v4309
        %v4566 = vmul.f32 %v3903, %v4310
        %v4567 = vmul.f32 %v4072, %v4311
        %v4568 = vmul.f32 %v3568, %v4312
        %v4569 = vmul.f32 %v3737, %v4313
        %v4570 = vmul.f32 %v3906, %v4314
        %v4571 = vmul.f32 %v4075, %v4315
        %v4572 = vmul.f32 %v3570, %v4316
        %v4573 = vmul.f32 %v3739, %v4317
        %v4574 = vmul.f32 %v3908, %v4318
        %v4575 = vmul.f32 %v4077, %v4319
        %v4576 = vmul.f32 %v3573, %v4320
        %v4577 = vmul.f32 %v3742, %v4321
        %v4578 = vmul.f32 %v3911, %v4322
        %v4579 = vmul.f32 %v4080, %v4323
        %v4580 = vmul.f32 %v3575, %v4324
        %v4581 = vmul.f32 %v3744, %v4325
        %v4582 = vmul.f32 %v3913, %v4326
        %v4583 = vmul.f32 %v4082, %v4327
        %v4584 = vmul.f32 %v3578, %v4328
        %v4585 = vmul.f32 %v3747, %v4329
        %v4586 = vmul.f32 %v3916, %v4330
        %v4587 = vmul.f32 %v4085, %v4331
        %v4588 = vmul.f32 %v3580, %v4332
        %v4589 = vmul.f32 %v3749, %v4333
        %v4590 = vmul.f32 %v3918, %v4334
        %v4591 = vmul.f32 %v4087, %v4335
        %v4592 = vmul.f32 %v3583, %v4336
        %v4593 = vmul.f32 %v3752, %v4337
        %v4594 = vmul.f32 %v3921, %v4338
        %v4595 = vmul.f32 %v4090, %v4339
        %v4596 = vmul.f32 %v3585, %v4340
        %v4597 = vmul.f32 %v3754, %v4341
        %v4598 = vmul.f32 %v3923, %v4342
        %v4599 = vmul.f32 %v4092, %v4343
        %v4600 = vmul.f32 %v3588, %v4344
        %v4601 = vmul.f32 %v3757, %v4345
        %v4602 = vmul.f32 %v3926, %v4346
        %v4603 = vmul.f32 %v4095, %v4347
        %v4604 = vmul.f32 %v3590, %v4348
        %v4605 = vmul.f32 %v3759, %v4349
        %v4606 = vmul.f32 %v3928, %v4350
        %v4607 = vmul.f32 %v4097, %v4351
        %v4608 = vmul.f32 %v3593, %v4352
        %v4609 = vmul.f32 %v3762, %v4353
        %v4610 = vmul.f32 %v3931, %v4354
        %v4611 = vmul.f32 %v4100, %v4355
        %v4612 = vmul.f32 %v3595, %v4356
        %v4613 = vmul.f32 %v3764, %v4357
        %v4614 = vmul.f32 %v3933, %v4358
        %v4615 = vmul.f32 %v4102, %v4359
        %v4616 = vmul.f32 %v4360, 0.044715
        %v4617 = vmul.f32 %v4361, 0.044715
        %v4618 = vmul.f32 %v4362, 0.044715
        %v4619 = vmul.f32 %v4363, 0.044715
        %v4620 = vmul.f32 %v4364, 0.044715
        %v4621 = vmul.f32 %v4365, 0.044715
        %v4622 = vmul.f32 %v4366, 0.044715
        %v4623 = vmul.f32 %v4367, 0.044715
        %v4624 = vmul.f32 %v4368, 0.044715
        %v4625 = vmul.f32 %v4369, 0.044715
        %v4626 = vmul.f32 %v4370, 0.044715
        %v4627 = vmul.f32 %v4371, 0.044715
        %v4628 = vmul.f32 %v4372, 0.044715
        %v4629 = vmul.f32 %v4373, 0.044715
        %v4630 = vmul.f32 %v4374, 0.044715
        %v4631 = vmul.f32 %v4375, 0.044715
        %v4632 = vmul.f32 %v4376, 0.044715
        %v4633 = vmul.f32 %v4377, 0.044715
        %v4634 = vmul.f32 %v4378, 0.044715
        %v4635 = vmul.f32 %v4379, 0.044715
        %v4636 = vmul.f32 %v4380, 0.044715
        %v4637 = vmul.f32 %v4381, 0.044715
        %v4638 = vmul.f32 %v4382, 0.044715
        %v4639 = vmul.f32 %v4383, 0.044715
        %v4640 = vmul.f32 %v4384, 0.044715
        %v4641 = vmul.f32 %v4385, 0.044715
        %v4642 = vmul.f32 %v4386, 0.044715
        %v4643 = vmul.f32 %v4387, 0.044715
        %v4644 = vmul.f32 %v4388, 0.044715
        %v4645 = vmul.f32 %v4389, 0.044715
        %v4646 = vmul.f32 %v4390, 0.044715
        %v4647 = vmul.f32 %v4391, 0.044715
        %v4648 = vmul.f32 %v4392, 0.044715
        %v4649 = vmul.f32 %v4393, 0.044715
        %v4650 = vmul.f32 %v4394, 0.044715
        %v4651 = vmul.f32 %v4395, 0.044715
        %v4652 = vmul.f32 %v4396, 0.044715
        %v4653 = vmul.f32 %v4397, 0.044715
        %v4654 = vmul.f32 %v4398, 0.044715
        %v4655 = vmul.f32 %v4399, 0.044715
        %v4656 = vmul.f32 %v4400, 0.044715
        %v4657 = vmul.f32 %v4401, 0.044715
        %v4658 = vmul.f32 %v4402, 0.044715
        %v4659 = vmul.f32 %v4403, 0.044715
        %v4660 = vmul.f32 %v4404, 0.044715
        %v4661 = vmul.f32 %v4405, 0.044715
        %v4662 = vmul.f32 %v4406, 0.044715
        %v4663 = vmul.f32 %v4407, 0.044715
        %v4664 = vmul.f32 %v4408, 0.044715
        %v4665 = vmul.f32 %v4409, 0.044715
        %v4666 = vmul.f32 %v4410, 0.044715
        %v4667 = vmul.f32 %v4411, 0.044715
        %v4668 = vmul.f32 %v4412, 0.044715
        %v4669 = vmul.f32 %v4413, 0.044715
        %v4670 = vmul.f32 %v4414, 0.044715
        %v4671 = vmul.f32 %v4415, 0.044715
        %v4672 = vmul.f32 %v4416, 0.044715
        %v4673 = vmul.f32 %v4417, 0.044715
        %v4674 = vmul.f32 %v4418, 0.044715
        %v4675 = vmul.f32 %v4419, 0.044715
        %v4676 = vmul.f32 %v4420, 0.044715
        %v4677 = vmul.f32 %v4421, 0.044715
        %v4678 = vmul.f32 %v4422, 0.044715
        %v4679 = vmul.f32 %v4423, 0.044715
        %v4680 = vmul.f32 %v4424, 0.044715
        %v4681 = vmul.f32 %v4425, 0.044715
        %v4682 = vmul.f32 %v4426, 0.044715
        %v4683 = vmul.f32 %v4427, 0.044715
        %v4684 = vmul.f32 %v4428, 0.044715
        %v4685 = vmul.f32 %v4429, 0.044715
        %v4686 = vmul.f32 %v4430, 0.044715
        %v4687 = vmul.f32 %v4431, 0.044715
        %v4688 = vmul.f32 %v4432, 0.044715
        %v4689 = vmul.f32 %v4433, 0.044715
        %v4690 = vmul.f32 %v4434, 0.044715
        %v4691 = vmul.f32 %v4435, 0.044715
        %v4692 = vmul.f32 %v4436, 0.044715
        %v4693 = vmul.f32 %v4437, 0.044715
        %v4694 = vmul.f32 %v4438, 0.044715
        %v4695 = vmul.f32 %v4439, 0.044715
        %v4696 = vmul.f32 %v4440, 0.044715
        %v4697 = vmul.f32 %v4441, 0.044715
        %v4698 = vmul.f32 %v4442, 0.044715
        %v4699 = vmul.f32 %v4443, 0.044715
        %v4700 = vmul.f32 %v4444, 0.044715
        %v4701 = vmul.f32 %v4445, 0.044715
        %v4702 = vmul.f32 %v4446, 0.044715
        %v4703 = vmul.f32 %v4447, 0.044715
        %v4704 = vmul.f32 %v4448, 0.044715
        %v4705 = vmul.f32 %v4449, 0.044715
        %v4706 = vmul.f32 %v4450, 0.044715
        %v4707 = vmul.f32 %v4451, 0.044715
        %v4708 = vmul.f32 %v4452, 0.044715
        %v4709 = vmul.f32 %v4453, 0.044715
        %v4710 = vmul.f32 %v4454, 0.044715
        %v4711 = vmul.f32 %v4455, 0.044715
        %v4712 = vmul.f32 %v4456, 0.044715
        %v4713 = vmul.f32 %v4457, 0.044715
        %v4714 = vmul.f32 %v4458, 0.044715
        %v4715 = vmul.f32 %v4459, 0.044715
        %v4716 = vmul.f32 %v4460, 0.044715
        %v4717 = vmul.f32 %v4461, 0.044715
        %v4718 = vmul.f32 %v4462, 0.044715
        %v4719 = vmul.f32 %v4463, 0.044715
        %v4720 = vmul.f32 %v4464, 0.044715
        %v4721 = vmul.f32 %v4465, 0.044715
        %v4722 = vmul.f32 %v4466, 0.044715
        %v4723 = vmul.f32 %v4467, 0.044715
        %v4724 = vmul.f32 %v4468, 0.044715
        %v4725 = vmul.f32 %v4469, 0.044715
        %v4726 = vmul.f32 %v4470, 0.044715
        %v4727 = vmul.f32 %v4471, 0.044715
        %v4728 = vmul.f32 %v4472, 0.044715
        %v4729 = vmul.f32 %v4473, 0.044715
        %v4730 = vmul.f32 %v4474, 0.044715
        %v4731 = vmul.f32 %v4475, 0.044715
        %v4732 = vmul.f32 %v4476, 0.044715
        %v4733 = vmul.f32 %v4477, 0.044715
        %v4734 = vmul.f32 %v4478, 0.044715
        %v4735 = vmul.f32 %v4479, 0.044715
        %v4736 = vmul.f32 %v4480, 0.044715
        %v4737 = vmul.f32 %v4481, 0.044715
        %v4738 = vmul.f32 %v4482, 0.044715
        %v4739 = vmul.f32 %v4483, 0.044715
        %v4740 = vmul.f32 %v4484, 0.044715
        %v4741 = vmul.f32 %v4485, 0.044715
        %v4742 = vmul.f32 %v4486, 0.044715
        %v4743 = vmul.f32 %v4487, 0.044715
        %v4744 = vmul.f32 %v4488, 0.044715
        %v4745 = vmul.f32 %v4489, 0.044715
        %v4746 = vmul.f32 %v4490, 0.044715
        %v4747 = vmul.f32 %v4491, 0.044715
        %v4748 = vmul.f32 %v4492, 0.044715
        %v4749 = vmul.f32 %v4493, 0.044715
        %v4750 = vmul.f32 %v4494, 0.044715
        %v4751 = vmul.f32 %v4495, 0.044715
        %v4752 = vmul.f32 %v4496, 0.044715
        %v4753 = vmul.f32 %v4497, 0.044715
        %v4754 = vmul.f32 %v4498, 0.044715
        %v4755 = vmul.f32 %v4499, 0.044715
        %v4756 = vmul.f32 %v4500, 0.044715
        %v4757 = vmul.f32 %v4501, 0.044715
        %v4758 = vmul.f32 %v4502, 0.044715
        %v4759 = vmul.f32 %v4503, 0.044715
        %v4760 = vmul.f32 %v4504, 0.044715
        %v4761 = vmul.f32 %v4505, 0.044715
        %v4762 = vmul.f32 %v4506, 0.044715
        %v4763 = vmul.f32 %v4507, 0.044715
        %v4764 = vmul.f32 %v4508, 0.044715
        %v4765 = vmul.f32 %v4509, 0.044715
        %v4766 = vmul.f32 %v4510, 0.044715
        %v4767 = vmul.f32 %v4511, 0.044715
        %v4768 = vmul.f32 %v4512, 0.044715
        %v4769 = vmul.f32 %v4513, 0.044715
        %v4770 = vmul.f32 %v4514, 0.044715
        %v4771 = vmul.f32 %v4515, 0.044715
        %v4772 = vmul.f32 %v4516, 0.044715
        %v4773 = vmul.f32 %v4517, 0.044715
        %v4774 = vmul.f32 %v4518, 0.044715
        %v4775 = vmul.f32 %v4519, 0.044715
        %v4776 = vmul.f32 %v4520, 0.044715
        %v4777 = vmul.f32 %v4521, 0.044715
        %v4778 = vmul.f32 %v4522, 0.044715
        %v4779 = vmul.f32 %v4523, 0.044715
        %v4780 = vmul.f32 %v4524, 0.044715
        %v4781 = vmul.f32 %v4525, 0.044715
        %v4782 = vmul.f32 %v4526, 0.044715
        %v4783 = vmul.f32 %v4527, 0.044715
        %v4784 = vmul.f32 %v4528, 0.044715
        %v4785 = vmul.f32 %v4529, 0.044715
        %v4786 = vmul.f32 %v4530, 0.044715
        %v4787 = vmul.f32 %v4531, 0.044715
        %v4788 = vmul.f32 %v4532, 0.044715
        %v4789 = vmul.f32 %v4533, 0.044715
        %v4790 = vmul.f32 %v4534, 0.044715
        %v4791 = vmul.f32 %v4535, 0.044715
        %v4792 = vmul.f32 %v4536, 0.044715
        %v4793 = vmul.f32 %v4537, 0.044715
        %v4794 = vmul.f32 %v4538, 0.044715
        %v4795 = vmul.f32 %v4539, 0.044715
        %v4796 = vmul.f32 %v4540, 0.044715
        %v4797 = vmul.f32 %v4541, 0.044715
        %v4798 = vmul.f32 %v4542, 0.044715
        %v4799 = vmul.f32 %v4543, 0.044715
        %v4800 = vmul.f32 %v4544, 0.044715
        %v4801 = vmul.f32 %v4545, 0.044715
        %v4802 = vmul.f32 %v4546, 0.044715
        %v4803 = vmul.f32 %v4547, 0.044715
        %v4804 = vmul.f32 %v4548, 0.044715
        %v4805 = vmul.f32 %v4549, 0.044715
        %v4806 = vmul.f32 %v4550, 0.044715
        %v4807 = vmul.f32 %v4551, 0.044715
        %v4808 = vmul.f32 %v4552, 0.044715
        %v4809 = vmul.f32 %v4553, 0.044715
        %v4810 = vmul.f32 %v4554, 0.044715
        %v4811 = vmul.f32 %v4555, 0.044715
        %v4812 = vmul.f32 %v4556, 0.044715
        %v4813 = vmul.f32 %v4557, 0.044715
        %v4814 = vmul.f32 %v4558, 0.044715
        %v4815 = vmul.f32 %v4559, 0.044715
        %v4816 = vmul.f32 %v4560, 0.044715
        %v4817 = vmul.f32 %v4561, 0.044715
        %v4818 = vmul.f32 %v4562, 0.044715
        %v4819 = vmul.f32 %v4563, 0.044715
        %v4820 = vmul.f32 %v4564, 0.044715
        %v4821 = vmul.f32 %v4565, 0.044715
        %v4822 = vmul.f32 %v4566, 0.044715
        %v4823 = vmul.f32 %v4567, 0.044715
        %v4824 = vmul.f32 %v4568, 0.044715
        %v4825 = vmul.f32 %v4569, 0.044715
        %v4826 = vmul.f32 %v4570, 0.044715
        %v4827 = vmul.f32 %v4571, 0.044715
        %v4828 = vmul.f32 %v4572, 0.044715
        %v4829 = vmul.f32 %v4573, 0.044715
        %v4830 = vmul.f32 %v4574, 0.044715
        %v4831 = vmul.f32 %v4575, 0.044715
        %v4832 = vmul.f32 %v4576, 0.044715
        %v4833 = vmul.f32 %v4577, 0.044715
        %v4834 = vmul.f32 %v4578, 0.044715
        %v4835 = vmul.f32 %v4579, 0.044715
        %v4836 = vmul.f32 %v4580, 0.044715
        %v4837 = vmul.f32 %v4581, 0.044715
        %v4838 = vmul.f32 %v4582, 0.044715
        %v4839 = vmul.f32 %v4583, 0.044715
        %v4840 = vmul.f32 %v4584, 0.044715
        %v4841 = vmul.f32 %v4585, 0.044715
        %v4842 = vmul.f32 %v4586, 0.044715
        %v4843 = vmul.f32 %v4587, 0.044715
        %v4844 = vmul.f32 %v4588, 0.044715
        %v4845 = vmul.f32 %v4589, 0.044715
        %v4846 = vmul.f32 %v4590, 0.044715
        %v4847 = vmul.f32 %v4591, 0.044715
        %v4848 = vmul.f32 %v4592, 0.044715
        %v4849 = vmul.f32 %v4593, 0.044715
        %v4850 = vmul.f32 %v4594, 0.044715
        %v4851 = vmul.f32 %v4595, 0.044715
        %v4852 = vmul.f32 %v4596, 0.044715
        %v4853 = vmul.f32 %v4597, 0.044715
        %v4854 = vmul.f32 %v4598, 0.044715
        %v4855 = vmul.f32 %v4599, 0.044715
        %v4856 = vmul.f32 %v4600, 0.044715
        %v4857 = vmul.f32 %v4601, 0.044715
        %v4858 = vmul.f32 %v4602, 0.044715
        %v4859 = vmul.f32 %v4603, 0.044715
        %v4860 = vmul.f32 %v4604, 0.044715
        %v4861 = vmul.f32 %v4605, 0.044715
        %v4862 = vmul.f32 %v4606, 0.044715
        %v4863 = vmul.f32 %v4607, 0.044715
        %v4864 = vmul.f32 %v4608, 0.044715
        %v4865 = vmul.f32 %v4609, 0.044715
        %v4866 = vmul.f32 %v4610, 0.044715
        %v4867 = vmul.f32 %v4611, 0.044715
        %v4868 = vmul.f32 %v4612, 0.044715
        %v4869 = vmul.f32 %v4613, 0.044715
        %v4870 = vmul.f32 %v4614, 0.044715
        %v4871 = vmul.f32 %v4615, 0.044715
        %v4872 = vadd.f32 %v3438, %v4616
        %v4873 = vadd.f32 %v3607, %v4617
        %v4874 = vadd.f32 %v3776, %v4618
        %v4875 = vadd.f32 %v3945, %v4619
        %v4876 = vadd.f32 %v3440, %v4620
        %v4877 = vadd.f32 %v3609, %v4621
        %v4878 = vadd.f32 %v3778, %v4622
        %v4879 = vadd.f32 %v3947, %v4623
        %v4880 = vadd.f32 %v3443, %v4624
        %v4881 = vadd.f32 %v3612, %v4625
        %v4882 = vadd.f32 %v3781, %v4626
        %v4883 = vadd.f32 %v3950, %v4627
        %v4884 = vadd.f32 %v3445, %v4628
        %v4885 = vadd.f32 %v3614, %v4629
        %v4886 = vadd.f32 %v3783, %v4630
        %v4887 = vadd.f32 %v3952, %v4631
        %v4888 = vadd.f32 %v3448, %v4632
        %v4889 = vadd.f32 %v3617, %v4633
        %v4890 = vadd.f32 %v3786, %v4634
        %v4891 = vadd.f32 %v3955, %v4635
        %v4892 = vadd.f32 %v3450, %v4636
        %v4893 = vadd.f32 %v3619, %v4637
        %v4894 = vadd.f32 %v3788, %v4638
        %v4895 = vadd.f32 %v3957, %v4639
        %v4896 = vadd.f32 %v3453, %v4640
        %v4897 = vadd.f32 %v3622, %v4641
        %v4898 = vadd.f32 %v3791, %v4642
        %v4899 = vadd.f32 %v3960, %v4643
        %v4900 = vadd.f32 %v3455, %v4644
        %v4901 = vadd.f32 %v3624, %v4645
        %v4902 = vadd.f32 %v3793, %v4646
        %v4903 = vadd.f32 %v3962, %v4647
        %v4904 = vadd.f32 %v3458, %v4648
        %v4905 = vadd.f32 %v3627, %v4649
        %v4906 = vadd.f32 %v3796, %v4650
        %v4907 = vadd.f32 %v3965, %v4651
        %v4908 = vadd.f32 %v3460, %v4652
        %v4909 = vadd.f32 %v3629, %v4653
        %v4910 = vadd.f32 %v3798, %v4654
        %v4911 = vadd.f32 %v3967, %v4655
        %v4912 = vadd.f32 %v3463, %v4656
        %v4913 = vadd.f32 %v3632, %v4657
        %v4914 = vadd.f32 %v3801, %v4658
        %v4915 = vadd.f32 %v3970, %v4659
        %v4916 = vadd.f32 %v3465, %v4660
        %v4917 = vadd.f32 %v3634, %v4661
        %v4918 = vadd.f32 %v3803, %v4662
        %v4919 = vadd.f32 %v3972, %v4663
        %v4920 = vadd.f32 %v3468, %v4664
        %v4921 = vadd.f32 %v3637, %v4665
        %v4922 = vadd.f32 %v3806, %v4666
        %v4923 = vadd.f32 %v3975, %v4667
        %v4924 = vadd.f32 %v3470, %v4668
        %v4925 = vadd.f32 %v3639, %v4669
        %v4926 = vadd.f32 %v3808, %v4670
        %v4927 = vadd.f32 %v3977, %v4671
        %v4928 = vadd.f32 %v3473, %v4672
        %v4929 = vadd.f32 %v3642, %v4673
        %v4930 = vadd.f32 %v3811, %v4674
        %v4931 = vadd.f32 %v3980, %v4675
        %v4932 = vadd.f32 %v3475, %v4676
        %v4933 = vadd.f32 %v3644, %v4677
        %v4934 = vadd.f32 %v3813, %v4678
        %v4935 = vadd.f32 %v3982, %v4679
        %v4936 = vadd.f32 %v3478, %v4680
        %v4937 = vadd.f32 %v3647, %v4681
        %v4938 = vadd.f32 %v3816, %v4682
        %v4939 = vadd.f32 %v3985, %v4683
        %v4940 = vadd.f32 %v3480, %v4684
        %v4941 = vadd.f32 %v3649, %v4685
        %v4942 = vadd.f32 %v3818, %v4686
        %v4943 = vadd.f32 %v3987, %v4687
        %v4944 = vadd.f32 %v3483, %v4688
        %v4945 = vadd.f32 %v3652, %v4689
        %v4946 = vadd.f32 %v3821, %v4690
        %v4947 = vadd.f32 %v3990, %v4691
        %v4948 = vadd.f32 %v3485, %v4692
        %v4949 = vadd.f32 %v3654, %v4693
        %v4950 = vadd.f32 %v3823, %v4694
        %v4951 = vadd.f32 %v3992, %v4695
        %v4952 = vadd.f32 %v3488, %v4696
        %v4953 = vadd.f32 %v3657, %v4697
        %v4954 = vadd.f32 %v3826, %v4698
        %v4955 = vadd.f32 %v3995, %v4699
        %v4956 = vadd.f32 %v3490, %v4700
        %v4957 = vadd.f32 %v3659, %v4701
        %v4958 = vadd.f32 %v3828, %v4702
        %v4959 = vadd.f32 %v3997, %v4703
        %v4960 = vadd.f32 %v3493, %v4704
        %v4961 = vadd.f32 %v3662, %v4705
        %v4962 = vadd.f32 %v3831, %v4706
        %v4963 = vadd.f32 %v4000, %v4707
        %v4964 = vadd.f32 %v3495, %v4708
        %v4965 = vadd.f32 %v3664, %v4709
        %v4966 = vadd.f32 %v3833, %v4710
        %v4967 = vadd.f32 %v4002, %v4711
        %v4968 = vadd.f32 %v3498, %v4712
        %v4969 = vadd.f32 %v3667, %v4713
        %v4970 = vadd.f32 %v3836, %v4714
        %v4971 = vadd.f32 %v4005, %v4715
        %v4972 = vadd.f32 %v3500, %v4716
        %v4973 = vadd.f32 %v3669, %v4717
        %v4974 = vadd.f32 %v3838, %v4718
        %v4975 = vadd.f32 %v4007, %v4719
        %v4976 = vadd.f32 %v3503, %v4720
        %v4977 = vadd.f32 %v3672, %v4721
        %v4978 = vadd.f32 %v3841, %v4722
        %v4979 = vadd.f32 %v4010, %v4723
        %v4980 = vadd.f32 %v3505, %v4724
        %v4981 = vadd.f32 %v3674, %v4725
        %v4982 = vadd.f32 %v3843, %v4726
        %v4983 = vadd.f32 %v4012, %v4727
        %v4984 = vadd.f32 %v3508, %v4728
        %v4985 = vadd.f32 %v3677, %v4729
        %v4986 = vadd.f32 %v3846, %v4730
        %v4987 = vadd.f32 %v4015, %v4731
        %v4988 = vadd.f32 %v3510, %v4732
        %v4989 = vadd.f32 %v3679, %v4733
        %v4990 = vadd.f32 %v3848, %v4734
        %v4991 = vadd.f32 %v4017, %v4735
        %v4992 = vadd.f32 %v3513, %v4736
        %v4993 = vadd.f32 %v3682, %v4737
        %v4994 = vadd.f32 %v3851, %v4738
        %v4995 = vadd.f32 %v4020, %v4739
        %v4996 = vadd.f32 %v3515, %v4740
        %v4997 = vadd.f32 %v3684, %v4741
        %v4998 = vadd.f32 %v3853, %v4742
        %v4999 = vadd.f32 %v4022, %v4743
        %v5000 = vadd.f32 %v3518, %v4744
        %v5001 = vadd.f32 %v3687, %v4745
        %v5002 = vadd.f32 %v3856, %v4746
        %v5003 = vadd.f32 %v4025, %v4747
        %v5004 = vadd.f32 %v3520, %v4748
        %v5005 = vadd.f32 %v3689, %v4749
        %v5006 = vadd.f32 %v3858, %v4750
        %v5007 = vadd.f32 %v4027, %v4751
        %v5008 = vadd.f32 %v3523, %v4752
        %v5009 = vadd.f32 %v3692, %v4753
        %v5010 = vadd.f32 %v3861, %v4754
        %v5011 = vadd.f32 %v4030, %v4755
        %v5012 = vadd.f32 %v3525, %v4756
        %v5013 = vadd.f32 %v3694, %v4757
        %v5014 = vadd.f32 %v3863, %v4758
        %v5015 = vadd.f32 %v4032, %v4759
        %v5016 = vadd.f32 %v3528, %v4760
        %v5017 = vadd.f32 %v3697, %v4761
        %v5018 = vadd.f32 %v3866, %v4762
        %v5019 = vadd.f32 %v4035, %v4763
        %v5020 = vadd.f32 %v3530, %v4764
        %v5021 = vadd.f32 %v3699, %v4765
        %v5022 = vadd.f32 %v3868, %v4766
        %v5023 = vadd.f32 %v4037, %v4767
        %v5024 = vadd.f32 %v3533, %v4768
        %v5025 = vadd.f32 %v3702, %v4769
        %v5026 = vadd.f32 %v3871, %v4770
        %v5027 = vadd.f32 %v4040, %v4771
        %v5028 = vadd.f32 %v3535, %v4772
        %v5029 = vadd.f32 %v3704, %v4773
        %v5030 = vadd.f32 %v3873, %v4774
        %v5031 = vadd.f32 %v4042, %v4775
        %v5032 = vadd.f32 %v3538, %v4776
        %v5033 = vadd.f32 %v3707, %v4777
        %v5034 = vadd.f32 %v3876, %v4778
        %v5035 = vadd.f32 %v4045, %v4779
        %v5036 = vadd.f32 %v3540, %v4780
        %v5037 = vadd.f32 %v3709, %v4781
        %v5038 = vadd.f32 %v3878, %v4782
        %v5039 = vadd.f32 %v4047, %v4783
        %v5040 = vadd.f32 %v3543, %v4784
        %v5041 = vadd.f32 %v3712, %v4785
        %v5042 = vadd.f32 %v3881, %v4786
        %v5043 = vadd.f32 %v4050, %v4787
        %v5044 = vadd.f32 %v3545, %v4788
        %v5045 = vadd.f32 %v3714, %v4789
        %v5046 = vadd.f32 %v3883, %v4790
        %v5047 = vadd.f32 %v4052, %v4791
        %v5048 = vadd.f32 %v3548, %v4792
        %v5049 = vadd.f32 %v3717, %v4793
        %v5050 = vadd.f32 %v3886, %v4794
        %v5051 = vadd.f32 %v4055, %v4795
        %v5052 = vadd.f32 %v3550, %v4796
        %v5053 = vadd.f32 %v3719, %v4797
        %v5054 = vadd.f32 %v3888, %v4798
        %v5055 = vadd.f32 %v4057, %v4799
        %v5056 = vadd.f32 %v3553, %v4800
        %v5057 = vadd.f32 %v3722, %v4801
        %v5058 = vadd.f32 %v3891, %v4802
        %v5059 = vadd.f32 %v4060, %v4803
        %v5060 = vadd.f32 %v3555, %v4804
        %v5061 = vadd.f32 %v3724, %v4805
        %v5062 = vadd.f32 %v3893, %v4806
        %v5063 = vadd.f32 %v4062, %v4807
        %v5064 = vadd.f32 %v3558, %v4808
        %v5065 = vadd.f32 %v3727, %v4809
        %v5066 = vadd.f32 %v3896, %v4810
        %v5067 = vadd.f32 %v4065, %v4811
        %v5068 = vadd.f32 %v3560, %v4812
        %v5069 = vadd.f32 %v3729, %v4813
        %v5070 = vadd.f32 %v3898, %v4814
        %v5071 = vadd.f32 %v4067, %v4815
        %v5072 = vadd.f32 %v3563, %v4816
        %v5073 = vadd.f32 %v3732, %v4817
        %v5074 = vadd.f32 %v3901, %v4818
        %v5075 = vadd.f32 %v4070, %v4819
        %v5076 = vadd.f32 %v3565, %v4820
        %v5077 = vadd.f32 %v3734, %v4821
        %v5078 = vadd.f32 %v3903, %v4822
        %v5079 = vadd.f32 %v4072, %v4823
        %v5080 = vadd.f32 %v3568, %v4824
        %v5081 = vadd.f32 %v3737, %v4825
        %v5082 = vadd.f32 %v3906, %v4826
        %v5083 = vadd.f32 %v4075, %v4827
        %v5084 = vadd.f32 %v3570, %v4828
        %v5085 = vadd.f32 %v3739, %v4829
        %v5086 = vadd.f32 %v3908, %v4830
        %v5087 = vadd.f32 %v4077, %v4831
        %v5088 = vadd.f32 %v3573, %v4832
        %v5089 = vadd.f32 %v3742, %v4833
        %v5090 = vadd.f32 %v3911, %v4834
        %v5091 = vadd.f32 %v4080, %v4835
        %v5092 = vadd.f32 %v3575, %v4836
        %v5093 = vadd.f32 %v3744, %v4837
        %v5094 = vadd.f32 %v3913, %v4838
        %v5095 = vadd.f32 %v4082, %v4839
        %v5096 = vadd.f32 %v3578, %v4840
        %v5097 = vadd.f32 %v3747, %v4841
        %v5098 = vadd.f32 %v3916, %v4842
        %v5099 = vadd.f32 %v4085, %v4843
        %v5100 = vadd.f32 %v3580, %v4844
        %v5101 = vadd.f32 %v3749, %v4845
        %v5102 = vadd.f32 %v3918, %v4846
        %v5103 = vadd.f32 %v4087, %v4847
        %v5104 = vadd.f32 %v3583, %v4848
        %v5105 = vadd.f32 %v3752, %v4849
        %v5106 = vadd.f32 %v3921, %v4850
        %v5107 = vadd.f32 %v4090, %v4851
        %v5108 = vadd.f32 %v3585, %v4852
        %v5109 = vadd.f32 %v3754, %v4853
        %v5110 = vadd.f32 %v3923, %v4854
        %v5111 = vadd.f32 %v4092, %v4855
        %v5112 = vadd.f32 %v3588, %v4856
        %v5113 = vadd.f32 %v3757, %v4857
        %v5114 = vadd.f32 %v3926, %v4858
        %v5115 = vadd.f32 %v4095, %v4859
        %v5116 = vadd.f32 %v3590, %v4860
        %v5117 = vadd.f32 %v3759, %v4861
        %v5118 = vadd.f32 %v3928, %v4862
        %v5119 = vadd.f32 %v4097, %v4863
        %v5120 = vadd.f32 %v3593, %v4864
        %v5121 = vadd.f32 %v3762, %v4865
        %v5122 = vadd.f32 %v3931, %v4866
        %v5123 = vadd.f32 %v4100, %v4867
        %v5124 = vadd.f32 %v3595, %v4868
        %v5125 = vadd.f32 %v3764, %v4869
        %v5126 = vadd.f32 %v3933, %v4870
        %v5127 = vadd.f32 %v4102, %v4871
        %v5128 = vmul.f32 %v4872, 0.7978846
        %v5129 = vmul.f32 %v4873, 0.7978846
        %v5130 = vmul.f32 %v4874, 0.7978846
        %v5131 = vmul.f32 %v4875, 0.7978846
        %v5132 = vmul.f32 %v4876, 0.7978846
        %v5133 = vmul.f32 %v4877, 0.7978846
        %v5134 = vmul.f32 %v4878, 0.7978846
        %v5135 = vmul.f32 %v4879, 0.7978846
        %v5136 = vmul.f32 %v4880, 0.7978846
        %v5137 = vmul.f32 %v4881, 0.7978846
        %v5138 = vmul.f32 %v4882, 0.7978846
        %v5139 = vmul.f32 %v4883, 0.7978846
        %v5140 = vmul.f32 %v4884, 0.7978846
        %v5141 = vmul.f32 %v4885, 0.7978846
        %v5142 = vmul.f32 %v4886, 0.7978846
        %v5143 = vmul.f32 %v4887, 0.7978846
        %v5144 = vmul.f32 %v4888, 0.7978846
        %v5145 = vmul.f32 %v4889, 0.7978846
        %v5146 = vmul.f32 %v4890, 0.7978846
        %v5147 = vmul.f32 %v4891, 0.7978846
        %v5148 = vmul.f32 %v4892, 0.7978846
        %v5149 = vmul.f32 %v4893, 0.7978846
        %v5150 = vmul.f32 %v4894, 0.7978846
        %v5151 = vmul.f32 %v4895, 0.7978846
        %v5152 = vmul.f32 %v4896, 0.7978846
        %v5153 = vmul.f32 %v4897, 0.7978846
        %v5154 = vmul.f32 %v4898, 0.7978846
        %v5155 = vmul.f32 %v4899, 0.7978846
        %v5156 = vmul.f32 %v4900, 0.7978846
        %v5157 = vmul.f32 %v4901, 0.7978846
        %v5158 = vmul.f32 %v4902, 0.7978846
        %v5159 = vmul.f32 %v4903, 0.7978846
        %v5160 = vmul.f32 %v4904, 0.7978846
        %v5161 = vmul.f32 %v4905, 0.7978846
        %v5162 = vmul.f32 %v4906, 0.7978846
        %v5163 = vmul.f32 %v4907, 0.7978846
        %v5164 = vmul.f32 %v4908, 0.7978846
        %v5165 = vmul.f32 %v4909, 0.7978846
        %v5166 = vmul.f32 %v4910, 0.7978846
        %v5167 = vmul.f32 %v4911, 0.7978846
        %v5168 = vmul.f32 %v4912, 0.7978846
        %v5169 = vmul.f32 %v4913, 0.7978846
        %v5170 = vmul.f32 %v4914, 0.7978846
        %v5171 = vmul.f32 %v4915, 0.7978846
        %v5172 = vmul.f32 %v4916, 0.7978846
        %v5173 = vmul.f32 %v4917, 0.7978846
        %v5174 = vmul.f32 %v4918, 0.7978846
        %v5175 = vmul.f32 %v4919, 0.7978846
        %v5176 = vmul.f32 %v4920, 0.7978846
        %v5177 = vmul.f32 %v4921, 0.7978846
        %v5178 = vmul.f32 %v4922, 0.7978846
        %v5179 = vmul.f32 %v4923, 0.7978846
        %v5180 = vmul.f32 %v4924, 0.7978846
        %v5181 = vmul.f32 %v4925, 0.7978846
        %v5182 = vmul.f32 %v4926, 0.7978846
        %v5183 = vmul.f32 %v4927, 0.7978846
        %v5184 = vmul.f32 %v4928, 0.7978846
        %v5185 = vmul.f32 %v4929, 0.7978846
        %v5186 = vmul.f32 %v4930, 0.7978846
        %v5187 = vmul.f32 %v4931, 0.7978846
        %v5188 = vmul.f32 %v4932, 0.7978846
        %v5189 = vmul.f32 %v4933, 0.7978846
        %v5190 = vmul.f32 %v4934, 0.7978846
        %v5191 = vmul.f32 %v4935, 0.7978846
        %v5192 = vmul.f32 %v4936, 0.7978846
        %v5193 = vmul.f32 %v4937, 0.7978846
        %v5194 = vmul.f32 %v4938, 0.7978846
        %v5195 = vmul.f32 %v4939, 0.7978846
        %v5196 = vmul.f32 %v4940, 0.7978846
        %v5197 = vmul.f32 %v4941, 0.7978846
        %v5198 = vmul.f32 %v4942, 0.7978846
        %v5199 = vmul.f32 %v4943, 0.7978846
        %v5200 = vmul.f32 %v4944, 0.7978846
        %v5201 = vmul.f32 %v4945, 0.7978846
        %v5202 = vmul.f32 %v4946, 0.7978846
        %v5203 = vmul.f32 %v4947, 0.7978846
        %v5204 = vmul.f32 %v4948, 0.7978846
        %v5205 = vmul.f32 %v4949, 0.7978846
        %v5206 = vmul.f32 %v4950, 0.7978846
        %v5207 = vmul.f32 %v4951, 0.7978846
        %v5208 = vmul.f32 %v4952, 0.7978846
        %v5209 = vmul.f32 %v4953, 0.7978846
        %v5210 = vmul.f32 %v4954, 0.7978846
        %v5211 = vmul.f32 %v4955, 0.7978846
        %v5212 = vmul.f32 %v4956, 0.7978846
        %v5213 = vmul.f32 %v4957, 0.7978846
        %v5214 = vmul.f32 %v4958, 0.7978846
        %v5215 = vmul.f32 %v4959, 0.7978846
        %v5216 = vmul.f32 %v4960, 0.7978846
        %v5217 = vmul.f32 %v4961, 0.7978846
        %v5218 = vmul.f32 %v4962, 0.7978846
        %v5219 = vmul.f32 %v4963, 0.7978846
        %v5220 = vmul.f32 %v4964, 0.7978846
        %v5221 = vmul.f32 %v4965, 0.7978846
        %v5222 = vmul.f32 %v4966, 0.7978846
        %v5223 = vmul.f32 %v4967, 0.7978846
        %v5224 = vmul.f32 %v4968, 0.7978846
        %v5225 = vmul.f32 %v4969, 0.7978846
        %v5226 = vmul.f32 %v4970, 0.7978846
        %v5227 = vmul.f32 %v4971, 0.7978846
        %v5228 = vmul.f32 %v4972, 0.7978846
        %v5229 = vmul.f32 %v4973, 0.7978846
        %v5230 = vmul.f32 %v4974, 0.7978846
        %v5231 = vmul.f32 %v4975, 0.7978846
        %v5232 = vmul.f32 %v4976, 0.7978846
        %v5233 = vmul.f32 %v4977, 0.7978846
        %v5234 = vmul.f32 %v4978, 0.7978846
        %v5235 = vmul.f32 %v4979, 0.7978846
        %v5236 = vmul.f32 %v4980, 0.7978846
        %v5237 = vmul.f32 %v4981, 0.7978846
        %v5238 = vmul.f32 %v4982, 0.7978846
        %v5239 = vmul.f32 %v4983, 0.7978846
        %v5240 = vmul.f32 %v4984, 0.7978846
        %v5241 = vmul.f32 %v4985, 0.7978846
        %v5242 = vmul.f32 %v4986, 0.7978846
        %v5243 = vmul.f32 %v4987, 0.7978846
        %v5244 = vmul.f32 %v4988, 0.7978846
        %v5245 = vmul.f32 %v4989, 0.7978846
        %v5246 = vmul.f32 %v4990, 0.7978846
        %v5247 = vmul.f32 %v4991, 0.7978846
        %v5248 = vmul.f32 %v4992, 0.7978846
        %v5249 = vmul.f32 %v4993, 0.7978846
        %v5250 = vmul.f32 %v4994, 0.7978846
        %v5251 = vmul.f32 %v4995, 0.7978846
        %v5252 = vmul.f32 %v4996, 0.7978846
        %v5253 = vmul.f32 %v4997, 0.7978846
        %v5254 = vmul.f32 %v4998, 0.7978846
        %v5255 = vmul.f32 %v4999, 0.7978846
        %v5256 = vmul.f32 %v5000, 0.7978846
        %v5257 = vmul.f32 %v5001, 0.7978846
        %v5258 = vmul.f32 %v5002, 0.7978846
        %v5259 = vmul.f32 %v5003, 0.7978846
        %v5260 = vmul.f32 %v5004, 0.7978846
        %v5261 = vmul.f32 %v5005, 0.7978846
        %v5262 = vmul.f32 %v5006, 0.7978846
        %v5263 = vmul.f32 %v5007, 0.7978846
        %v5264 = vmul.f32 %v5008, 0.7978846
        %v5265 = vmul.f32 %v5009, 0.7978846
        %v5266 = vmul.f32 %v5010, 0.7978846
        %v5267 = vmul.f32 %v5011, 0.7978846
        %v5268 = vmul.f32 %v5012, 0.7978846
        %v5269 = vmul.f32 %v5013, 0.7978846
        %v5270 = vmul.f32 %v5014, 0.7978846
        %v5271 = vmul.f32 %v5015, 0.7978846
        %v5272 = vmul.f32 %v5016, 0.7978846
        %v5273 = vmul.f32 %v5017, 0.7978846
        %v5274 = vmul.f32 %v5018, 0.7978846
        %v5275 = vmul.f32 %v5019, 0.7978846
        %v5276 = vmul.f32 %v5020, 0.7978846
        %v5277 = vmul.f32 %v5021, 0.7978846
        %v5278 = vmul.f32 %v5022, 0.7978846
        %v5279 = vmul.f32 %v5023, 0.7978846
        %v5280 = vmul.f32 %v5024, 0.7978846
        %v5281 = vmul.f32 %v5025, 0.7978846
        %v5282 = vmul.f32 %v5026, 0.7978846
        %v5283 = vmul.f32 %v5027, 0.7978846
        %v5284 = vmul.f32 %v5028, 0.7978846
        %v5285 = vmul.f32 %v5029, 0.7978846
        %v5286 = vmul.f32 %v5030, 0.7978846
        %v5287 = vmul.f32 %v5031, 0.7978846
        %v5288 = vmul.f32 %v5032, 0.7978846
        %v5289 = vmul.f32 %v5033, 0.7978846
        %v5290 = vmul.f32 %v5034, 0.7978846
        %v5291 = vmul.f32 %v5035, 0.7978846
        %v5292 = vmul.f32 %v5036, 0.7978846
        %v5293 = vmul.f32 %v5037, 0.7978846
        %v5294 = vmul.f32 %v5038, 0.7978846
        %v5295 = vmul.f32 %v5039, 0.7978846
        %v5296 = vmul.f32 %v5040, 0.7978846
        %v5297 = vmul.f32 %v5041, 0.7978846
        %v5298 = vmul.f32 %v5042, 0.7978846
        %v5299 = vmul.f32 %v5043, 0.7978846
        %v5300 = vmul.f32 %v5044, 0.7978846
        %v5301 = vmul.f32 %v5045, 0.7978846
        %v5302 = vmul.f32 %v5046, 0.7978846
        %v5303 = vmul.f32 %v5047, 0.7978846
        %v5304 = vmul.f32 %v5048, 0.7978846
        %v5305 = vmul.f32 %v5049, 0.7978846
        %v5306 = vmul.f32 %v5050, 0.7978846
        %v5307 = vmul.f32 %v5051, 0.7978846
        %v5308 = vmul.f32 %v5052, 0.7978846
        %v5309 = vmul.f32 %v5053, 0.7978846
        %v5310 = vmul.f32 %v5054, 0.7978846
        %v5311 = vmul.f32 %v5055, 0.7978846
        %v5312 = vmul.f32 %v5056, 0.7978846
        %v5313 = vmul.f32 %v5057, 0.7978846
        %v5314 = vmul.f32 %v5058, 0.7978846
        %v5315 = vmul.f32 %v5059, 0.7978846
        %v5316 = vmul.f32 %v5060, 0.7978846
        %v5317 = vmul.f32 %v5061, 0.7978846
        %v5318 = vmul.f32 %v5062, 0.7978846
        %v5319 = vmul.f32 %v5063, 0.7978846
        %v5320 = vmul.f32 %v5064, 0.7978846
        %v5321 = vmul.f32 %v5065, 0.7978846
        %v5322 = vmul.f32 %v5066, 0.7978846
        %v5323 = vmul.f32 %v5067, 0.7978846
        %v5324 = vmul.f32 %v5068, 0.7978846
        %v5325 = vmul.f32 %v5069, 0.7978846
        %v5326 = vmul.f32 %v5070, 0.7978846
        %v5327 = vmul.f32 %v5071, 0.7978846
        %v5328 = vmul.f32 %v5072, 0.7978846
        %v5329 = vmul.f32 %v5073, 0.7978846
        %v5330 = vmul.f32 %v5074, 0.7978846
        %v5331 = vmul.f32 %v5075, 0.7978846
        %v5332 = vmul.f32 %v5076, 0.7978846
        %v5333 = vmul.f32 %v5077, 0.7978846
        %v5334 = vmul.f32 %v5078, 0.7978846
        %v5335 = vmul.f32 %v5079, 0.7978846
        %v5336 = vmul.f32 %v5080, 0.7978846
        %v5337 = vmul.f32 %v5081, 0.7978846
        %v5338 = vmul.f32 %v5082, 0.7978846
        %v5339 = vmul.f32 %v5083, 0.7978846
        %v5340 = vmul.f32 %v5084, 0.7978846
        %v5341 = vmul.f32 %v5085, 0.7978846
        %v5342 = vmul.f32 %v5086, 0.7978846
        %v5343 = vmul.f32 %v5087, 0.7978846
        %v5344 = vmul.f32 %v5088, 0.7978846
        %v5345 = vmul.f32 %v5089, 0.7978846
        %v5346 = vmul.f32 %v5090, 0.7978846
        %v5347 = vmul.f32 %v5091, 0.7978846
        %v5348 = vmul.f32 %v5092, 0.7978846
        %v5349 = vmul.f32 %v5093, 0.7978846
        %v5350 = vmul.f32 %v5094, 0.7978846
        %v5351 = vmul.f32 %v5095, 0.7978846
        %v5352 = vmul.f32 %v5096, 0.7978846
        %v5353 = vmul.f32 %v5097, 0.7978846
        %v5354 = vmul.f32 %v5098, 0.7978846
        %v5355 = vmul.f32 %v5099, 0.7978846
        %v5356 = vmul.f32 %v5100, 0.7978846
        %v5357 = vmul.f32 %v5101, 0.7978846
        %v5358 = vmul.f32 %v5102, 0.7978846
        %v5359 = vmul.f32 %v5103, 0.7978846
        %v5360 = vmul.f32 %v5104, 0.7978846
        %v5361 = vmul.f32 %v5105, 0.7978846
        %v5362 = vmul.f32 %v5106, 0.7978846
        %v5363 = vmul.f32 %v5107, 0.7978846
        %v5364 = vmul.f32 %v5108, 0.7978846
        %v5365 = vmul.f32 %v5109, 0.7978846
        %v5366 = vmul.f32 %v5110, 0.7978846
        %v5367 = vmul.f32 %v5111, 0.7978846
        %v5368 = vmul.f32 %v5112, 0.7978846
        %v5369 = vmul.f32 %v5113, 0.7978846
        %v5370 = vmul.f32 %v5114, 0.7978846
        %v5371 = vmul.f32 %v5115, 0.7978846
        %v5372 = vmul.f32 %v5116, 0.7978846
        %v5373 = vmul.f32 %v5117, 0.7978846
        %v5374 = vmul.f32 %v5118, 0.7978846
        %v5375 = vmul.f32 %v5119, 0.7978846
        %v5376 = vmul.f32 %v5120, 0.7978846
        %v5377 = vmul.f32 %v5121, 0.7978846
        %v5378 = vmul.f32 %v5122, 0.7978846
        %v5379 = vmul.f32 %v5123, 0.7978846
        %v5380 = vmul.f32 %v5124, 0.7978846
        %v5381 = vmul.f32 %v5125, 0.7978846
        %v5382 = vmul.f32 %v5126, 0.7978846
        %v5383 = vmul.f32 %v5127, 0.7978846
        %v5384 = vtanh.pop %v5128
        %v5385 = vtanh.pop %v5129
        %v5386 = vtanh.pop %v5130
        %v5387 = vtanh.pop %v5131
        %v5388 = vtanh.pop %v5132
        %v5389 = vtanh.pop %v5133
        %v5390 = vtanh.pop %v5134
        %v5391 = vtanh.pop %v5135
        %v5392 = vtanh.pop %v5136
        %v5393 = vtanh.pop %v5137
        %v5394 = vtanh.pop %v5138
        %v5395 = vtanh.pop %v5139
        %v5396 = vtanh.pop %v5140
        %v5397 = vtanh.pop %v5141
        %v5398 = vtanh.pop %v5142
        %v5399 = vtanh.pop %v5143
        %v5400 = vtanh.pop %v5144
        %v5401 = vtanh.pop %v5145
        %v5402 = vtanh.pop %v5146
        %v5403 = vtanh.pop %v5147
        %v5404 = vtanh.pop %v5148
        %v5405 = vtanh.pop %v5149
        %v5406 = vtanh.pop %v5150
        %v5407 = vtanh.pop %v5151
        %v5408 = vtanh.pop %v5152
        %v5409 = vtanh.pop %v5153
        %v5410 = vtanh.pop %v5154
        %v5411 = vtanh.pop %v5155
        %v5412 = vtanh.pop %v5156
        %v5413 = vtanh.pop %v5157
        %v5414 = vtanh.pop %v5158
        %v5415 = vtanh.pop %v5159
        %v5416 = vtanh.pop %v5160
        %v5417 = vtanh.pop %v5161
        %v5418 = vtanh.pop %v5162
        %v5419 = vtanh.pop %v5163
        %v5420 = vtanh.pop %v5164
        %v5421 = vtanh.pop %v5165
        %v5422 = vtanh.pop %v5166
        %v5423 = vtanh.pop %v5167
        %v5424 = vtanh.pop %v5168
        %v5425 = vtanh.pop %v5169
        %v5426 = vtanh.pop %v5170
        %v5427 = vtanh.pop %v5171
        %v5428 = vtanh.pop %v5172
        %v5429 = vtanh.pop %v5173
        %v5430 = vtanh.pop %v5174
        %v5431 = vtanh.pop %v5175
        %v5432 = vtanh.pop %v5176
        %v5433 = vtanh.pop %v5177
        %v5434 = vtanh.pop %v5178
        %v5435 = vtanh.pop %v5179
        %v5436 = vtanh.pop %v5180
        %v5437 = vtanh.pop %v5181
        %v5438 = vtanh.pop %v5182
        %v5439 = vtanh.pop %v5183
        %v5440 = vtanh.pop %v5184
        %v5441 = vtanh.pop %v5185
        %v5442 = vtanh.pop %v5186
        %v5443 = vtanh.pop %v5187
        %v5444 = vtanh.pop %v5188
        %v5445 = vtanh.pop %v5189
        %v5446 = vtanh.pop %v5190
        %v5447 = vtanh.pop %v5191
        %v5448 = vtanh.pop %v5192
        %v5449 = vtanh.pop %v5193
        %v5450 = vtanh.pop %v5194
        %v5451 = vtanh.pop %v5195
        %v5452 = vtanh.pop %v5196
        %v5453 = vtanh.pop %v5197
        %v5454 = vtanh.pop %v5198
        %v5455 = vtanh.pop %v5199
        %v5456 = vtanh.pop %v5200
        %v5457 = vtanh.pop %v5201
        %v5458 = vtanh.pop %v5202
        %v5459 = vtanh.pop %v5203
        %v5460 = vtanh.pop %v5204
        %v5461 = vtanh.pop %v5205
        %v5462 = vtanh.pop %v5206
        %v5463 = vtanh.pop %v5207
        %v5464 = vtanh.pop %v5208
        %v5465 = vtanh.pop %v5209
        %v5466 = vtanh.pop %v5210
        %v5467 = vtanh.pop %v5211
        %v5468 = vtanh.pop %v5212
        %v5469 = vtanh.pop %v5213
        %v5470 = vtanh.pop %v5214
        %v5471 = vtanh.pop %v5215
        %v5472 = vtanh.pop %v5216
        %v5473 = vtanh.pop %v5217
        %v5474 = vtanh.pop %v5218
        %v5475 = vtanh.pop %v5219
        %v5476 = vtanh.pop %v5220
        %v5477 = vtanh.pop %v5221
        %v5478 = vtanh.pop %v5222
        %v5479 = vtanh.pop %v5223
        %v5480 = vtanh.pop %v5224
        %v5481 = vtanh.pop %v5225
        %v5482 = vtanh.pop %v5226
        %v5483 = vtanh.pop %v5227
        %v5484 = vtanh.pop %v5228
        %v5485 = vtanh.pop %v5229
        %v5486 = vtanh.pop %v5230
        %v5487 = vtanh.pop %v5231
        %v5488 = vtanh.pop %v5232
        %v5489 = vtanh.pop %v5233
        %v5490 = vtanh.pop %v5234
        %v5491 = vtanh.pop %v5235
        %v5492 = vtanh.pop %v5236
        %v5493 = vtanh.pop %v5237
        %v5494 = vtanh.pop %v5238
        %v5495 = vtanh.pop %v5239
        %v5496 = vtanh.pop %v5240
        %v5497 = vtanh.pop %v5241
        %v5498 = vtanh.pop %v5242
        %v5499 = vtanh.pop %v5243
        %v5500 = vtanh.pop %v5244
        %v5501 = vtanh.pop %v5245
        %v5502 = vtanh.pop %v5246
        %v5503 = vtanh.pop %v5247
        %v5504 = vtanh.pop %v5248
        %v5505 = vtanh.pop %v5249
        %v5506 = vtanh.pop %v5250
        %v5507 = vtanh.pop %v5251
        %v5508 = vtanh.pop %v5252
        %v5509 = vtanh.pop %v5253
        %v5510 = vtanh.pop %v5254
        %v5511 = vtanh.pop %v5255
        %v5512 = vtanh.pop %v5256
        %v5513 = vtanh.pop %v5257
        %v5514 = vtanh.pop %v5258
        %v5515 = vtanh.pop %v5259
        %v5516 = vtanh.pop %v5260
        %v5517 = vtanh.pop %v5261
        %v5518 = vtanh.pop %v5262
        %v5519 = vtanh.pop %v5263
        %v5520 = vtanh.pop %v5264
        %v5521 = vtanh.pop %v5265
        %v5522 = vtanh.pop %v5266
        %v5523 = vtanh.pop %v5267
        %v5524 = vtanh.pop %v5268
        %v5525 = vtanh.pop %v5269
        %v5526 = vtanh.pop %v5270
        %v5527 = vtanh.pop %v5271
        %v5528 = vtanh.pop %v5272
        %v5529 = vtanh.pop %v5273
        %v5530 = vtanh.pop %v5274
        %v5531 = vtanh.pop %v5275
        %v5532 = vtanh.pop %v5276
        %v5533 = vtanh.pop %v5277
        %v5534 = vtanh.pop %v5278
        %v5535 = vtanh.pop %v5279
        %v5536 = vtanh.pop %v5280
        %v5537 = vtanh.pop %v5281
        %v5538 = vtanh.pop %v5282
        %v5539 = vtanh.pop %v5283
        %v5540 = vtanh.pop %v5284
        %v5541 = vtanh.pop %v5285
        %v5542 = vtanh.pop %v5286
        %v5543 = vtanh.pop %v5287
        %v5544 = vtanh.pop %v5288
        %v5545 = vtanh.pop %v5289
        %v5546 = vtanh.pop %v5290
        %v5547 = vtanh.pop %v5291
        %v5548 = vtanh.pop %v5292
        %v5549 = vtanh.pop %v5293
        %v5550 = vtanh.pop %v5294
        %v5551 = vtanh.pop %v5295
        %v5552 = vtanh.pop %v5296
        %v5553 = vtanh.pop %v5297
        %v5554 = vtanh.pop %v5298
        %v5555 = vtanh.pop %v5299
        %v5556 = vtanh.pop %v5300
        %v5557 = vtanh.pop %v5301
        %v5558 = vtanh.pop %v5302
        %v5559 = vtanh.pop %v5303
        %v5560 = vtanh.pop %v5304
        %v5561 = vtanh.pop %v5305
        %v5562 = vtanh.pop %v5306
        %v5563 = vtanh.pop %v5307
        %v5564 = vtanh.pop %v5308
        %v5565 = vtanh.pop %v5309
        %v5566 = vtanh.pop %v5310
        %v5567 = vtanh.pop %v5311
        %v5568 = vtanh.pop %v5312
        %v5569 = vtanh.pop %v5313
        %v5570 = vtanh.pop %v5314
        %v5571 = vtanh.pop %v5315
        %v5572 = vtanh.pop %v5316
        %v5573 = vtanh.pop %v5317
        %v5574 = vtanh.pop %v5318
        %v5575 = vtanh.pop %v5319
        %v5576 = vtanh.pop %v5320
        %v5577 = vtanh.pop %v5321
        %v5578 = vtanh.pop %v5322
        %v5579 = vtanh.pop %v5323
        %v5580 = vtanh.pop %v5324
        %v5581 = vtanh.pop %v5325
        %v5582 = vtanh.pop %v5326
        %v5583 = vtanh.pop %v5327
        %v5584 = vtanh.pop %v5328
        %v5585 = vtanh.pop %v5329
        %v5586 = vtanh.pop %v5330
        %v5587 = vtanh.pop %v5331
        %v5588 = vtanh.pop %v5332
        %v5589 = vtanh.pop %v5333
        %v5590 = vtanh.pop %v5334
        %v5591 = vtanh.pop %v5335
        %v5592 = vtanh.pop %v5336
        %v5593 = vtanh.pop %v5337
        %v5594 = vtanh.pop %v5338
        %v5595 = vtanh.pop %v5339
        %v5596 = vtanh.pop %v5340
        %v5597 = vtanh.pop %v5341
        %v5598 = vtanh.pop %v5342
        %v5599 = vtanh.pop %v5343
        %v5600 = vtanh.pop %v5344
        %v5601 = vtanh.pop %v5345
        %v5602 = vtanh.pop %v5346
        %v5603 = vtanh.pop %v5347
        %v5604 = vtanh.pop %v5348
        %v5605 = vtanh.pop %v5349
        %v5606 = vtanh.pop %v5350
        %v5607 = vtanh.pop %v5351
        %v5608 = vtanh.pop %v5352
        %v5609 = vtanh.pop %v5353
        %v5610 = vtanh.pop %v5354
        %v5611 = vtanh.pop %v5355
        %v5612 = vtanh.pop %v5356
        %v5613 = vtanh.pop %v5357
        %v5614 = vtanh.pop %v5358
        %v5615 = vtanh.pop %v5359
        %v5616 = vtanh.pop %v5360
        %v5617 = vtanh.pop %v5361
        %v5618 = vtanh.pop %v5362
        %v5619 = vtanh.pop %v5363
        %v5620 = vtanh.pop %v5364
        %v5621 = vtanh.pop %v5365
        %v5622 = vtanh.pop %v5366
        %v5623 = vtanh.pop %v5367
        %v5624 = vtanh.pop %v5368
        %v5625 = vtanh.pop %v5369
        %v5626 = vtanh.pop %v5370
        %v5627 = vtanh.pop %v5371
        %v5628 = vtanh.pop %v5372
        %v5629 = vtanh.pop %v5373
        %v5630 = vtanh.pop %v5374
        %v5631 = vtanh.pop %v5375
        %v5632 = vtanh.pop %v5376
        %v5633 = vtanh.pop %v5377
        %v5634 = vtanh.pop %v5378
        %v5635 = vtanh.pop %v5379
        %v5636 = vtanh.pop %v5380
        %v5637 = vtanh.pop %v5381
        %v5638 = vtanh.pop %v5382
        %v5639 = vtanh.pop %v5383
        %v5640 = vadd.f32 %v5384, 1.0
        %v5641 = vadd.f32 %v5385, 1.0
        %v5642 = vadd.f32 %v5386, 1.0
        %v5643 = vadd.f32 %v5387, 1.0
        %v5644 = vadd.f32 %v5388, 1.0
        %v5645 = vadd.f32 %v5389, 1.0
        %v5646 = vadd.f32 %v5390, 1.0
        %v5647 = vadd.f32 %v5391, 1.0
        %v5648 = vadd.f32 %v5392, 1.0
        %v5649 = vadd.f32 %v5393, 1.0
        %v5650 = vadd.f32 %v5394, 1.0
        %v5651 = vadd.f32 %v5395, 1.0
        %v5652 = vadd.f32 %v5396, 1.0
        %v5653 = vadd.f32 %v5397, 1.0
        %v5654 = vadd.f32 %v5398, 1.0
        %v5655 = vadd.f32 %v5399, 1.0
        %v5656 = vadd.f32 %v5400, 1.0
        %v5657 = vadd.f32 %v5401, 1.0
        %v5658 = vadd.f32 %v5402, 1.0
        %v5659 = vadd.f32 %v5403, 1.0
        %v5660 = vadd.f32 %v5404, 1.0
        %v5661 = vadd.f32 %v5405, 1.0
        %v5662 = vadd.f32 %v5406, 1.0
        %v5663 = vadd.f32 %v5407, 1.0
        %v5664 = vadd.f32 %v5408, 1.0
        %v5665 = vadd.f32 %v5409, 1.0
        %v5666 = vadd.f32 %v5410, 1.0
        %v5667 = vadd.f32 %v5411, 1.0
        %v5668 = vadd.f32 %v5412, 1.0
        %v5669 = vadd.f32 %v5413, 1.0
        %v5670 = vadd.f32 %v5414, 1.0
        %v5671 = vadd.f32 %v5415, 1.0
        %v5672 = vadd.f32 %v5416, 1.0
        %v5673 = vadd.f32 %v5417, 1.0
        %v5674 = vadd.f32 %v5418, 1.0
        %v5675 = vadd.f32 %v5419, 1.0
        %v5676 = vadd.f32 %v5420, 1.0
        %v5677 = vadd.f32 %v5421, 1.0
        %v5678 = vadd.f32 %v5422, 1.0
        %v5679 = vadd.f32 %v5423, 1.0
        %v5680 = vadd.f32 %v5424, 1.0
        %v5681 = vadd.f32 %v5425, 1.0
        %v5682 = vadd.f32 %v5426, 1.0
        %v5683 = vadd.f32 %v5427, 1.0
        %v5684 = vadd.f32 %v5428, 1.0
        %v5685 = vadd.f32 %v5429, 1.0
        %v5686 = vadd.f32 %v5430, 1.0
        %v5687 = vadd.f32 %v5431, 1.0
        %v5688 = vadd.f32 %v5432, 1.0
        %v5689 = vadd.f32 %v5433, 1.0
        %v5690 = vadd.f32 %v5434, 1.0
        %v5691 = vadd.f32 %v5435, 1.0
        %v5692 = vadd.f32 %v5436, 1.0
        %v5693 = vadd.f32 %v5437, 1.0
        %v5694 = vadd.f32 %v5438, 1.0
        %v5695 = vadd.f32 %v5439, 1.0
        %v5696 = vadd.f32 %v5440, 1.0
        %v5697 = vadd.f32 %v5441, 1.0
        %v5698 = vadd.f32 %v5442, 1.0
        %v5699 = vadd.f32 %v5443, 1.0
        %v5700 = vadd.f32 %v5444, 1.0
        %v5701 = vadd.f32 %v5445, 1.0
        %v5702 = vadd.f32 %v5446, 1.0
        %v5703 = vadd.f32 %v5447, 1.0
        %v5704 = vadd.f32 %v5448, 1.0
        %v5705 = vadd.f32 %v5449, 1.0
        %v5706 = vadd.f32 %v5450, 1.0
        %v5707 = vadd.f32 %v5451, 1.0
        %v5708 = vadd.f32 %v5452, 1.0
        %v5709 = vadd.f32 %v5453, 1.0
        %v5710 = vadd.f32 %v5454, 1.0
        %v5711 = vadd.f32 %v5455, 1.0
        %v5712 = vadd.f32 %v5456, 1.0
        %v5713 = vadd.f32 %v5457, 1.0
        %v5714 = vadd.f32 %v5458, 1.0
        %v5715 = vadd.f32 %v5459, 1.0
        %v5716 = vadd.f32 %v5460, 1.0
        %v5717 = vadd.f32 %v5461, 1.0
        %v5718 = vadd.f32 %v5462, 1.0
        %v5719 = vadd.f32 %v5463, 1.0
        %v5720 = vadd.f32 %v5464, 1.0
        %v5721 = vadd.f32 %v5465, 1.0
        %v5722 = vadd.f32 %v5466, 1.0
        %v5723 = vadd.f32 %v5467, 1.0
        %v5724 = vadd.f32 %v5468, 1.0
        %v5725 = vadd.f32 %v5469, 1.0
        %v5726 = vadd.f32 %v5470, 1.0
        %v5727 = vadd.f32 %v5471, 1.0
        %v5728 = vadd.f32 %v5472, 1.0
        %v5729 = vadd.f32 %v5473, 1.0
        %v5730 = vadd.f32 %v5474, 1.0
        %v5731 = vadd.f32 %v5475, 1.0
        %v5732 = vadd.f32 %v5476, 1.0
        %v5733 = vadd.f32 %v5477, 1.0
        %v5734 = vadd.f32 %v5478, 1.0
        %v5735 = vadd.f32 %v5479, 1.0
        %v5736 = vadd.f32 %v5480, 1.0
        %v5737 = vadd.f32 %v5481, 1.0
        %v5738 = vadd.f32 %v5482, 1.0
        %v5739 = vadd.f32 %v5483, 1.0
        %v5740 = vadd.f32 %v5484, 1.0
        %v5741 = vadd.f32 %v5485, 1.0
        %v5742 = vadd.f32 %v5486, 1.0
        %v5743 = vadd.f32 %v5487, 1.0
        %v5744 = vadd.f32 %v5488, 1.0
        %v5745 = vadd.f32 %v5489, 1.0
        %v5746 = vadd.f32 %v5490, 1.0
        %v5747 = vadd.f32 %v5491, 1.0
        %v5748 = vadd.f32 %v5492, 1.0
        %v5749 = vadd.f32 %v5493, 1.0
        %v5750 = vadd.f32 %v5494, 1.0
        %v5751 = vadd.f32 %v5495, 1.0
        %v5752 = vadd.f32 %v5496, 1.0
        %v5753 = vadd.f32 %v5497, 1.0
        %v5754 = vadd.f32 %v5498, 1.0
        %v5755 = vadd.f32 %v5499, 1.0
        %v5756 = vadd.f32 %v5500, 1.0
        %v5757 = vadd.f32 %v5501, 1.0
        %v5758 = vadd.f32 %v5502, 1.0
        %v5759 = vadd.f32 %v5503, 1.0
        %v5760 = vadd.f32 %v5504, 1.0
        %v5761 = vadd.f32 %v5505, 1.0
        %v5762 = vadd.f32 %v5506, 1.0
        %v5763 = vadd.f32 %v5507, 1.0
        %v5764 = vadd.f32 %v5508, 1.0
        %v5765 = vadd.f32 %v5509, 1.0
        %v5766 = vadd.f32 %v5510, 1.0
        %v5767 = vadd.f32 %v5511, 1.0
        %v5768 = vadd.f32 %v5512, 1.0
        %v5769 = vadd.f32 %v5513, 1.0
        %v5770 = vadd.f32 %v5514, 1.0
        %v5771 = vadd.f32 %v5515, 1.0
        %v5772 = vadd.f32 %v5516, 1.0
        %v5773 = vadd.f32 %v5517, 1.0
        %v5774 = vadd.f32 %v5518, 1.0
        %v5775 = vadd.f32 %v5519, 1.0
        %v5776 = vadd.f32 %v5520, 1.0
        %v5777 = vadd.f32 %v5521, 1.0
        %v5778 = vadd.f32 %v5522, 1.0
        %v5779 = vadd.f32 %v5523, 1.0
        %v5780 = vadd.f32 %v5524, 1.0
        %v5781 = vadd.f32 %v5525, 1.0
        %v5782 = vadd.f32 %v5526, 1.0
        %v5783 = vadd.f32 %v5527, 1.0
        %v5784 = vadd.f32 %v5528, 1.0
        %v5785 = vadd.f32 %v5529, 1.0
        %v5786 = vadd.f32 %v5530, 1.0
        %v5787 = vadd.f32 %v5531, 1.0
        %v5788 = vadd.f32 %v5532, 1.0
        %v5789 = vadd.f32 %v5533, 1.0
        %v5790 = vadd.f32 %v5534, 1.0
        %v5791 = vadd.f32 %v5535, 1.0
        %v5792 = vadd.f32 %v5536, 1.0
        %v5793 = vadd.f32 %v5537, 1.0
        %v5794 = vadd.f32 %v5538, 1.0
        %v5795 = vadd.f32 %v5539, 1.0
        %v5796 = vadd.f32 %v5540, 1.0
        %v5797 = vadd.f32 %v5541, 1.0
        %v5798 = vadd.f32 %v5542, 1.0
        %v5799 = vadd.f32 %v5543, 1.0
        %v5800 = vadd.f32 %v5544, 1.0
        %v5801 = vadd.f32 %v5545, 1.0
        %v5802 = vadd.f32 %v5546, 1.0
        %v5803 = vadd.f32 %v5547, 1.0
        %v5804 = vadd.f32 %v5548, 1.0
        %v5805 = vadd.f32 %v5549, 1.0
        %v5806 = vadd.f32 %v5550, 1.0
        %v5807 = vadd.f32 %v5551, 1.0
        %v5808 = vadd.f32 %v5552, 1.0
        %v5809 = vadd.f32 %v5553, 1.0
        %v5810 = vadd.f32 %v5554, 1.0
        %v5811 = vadd.f32 %v5555, 1.0
        %v5812 = vadd.f32 %v5556, 1.0
        %v5813 = vadd.f32 %v5557, 1.0
        %v5814 = vadd.f32 %v5558, 1.0
        %v5815 = vadd.f32 %v5559, 1.0
        %v5816 = vadd.f32 %v5560, 1.0
        %v5817 = vadd.f32 %v5561, 1.0
        %v5818 = vadd.f32 %v5562, 1.0
        %v5819 = vadd.f32 %v5563, 1.0
        %v5820 = vadd.f32 %v5564, 1.0
        %v5821 = vadd.f32 %v5565, 1.0
        %v5822 = vadd.f32 %v5566, 1.0
        %v5823 = vadd.f32 %v5567, 1.0
        %v5824 = vadd.f32 %v5568, 1.0
        %v5825 = vadd.f32 %v5569, 1.0
        %v5826 = vadd.f32 %v5570, 1.0
        %v5827 = vadd.f32 %v5571, 1.0
        %v5828 = vadd.f32 %v5572, 1.0
        %v5829 = vadd.f32 %v5573, 1.0
        %v5830 = vadd.f32 %v5574, 1.0
        %v5831 = vadd.f32 %v5575, 1.0
        %v5832 = vadd.f32 %v5576, 1.0
        %v5833 = vadd.f32 %v5577, 1.0
        %v5834 = vadd.f32 %v5578, 1.0
        %v5835 = vadd.f32 %v5579, 1.0
        %v5836 = vadd.f32 %v5580, 1.0
        %v5837 = vadd.f32 %v5581, 1.0
        %v5838 = vadd.f32 %v5582, 1.0
        %v5839 = vadd.f32 %v5583, 1.0
        %v5840 = vadd.f32 %v5584, 1.0
        %v5841 = vadd.f32 %v5585, 1.0
        %v5842 = vadd.f32 %v5586, 1.0
        %v5843 = vadd.f32 %v5587, 1.0
        %v5844 = vadd.f32 %v5588, 1.0
        %v5845 = vadd.f32 %v5589, 1.0
        %v5846 = vadd.f32 %v5590, 1.0
        %v5847 = vadd.f32 %v5591, 1.0
        %v5848 = vadd.f32 %v5592, 1.0
        %v5849 = vadd.f32 %v5593, 1.0
        %v5850 = vadd.f32 %v5594, 1.0
        %v5851 = vadd.f32 %v5595, 1.0
        %v5852 = vadd.f32 %v5596, 1.0
        %v5853 = vadd.f32 %v5597, 1.0
        %v5854 = vadd.f32 %v5598, 1.0
        %v5855 = vadd.f32 %v5599, 1.0
        %v5856 = vadd.f32 %v5600, 1.0
        %v5857 = vadd.f32 %v5601, 1.0
        %v5858 = vadd.f32 %v5602, 1.0
        %v5859 = vadd.f32 %v5603, 1.0
        %v5860 = vadd.f32 %v5604, 1.0
        %v5861 = vadd.f32 %v5605, 1.0
        %v5862 = vadd.f32 %v5606, 1.0
        %v5863 = vadd.f32 %v5607, 1.0
        %v5864 = vadd.f32 %v5608, 1.0
        %v5865 = vadd.f32 %v5609, 1.0
        %v5866 = vadd.f32 %v5610, 1.0
        %v5867 = vadd.f32 %v5611, 1.0
        %v5868 = vadd.f32 %v5612, 1.0
        %v5869 = vadd.f32 %v5613, 1.0
        %v5870 = vadd.f32 %v5614, 1.0
        %v5871 = vadd.f32 %v5615, 1.0
        %v5872 = vadd.f32 %v5616, 1.0
        %v5873 = vadd.f32 %v5617, 1.0
        %v5874 = vadd.f32 %v5618, 1.0
        %v5875 = vadd.f32 %v5619, 1.0
        %v5876 = vadd.f32 %v5620, 1.0
        %v5877 = vadd.f32 %v5621, 1.0
        %v5878 = vadd.f32 %v5622, 1.0
        %v5879 = vadd.f32 %v5623, 1.0
        %v5880 = vadd.f32 %v5624, 1.0
        %v5881 = vadd.f32 %v5625, 1.0
        %v5882 = vadd.f32 %v5626, 1.0
        %v5883 = vadd.f32 %v5627, 1.0
        %v5884 = vadd.f32 %v5628, 1.0
        %v5885 = vadd.f32 %v5629, 1.0
        %v5886 = vadd.f32 %v5630, 1.0
        %v5887 = vadd.f32 %v5631, 1.0
        %v5888 = vadd.f32 %v5632, 1.0
        %v5889 = vadd.f32 %v5633, 1.0
        %v5890 = vadd.f32 %v5634, 1.0
        %v5891 = vadd.f32 %v5635, 1.0
        %v5892 = vadd.f32 %v5636, 1.0
        %v5893 = vadd.f32 %v5637, 1.0
        %v5894 = vadd.f32 %v5638, 1.0
        %v5895 = vadd.f32 %v5639, 1.0
        %v5896 = vmul.f32 %v5640, 0.5
        %v5897 = vmul.f32 %v5641, 0.5
        %v5898 = vmul.f32 %v5642, 0.5
        %v5899 = vmul.f32 %v5643, 0.5
        %v5900 = vmul.f32 %v5644, 0.5
        %v5901 = vmul.f32 %v5645, 0.5
        %v5902 = vmul.f32 %v5646, 0.5
        %v5903 = vmul.f32 %v5647, 0.5
        %v5904 = vmul.f32 %v5648, 0.5
        %v5905 = vmul.f32 %v5649, 0.5
        %v5906 = vmul.f32 %v5650, 0.5
        %v5907 = vmul.f32 %v5651, 0.5
        %v5908 = vmul.f32 %v5652, 0.5
        %v5909 = vmul.f32 %v5653, 0.5
        %v5910 = vmul.f32 %v5654, 0.5
        %v5911 = vmul.f32 %v5655, 0.5
        %v5912 = vmul.f32 %v5656, 0.5
        %v5913 = vmul.f32 %v5657, 0.5
        %v5914 = vmul.f32 %v5658, 0.5
        %v5915 = vmul.f32 %v5659, 0.5
        %v5916 = vmul.f32 %v5660, 0.5
        %v5917 = vmul.f32 %v5661, 0.5
        %v5918 = vmul.f32 %v5662, 0.5
        %v5919 = vmul.f32 %v5663, 0.5
        %v5920 = vmul.f32 %v5664, 0.5
        %v5921 = vmul.f32 %v5665, 0.5
        %v5922 = vmul.f32 %v5666, 0.5
        %v5923 = vmul.f32 %v5667, 0.5
        %v5924 = vmul.f32 %v5668, 0.5
        %v5925 = vmul.f32 %v5669, 0.5
        %v5926 = vmul.f32 %v5670, 0.5
        %v5927 = vmul.f32 %v5671, 0.5
        %v5928 = vmul.f32 %v5672, 0.5
        %v5929 = vmul.f32 %v5673, 0.5
        %v5930 = vmul.f32 %v5674, 0.5
        %v5931 = vmul.f32 %v5675, 0.5
        %v5932 = vmul.f32 %v5676, 0.5
        %v5933 = vmul.f32 %v5677, 0.5
        %v5934 = vmul.f32 %v5678, 0.5
        %v5935 = vmul.f32 %v5679, 0.5
        %v5936 = vmul.f32 %v5680, 0.5
        %v5937 = vmul.f32 %v5681, 0.5
        %v5938 = vmul.f32 %v5682, 0.5
        %v5939 = vmul.f32 %v5683, 0.5
        %v5940 = vmul.f32 %v5684, 0.5
        %v5941 = vmul.f32 %v5685, 0.5
        %v5942 = vmul.f32 %v5686, 0.5
        %v5943 = vmul.f32 %v5687, 0.5
        %v5944 = vmul.f32 %v5688, 0.5
        %v5945 = vmul.f32 %v5689, 0.5
        %v5946 = vmul.f32 %v5690, 0.5
        %v5947 = vmul.f32 %v5691, 0.5
        %v5948 = vmul.f32 %v5692, 0.5
        %v5949 = vmul.f32 %v5693, 0.5
        %v5950 = vmul.f32 %v5694, 0.5
        %v5951 = vmul.f32 %v5695, 0.5
        %v5952 = vmul.f32 %v5696, 0.5
        %v5953 = vmul.f32 %v5697, 0.5
        %v5954 = vmul.f32 %v5698, 0.5
        %v5955 = vmul.f32 %v5699, 0.5
        %v5956 = vmul.f32 %v5700, 0.5
        %v5957 = vmul.f32 %v5701, 0.5
        %v5958 = vmul.f32 %v5702, 0.5
        %v5959 = vmul.f32 %v5703, 0.5
        %v5960 = vmul.f32 %v5704, 0.5
        %v5961 = vmul.f32 %v5705, 0.5
        %v5962 = vmul.f32 %v5706, 0.5
        %v5963 = vmul.f32 %v5707, 0.5
        %v5964 = vmul.f32 %v5708, 0.5
        %v5965 = vmul.f32 %v5709, 0.5
        %v5966 = vmul.f32 %v5710, 0.5
        %v5967 = vmul.f32 %v5711, 0.5
        %v5968 = vmul.f32 %v5712, 0.5
        %v5969 = vmul.f32 %v5713, 0.5
        %v5970 = vmul.f32 %v5714, 0.5
        %v5971 = vmul.f32 %v5715, 0.5
        %v5972 = vmul.f32 %v5716, 0.5
        %v5973 = vmul.f32 %v5717, 0.5
        %v5974 = vmul.f32 %v5718, 0.5
        %v5975 = vmul.f32 %v5719, 0.5
        %v5976 = vmul.f32 %v5720, 0.5
        %v5977 = vmul.f32 %v5721, 0.5
        %v5978 = vmul.f32 %v5722, 0.5
        %v5979 = vmul.f32 %v5723, 0.5
        %v5980 = vmul.f32 %v5724, 0.5
        %v5981 = vmul.f32 %v5725, 0.5
        %v5982 = vmul.f32 %v5726, 0.5
        %v5983 = vmul.f32 %v5727, 0.5
        %v5984 = vmul.f32 %v5728, 0.5
        %v5985 = vmul.f32 %v5729, 0.5
        %v5986 = vmul.f32 %v5730, 0.5
        %v5987 = vmul.f32 %v5731, 0.5
        %v5988 = vmul.f32 %v5732, 0.5
        %v5989 = vmul.f32 %v5733, 0.5
        %v5990 = vmul.f32 %v5734, 0.5
        %v5991 = vmul.f32 %v5735, 0.5
        %v5992 = vmul.f32 %v5736, 0.5
        %v5993 = vmul.f32 %v5737, 0.5
        %v5994 = vmul.f32 %v5738, 0.5
        %v5995 = vmul.f32 %v5739, 0.5
        %v5996 = vmul.f32 %v5740, 0.5
        %v5997 = vmul.f32 %v5741, 0.5
        %v5998 = vmul.f32 %v5742, 0.5
        %v5999 = vmul.f32 %v5743, 0.5
        %v6000 = vmul.f32 %v5744, 0.5
        %v6001 = vmul.f32 %v5745, 0.5
        %v6002 = vmul.f32 %v5746, 0.5
        %v6003 = vmul.f32 %v5747, 0.5
        %v6004 = vmul.f32 %v5748, 0.5
        %v6005 = vmul.f32 %v5749, 0.5
        %v6006 = vmul.f32 %v5750, 0.5
        %v6007 = vmul.f32 %v5751, 0.5
        %v6008 = vmul.f32 %v5752, 0.5
        %v6009 = vmul.f32 %v5753, 0.5
        %v6010 = vmul.f32 %v5754, 0.5
        %v6011 = vmul.f32 %v5755, 0.5
        %v6012 = vmul.f32 %v5756, 0.5
        %v6013 = vmul.f32 %v5757, 0.5
        %v6014 = vmul.f32 %v5758, 0.5
        %v6015 = vmul.f32 %v5759, 0.5
        %v6016 = vmul.f32 %v5760, 0.5
        %v6017 = vmul.f32 %v5761, 0.5
        %v6018 = vmul.f32 %v5762, 0.5
        %v6019 = vmul.f32 %v5763, 0.5
        %v6020 = vmul.f32 %v5764, 0.5
        %v6021 = vmul.f32 %v5765, 0.5
        %v6022 = vmul.f32 %v5766, 0.5
        %v6023 = vmul.f32 %v5767, 0.5
        %v6024 = vmul.f32 %v5768, 0.5
        %v6025 = vmul.f32 %v5769, 0.5
        %v6026 = vmul.f32 %v5770, 0.5
        %v6027 = vmul.f32 %v5771, 0.5
        %v6028 = vmul.f32 %v5772, 0.5
        %v6029 = vmul.f32 %v5773, 0.5
        %v6030 = vmul.f32 %v5774, 0.5
        %v6031 = vmul.f32 %v5775, 0.5
        %v6032 = vmul.f32 %v5776, 0.5
        %v6033 = vmul.f32 %v5777, 0.5
        %v6034 = vmul.f32 %v5778, 0.5
        %v6035 = vmul.f32 %v5779, 0.5
        %v6036 = vmul.f32 %v5780, 0.5
        %v6037 = vmul.f32 %v5781, 0.5
        %v6038 = vmul.f32 %v5782, 0.5
        %v6039 = vmul.f32 %v5783, 0.5
        %v6040 = vmul.f32 %v5784, 0.5
        %v6041 = vmul.f32 %v5785, 0.5
        %v6042 = vmul.f32 %v5786, 0.5
        %v6043 = vmul.f32 %v5787, 0.5
        %v6044 = vmul.f32 %v5788, 0.5
        %v6045 = vmul.f32 %v5789, 0.5
        %v6046 = vmul.f32 %v5790, 0.5
        %v6047 = vmul.f32 %v5791, 0.5
        %v6048 = vmul.f32 %v5792, 0.5
        %v6049 = vmul.f32 %v5793, 0.5
        %v6050 = vmul.f32 %v5794, 0.5
        %v6051 = vmul.f32 %v5795, 0.5
        %v6052 = vmul.f32 %v5796, 0.5
        %v6053 = vmul.f32 %v5797, 0.5
        %v6054 = vmul.f32 %v5798, 0.5
        %v6055 = vmul.f32 %v5799, 0.5
        %v6056 = vmul.f32 %v5800, 0.5
        %v6057 = vmul.f32 %v5801, 0.5
        %v6058 = vmul.f32 %v5802, 0.5
        %v6059 = vmul.f32 %v5803, 0.5
        %v6060 = vmul.f32 %v5804, 0.5
        %v6061 = vmul.f32 %v5805, 0.5
        %v6062 = vmul.f32 %v5806, 0.5
        %v6063 = vmul.f32 %v5807, 0.5
        %v6064 = vmul.f32 %v5808, 0.5
        %v6065 = vmul.f32 %v5809, 0.5
        %v6066 = vmul.f32 %v5810, 0.5
        %v6067 = vmul.f32 %v5811, 0.5
        %v6068 = vmul.f32 %v5812, 0.5
        %v6069 = vmul.f32 %v5813, 0.5
        %v6070 = vmul.f32 %v5814, 0.5
        %v6071 = vmul.f32 %v5815, 0.5
        %v6072 = vmul.f32 %v5816, 0.5
        %v6073 = vmul.f32 %v5817, 0.5
        %v6074 = vmul.f32 %v5818, 0.5
        %v6075 = vmul.f32 %v5819, 0.5
        %v6076 = vmul.f32 %v5820, 0.5
        %v6077 = vmul.f32 %v5821, 0.5
        %v6078 = vmul.f32 %v5822, 0.5
        %v6079 = vmul.f32 %v5823, 0.5
        %v6080 = vmul.f32 %v5824, 0.5
        %v6081 = vmul.f32 %v5825, 0.5
        %v6082 = vmul.f32 %v5826, 0.5
        %v6083 = vmul.f32 %v5827, 0.5
        %v6084 = vmul.f32 %v5828, 0.5
        %v6085 = vmul.f32 %v5829, 0.5
        %v6086 = vmul.f32 %v5830, 0.5
        %v6087 = vmul.f32 %v5831, 0.5
        %v6088 = vmul.f32 %v5832, 0.5
        %v6089 = vmul.f32 %v5833, 0.5
        %v6090 = vmul.f32 %v5834, 0.5
        %v6091 = vmul.f32 %v5835, 0.5
        %v6092 = vmul.f32 %v5836, 0.5
        %v6093 = vmul.f32 %v5837, 0.5
        %v6094 = vmul.f32 %v5838, 0.5
        %v6095 = vmul.f32 %v5839, 0.5
        %v6096 = vmul.f32 %v5840, 0.5
        %v6097 = vmul.f32 %v5841, 0.5
        %v6098 = vmul.f32 %v5842, 0.5
        %v6099 = vmul.f32 %v5843, 0.5
        %v6100 = vmul.f32 %v5844, 0.5
        %v6101 = vmul.f32 %v5845, 0.5
        %v6102 = vmul.f32 %v5846, 0.5
        %v6103 = vmul.f32 %v5847, 0.5
        %v6104 = vmul.f32 %v5848, 0.5
        %v6105 = vmul.f32 %v5849, 0.5
        %v6106 = vmul.f32 %v5850, 0.5
        %v6107 = vmul.f32 %v5851, 0.5
        %v6108 = vmul.f32 %v5852, 0.5
        %v6109 = vmul.f32 %v5853, 0.5
        %v6110 = vmul.f32 %v5854, 0.5
        %v6111 = vmul.f32 %v5855, 0.5
        %v6112 = vmul.f32 %v5856, 0.5
        %v6113 = vmul.f32 %v5857, 0.5
        %v6114 = vmul.f32 %v5858, 0.5
        %v6115 = vmul.f32 %v5859, 0.5
        %v6116 = vmul.f32 %v5860, 0.5
        %v6117 = vmul.f32 %v5861, 0.5
        %v6118 = vmul.f32 %v5862, 0.5
        %v6119 = vmul.f32 %v5863, 0.5
        %v6120 = vmul.f32 %v5864, 0.5
        %v6121 = vmul.f32 %v5865, 0.5
        %v6122 = vmul.f32 %v5866, 0.5
        %v6123 = vmul.f32 %v5867, 0.5
        %v6124 = vmul.f32 %v5868, 0.5
        %v6125 = vmul.f32 %v5869, 0.5
        %v6126 = vmul.f32 %v5870, 0.5
        %v6127 = vmul.f32 %v5871, 0.5
        %v6128 = vmul.f32 %v5872, 0.5
        %v6129 = vmul.f32 %v5873, 0.5
        %v6130 = vmul.f32 %v5874, 0.5
        %v6131 = vmul.f32 %v5875, 0.5
        %v6132 = vmul.f32 %v5876, 0.5
        %v6133 = vmul.f32 %v5877, 0.5
        %v6134 = vmul.f32 %v5878, 0.5
        %v6135 = vmul.f32 %v5879, 0.5
        %v6136 = vmul.f32 %v5880, 0.5
        %v6137 = vmul.f32 %v5881, 0.5
        %v6138 = vmul.f32 %v5882, 0.5
        %v6139 = vmul.f32 %v5883, 0.5
        %v6140 = vmul.f32 %v5884, 0.5
        %v6141 = vmul.f32 %v5885, 0.5
        %v6142 = vmul.f32 %v5886, 0.5
        %v6143 = vmul.f32 %v5887, 0.5
        %v6144 = vmul.f32 %v5888, 0.5
        %v6145 = vmul.f32 %v5889, 0.5
        %v6146 = vmul.f32 %v5890, 0.5
        %v6147 = vmul.f32 %v5891, 0.5
        %v6148 = vmul.f32 %v5892, 0.5
        %v6149 = vmul.f32 %v5893, 0.5
        %v6150 = vmul.f32 %v5894, 0.5
        %v6151 = vmul.f32 %v5895, 0.5
        %v6152 = vmul.f32 %v3438, %v5896
        %v6153 = vmul.f32 %v3607, %v5897
        %v6154 = vmul.f32 %v3776, %v5898
        %v6155 = vmul.f32 %v3945, %v5899
        %v6156 = vmul.f32 %v3440, %v5900
        %v6157 = vmul.f32 %v3609, %v5901
        %v6158 = vmul.f32 %v3778, %v5902
        %v6159 = vmul.f32 %v3947, %v5903
        %v6160 = vmul.f32 %v3443, %v5904
        %v6161 = vmul.f32 %v3612, %v5905
        %v6162 = vmul.f32 %v3781, %v5906
        %v6163 = vmul.f32 %v3950, %v5907
        %v6164 = vmul.f32 %v3445, %v5908
        %v6165 = vmul.f32 %v3614, %v5909
        %v6166 = vmul.f32 %v3783, %v5910
        %v6167 = vmul.f32 %v3952, %v5911
        %v6168 = vmul.f32 %v3448, %v5912
        %v6169 = vmul.f32 %v3617, %v5913
        %v6170 = vmul.f32 %v3786, %v5914
        %v6171 = vmul.f32 %v3955, %v5915
        %v6172 = vmul.f32 %v3450, %v5916
        %v6173 = vmul.f32 %v3619, %v5917
        %v6174 = vmul.f32 %v3788, %v5918
        %v6175 = vmul.f32 %v3957, %v5919
        %v6176 = vmul.f32 %v3453, %v5920
        %v6177 = vmul.f32 %v3622, %v5921
        %v6178 = vmul.f32 %v3791, %v5922
        %v6179 = vmul.f32 %v3960, %v5923
        %v6180 = vmul.f32 %v3455, %v5924
        %v6181 = vmul.f32 %v3624, %v5925
        %v6182 = vmul.f32 %v3793, %v5926
        %v6183 = vmul.f32 %v3962, %v5927
        %v6184 = vmul.f32 %v3458, %v5928
        %v6185 = vmul.f32 %v3627, %v5929
        %v6186 = vmul.f32 %v3796, %v5930
        %v6187 = vmul.f32 %v3965, %v5931
        %v6188 = vmul.f32 %v3460, %v5932
        %v6189 = vmul.f32 %v3629, %v5933
        %v6190 = vmul.f32 %v3798, %v5934
        %v6191 = vmul.f32 %v3967, %v5935
        %v6192 = vmul.f32 %v3463, %v5936
        %v6193 = vmul.f32 %v3632, %v5937
        %v6194 = vmul.f32 %v3801, %v5938
        %v6195 = vmul.f32 %v3970, %v5939
        %v6196 = vmul.f32 %v3465, %v5940
        %v6197 = vmul.f32 %v3634, %v5941
        %v6198 = vmul.f32 %v3803, %v5942
        %v6199 = vmul.f32 %v3972, %v5943
        %v6200 = vmul.f32 %v3468, %v5944
        %v6201 = vmul.f32 %v3637, %v5945
        %v6202 = vmul.f32 %v3806, %v5946
        %v6203 = vmul.f32 %v3975, %v5947
        %v6204 = vmul.f32 %v3470, %v5948
        %v6205 = vmul.f32 %v3639, %v5949
        %v6206 = vmul.f32 %v3808, %v5950
        %v6207 = vmul.f32 %v3977, %v5951
        %v6208 = vmul.f32 %v3473, %v5952
        %v6209 = vmul.f32 %v3642, %v5953
        %v6210 = vmul.f32 %v3811, %v5954
        %v6211 = vmul.f32 %v3980, %v5955
        %v6212 = vmul.f32 %v3475, %v5956
        %v6213 = vmul.f32 %v3644, %v5957
        %v6214 = vmul.f32 %v3813, %v5958
        %v6215 = vmul.f32 %v3982, %v5959
        %v6216 = vmul.f32 %v3478, %v5960
        %v6217 = vmul.f32 %v3647, %v5961
        %v6218 = vmul.f32 %v3816, %v5962
        %v6219 = vmul.f32 %v3985, %v5963
        %v6220 = vmul.f32 %v3480, %v5964
        %v6221 = vmul.f32 %v3649, %v5965
        %v6222 = vmul.f32 %v3818, %v5966
        %v6223 = vmul.f32 %v3987, %v5967
        %v6224 = vmul.f32 %v3483, %v5968
        %v6225 = vmul.f32 %v3652, %v5969
        %v6226 = vmul.f32 %v3821, %v5970
        %v6227 = vmul.f32 %v3990, %v5971
        %v6228 = vmul.f32 %v3485, %v5972
        %v6229 = vmul.f32 %v3654, %v5973
        %v6230 = vmul.f32 %v3823, %v5974
        %v6231 = vmul.f32 %v3992, %v5975
        %v6232 = vmul.f32 %v3488, %v5976
        %v6233 = vmul.f32 %v3657, %v5977
        %v6234 = vmul.f32 %v3826, %v5978
        %v6235 = vmul.f32 %v3995, %v5979
        %v6236 = vmul.f32 %v3490, %v5980
        %v6237 = vmul.f32 %v3659, %v5981
        %v6238 = vmul.f32 %v3828, %v5982
        %v6239 = vmul.f32 %v3997, %v5983
        %v6240 = vmul.f32 %v3493, %v5984
        %v6241 = vmul.f32 %v3662, %v5985
        %v6242 = vmul.f32 %v3831, %v5986
        %v6243 = vmul.f32 %v4000, %v5987
        %v6244 = vmul.f32 %v3495, %v5988
        %v6245 = vmul.f32 %v3664, %v5989
        %v6246 = vmul.f32 %v3833, %v5990
        %v6247 = vmul.f32 %v4002, %v5991
        %v6248 = vmul.f32 %v3498, %v5992
        %v6249 = vmul.f32 %v3667, %v5993
        %v6250 = vmul.f32 %v3836, %v5994
        %v6251 = vmul.f32 %v4005, %v5995
        %v6252 = vmul.f32 %v3500, %v5996
        %v6253 = vmul.f32 %v3669, %v5997
        %v6254 = vmul.f32 %v3838, %v5998
        %v6255 = vmul.f32 %v4007, %v5999
        %v6256 = vmul.f32 %v3503, %v6000
        %v6257 = vmul.f32 %v3672, %v6001
        %v6258 = vmul.f32 %v3841, %v6002
        %v6259 = vmul.f32 %v4010, %v6003
        %v6260 = vmul.f32 %v3505, %v6004
        %v6261 = vmul.f32 %v3674, %v6005
        %v6262 = vmul.f32 %v3843, %v6006
        %v6263 = vmul.f32 %v4012, %v6007
        %v6264 = vmul.f32 %v3508, %v6008
        %v6265 = vmul.f32 %v3677, %v6009
        %v6266 = vmul.f32 %v3846, %v6010
        %v6267 = vmul.f32 %v4015, %v6011
        %v6268 = vmul.f32 %v3510, %v6012
        %v6269 = vmul.f32 %v3679, %v6013
        %v6270 = vmul.f32 %v3848, %v6014
        %v6271 = vmul.f32 %v4017, %v6015
        %v6272 = vmul.f32 %v3513, %v6016
        %v6273 = vmul.f32 %v3682, %v6017
        %v6274 = vmul.f32 %v3851, %v6018
        %v6275 = vmul.f32 %v4020, %v6019
        %v6276 = vmul.f32 %v3515, %v6020
        %v6277 = vmul.f32 %v3684, %v6021
        %v6278 = vmul.f32 %v3853, %v6022
        %v6279 = vmul.f32 %v4022, %v6023
        %v6280 = vmul.f32 %v3518, %v6024
        %v6281 = vmul.f32 %v3687, %v6025
        %v6282 = vmul.f32 %v3856, %v6026
        %v6283 = vmul.f32 %v4025, %v6027
        %v6284 = vmul.f32 %v3520, %v6028
        %v6285 = vmul.f32 %v3689, %v6029
        %v6286 = vmul.f32 %v3858, %v6030
        %v6287 = vmul.f32 %v4027, %v6031
        %v6288 = vmul.f32 %v3523, %v6032
        %v6289 = vmul.f32 %v3692, %v6033
        %v6290 = vmul.f32 %v3861, %v6034
        %v6291 = vmul.f32 %v4030, %v6035
        %v6292 = vmul.f32 %v3525, %v6036
        %v6293 = vmul.f32 %v3694, %v6037
        %v6294 = vmul.f32 %v3863, %v6038
        %v6295 = vmul.f32 %v4032, %v6039
        %v6296 = vmul.f32 %v3528, %v6040
        %v6297 = vmul.f32 %v3697, %v6041
        %v6298 = vmul.f32 %v3866, %v6042
        %v6299 = vmul.f32 %v4035, %v6043
        %v6300 = vmul.f32 %v3530, %v6044
        %v6301 = vmul.f32 %v3699, %v6045
        %v6302 = vmul.f32 %v3868, %v6046
        %v6303 = vmul.f32 %v4037, %v6047
        %v6304 = vmul.f32 %v3533, %v6048
        %v6305 = vmul.f32 %v3702, %v6049
        %v6306 = vmul.f32 %v3871, %v6050
        %v6307 = vmul.f32 %v4040, %v6051
        %v6308 = vmul.f32 %v3535, %v6052
        %v6309 = vmul.f32 %v3704, %v6053
        %v6310 = vmul.f32 %v3873, %v6054
        %v6311 = vmul.f32 %v4042, %v6055
        %v6312 = vmul.f32 %v3538, %v6056
        %v6313 = vmul.f32 %v3707, %v6057
        %v6314 = vmul.f32 %v3876, %v6058
        %v6315 = vmul.f32 %v4045, %v6059
        %v6316 = vmul.f32 %v3540, %v6060
        %v6317 = vmul.f32 %v3709, %v6061
        %v6318 = vmul.f32 %v3878, %v6062
        %v6319 = vmul.f32 %v4047, %v6063
        %v6320 = vmul.f32 %v3543, %v6064
        %v6321 = vmul.f32 %v3712, %v6065
        %v6322 = vmul.f32 %v3881, %v6066
        %v6323 = vmul.f32 %v4050, %v6067
        %v6324 = vmul.f32 %v3545, %v6068
        %v6325 = vmul.f32 %v3714, %v6069
        %v6326 = vmul.f32 %v3883, %v6070
        %v6327 = vmul.f32 %v4052, %v6071
        %v6328 = vmul.f32 %v3548, %v6072
        %v6329 = vmul.f32 %v3717, %v6073
        %v6330 = vmul.f32 %v3886, %v6074
        %v6331 = vmul.f32 %v4055, %v6075
        %v6332 = vmul.f32 %v3550, %v6076
        %v6333 = vmul.f32 %v3719, %v6077
        %v6334 = vmul.f32 %v3888, %v6078
        %v6335 = vmul.f32 %v4057, %v6079
        %v6336 = vmul.f32 %v3553, %v6080
        %v6337 = vmul.f32 %v3722, %v6081
        %v6338 = vmul.f32 %v3891, %v6082
        %v6339 = vmul.f32 %v4060, %v6083
        %v6340 = vmul.f32 %v3555, %v6084
        %v6341 = vmul.f32 %v3724, %v6085
        %v6342 = vmul.f32 %v3893, %v6086
        %v6343 = vmul.f32 %v4062, %v6087
        %v6344 = vmul.f32 %v3558, %v6088
        %v6345 = vmul.f32 %v3727, %v6089
        %v6346 = vmul.f32 %v3896, %v6090
        %v6347 = vmul.f32 %v4065, %v6091
        %v6348 = vmul.f32 %v3560, %v6092
        %v6349 = vmul.f32 %v3729, %v6093
        %v6350 = vmul.f32 %v3898, %v6094
        %v6351 = vmul.f32 %v4067, %v6095
        %v6352 = vmul.f32 %v3563, %v6096
        %v6353 = vmul.f32 %v3732, %v6097
        %v6354 = vmul.f32 %v3901, %v6098
        %v6355 = vmul.f32 %v4070, %v6099
        %v6356 = vmul.f32 %v3565, %v6100
        %v6357 = vmul.f32 %v3734, %v6101
        %v6358 = vmul.f32 %v3903, %v6102
        %v6359 = vmul.f32 %v4072, %v6103
        %v6360 = vmul.f32 %v3568, %v6104
        %v6361 = vmul.f32 %v3737, %v6105
        %v6362 = vmul.f32 %v3906, %v6106
        %v6363 = vmul.f32 %v4075, %v6107
        %v6364 = vmul.f32 %v3570, %v6108
        %v6365 = vmul.f32 %v3739, %v6109
        %v6366 = vmul.f32 %v3908, %v6110
        %v6367 = vmul.f32 %v4077, %v6111
        %v6368 = vmul.f32 %v3573, %v6112
        %v6369 = vmul.f32 %v3742, %v6113
        %v6370 = vmul.f32 %v3911, %v6114
        %v6371 = vmul.f32 %v4080, %v6115
        %v6372 = vmul.f32 %v3575, %v6116
        %v6373 = vmul.f32 %v3744, %v6117
        %v6374 = vmul.f32 %v3913, %v6118
        %v6375 = vmul.f32 %v4082, %v6119
        %v6376 = vmul.f32 %v3578, %v6120
        %v6377 = vmul.f32 %v3747, %v6121
        %v6378 = vmul.f32 %v3916, %v6122
        %v6379 = vmul.f32 %v4085, %v6123
        %v6380 = vmul.f32 %v3580, %v6124
        %v6381 = vmul.f32 %v3749, %v6125
        %v6382 = vmul.f32 %v3918, %v6126
        %v6383 = vmul.f32 %v4087, %v6127
        %v6384 = vmul.f32 %v3583, %v6128
        %v6385 = vmul.f32 %v3752, %v6129
        %v6386 = vmul.f32 %v3921, %v6130
        %v6387 = vmul.f32 %v4090, %v6131
        %v6388 = vmul.f32 %v3585, %v6132
        %v6389 = vmul.f32 %v3754, %v6133
        %v6390 = vmul.f32 %v3923, %v6134
        %v6391 = vmul.f32 %v4092, %v6135
        %v6392 = vmul.f32 %v3588, %v6136
        %v6393 = vmul.f32 %v3757, %v6137
        %v6394 = vmul.f32 %v3926, %v6138
        %v6395 = vmul.f32 %v4095, %v6139
        %v6396 = vmul.f32 %v3590, %v6140
        %v6397 = vmul.f32 %v3759, %v6141
        %v6398 = vmul.f32 %v3928, %v6142
        %v6399 = vmul.f32 %v4097, %v6143
        %v6400 = vmul.f32 %v3593, %v6144
        %v6401 = vmul.f32 %v3762, %v6145
        %v6402 = vmul.f32 %v3931, %v6146
        %v6403 = vmul.f32 %v4100, %v6147
        %v6404 = vmul.f32 %v3595, %v6148
        %v6405 = vmul.f32 %v3764, %v6149
        %v6406 = vmul.f32 %v3933, %v6150
        %v6407 = vmul.f32 %v4102, %v6151
        %v6408 = vpack.c.bf16 %v6156, %v6152
        %v6409 = vpack.c.bf16 %v6157, %v6153
        %v6410 = vpack.c.bf16 %v6158, %v6154
        %v6411 = vpack.c.bf16 %v6159, %v6155
        %v6412 = vpack.c.bf16 %v6164, %v6160
        %v6413 = vpack.c.bf16 %v6165, %v6161
        %v6414 = vpack.c.bf16 %v6166, %v6162
        %v6415 = vpack.c.bf16 %v6167, %v6163
        %v6416 = vpack.c.bf16 %v6172, %v6168
        %v6417 = vpack.c.bf16 %v6173, %v6169
        %v6418 = vpack.c.bf16 %v6174, %v6170
        %v6419 = vpack.c.bf16 %v6175, %v6171
        %v6420 = vpack.c.bf16 %v6180, %v6176
        %v6421 = vpack.c.bf16 %v6181, %v6177
        %v6422 = vpack.c.bf16 %v6182, %v6178
        %v6423 = vpack.c.bf16 %v6183, %v6179
        %v6424 = vpack.c.bf16 %v6188, %v6184
        %v6425 = vpack.c.bf16 %v6189, %v6185
        %v6426 = vpack.c.bf16 %v6190, %v6186
        %v6427 = vpack.c.bf16 %v6191, %v6187
        %v6428 = vpack.c.bf16 %v6196, %v6192
        %v6429 = vpack.c.bf16 %v6197, %v6193
        %v6430 = vpack.c.bf16 %v6198, %v6194
        %v6431 = vpack.c.bf16 %v6199, %v6195
        %v6432 = vpack.c.bf16 %v6204, %v6200
        %v6433 = vpack.c.bf16 %v6205, %v6201
        %v6434 = vpack.c.bf16 %v6206, %v6202
        %v6435 = vpack.c.bf16 %v6207, %v6203
        %v6436 = vpack.c.bf16 %v6212, %v6208
        %v6437 = vpack.c.bf16 %v6213, %v6209
        %v6438 = vpack.c.bf16 %v6214, %v6210
        %v6439 = vpack.c.bf16 %v6215, %v6211
        %v6440 = vpack.c.bf16 %v6220, %v6216
        %v6441 = vpack.c.bf16 %v6221, %v6217
        %v6442 = vpack.c.bf16 %v6222, %v6218
        %v6443 = vpack.c.bf16 %v6223, %v6219
        %v6444 = vpack.c.bf16 %v6228, %v6224
        %v6445 = vpack.c.bf16 %v6229, %v6225
        %v6446 = vpack.c.bf16 %v6230, %v6226
        %v6447 = vpack.c.bf16 %v6231, %v6227
        %v6448 = vpack.c.bf16 %v6236, %v6232
        %v6449 = vpack.c.bf16 %v6237, %v6233
        %v6450 = vpack.c.bf16 %v6238, %v6234
        %v6451 = vpack.c.bf16 %v6239, %v6235
        %v6452 = vpack.c.bf16 %v6244, %v6240
        %v6453 = vpack.c.bf16 %v6245, %v6241
        %v6454 = vpack.c.bf16 %v6246, %v6242
        %v6455 = vpack.c.bf16 %v6247, %v6243
        %v6456 = vpack.c.bf16 %v6252, %v6248
        %v6457 = vpack.c.bf16 %v6253, %v6249
        %v6458 = vpack.c.bf16 %v6254, %v6250
        %v6459 = vpack.c.bf16 %v6255, %v6251
        %v6460 = vpack.c.bf16 %v6260, %v6256
        %v6461 = vpack.c.bf16 %v6261, %v6257
        %v6462 = vpack.c.bf16 %v6262, %v6258
        %v6463 = vpack.c.bf16 %v6263, %v6259
        %v6464 = vpack.c.bf16 %v6268, %v6264
        %v6465 = vpack.c.bf16 %v6269, %v6265
        %v6466 = vpack.c.bf16 %v6270, %v6266
        %v6467 = vpack.c.bf16 %v6271, %v6267
        %v6468 = vpack.c.bf16 %v6276, %v6272
        %v6469 = vpack.c.bf16 %v6277, %v6273
        %v6470 = vpack.c.bf16 %v6278, %v6274
        %v6471 = vpack.c.bf16 %v6279, %v6275
        %v6472 = vpack.c.bf16 %v6284, %v6280
        %v6473 = vpack.c.bf16 %v6285, %v6281
        %v6474 = vpack.c.bf16 %v6286, %v6282
        %v6475 = vpack.c.bf16 %v6287, %v6283
        %v6476 = vpack.c.bf16 %v6292, %v6288
        %v6477 = vpack.c.bf16 %v6293, %v6289
        %v6478 = vpack.c.bf16 %v6294, %v6290
        %v6479 = vpack.c.bf16 %v6295, %v6291
        %v6480 = vpack.c.bf16 %v6300, %v6296
        %v6481 = vpack.c.bf16 %v6301, %v6297
        %v6482 = vpack.c.bf16 %v6302, %v6298
        %v6483 = vpack.c.bf16 %v6303, %v6299
        %v6484 = vpack.c.bf16 %v6308, %v6304
        %v6485 = vpack.c.bf16 %v6309, %v6305
        %v6486 = vpack.c.bf16 %v6310, %v6306
        %v6487 = vpack.c.bf16 %v6311, %v6307
        %v6488 = vpack.c.bf16 %v6316, %v6312
        %v6489 = vpack.c.bf16 %v6317, %v6313
        %v6490 = vpack.c.bf16 %v6318, %v6314
        %v6491 = vpack.c.bf16 %v6319, %v6315
        %v6492 = vpack.c.bf16 %v6324, %v6320
        %v6493 = vpack.c.bf16 %v6325, %v6321
        %v6494 = vpack.c.bf16 %v6326, %v6322
        %v6495 = vpack.c.bf16 %v6327, %v6323
        %v6496 = vpack.c.bf16 %v6332, %v6328
        %v6497 = vpack.c.bf16 %v6333, %v6329
        %v6498 = vpack.c.bf16 %v6334, %v6330
        %v6499 = vpack.c.bf16 %v6335, %v6331
        %v6500 = vpack.c.bf16 %v6340, %v6336
        %v6501 = vpack.c.bf16 %v6341, %v6337
        %v6502 = vpack.c.bf16 %v6342, %v6338
        %v6503 = vpack.c.bf16 %v6343, %v6339
        %v6504 = vpack.c.bf16 %v6348, %v6344
        %v6505 = vpack.c.bf16 %v6349, %v6345
        %v6506 = vpack.c.bf16 %v6350, %v6346
        %v6507 = vpack.c.bf16 %v6351, %v6347
        %v6508 = vpack.c.bf16 %v6356, %v6352
        %v6509 = vpack.c.bf16 %v6357, %v6353
        %v6510 = vpack.c.bf16 %v6358, %v6354
        %v6511 = vpack.c.bf16 %v6359, %v6355
        %v6512 = vpack.c.bf16 %v6364, %v6360
        %v6513 = vpack.c.bf16 %v6365, %v6361
        %v6514 = vpack.c.bf16 %v6366, %v6362
        %v6515 = vpack.c.bf16 %v6367, %v6363
        %v6516 = vpack.c.bf16 %v6372, %v6368
        %v6517 = vpack.c.bf16 %v6373, %v6369
        %v6518 = vpack.c.bf16 %v6374, %v6370
        %v6519 = vpack.c.bf16 %v6375, %v6371
        %v6520 = vpack.c.bf16 %v6380, %v6376
        %v6521 = vpack.c.bf16 %v6381, %v6377
        %v6522 = vpack.c.bf16 %v6382, %v6378
        %v6523 = vpack.c.bf16 %v6383, %v6379
        %v6524 = vpack.c.bf16 %v6388, %v6384
        %v6525 = vpack.c.bf16 %v6389, %v6385
        %v6526 = vpack.c.bf16 %v6390, %v6386
        %v6527 = vpack.c.bf16 %v6391, %v6387
        %v6528 = vpack.c.bf16 %v6396, %v6392
        %v6529 = vpack.c.bf16 %v6397, %v6393
        %v6530 = vpack.c.bf16 %v6398, %v6394
        %v6531 = vpack.c.bf16 %v6399, %v6395
        %v6532 = vpack.c.bf16 %v6404, %v6400
        %v6533 = vpack.c.bf16 %v6405, %v6401
        %v6534 = vpack.c.bf16 %v6406, %v6402
        %v6535 = vpack.c.bf16 %v6407, %v6403
        %v6536 = vld [vmem:[#allocation10] sm:$0xf]
        %v6537 = vld [vmem:[#allocation10 + $0x4] sm:$0xf]
        %v6538 = vld [vmem:[#allocation10 + $0x8] sm:$0xf]
        %v6539 = vld [vmem:[#allocation10 + $0xc] sm:$0xf]
        %v6540 = vld [vmem:[#allocation10 + $0x10] sm:$0xf]
        %v6541 = vld [vmem:[#allocation10 + $0x14] sm:$0xf]
        %v6542 = vld [vmem:[#allocation10 + $0x18] sm:$0xf]
        %v6543 = vld [vmem:[#allocation10 + $0x1c] sm:$0xf]
        %v6544 = vld [vmem:[#allocation10 + $0x20] sm:$0xf]
        %v6545 = vld [vmem:[#allocation10 + $0x24] sm:$0xf]
        %v6546 = vld [vmem:[#allocation10 + $0x28] sm:$0xf]
        %v6547 = vld [vmem:[#allocation10 + $0x2c] sm:$0xf]
        %v6548 = vld [vmem:[#allocation10 + $0x30] sm:$0xf]
        %v6549 = vld [vmem:[#allocation10 + $0x34] sm:$0xf]
        %v6550 = vld [vmem:[#allocation10 + $0x38] sm:$0xf]
        %v6551 = vld [vmem:[#allocation10 + $0x3c] sm:$0xf]
        %v6552 = vld [vmem:[#allocation10 + $0x40] sm:$0xf]
        %v6553 = vld [vmem:[#allocation10 + $0x44] sm:$0xf]
        %v6554 = vld [vmem:[#allocation10 + $0x48] sm:$0xf]
        %v6555 = vld [vmem:[#allocation10 + $0x4c] sm:$0xf]
        %v6556 = vld [vmem:[#allocation10 + $0x50] sm:$0xf]
        %v6557 = vld [vmem:[#allocation10 + $0x54] sm:$0xf]
        %v6558 = vld [vmem:[#allocation10 + $0x58] sm:$0xf]
        %v6559 = vld [vmem:[#allocation10 + $0x5c] sm:$0xf]
        %v6560 = vld [vmem:[#allocation10 + $0x60] sm:$0xf]
        %v6561 = vld [vmem:[#allocation10 + $0x64] sm:$0xf]
        %v6562 = vld [vmem:[#allocation10 + $0x68] sm:$0xf]
        %v6563 = vld [vmem:[#allocation10 + $0x6c] sm:$0xf]
        %v6564 = vld [vmem:[#allocation10 + $0x70] sm:$0xf]
        %v6565 = vld [vmem:[#allocation10 + $0x74] sm:$0xf]
        %v6566 = vld [vmem:[#allocation10 + $0x78] sm:$0xf]
        %v6567 = vld [vmem:[#allocation10 + $0x7c] sm:$0xf]
        %v6568 = vld [vmem:[#allocation10 + $0x80] sm:$0xf]
        %v6569 = vld [vmem:[#allocation10 + $0x84] sm:$0xf]
        %v6570 = vld [vmem:[#allocation10 + $0x88] sm:$0xf]
        %v6571 = vld [vmem:[#allocation10 + $0x8c] sm:$0xf]
        %v6572 = vld [vmem:[#allocation10 + $0x90] sm:$0xf]
        %v6573 = vld [vmem:[#allocation10 + $0x94] sm:$0xf]
        %v6574 = vld [vmem:[#allocation10 + $0x98] sm:$0xf]
        %v6575 = vld [vmem:[#allocation10 + $0x9c] sm:$0xf]
        %v6576 = vld [vmem:[#allocation10 + $0xa0] sm:$0xf]
        %v6577 = vld [vmem:[#allocation10 + $0xa4] sm:$0xf]
        %v6578 = vld [vmem:[#allocation10 + $0xa8] sm:$0xf]
        %v6579 = vld [vmem:[#allocation10 + $0xac] sm:$0xf]
        %v6580 = vld [vmem:[#allocation10 + $0xb0] sm:$0xf]
        %v6581 = vld [vmem:[#allocation10 + $0xb4] sm:$0xf]
        %v6582 = vld [vmem:[#allocation10 + $0xb8] sm:$0xf]
        %v6583 = vld [vmem:[#allocation10 + $0xbc] sm:$0xf]
        %v6584 = vld [vmem:[#allocation10 + $0xc0] sm:$0xf]
        %v6585 = vld [vmem:[#allocation10 + $0xc4] sm:$0xf]
        %v6586 = vld [vmem:[#allocation10 + $0xc8] sm:$0xf]
        %v6587 = vld [vmem:[#allocation10 + $0xcc] sm:$0xf]
        %v6588 = vld [vmem:[#allocation10 + $0xd0] sm:$0xf]
        %v6589 = vld [vmem:[#allocation10 + $0xd4] sm:$0xf]
        %v6590 = vld [vmem:[#allocation10 + $0xd8] sm:$0xf]
        %v6591 = vld [vmem:[#allocation10 + $0xdc] sm:$0xf]
        %v6592 = vld [vmem:[#allocation10 + $0xe0] sm:$0xf]
        %v6593 = vld [vmem:[#allocation10 + $0xe4] sm:$0xf]
        %v6594 = vld [vmem:[#allocation10 + $0xe8] sm:$0xf]
        %v6595 = vld [vmem:[#allocation10 + $0xec] sm:$0xf]
        %v6596 = vld [vmem:[#allocation10 + $0xf0] sm:$0xf]
        %v6597 = vld [vmem:[#allocation10 + $0xf4] sm:$0xf]
        %v6598 = vld [vmem:[#allocation10 + $0xf8] sm:$0xf]
        %v6599 = vld [vmem:[#allocation10 + $0xfc] sm:$0xf]
        %v6600 = vld [vmem:[%s6] sm:$0x1]
        %v6602 = vperm.slane %v6600, 0
        %v6668 = vunpack.c.l.b16 %v6536
        %v6669 = vunpack.c.l.b16 %v6537
        %v6670 = vunpack.c.l.b16 %v6538
        %v6671 = vunpack.c.l.b16 %v6539
        %v6672 = vunpack.c.l.b16 %v6540
        %v6673 = vunpack.c.l.b16 %v6541
        %v6674 = vunpack.c.l.b16 %v6542
        %v6675 = vunpack.c.l.b16 %v6543
        %v6676 = vunpack.c.l.b16 %v6544
        %v6677 = vunpack.c.l.b16 %v6545
        %v6678 = vunpack.c.l.b16 %v6546
        %v6679 = vunpack.c.l.b16 %v6547
        %v6680 = vunpack.c.l.b16 %v6548
        %v6681 = vunpack.c.l.b16 %v6549
        %v6682 = vunpack.c.l.b16 %v6550
        %v6683 = vunpack.c.l.b16 %v6551
        %v6684 = vunpack.c.l.b16 %v6552
        %v6685 = vunpack.c.l.b16 %v6553
        %v6686 = vunpack.c.l.b16 %v6554
        %v6687 = vunpack.c.l.b16 %v6555
        %v6688 = vunpack.c.l.b16 %v6556
        %v6689 = vunpack.c.l.b16 %v6557
        %v6690 = vunpack.c.l.b16 %v6558
        %v6691 = vunpack.c.l.b16 %v6559
        %v6692 = vunpack.c.l.b16 %v6560
        %v6693 = vunpack.c.l.b16 %v6561
        %v6694 = vunpack.c.l.b16 %v6562
        %v6695 = vunpack.c.l.b16 %v6563
        %v6696 = vunpack.c.l.b16 %v6564
        %v6697 = vunpack.c.l.b16 %v6565
        %v6698 = vunpack.c.l.b16 %v6566
        %v6699 = vunpack.c.l.b16 %v6567
        %v6700 = vunpack.c.l.b16 %v6568
        %v6701 = vunpack.c.l.b16 %v6569
        %v6702 = vunpack.c.l.b16 %v6570
        %v6703 = vunpack.c.l.b16 %v6571
        %v6704 = vunpack.c.l.b16 %v6572
        %v6705 = vunpack.c.l.b16 %v6573
        %v6706 = vunpack.c.l.b16 %v6574
        %v6707 = vunpack.c.l.b16 %v6575
        %v6708 = vunpack.c.l.b16 %v6576
        %v6709 = vunpack.c.l.b16 %v6577
        %v6710 = vunpack.c.l.b16 %v6578
        %v6711 = vunpack.c.l.b16 %v6579
        %v6712 = vunpack.c.l.b16 %v6580
        %v6713 = vunpack.c.l.b16 %v6581
        %v6714 = vunpack.c.l.b16 %v6582
        %v6715 = vunpack.c.l.b16 %v6583
        %v6716 = vunpack.c.l.b16 %v6584
        %v6717 = vunpack.c.l.b16 %v6585
        %v6718 = vunpack.c.l.b16 %v6586
        %v6719 = vunpack.c.l.b16 %v6587
        %v6720 = vunpack.c.l.b16 %v6588
        %v6721 = vunpack.c.l.b16 %v6589
        %v6722 = vunpack.c.l.b16 %v6590
        %v6723 = vunpack.c.l.b16 %v6591
        %v6724 = vunpack.c.l.b16 %v6592
        %v6725 = vunpack.c.l.b16 %v6593
        %v6726 = vunpack.c.l.b16 %v6594
        %v6727 = vunpack.c.l.b16 %v6595
        %v6728 = vunpack.c.l.b16 %v6596
        %v6729 = vunpack.c.l.b16 %v6597
        %v6730 = vunpack.c.l.b16 %v6598
        %v6731 = vunpack.c.l.b16 %v6599
        %v6732 = vpack.c.b16 %v6669, %v6668
        %v6733 = vpack.c.b16 %v6671, %v6670
        %v6734 = vpack.c.b16 %v6673, %v6672
        %v6735 = vpack.c.b16 %v6675, %v6674
        %v6736 = vpack.c.b16 %v6677, %v6676
        %v6737 = vpack.c.b16 %v6679, %v6678
        %v6738 = vpack.c.b16 %v6681, %v6680
        %v6739 = vpack.c.b16 %v6683, %v6682
        %v6740 = vpack.c.b16 %v6685, %v6684
        %v6741 = vpack.c.b16 %v6687, %v6686
        %v6742 = vpack.c.b16 %v6689, %v6688
        %v6743 = vpack.c.b16 %v6691, %v6690
        %v6744 = vpack.c.b16 %v6693, %v6692
        %v6745 = vpack.c.b16 %v6695, %v6694
        %v6746 = vpack.c.b16 %v6697, %v6696
        %v6747 = vpack.c.b16 %v6699, %v6698
        %v6748 = vpack.c.b16 %v6701, %v6700
        %v6749 = vpack.c.b16 %v6703, %v6702
        %v6750 = vpack.c.b16 %v6705, %v6704
        %v6751 = vpack.c.b16 %v6707, %v6706
        %v6752 = vpack.c.b16 %v6709, %v6708
        %v6753 = vpack.c.b16 %v6711, %v6710
        %v6754 = vpack.c.b16 %v6713, %v6712
        %v6755 = vpack.c.b16 %v6715, %v6714
        %v6756 = vpack.c.b16 %v6717, %v6716
        %v6757 = vpack.c.b16 %v6719, %v6718
        %v6758 = vpack.c.b16 %v6721, %v6720
        %v6759 = vpack.c.b16 %v6723, %v6722
        %v6760 = vpack.c.b16 %v6725, %v6724
        %v6761 = vpack.c.b16 %v6727, %v6726
        %v6762 = vpack.c.b16 %v6729, %v6728
        %v6763 = vpack.c.b16 %v6731, %v6730
        %6796 = vmatpush.bf16.msra.mxu0 %v6739
        %6797 = vmatpush.bf16.msra.mxu0 %v6738
        %6798 = vmatpush.bf16.msra.mxu0 %v6737
        %6799 = vmatpush.bf16.msra.mxu0 %v6736
        %6800 = vmatpush.bf16.msra.mxu0 %v6735
        %6801 = vmatpush.bf16.msra.mxu0 %v6734
        %6802 = vmatpush.bf16.msra.mxu0 %v6733
        %6803 = vmatpush.bf16.msra.mxu0 %v6732
        %6804 = vmatmul.bf16.gmra.mxu0 %v6408
        %v6805 = vpop.f32.mrf.mxu0
        %v6806 = vadd.f32 %v6602, %v6805
        %v6807 = vpop.f32.mrf.mxu0
        %v6808 = vadd.f32 %v6602, %v6807
        %6809 = vmatmul.bf16.gmra.mxu0 %v6412
        %v6810 = vpop.f32.mrf.mxu0
        %v6811 = vadd.f32 %v6602, %v6810
        %v6812 = vpop.f32.mrf.mxu0
        %v6813 = vadd.f32 %v6602, %v6812
        %6814 = vmatmul.bf16.gmra.mxu0 %v6416
        %v6815 = vpop.f32.mrf.mxu0
        %v6816 = vadd.f32 %v6602, %v6815
        %v6817 = vpop.f32.mrf.mxu0
        %v6818 = vadd.f32 %v6602, %v6817
        %6819 = vmatmul.bf16.gmra.mxu0 %v6420
        %v6820 = vpop.f32.mrf.mxu0
        %v6821 = vadd.f32 %v6602, %v6820
        %v6822 = vpop.f32.mrf.mxu0
        %v6823 = vadd.f32 %v6602, %v6822
        %6824 = vmatmul.bf16.gmra.mxu0 %v6424
        %v6825 = vpop.f32.mrf.mxu0
        %v6826 = vadd.f32 %v6602, %v6825
        %v6827 = vpop.f32.mrf.mxu0
        %v6828 = vadd.f32 %v6602, %v6827
        %6829 = vmatmul.bf16.gmra.mxu0 %v6428
        %v6830 = vpop.f32.mrf.mxu0
        %v6831 = vadd.f32 %v6602, %v6830
        %v6832 = vpop.f32.mrf.mxu0
        %v6833 = vadd.f32 %v6602, %v6832
        %6834 = vmatmul.bf16.gmra.mxu0 %v6432
        %v6835 = vpop.f32.mrf.mxu0
        %v6836 = vadd.f32 %v6602, %v6835
        %v6837 = vpop.f32.mrf.mxu0
        %v6838 = vadd.f32 %v6602, %v6837
        %6839 = vmatmul.bf16.gmra.mxu0 %v6436
        %v6840 = vpop.f32.mrf.mxu0
        %v6841 = vadd.f32 %v6602, %v6840
        %v6842 = vpop.f32.mrf.mxu0
        %v6843 = vadd.f32 %v6602, %v6842
        %6844 = vmatmul.bf16.gmra.mxu0 %v6440
        %v6845 = vpop.f32.mrf.mxu0
        %v6846 = vadd.f32 %v6602, %v6845
        %v6847 = vpop.f32.mrf.mxu0
        %v6848 = vadd.f32 %v6602, %v6847
        %6849 = vmatmul.bf16.gmra.mxu0 %v6444
        %v6850 = vpop.f32.mrf.mxu0
        %v6851 = vadd.f32 %v6602, %v6850
        %v6852 = vpop.f32.mrf.mxu0
        %v6853 = vadd.f32 %v6602, %v6852
        %6854 = vmatmul.bf16.gmra.mxu0 %v6448
        %v6855 = vpop.f32.mrf.mxu0
        %v6856 = vadd.f32 %v6602, %v6855
        %v6857 = vpop.f32.mrf.mxu0
        %v6858 = vadd.f32 %v6602, %v6857
        %6859 = vmatmul.bf16.gmra.mxu0 %v6452
        %v6860 = vpop.f32.mrf.mxu0
        %v6861 = vadd.f32 %v6602, %v6860
        %v6862 = vpop.f32.mrf.mxu0
        %v6863 = vadd.f32 %v6602, %v6862
        %6864 = vmatmul.bf16.gmra.mxu0 %v6456
        %v6865 = vpop.f32.mrf.mxu0
        %v6866 = vadd.f32 %v6602, %v6865
        %v6867 = vpop.f32.mrf.mxu0
        %v6868 = vadd.f32 %v6602, %v6867
        %6869 = vmatmul.bf16.gmra.mxu0 %v6460
        %v6870 = vpop.f32.mrf.mxu0
        %v6871 = vadd.f32 %v6602, %v6870
        %v6872 = vpop.f32.mrf.mxu0
        %v6873 = vadd.f32 %v6602, %v6872
        %6874 = vmatmul.bf16.gmra.mxu0 %v6464
        %v6875 = vpop.f32.mrf.mxu0
        %v6876 = vadd.f32 %v6602, %v6875
        %v6877 = vpop.f32.mrf.mxu0
        %v6878 = vadd.f32 %v6602, %v6877
        %6879 = vmatmul.bf16.gmra.mxu0 %v6468
        %v6880 = vpop.f32.mrf.mxu0
        %v6881 = vadd.f32 %v6602, %v6880
        %v6882 = vpop.f32.mrf.mxu0
        %v6883 = vadd.f32 %v6602, %v6882
        %6884 = vmatmul.bf16.gmra.mxu0 %v6472
        %v6885 = vpop.f32.mrf.mxu0
        %v6886 = vadd.f32 %v6602, %v6885
        %v6887 = vpop.f32.mrf.mxu0
        %v6888 = vadd.f32 %v6602, %v6887
        %6889 = vmatmul.bf16.gmra.mxu0 %v6476
        %v6890 = vpop.f32.mrf.mxu0
        %v6891 = vadd.f32 %v6602, %v6890
        %v6892 = vpop.f32.mrf.mxu0
        %v6893 = vadd.f32 %v6602, %v6892
        %6894 = vmatmul.bf16.gmra.mxu0 %v6480
        %v6895 = vpop.f32.mrf.mxu0
        %v6896 = vadd.f32 %v6602, %v6895
        %v6897 = vpop.f32.mrf.mxu0
        %v6898 = vadd.f32 %v6602, %v6897
        %6899 = vmatmul.bf16.gmra.mxu0 %v6484
        %v6900 = vpop.f32.mrf.mxu0
        %v6901 = vadd.f32 %v6602, %v6900
        %v6902 = vpop.f32.mrf.mxu0
        %v6903 = vadd.f32 %v6602, %v6902
        %6904 = vmatmul.bf16.gmra.mxu0 %v6488
        %v6905 = vpop.f32.mrf.mxu0
        %v6906 = vadd.f32 %v6602, %v6905
        %v6907 = vpop.f32.mrf.mxu0
        %v6908 = vadd.f32 %v6602, %v6907
        %6909 = vmatmul.bf16.gmra.mxu0 %v6492
        %v6910 = vpop.f32.mrf.mxu0
        %v6911 = vadd.f32 %v6602, %v6910
        %v6912 = vpop.f32.mrf.mxu0
        %v6913 = vadd.f32 %v6602, %v6912
        %6914 = vmatmul.bf16.gmra.mxu0 %v6496
        %v6915 = vpop.f32.mrf.mxu0
        %v6916 = vadd.f32 %v6602, %v6915
        %v6917 = vpop.f32.mrf.mxu0
        %v6918 = vadd.f32 %v6602, %v6917
        %6919 = vmatmul.bf16.gmra.mxu0 %v6500
        %v6920 = vpop.f32.mrf.mxu0
        %v6921 = vadd.f32 %v6602, %v6920
        %v6922 = vpop.f32.mrf.mxu0
        %v6923 = vadd.f32 %v6602, %v6922
        %6924 = vmatmul.bf16.gmra.mxu0 %v6504
        %v6925 = vpop.f32.mrf.mxu0
        %v6926 = vadd.f32 %v6602, %v6925
        %v6927 = vpop.f32.mrf.mxu0
        %v6928 = vadd.f32 %v6602, %v6927
        %6929 = vmatmul.bf16.gmra.mxu0 %v6508
        %v6930 = vpop.f32.mrf.mxu0
        %v6931 = vadd.f32 %v6602, %v6930
        %v6932 = vpop.f32.mrf.mxu0
        %v6933 = vadd.f32 %v6602, %v6932
        %6934 = vmatmul.bf16.gmra.mxu0 %v6512
        %v6935 = vpop.f32.mrf.mxu0
        %v6936 = vadd.f32 %v6602, %v6935
        %v6937 = vpop.f32.mrf.mxu0
        %v6938 = vadd.f32 %v6602, %v6937
        %6939 = vmatmul.bf16.gmra.mxu0 %v6516
        %v6940 = vpop.f32.mrf.mxu0
        %v6941 = vadd.f32 %v6602, %v6940
        %v6942 = vpop.f32.mrf.mxu0
        %v6943 = vadd.f32 %v6602, %v6942
        %6944 = vmatmul.bf16.gmra.mxu0 %v6520
        %v6945 = vpop.f32.mrf.mxu0
        %v6946 = vadd.f32 %v6602, %v6945
        %v6947 = vpop.f32.mrf.mxu0
        %v6948 = vadd.f32 %v6602, %v6947
        %6949 = vmatmul.bf16.gmra.mxu0 %v6524
        %v6950 = vpop.f32.mrf.mxu0
        %v6951 = vadd.f32 %v6602, %v6950
        %v6952 = vpop.f32.mrf.mxu0
        %v6953 = vadd.f32 %v6602, %v6952
        %6954 = vmatmul.bf16.gmra.mxu0 %v6528
        %v6955 = vpop.f32.mrf.mxu0
        %v6956 = vadd.f32 %v6602, %v6955
        %v6957 = vpop.f32.mrf.mxu0
        %v6958 = vadd.f32 %v6602, %v6957
        %6959 = vmatmul.bf16.gmra.mxu0 %v6532
        %v6960 = vpop.f32.mrf.mxu0
        %v6961 = vadd.f32 %v6602, %v6960
        %v6962 = vpop.f32.mrf.mxu0
        %v6963 = vadd.f32 %v6602, %v6962
        %6964 = vdwg.mxu0
        %6965 = vmatpush.bf16.msra.mxu0 %v6747
        %6966 = vmatpush.bf16.msra.mxu0 %v6746
        %6967 = vmatpush.bf16.msra.mxu0 %v6745
        %6968 = vmatpush.bf16.msra.mxu0 %v6744
        %6969 = vmatpush.bf16.msra.mxu0 %v6743
        %6970 = vmatpush.bf16.msra.mxu0 %v6742
        %6971 = vmatpush.bf16.msra.mxu0 %v6741
        %6972 = vmatpush.bf16.msra.mxu0 %v6740
        %6973 = vmatmul.bf16.gmra.mxu0 %v6409
        %v6974 = vpop.f32.mrf.mxu0
        %v6975 = vadd.f32 %v6806, %v6974
        %v6976 = vpop.f32.mrf.mxu0
        %v6977 = vadd.f32 %v6808, %v6976
        %6978 = vmatmul.bf16.gmra.mxu0 %v6413
        %v6979 = vpop.f32.mrf.mxu0
        %v6980 = vadd.f32 %v6811, %v6979
        %v6981 = vpop.f32.mrf.mxu0
        %v6982 = vadd.f32 %v6813, %v6981
        %6983 = vmatmul.bf16.gmra.mxu0 %v6417
        %v6984 = vpop.f32.mrf.mxu0
        %v6985 = vadd.f32 %v6816, %v6984
        %v6986 = vpop.f32.mrf.mxu0
        %v6987 = vadd.f32 %v6818, %v6986
        %6988 = vmatmul.bf16.gmra.mxu0 %v6421
        %v6989 = vpop.f32.mrf.mxu0
        %v6990 = vadd.f32 %v6821, %v6989
        %v6991 = vpop.f32.mrf.mxu0
        %v6992 = vadd.f32 %v6823, %v6991
        %6993 = vmatmul.bf16.gmra.mxu0 %v6425
        %v6994 = vpop.f32.mrf.mxu0
        %v6995 = vadd.f32 %v6826, %v6994
        %v6996 = vpop.f32.mrf.mxu0
        %v6997 = vadd.f32 %v6828, %v6996
        %6998 = vmatmul.bf16.gmra.mxu0 %v6429
        %v6999 = vpop.f32.mrf.mxu0
        %v7000 = vadd.f32 %v6831, %v6999
        %v7001 = vpop.f32.mrf.mxu0
        %v7002 = vadd.f32 %v6833, %v7001
        %7003 = vmatmul.bf16.gmra.mxu0 %v6433
        %v7004 = vpop.f32.mrf.mxu0
        %v7005 = vadd.f32 %v6836, %v7004
        %v7006 = vpop.f32.mrf.mxu0
        %v7007 = vadd.f32 %v6838, %v7006
        %7008 = vmatmul.bf16.gmra.mxu0 %v6437
        %v7009 = vpop.f32.mrf.mxu0
        %v7010 = vadd.f32 %v6841, %v7009
        %v7011 = vpop.f32.mrf.mxu0
        %v7012 = vadd.f32 %v6843, %v7011
        %7013 = vmatmul.bf16.gmra.mxu0 %v6441
        %v7014 = vpop.f32.mrf.mxu0
        %v7015 = vadd.f32 %v6846, %v7014
        %v7016 = vpop.f32.mrf.mxu0
        %v7017 = vadd.f32 %v6848, %v7016
        %7018 = vmatmul.bf16.gmra.mxu0 %v6445
        %v7019 = vpop.f32.mrf.mxu0
        %v7020 = vadd.f32 %v6851, %v7019
        %v7021 = vpop.f32.mrf.mxu0
        %v7022 = vadd.f32 %v6853, %v7021
        %7023 = vmatmul.bf16.gmra.mxu0 %v6449
        %v7024 = vpop.f32.mrf.mxu0
        %v7025 = vadd.f32 %v6856, %v7024
        %v7026 = vpop.f32.mrf.mxu0
        %v7027 = vadd.f32 %v6858, %v7026
        %7028 = vmatmul.bf16.gmra.mxu0 %v6453
        %v7029 = vpop.f32.mrf.mxu0
        %v7030 = vadd.f32 %v6861, %v7029
        %v7031 = vpop.f32.mrf.mxu0
        %v7032 = vadd.f32 %v6863, %v7031
        %7033 = vmatmul.bf16.gmra.mxu0 %v6457
        %v7034 = vpop.f32.mrf.mxu0
        %v7035 = vadd.f32 %v6866, %v7034
        %v7036 = vpop.f32.mrf.mxu0
        %v7037 = vadd.f32 %v6868, %v7036
        %7038 = vmatmul.bf16.gmra.mxu0 %v6461
        %v7039 = vpop.f32.mrf.mxu0
        %v7040 = vadd.f32 %v6871, %v7039
        %v7041 = vpop.f32.mrf.mxu0
        %v7042 = vadd.f32 %v6873, %v7041
        %7043 = vmatmul.bf16.gmra.mxu0 %v6465
        %v7044 = vpop.f32.mrf.mxu0
        %v7045 = vadd.f32 %v6876, %v7044
        %v7046 = vpop.f32.mrf.mxu0
        %v7047 = vadd.f32 %v6878, %v7046
        %7048 = vmatmul.bf16.gmra.mxu0 %v6469
        %v7049 = vpop.f32.mrf.mxu0
        %v7050 = vadd.f32 %v6881, %v7049
        %v7051 = vpop.f32.mrf.mxu0
        %v7052 = vadd.f32 %v6883, %v7051
        %7053 = vmatmul.bf16.gmra.mxu0 %v6473
        %v7054 = vpop.f32.mrf.mxu0
        %v7055 = vadd.f32 %v6886, %v7054
        %v7056 = vpop.f32.mrf.mxu0
        %v7057 = vadd.f32 %v6888, %v7056
        %7058 = vmatmul.bf16.gmra.mxu0 %v6477
        %v7059 = vpop.f32.mrf.mxu0
        %v7060 = vadd.f32 %v6891, %v7059
        %v7061 = vpop.f32.mrf.mxu0
        %v7062 = vadd.f32 %v6893, %v7061
        %7063 = vmatmul.bf16.gmra.mxu0 %v6481
        %v7064 = vpop.f32.mrf.mxu0
        %v7065 = vadd.f32 %v6896, %v7064
        %v7066 = vpop.f32.mrf.mxu0
        %v7067 = vadd.f32 %v6898, %v7066
        %7068 = vmatmul.bf16.gmra.mxu0 %v6485
        %v7069 = vpop.f32.mrf.mxu0
        %v7070 = vadd.f32 %v6901, %v7069
        %v7071 = vpop.f32.mrf.mxu0
        %v7072 = vadd.f32 %v6903, %v7071
        %7073 = vmatmul.bf16.gmra.mxu0 %v6489
        %v7074 = vpop.f32.mrf.mxu0
        %v7075 = vadd.f32 %v6906, %v7074
        %v7076 = vpop.f32.mrf.mxu0
        %v7077 = vadd.f32 %v6908, %v7076
        %7078 = vmatmul.bf16.gmra.mxu0 %v6493
        %v7079 = vpop.f32.mrf.mxu0
        %v7080 = vadd.f32 %v6911, %v7079
        %v7081 = vpop.f32.mrf.mxu0
        %v7082 = vadd.f32 %v6913, %v7081
        %7083 = vmatmul.bf16.gmra.mxu0 %v6497
        %v7084 = vpop.f32.mrf.mxu0
        %v7085 = vadd.f32 %v6916, %v7084
        %v7086 = vpop.f32.mrf.mxu0
        %v7087 = vadd.f32 %v6918, %v7086
        %7088 = vmatmul.bf16.gmra.mxu0 %v6501
        %v7089 = vpop.f32.mrf.mxu0
        %v7090 = vadd.f32 %v6921, %v7089
        %v7091 = vpop.f32.mrf.mxu0
        %v7092 = vadd.f32 %v6923, %v7091
        %7093 = vmatmul.bf16.gmra.mxu0 %v6505
        %v7094 = vpop.f32.mrf.mxu0
        %v7095 = vadd.f32 %v6926, %v7094
        %v7096 = vpop.f32.mrf.mxu0
        %v7097 = vadd.f32 %v6928, %v7096
        %7098 = vmatmul.bf16.gmra.mxu0 %v6509
        %v7099 = vpop.f32.mrf.mxu0
        %v7100 = vadd.f32 %v6931, %v7099
        %v7101 = vpop.f32.mrf.mxu0
        %v7102 = vadd.f32 %v6933, %v7101
        %7103 = vmatmul.bf16.gmra.mxu0 %v6513
        %v7104 = vpop.f32.mrf.mxu0
        %v7105 = vadd.f32 %v6936, %v7104
        %v7106 = vpop.f32.mrf.mxu0
        %v7107 = vadd.f32 %v6938, %v7106
        %7108 = vmatmul.bf16.gmra.mxu0 %v6517
        %v7109 = vpop.f32.mrf.mxu0
        %v7110 = vadd.f32 %v6941, %v7109
        %v7111 = vpop.f32.mrf.mxu0
        %v7112 = vadd.f32 %v6943, %v7111
        %7113 = vmatmul.bf16.gmra.mxu0 %v6521
        %v7114 = vpop.f32.mrf.mxu0
        %v7115 = vadd.f32 %v6946, %v7114
        %v7116 = vpop.f32.mrf.mxu0
        %v7117 = vadd.f32 %v6948, %v7116
        %7118 = vmatmul.bf16.gmra.mxu0 %v6525
        %v7119 = vpop.f32.mrf.mxu0
        %v7120 = vadd.f32 %v6951, %v7119
        %v7121 = vpop.f32.mrf.mxu0
        %v7122 = vadd.f32 %v6953, %v7121
        %7123 = vmatmul.bf16.gmra.mxu0 %v6529
        %v7124 = vpop.f32.mrf.mxu0
        %v7125 = vadd.f32 %v6956, %v7124
        %v7126 = vpop.f32.mrf.mxu0
        %v7127 = vadd.f32 %v6958, %v7126
        %7128 = vmatmul.bf16.gmra.mxu0 %v6533
        %v7129 = vpop.f32.mrf.mxu0
        %v7130 = vadd.f32 %v6961, %v7129
        %v7131 = vpop.f32.mrf.mxu0
        %v7132 = vadd.f32 %v6963, %v7131
        %7133 = vdwg.mxu0
        %7134 = vmatpush.bf16.msra.mxu0 %v6755
        %7135 = vmatpush.bf16.msra.mxu0 %v6754
        %7136 = vmatpush.bf16.msra.mxu0 %v6753
        %7137 = vmatpush.bf16.msra.mxu0 %v6752
        %7138 = vmatpush.bf16.msra.mxu0 %v6751
        %7139 = vmatpush.bf16.msra.mxu0 %v6750
        %7140 = vmatpush.bf16.msra.mxu0 %v6749
        %7141 = vmatpush.bf16.msra.mxu0 %v6748
        %7142 = vmatmul.bf16.gmra.mxu0 %v6410
        %v7143 = vpop.f32.mrf.mxu0
        %v7144 = vadd.f32 %v6975, %v7143
        %v7145 = vpop.f32.mrf.mxu0
        %v7146 = vadd.f32 %v6977, %v7145
        %7147 = vmatmul.bf16.gmra.mxu0 %v6414
        %v7148 = vpop.f32.mrf.mxu0
        %v7149 = vadd.f32 %v6980, %v7148
        %v7150 = vpop.f32.mrf.mxu0
        %v7151 = vadd.f32 %v6982, %v7150
        %7152 = vmatmul.bf16.gmra.mxu0 %v6418
        %v7153 = vpop.f32.mrf.mxu0
        %v7154 = vadd.f32 %v6985, %v7153
        %v7155 = vpop.f32.mrf.mxu0
        %v7156 = vadd.f32 %v6987, %v7155
        %7157 = vmatmul.bf16.gmra.mxu0 %v6422
        %v7158 = vpop.f32.mrf.mxu0
        %v7159 = vadd.f32 %v6990, %v7158
        %v7160 = vpop.f32.mrf.mxu0
        %v7161 = vadd.f32 %v6992, %v7160
        %7162 = vmatmul.bf16.gmra.mxu0 %v6426
        %v7163 = vpop.f32.mrf.mxu0
        %v7164 = vadd.f32 %v6995, %v7163
        %v7165 = vpop.f32.mrf.mxu0
        %v7166 = vadd.f32 %v6997, %v7165
        %7167 = vmatmul.bf16.gmra.mxu0 %v6430
        %v7168 = vpop.f32.mrf.mxu0
        %v7169 = vadd.f32 %v7000, %v7168
        %v7170 = vpop.f32.mrf.mxu0
        %v7171 = vadd.f32 %v7002, %v7170
        %7172 = vmatmul.bf16.gmra.mxu0 %v6434
        %v7173 = vpop.f32.mrf.mxu0
        %v7174 = vadd.f32 %v7005, %v7173
        %v7175 = vpop.f32.mrf.mxu0
        %v7176 = vadd.f32 %v7007, %v7175
        %7177 = vmatmul.bf16.gmra.mxu0 %v6438
        %v7178 = vpop.f32.mrf.mxu0
        %v7179 = vadd.f32 %v7010, %v7178
        %v7180 = vpop.f32.mrf.mxu0
        %v7181 = vadd.f32 %v7012, %v7180
        %7182 = vmatmul.bf16.gmra.mxu0 %v6442
        %v7183 = vpop.f32.mrf.mxu0
        %v7184 = vadd.f32 %v7015, %v7183
        %v7185 = vpop.f32.mrf.mxu0
        %v7186 = vadd.f32 %v7017, %v7185
        %7187 = vmatmul.bf16.gmra.mxu0 %v6446
        %v7188 = vpop.f32.mrf.mxu0
        %v7189 = vadd.f32 %v7020, %v7188
        %v7190 = vpop.f32.mrf.mxu0
        %v7191 = vadd.f32 %v7022, %v7190
        %7192 = vmatmul.bf16.gmra.mxu0 %v6450
        %v7193 = vpop.f32.mrf.mxu0
        %v7194 = vadd.f32 %v7025, %v7193
        %v7195 = vpop.f32.mrf.mxu0
        %v7196 = vadd.f32 %v7027, %v7195
        %7197 = vmatmul.bf16.gmra.mxu0 %v6454
        %v7198 = vpop.f32.mrf.mxu0
        %v7199 = vadd.f32 %v7030, %v7198
        %v7200 = vpop.f32.mrf.mxu0
        %v7201 = vadd.f32 %v7032, %v7200
        %7202 = vmatmul.bf16.gmra.mxu0 %v6458
        %v7203 = vpop.f32.mrf.mxu0
        %v7204 = vadd.f32 %v7035, %v7203
        %v7205 = vpop.f32.mrf.mxu0
        %v7206 = vadd.f32 %v7037, %v7205
        %7207 = vmatmul.bf16.gmra.mxu0 %v6462
        %v7208 = vpop.f32.mrf.mxu0
        %v7209 = vadd.f32 %v7040, %v7208
        %v7210 = vpop.f32.mrf.mxu0
        %v7211 = vadd.f32 %v7042, %v7210
        %7212 = vmatmul.bf16.gmra.mxu0 %v6466
        %v7213 = vpop.f32.mrf.mxu0
        %v7214 = vadd.f32 %v7045, %v7213
        %v7215 = vpop.f32.mrf.mxu0
        %v7216 = vadd.f32 %v7047, %v7215
        %7217 = vmatmul.bf16.gmra.mxu0 %v6470
        %v7218 = vpop.f32.mrf.mxu0
        %v7219 = vadd.f32 %v7050, %v7218
        %v7220 = vpop.f32.mrf.mxu0
        %v7221 = vadd.f32 %v7052, %v7220
        %7222 = vmatmul.bf16.gmra.mxu0 %v6474
        %v7223 = vpop.f32.mrf.mxu0
        %v7224 = vadd.f32 %v7055, %v7223
        %v7225 = vpop.f32.mrf.mxu0
        %v7226 = vadd.f32 %v7057, %v7225
        %7227 = vmatmul.bf16.gmra.mxu0 %v6478
        %v7228 = vpop.f32.mrf.mxu0
        %v7229 = vadd.f32 %v7060, %v7228
        %v7230 = vpop.f32.mrf.mxu0
        %v7231 = vadd.f32 %v7062, %v7230
        %7232 = vmatmul.bf16.gmra.mxu0 %v6482
        %v7233 = vpop.f32.mrf.mxu0
        %v7234 = vadd.f32 %v7065, %v7233
        %v7235 = vpop.f32.mrf.mxu0
        %v7236 = vadd.f32 %v7067, %v7235
        %7237 = vmatmul.bf16.gmra.mxu0 %v6486
        %v7238 = vpop.f32.mrf.mxu0
        %v7239 = vadd.f32 %v7070, %v7238
        %v7240 = vpop.f32.mrf.mxu0
        %v7241 = vadd.f32 %v7072, %v7240
        %7242 = vmatmul.bf16.gmra.mxu0 %v6490
        %v7243 = vpop.f32.mrf.mxu0
        %v7244 = vadd.f32 %v7075, %v7243
        %v7245 = vpop.f32.mrf.mxu0
        %v7246 = vadd.f32 %v7077, %v7245
        %7247 = vmatmul.bf16.gmra.mxu0 %v6494
        %v7248 = vpop.f32.mrf.mxu0
        %v7249 = vadd.f32 %v7080, %v7248
        %v7250 = vpop.f32.mrf.mxu0
        %v7251 = vadd.f32 %v7082, %v7250
        %7252 = vmatmul.bf16.gmra.mxu0 %v6498
        %v7253 = vpop.f32.mrf.mxu0
        %v7254 = vadd.f32 %v7085, %v7253
        %v7255 = vpop.f32.mrf.mxu0
        %v7256 = vadd.f32 %v7087, %v7255
        %7257 = vmatmul.bf16.gmra.mxu0 %v6502
        %v7258 = vpop.f32.mrf.mxu0
        %v7259 = vadd.f32 %v7090, %v7258
        %v7260 = vpop.f32.mrf.mxu0
        %v7261 = vadd.f32 %v7092, %v7260
        %7262 = vmatmul.bf16.gmra.mxu0 %v6506
        %v7263 = vpop.f32.mrf.mxu0
        %v7264 = vadd.f32 %v7095, %v7263
        %v7265 = vpop.f32.mrf.mxu0
        %v7266 = vadd.f32 %v7097, %v7265
        %7267 = vmatmul.bf16.gmra.mxu0 %v6510
        %v7268 = vpop.f32.mrf.mxu0
        %v7269 = vadd.f32 %v7100, %v7268
        %v7270 = vpop.f32.mrf.mxu0
        %v7271 = vadd.f32 %v7102, %v7270
        %7272 = vmatmul.bf16.gmra.mxu0 %v6514
        %v7273 = vpop.f32.mrf.mxu0
        %v7274 = vadd.f32 %v7105, %v7273
        %v7275 = vpop.f32.mrf.mxu0
        %v7276 = vadd.f32 %v7107, %v7275
        %7277 = vmatmul.bf16.gmra.mxu0 %v6518
        %v7278 = vpop.f32.mrf.mxu0
        %v7279 = vadd.f32 %v7110, %v7278
        %v7280 = vpop.f32.mrf.mxu0
        %v7281 = vadd.f32 %v7112, %v7280
        %7282 = vmatmul.bf16.gmra.mxu0 %v6522
        %v7283 = vpop.f32.mrf.mxu0
        %v7284 = vadd.f32 %v7115, %v7283
        %v7285 = vpop.f32.mrf.mxu0
        %v7286 = vadd.f32 %v7117, %v7285
        %7287 = vmatmul.bf16.gmra.mxu0 %v6526
        %v7288 = vpop.f32.mrf.mxu0
        %v7289 = vadd.f32 %v7120, %v7288
        %v7290 = vpop.f32.mrf.mxu0
        %v7291 = vadd.f32 %v7122, %v7290
        %7292 = vmatmul.bf16.gmra.mxu0 %v6530
        %v7293 = vpop.f32.mrf.mxu0
        %v7294 = vadd.f32 %v7125, %v7293
        %v7295 = vpop.f32.mrf.mxu0
        %v7296 = vadd.f32 %v7127, %v7295
        %7297 = vmatmul.bf16.gmra.mxu0 %v6534
        %v7298 = vpop.f32.mrf.mxu0
        %v7299 = vadd.f32 %v7130, %v7298
        %v7300 = vpop.f32.mrf.mxu0
        %v7301 = vadd.f32 %v7132, %v7300
        %7302 = vdwg.mxu0
        %7303 = vmatpush.bf16.msra.mxu0 %v6763
        %7304 = vmatpush.bf16.msra.mxu0 %v6762
        %7305 = vmatpush.bf16.msra.mxu0 %v6761
        %7306 = vmatpush.bf16.msra.mxu0 %v6760
        %7307 = vmatpush.bf16.msra.mxu0 %v6759
        %7308 = vmatpush.bf16.msra.mxu0 %v6758
        %7309 = vmatpush.bf16.msra.mxu0 %v6757
        %7310 = vmatpush.bf16.msra.mxu0 %v6756
        %7311 = vmatmul.bf16.gmra.mxu0 %v6411
        %v7312 = vpop.f32.mrf.mxu0
        %v7313 = vadd.f32 %v7144, %v7312
        %v7314 = vpop.f32.mrf.mxu0
        %v7315 = vadd.f32 %v7146, %v7314
        %7316 = vmatmul.bf16.gmra.mxu0 %v6415
        %v7317 = vpop.f32.mrf.mxu0
        %v7318 = vadd.f32 %v7149, %v7317
        %v7319 = vpop.f32.mrf.mxu0
        %v7320 = vadd.f32 %v7151, %v7319
        %7321 = vmatmul.bf16.gmra.mxu0 %v6419
        %v7322 = vpop.f32.mrf.mxu0
        %v7323 = vadd.f32 %v7154, %v7322
        %v7324 = vpop.f32.mrf.mxu0
        %v7325 = vadd.f32 %v7156, %v7324
        %7326 = vmatmul.bf16.gmra.mxu0 %v6423
        %v7327 = vpop.f32.mrf.mxu0
        %v7328 = vadd.f32 %v7159, %v7327
        %v7329 = vpop.f32.mrf.mxu0
        %v7330 = vadd.f32 %v7161, %v7329
        %7331 = vmatmul.bf16.gmra.mxu0 %v6427
        %v7332 = vpop.f32.mrf.mxu0
        %v7333 = vadd.f32 %v7164, %v7332
        %v7334 = vpop.f32.mrf.mxu0
        %v7335 = vadd.f32 %v7166, %v7334
        %7336 = vmatmul.bf16.gmra.mxu0 %v6431
        %v7337 = vpop.f32.mrf.mxu0
        %v7338 = vadd.f32 %v7169, %v7337
        %v7339 = vpop.f32.mrf.mxu0
        %v7340 = vadd.f32 %v7171, %v7339
        %7341 = vmatmul.bf16.gmra.mxu0 %v6435
        %v7342 = vpop.f32.mrf.mxu0
        %v7343 = vadd.f32 %v7174, %v7342
        %v7344 = vpop.f32.mrf.mxu0
        %v7345 = vadd.f32 %v7176, %v7344
        %7346 = vmatmul.bf16.gmra.mxu0 %v6439
        %v7347 = vpop.f32.mrf.mxu0
        %v7348 = vadd.f32 %v7179, %v7347
        %v7349 = vpop.f32.mrf.mxu0
        %v7350 = vadd.f32 %v7181, %v7349
        %7351 = vmatmul.bf16.gmra.mxu0 %v6443
        %v7352 = vpop.f32.mrf.mxu0
        %v7353 = vadd.f32 %v7184, %v7352
        %v7354 = vpop.f32.mrf.mxu0
        %v7355 = vadd.f32 %v7186, %v7354
        %7356 = vmatmul.bf16.gmra.mxu0 %v6447
        %v7357 = vpop.f32.mrf.mxu0
        %v7358 = vadd.f32 %v7189, %v7357
        %v7359 = vpop.f32.mrf.mxu0
        %v7360 = vadd.f32 %v7191, %v7359
        %7361 = vmatmul.bf16.gmra.mxu0 %v6451
        %v7362 = vpop.f32.mrf.mxu0
        %v7363 = vadd.f32 %v7194, %v7362
        %v7364 = vpop.f32.mrf.mxu0
        %v7365 = vadd.f32 %v7196, %v7364
        %7366 = vmatmul.bf16.gmra.mxu0 %v6455
        %v7367 = vpop.f32.mrf.mxu0
        %v7368 = vadd.f32 %v7199, %v7367
        %v7369 = vpop.f32.mrf.mxu0
        %v7370 = vadd.f32 %v7201, %v7369
        %7371 = vmatmul.bf16.gmra.mxu0 %v6459
        %v7372 = vpop.f32.mrf.mxu0
        %v7373 = vadd.f32 %v7204, %v7372
        %v7374 = vpop.f32.mrf.mxu0
        %v7375 = vadd.f32 %v7206, %v7374
        %7376 = vmatmul.bf16.gmra.mxu0 %v6463
        %v7377 = vpop.f32.mrf.mxu0
        %v7378 = vadd.f32 %v7209, %v7377
        %v7379 = vpop.f32.mrf.mxu0
        %v7380 = vadd.f32 %v7211, %v7379
        %7381 = vmatmul.bf16.gmra.mxu0 %v6467
        %v7382 = vpop.f32.mrf.mxu0
        %v7383 = vadd.f32 %v7214, %v7382
        %v7384 = vpop.f32.mrf.mxu0
        %v7385 = vadd.f32 %v7216, %v7384
        %7386 = vmatmul.bf16.gmra.mxu0 %v6471
        %v7387 = vpop.f32.mrf.mxu0
        %v7388 = vadd.f32 %v7219, %v7387
        %v7389 = vpop.f32.mrf.mxu0
        %v7390 = vadd.f32 %v7221, %v7389
        %7391 = vmatmul.bf16.gmra.mxu0 %v6475
        %v7392 = vpop.f32.mrf.mxu0
        %v7393 = vadd.f32 %v7224, %v7392
        %v7394 = vpop.f32.mrf.mxu0
        %v7395 = vadd.f32 %v7226, %v7394
        %7396 = vmatmul.bf16.gmra.mxu0 %v6479
        %v7397 = vpop.f32.mrf.mxu0
        %v7398 = vadd.f32 %v7229, %v7397
        %v7399 = vpop.f32.mrf.mxu0
        %v7400 = vadd.f32 %v7231, %v7399
        %7401 = vmatmul.bf16.gmra.mxu0 %v6483
        %v7402 = vpop.f32.mrf.mxu0
        %v7403 = vadd.f32 %v7234, %v7402
        %v7404 = vpop.f32.mrf.mxu0
        %v7405 = vadd.f32 %v7236, %v7404
        %7406 = vmatmul.bf16.gmra.mxu0 %v6487
        %v7407 = vpop.f32.mrf.mxu0
        %v7408 = vadd.f32 %v7239, %v7407
        %v7409 = vpop.f32.mrf.mxu0
        %v7410 = vadd.f32 %v7241, %v7409
        %7411 = vmatmul.bf16.gmra.mxu0 %v6491
        %v7412 = vpop.f32.mrf.mxu0
        %v7413 = vadd.f32 %v7244, %v7412
        %v7414 = vpop.f32.mrf.mxu0
        %v7415 = vadd.f32 %v7246, %v7414
        %7416 = vmatmul.bf16.gmra.mxu0 %v6495
        %v7417 = vpop.f32.mrf.mxu0
        %v7418 = vadd.f32 %v7249, %v7417
        %v7419 = vpop.f32.mrf.mxu0
        %v7420 = vadd.f32 %v7251, %v7419
        %7421 = vmatmul.bf16.gmra.mxu0 %v6499
        %v7422 = vpop.f32.mrf.mxu0
        %v7423 = vadd.f32 %v7254, %v7422
        %v7424 = vpop.f32.mrf.mxu0
        %v7425 = vadd.f32 %v7256, %v7424
        %7426 = vmatmul.bf16.gmra.mxu0 %v6503
        %v7427 = vpop.f32.mrf.mxu0
        %v7428 = vadd.f32 %v7259, %v7427
        %v7429 = vpop.f32.mrf.mxu0
        %v7430 = vadd.f32 %v7261, %v7429
        %7431 = vmatmul.bf16.gmra.mxu0 %v6507
        %v7432 = vpop.f32.mrf.mxu0
        %v7433 = vadd.f32 %v7264, %v7432
        %v7434 = vpop.f32.mrf.mxu0
        %v7435 = vadd.f32 %v7266, %v7434
        %7436 = vmatmul.bf16.gmra.mxu0 %v6511
        %v7437 = vpop.f32.mrf.mxu0
        %v7438 = vadd.f32 %v7269, %v7437
        %v7439 = vpop.f32.mrf.mxu0
        %v7440 = vadd.f32 %v7271, %v7439
        %7441 = vmatmul.bf16.gmra.mxu0 %v6515
        %v7442 = vpop.f32.mrf.mxu0
        %v7443 = vadd.f32 %v7274, %v7442
        %v7444 = vpop.f32.mrf.mxu0
        %v7445 = vadd.f32 %v7276, %v7444
        %7446 = vmatmul.bf16.gmra.mxu0 %v6519
        %v7447 = vpop.f32.mrf.mxu0
        %v7448 = vadd.f32 %v7279, %v7447
        %v7449 = vpop.f32.mrf.mxu0
        %v7450 = vadd.f32 %v7281, %v7449
        %7451 = vmatmul.bf16.gmra.mxu0 %v6523
        %v7452 = vpop.f32.mrf.mxu0
        %v7453 = vadd.f32 %v7284, %v7452
        %v7454 = vpop.f32.mrf.mxu0
        %v7455 = vadd.f32 %v7286, %v7454
        %7456 = vmatmul.bf16.gmra.mxu0 %v6527
        %v7457 = vpop.f32.mrf.mxu0
        %v7458 = vadd.f32 %v7289, %v7457
        %v7459 = vpop.f32.mrf.mxu0
        %v7460 = vadd.f32 %v7291, %v7459
        %7461 = vmatmul.bf16.gmra.mxu0 %v6531
        %v7462 = vpop.f32.mrf.mxu0
        %v7463 = vadd.f32 %v7294, %v7462
        %v7464 = vpop.f32.mrf.mxu0
        %v7465 = vadd.f32 %v7296, %v7464
        %7466 = vmatmul.bf16.gmra.mxu0 %v6535
        %v7467 = vpop.f32.mrf.mxu0
        %v7468 = vadd.f32 %v7299, %v7467
        %v7469 = vpop.f32.mrf.mxu0
        %v7470 = vadd.f32 %v7301, %v7469
        %7471 = vdwg.mxu0
        %v7472 = vadd.f32 %v1850, %v7313
        %v7473 = vadd.f32 %v1851, %v7315
        %v7474 = vadd.f32 %v1852, %v7318
        %v7475 = vadd.f32 %v1853, %v7320
        %v7476 = vadd.f32 %v1854, %v7323
        %v7477 = vadd.f32 %v1855, %v7325
        %v7478 = vadd.f32 %v1856, %v7328
        %v7479 = vadd.f32 %v1857, %v7330
        %v7480 = vadd.f32 %v1858, %v7333
        %v7481 = vadd.f32 %v1859, %v7335
        %v7482 = vadd.f32 %v1860, %v7338
        %v7483 = vadd.f32 %v1861, %v7340
        %v7484 = vadd.f32 %v1862, %v7343
        %v7485 = vadd.f32 %v1863, %v7345
        %v7486 = vadd.f32 %v1864, %v7348
        %v7487 = vadd.f32 %v1865, %v7350
        %v7488 = vadd.f32 %v1866, %v7353
        %v7489 = vadd.f32 %v1867, %v7355
        %v7490 = vadd.f32 %v1868, %v7358
        %v7491 = vadd.f32 %v1869, %v7360
        %v7492 = vadd.f32 %v1870, %v7363
        %v7493 = vadd.f32 %v1871, %v7365
        %v7494 = vadd.f32 %v1872, %v7368
        %v7495 = vadd.f32 %v1873, %v7370
        %v7496 = vadd.f32 %v1874, %v7373
        %v7497 = vadd.f32 %v1875, %v7375
        %v7498 = vadd.f32 %v1876, %v7378
        %v7499 = vadd.f32 %v1877, %v7380
        %v7500 = vadd.f32 %v1878, %v7383
        %v7501 = vadd.f32 %v1879, %v7385
        %v7502 = vadd.f32 %v1880, %v7388
        %v7503 = vadd.f32 %v1881, %v7390
        %v7504 = vadd.f32 %v1882, %v7393
        %v7505 = vadd.f32 %v1883, %v7395
        %v7506 = vadd.f32 %v1884, %v7398
        %v7507 = vadd.f32 %v1885, %v7400
        %v7508 = vadd.f32 %v1886, %v7403
        %v7509 = vadd.f32 %v1887, %v7405
        %v7510 = vadd.f32 %v1888, %v7408
        %v7511 = vadd.f32 %v1889, %v7410
        %v7512 = vadd.f32 %v1890, %v7413
        %v7513 = vadd.f32 %v1891, %v7415
        %v7514 = vadd.f32 %v1892, %v7418
        %v7515 = vadd.f32 %v1893, %v7420
        %v7516 = vadd.f32 %v1894, %v7423
        %v7517 = vadd.f32 %v1895, %v7425
        %v7518 = vadd.f32 %v1896, %v7428
        %v7519 = vadd.f32 %v1897, %v7430
        %v7520 = vadd.f32 %v1898, %v7433
        %v7521 = vadd.f32 %v1899, %v7435
        %v7522 = vadd.f32 %v1900, %v7438
        %v7523 = vadd.f32 %v1901, %v7440
        %v7524 = vadd.f32 %v1902, %v7443
        %v7525 = vadd.f32 %v1903, %v7445
        %v7526 = vadd.f32 %v1904, %v7448
        %v7527 = vadd.f32 %v1905, %v7450
        %v7528 = vadd.f32 %v1906, %v7453
        %v7529 = vadd.f32 %v1907, %v7455
        %v7530 = vadd.f32 %v1908, %v7458
        %v7531 = vadd.f32 %v1909, %v7460
        %v7532 = vadd.f32 %v1910, %v7463
        %v7533 = vadd.f32 %v1911, %v7465
        %v7534 = vadd.f32 %v1912, %v7468
        %v7535 = vadd.f32 %v1913, %v7470
        %7536 = vst [vmem:[%s360] sm:$0xff] %v7472
        %7537 = vst [vmem:[%s360 + $0x8] sm:$0xff] %v7473
        %7538 = vst [vmem:[%s360 + $0x10] sm:$0xff] %v7474
        %7539 = vst [vmem:[%s360 + $0x18] sm:$0xff] %v7475
        %7540 = vst [vmem:[%s360 + $0x20] sm:$0xff] %v7476
        %7541 = vst [vmem:[%s360 + $0x28] sm:$0xff] %v7477
        %7542 = vst [vmem:[%s360 + $0x30] sm:$0xff] %v7478
        %7543 = vst [vmem:[%s360 + $0x38] sm:$0xff] %v7479
        %7544 = vst [vmem:[%s360 + $0x40] sm:$0xff] %v7480
        %7545 = vst [vmem:[%s360 + $0x48] sm:$0xff] %v7481
        %7546 = vst [vmem:[%s360 + $0x50] sm:$0xff] %v7482
        %7547 = vst [vmem:[%s360 + $0x58] sm:$0xff] %v7483
        %7548 = vst [vmem:[%s360 + $0x60] sm:$0xff] %v7484
        %7549 = vst [vmem:[%s360 + $0x68] sm:$0xff] %v7485
        %7550 = vst [vmem:[%s360 + $0x70] sm:$0xff] %v7486
        %7551 = vst [vmem:[%s360 + $0x78] sm:$0xff] %v7487
        %7552 = vst [vmem:[%s360 + $0x80] sm:$0xff] %v7488
        %7553 = vst [vmem:[%s360 + $0x88] sm:$0xff] %v7489
        %7554 = vst [vmem:[%s360 + $0x90] sm:$0xff] %v7490
        %7555 = vst [vmem:[%s360 + $0x98] sm:$0xff] %v7491
        %7556 = vst [vmem:[%s360 + $0xa0] sm:$0xff] %v7492
        %7557 = vst [vmem:[%s360 + $0xa8] sm:$0xff] %v7493
        %7558 = vst [vmem:[%s360 + $0xb0] sm:$0xff] %v7494
        %7559 = vst [vmem:[%s360 + $0xb8] sm:$0xff] %v7495
        %7560 = vst [vmem:[%s360 + $0xc0] sm:$0xff] %v7496
        %7561 = vst [vmem:[%s360 + $0xc8] sm:$0xff] %v7497
        %7562 = vst [vmem:[%s360 + $0xd0] sm:$0xff] %v7498
        %7563 = vst [vmem:[%s360 + $0xd8] sm:$0xff] %v7499
        %7564 = vst [vmem:[%s360 + $0xe0] sm:$0xff] %v7500
        %7565 = vst [vmem:[%s360 + $0xe8] sm:$0xff] %v7501
        %7566 = vst [vmem:[%s360 + $0xf0] sm:$0xff] %v7502
        %7567 = vst [vmem:[%s360 + $0xf8] sm:$0xff] %v7503
        %7568 = vst [vmem:[%s360 + $0x100] sm:$0xff] %v7504
        %7569 = vst [vmem:[%s360 + $0x108] sm:$0xff] %v7505
        %7570 = vst [vmem:[%s360 + $0x110] sm:$0xff] %v7506
        %7571 = vst [vmem:[%s360 + $0x118] sm:$0xff] %v7507
        %7572 = vst [vmem:[%s360 + $0x120] sm:$0xff] %v7508
        %7573 = vst [vmem:[%s360 + $0x128] sm:$0xff] %v7509
        %7574 = vst [vmem:[%s360 + $0x130] sm:$0xff] %v7510
        %7575 = vst [vmem:[%s360 + $0x138] sm:$0xff] %v7511
        %7576 = vst [vmem:[%s360 + $0x140] sm:$0xff] %v7512
        %7577 = vst [vmem:[%s360 + $0x148] sm:$0xff] %v7513
        %7578 = vst [vmem:[%s360 + $0x150] sm:$0xff] %v7514
        %7579 = vst [vmem:[%s360 + $0x158] sm:$0xff] %v7515
        %7580 = vst [vmem:[%s360 + $0x160] sm:$0xff] %v7516
        %7581 = vst [vmem:[%s360 + $0x168] sm:$0xff] %v7517
        %7582 = vst [vmem:[%s360 + $0x170] sm:$0xff] %v7518
        %7583 = vst [vmem:[%s360 + $0x178] sm:$0xff] %v7519
        %7584 = vst [vmem:[%s360 + $0x180] sm:$0xff] %v7520
        %7585 = vst [vmem:[%s360 + $0x188] sm:$0xff] %v7521
        %7586 = vst [vmem:[%s360 + $0x190] sm:$0xff] %v7522
        %7587 = vst [vmem:[%s360 + $0x198] sm:$0xff] %v7523
        %7588 = vst [vmem:[%s360 + $0x1a0] sm:$0xff] %v7524
        %7589 = vst [vmem:[%s360 + $0x1a8] sm:$0xff] %v7525
        %7590 = vst [vmem:[%s360 + $0x1b0] sm:$0xff] %v7526
        %7591 = vst [vmem:[%s360 + $0x1b8] sm:$0xff] %v7527
        %7592 = vst [vmem:[%s360 + $0x1c0] sm:$0xff] %v7528
        %7593 = vst [vmem:[%s360 + $0x1c8] sm:$0xff] %v7529
        %7594 = vst [vmem:[%s360 + $0x1d0] sm:$0xff] %v7530
        %7595 = vst [vmem:[%s360 + $0x1d8] sm:$0xff] %v7531
        %7596 = vst [vmem:[%s360 + $0x1e0] sm:$0xff] %v7532
        %7597 = vst [vmem:[%s360 + $0x1e8] sm:$0xff] %v7533
        %7598 = vst [vmem:[%s360 + $0x1f0] sm:$0xff] %v7534
        %7599 = vst [vmem:[%s360 + $0x1f8] sm:$0xff] %v7535
        %s7600 = sand.u32 %s186, 1
        %s7601 = scalar_lea.sflag [#allocation4], %s7600
        %s7602 = sand.u32 %s186, 1
        %s7603 = smul.addr %s7602, 512
        %s7604 = scalar_lea.vmem [#allocation11], %s7603
        // Predicated region
        $region69: #{tpu_custom_call.1} parent=47 // pred_check
          %p7605 = pneg %p196
        $region70: #{tpu_custom_call.1} parent=47 // pred_check_branch
          %7607 = sbr.rel (%p7605) target = $region72
        $region71: #{tpu_custom_call.1} parent=47 // pred_region
          %s7608 = smul.u32 64, %s26
          %7610 = vsyncadd %s7601, 0
          %s7611 = smul.addr %s7608, 8
          %s7612 = scalar_lea.hbm %s7, %s7611
          %s7613 = sshll.u32 %s7604, 4
          %s7614 = int_to_ptr.vmem [resolvable:$true] %s7613
          %s7615 = sshll.u32 %s7612, 4
          %s7616 = int_to_ptr.hbm [resolvable:$true] %s7615
          %7621 = dma.vmem_to_hbm [thread:$0]  %s7614, 8192, %s7616, %s7601, 128, 128, 8
        $region72: #{tpu_custom_call.1} parent=47 // pred_fallthru
          _
      $region48: #{tpu_custom_call.1} parent=5 // pred_fallthru
        _
      %p7622 = scmp.le.s32.totalorder 2, %s21
      // Predicated region
      $region73: #{tpu_custom_call.1} parent=5 // pred_check
        %p7623 = pneg %p7622
      $region74: #{tpu_custom_call.1} parent=5 // pred_check_branch
        %7625 = sbr.rel (%p7623) target = $region76
      $region75: #{tpu_custom_call.1} parent=5 // pred_region
        %s7626 = ssub.s32 %s21, 2
        // Predicated region
        $region77: #{tpu_custom_call.1} parent=75 // pred_check
          %p7627 = pneg %p202
        $region78: #{tpu_custom_call.1} parent=75 // pred_check_branch
          %7629 = sbr.rel (%p7627) target = $region80
        $region79: #{tpu_custom_call.1} parent=75 // pred_region
          %s7630 = sand.u32 %s187, 1
          %s7631 = scalar_lea.sflag [#allocation4], %s7630
          %s7632 = sand.u32 %s187, 1
          %s7633 = smul.addr %s7632, 512
          %s7634 = scalar_lea.vmem [#allocation11], %s7633
          %7636 = dma.done %s7631, 8192
        $region80: #{tpu_custom_call.1} parent=75 // pred_fallthru
          _
      $region76: #{tpu_custom_call.1} parent=5 // pred_fallthru
        _
    $region6: #{tpu_custom_call.1} parent=1 // loop_footer
      %s25 = sadd.s32 1, %s21
    $region7: #{tpu_custom_call.1} parent=1 // loop_footer_branch
      %20 = sbr.rel target = $region3
    $region8: #{tpu_custom_call.1} parent=1 // loop_exit
      _
    %7637 = vsyncpa [#allocation3], 1
    %s7638 = scalar_lea.sflag [#allocation3], 1
    %7639 = vsyncpa %s7638, 1
    %7640 = vsyncpa [#allocation6], 1
    %7641 = vsyncpa [#allocation9], 1
    %7642 = vsyncpa [#allocation4], 1
    %s7643 = scalar_lea.sflag [#allocation4], 1
    %7644 = vsyncpa %s7643, 1

</llo_original>
